<compile_context>
chip_gen: v7x
topology: tpu7x:2x2x1
jax: 0.10.0
libtpu: 0.0.40
codegen_flags: <defaults>
</compile_context>

<pallas_src>
import jax
import jax.numpy as jnp
from jax import lax
from jax.experimental import pallas as pl
from jax.experimental.pallas import tpu as pltpu

# ------------------------------- config -------------------------------------
N_NODES = 16            # nodes per graph
IN_H = 8                # raw node feature dim (h)
I_DIM = 42              # FeatureAttention input dim (fixed in the module)
K_NEIGH = 3             # neighbour slots per node in c_ineigh_feature
NUM_META_PATHS = 2
NUM_NETWORKS = 2
HIDDEN_SIZE = 36
NUM_HEADS = [4, 4]      # HIDDEN_SIZE * NUM_HEADS[-1] == 144 == network_emebdding_indim
NUM_LAYERS = len(NUM_HEADS)
H = NUM_HEADS[0]        # every layer uses the same head count here
HF = HIDDEN_SIZE * H    # 144 == implicit multi-head concat width
OUT_SIZE = 4
NET_OUT = 64            # HAT.network_embedding_outdim
FEAT_HID = 16           # FeatureAttention hidden
SEM_HID = 128           # SemanticAttention hidden

VMEM_SPEC = pl.BlockSpec(memory_space=pltpu.MemorySpace.VMEM)

# Rows of the packed (rows, 128) vector table (all tiny (1,x) bias/vector leaves).
_ROW_FEAT_B1 = 0
_ROW_FEAT_W2 = 1
def _row_sem_b1(layer): return 2 + 2 * layer
def _row_sem_w2(layer): return 3 + 2 * layer
_ROW_PROJ_B = 2 + 2 * NUM_LAYERS
_ROW_NA_B1 = _ROW_PROJ_B + 1
_ROW_NA_W2 = _ROW_PROJ_B + 2
_ROW_PRED_B = _ROW_PROJ_B + 3
_N_VEC_ROWS = _ROW_PRED_B + 1


# ------------------------------ fused kernel --------------------------------
def _hat_kernel(adj_ref, h_ref, cf_ref,
                fw1_ref, gw1h_ref, gw1c_ref, gw2_ref,
                al_ref, ar_ref, gb_ref, sw1_ref,
                pw_ref, nw1_ref, prw_ref, vec_ref, out_ref):
    f32 = jnp.float32

    def vrow(i, width=SEM_HID):
        # one row of the packed vector table, first `width` lanes
        return vec_ref[i:i + 1, 0:width]                     # (1, width)

    # Per-head lane masks over the 144-wide multi-head concat (built once,
    # reused by every GAT aggregation; avoids unaligned lane slices/concat).
    lane = lax.broadcasted_iota(jnp.int32, (1, HF), 1)
    head_mask = [(lane >= hd * HIDDEN_SIZE) & (lane < (hd + 1) * HIDDEN_SIZE)
                 for hd in range(H)]

    # ---------------- FeatureAttention (shared by both networks) ------------
    cf = cf_ref[...]                                          # (K*N, 42)
    hk = jnp.tanh(jnp.dot(cf, fw1_ref[...], preferred_element_type=f32)
                  + vrow(_ROW_FEAT_B1, FEAT_HID))             # (K*N, 16), 1 matmul
    s_all = jnp.sum(hk * vrow(_ROW_FEAT_W2, FEAT_HID), axis=1, keepdims=True)
    s = [s_all[k * N_NODES:(k + 1) * N_NODES, :] for k in range(K_NEIGH)]
    smax = s[0]
    for k in range(1, K_NEIGH):
        smax = jnp.maximum(smax, s[k])
    ps = [jnp.exp(sk - smax) for sk in s]
    denom = ps[0]
    for k in range(1, K_NEIGH):
        denom = denom + ps[k]
    inv = pl.reciprocal(denom, approx=True)
    c_emb = None
    for k in range(K_NEIGH):
        zk = cf[k * N_NODES:(k + 1) * N_NODES, :]             # (N, 42)
        t = (ps[k] * inv) * zk
        c_emb = t if c_emb is None else c_emb + t             # (N, 42)

    h_raw = h_ref[...]                                        # (N, 8)

    # ---------------- dense-masked DGL GATConv (eval mode) ------------------
    def gat_conv(zh, lm_idx, adj_dst_src):
        # zh: (N, 144) head-batched projected features (implicit head concat)
        # el[h, src] for all heads at once (block-expanded attn_l, (H,144)):
        el = lax.dot_general(al_ref[lm_idx], zh, (((1,), (1,)), ((), ())),
                             preferred_element_type=f32)      # (H, N)
        # er[dst, h] for all heads at once (block-expanded attn_r, (144,H)):
        er = jnp.dot(zh, ar_ref[lm_idx], preferred_element_type=f32)  # (N, H)
        edge = adj_dst_src > 0.5                              # (N, N), [dst, src]
        rst = gb_ref[lm_idx]                                  # (1, 144) bias
        for hd in range(H):
            # e[dst, src] = leaky_relu(el[src] + er[dst]); softmax over src
            # (lane axis) per destination row.
            e = er[:, hd:hd + 1] + el[hd:hd + 1, :]           # (N, N)
            e = jnp.where(e >= 0, e, 0.2 * e)                 # LeakyReLU(0.2)
            e = jnp.where(edge, e, jnp.float32(-1e30))
            m = jnp.max(e, axis=-1, keepdims=True)            # per-dst (self-loops
            p = jnp.where(edge, jnp.exp(e - m), 0.0)          #  guarantee finite m)
            alpha = p * pl.reciprocal(jnp.sum(p, axis=-1, keepdims=True),
                                      approx=True)
            # Aggregate only this head's 36-wide block of zh via a lane mask
            # (no lane slicing / concat; result lands in the right lanes).
            zh_h = jnp.where(head_mask[hd], zh, 0.0)          # (N, 144)
            rst = rst + jnp.dot(alpha, zh_h, preferred_element_type=f32)
        # bias already folded into rst init; ELU activation:
        return jnp.where(rst > 0, rst, jnp.exp(jnp.minimum(rst, 0.0)) - 1.0)

    # ---------------- semantic / network attention (shared structure) -------
    def attention_pool(z_list, w1, b1, w2):
        ws = []
        for z in z_list:
            hm = jnp.tanh(jnp.dot(z, w1, preferred_element_type=f32) + b1)
            ws.append(jnp.mean(jnp.sum(hm * w2, axis=1, keepdims=True)))  # scalar
        wmax = ws[0]
        for w in ws[1:]:
            wmax = jnp.maximum(wmax, w)
        es = [jnp.exp(w - wmax) for w in ws]
        den = es[0]
        for e in es[1:]:
            den = den + e
        inv_d = 1.0 / den
        out = (es[0] * inv_d) * z_list[0]
        for i in range(1, len(z_list)):
            out = out + (es[i] * inv_d) * z_list[i]
        return out

    # ---------------- per-network HAN backbone + project ---------------------
    net_embs = []
    for net in range(NUM_NETWORKS):
        x = None
        for layer in range(NUM_LAYERS):
            z_mps = []
            for mp in range(NUM_META_PATHS):
                if layer == 0:
                    # input = cat(h_raw, c_emb) kept implicit: two matmuls
                    # against the split (8,144)/(42,144) weight stacks.
                    zh = (jnp.dot(h_raw, gw1h_ref[mp], preferred_element_type=f32)
                          + jnp.dot(c_emb, gw1c_ref[mp], preferred_element_type=f32))
                else:
                    zh = jnp.dot(x, gw2_ref[(layer - 1) * NUM_META_PATHS + mp],
                                 preferred_element_type=f32)   # (16,144)x(144,144)
                z_mps.append(gat_conv(zh, layer * NUM_META_PATHS + mp,
                                      adj_ref[net * NUM_META_PATHS + mp]))
            x = attention_pool(z_mps, sw1_ref[layer],
                               vrow(_row_sem_b1(layer)), vrow(_row_sem_w2(layer)))
        # HAT.project: Linear(144 -> 64)
        net_embs.append(jnp.dot(x, pw_ref[...], preferred_element_type=f32)
                        + vrow(_ROW_PROJ_B, NET_OUT))          # (16, 64)

    # ---------------- network-level attention + predict ----------------------
    g = attention_pool(net_embs, nw1_ref[...], vrow(_ROW_NA_B1), vrow(_ROW_NA_W2))
    out_ref[...] = (jnp.dot(g, prw_ref[...], preferred_element_type=f32)
                    + vrow(_ROW_PRED_B, OUT_SIZE))             # (16, 4)


# ------------------------------ parameters ----------------------------------
def init_params(key):
    keys = iter(jax.random.split(key, 256))

    def nrm(shape, scale=0.1):
        return scale * jax.random.normal(next(keys), shape, jnp.float32)

    L, MP = NUM_LAYERS, NUM_META_PATHS

    def block_expand(a):
        # (H, F) per-head attention vector -> (H, H*F) block matrix so that
        # head h's logit only sees head h's 36 feature lanes.
        out = jnp.zeros((H, HF), jnp.float32)
        for hd in range(H):
            out = out.at[hd, hd * HIDDEN_SIZE:(hd + 1) * HIDDEN_SIZE].set(a[hd])
        return out

    attn_l = jnp.stack([block_expand(nrm((H, HIDDEN_SIZE)))
                        for _ in range(L * MP)])               # (L*MP, H, 144)
    attn_r = jnp.stack([block_expand(nrm((H, HIDDEN_SIZE))).T
                        for _ in range(L * MP)])               # (L*MP, 144, H)
    gat_b = nrm((L * MP, 1, HF))                               # per-head bias, flat

    def pad_row(v):
        row = jnp.zeros((1, 128), jnp.float32)
        return row.at[0, :v.shape[0]].set(v)

    vec_rows = [nrm((FEAT_HID,)), nrm((FEAT_HID,))]            # feat b1, feat w2
    for _ in range(L):
        vec_rows += [nrm((SEM_HID,)), nrm((SEM_HID,))]         # sem b1, sem w2
    vec_rows += [nrm((NET_OUT,)),                              # proj bias
                 nrm((SEM_HID,)), nrm((SEM_HID,)),             # net-att b1, w2
                 nrm((OUT_SIZE,))]                             # predict bias
    assert len(vec_rows) == _N_VEC_ROWS
    vecs = jnp.concatenate([pad_row(v) for v in vec_rows], axis=0)  # (10, 128)

    return {
        "feat_w1": nrm((I_DIM, FEAT_HID)),          # FeatureAttention Linear(42,16)
        "gat_w1_h": nrm((MP, IN_H, HF)),            # layer-0 GAT weight, h piece
        "gat_w1_c": nrm((MP, I_DIM, HF)),           # layer-0 GAT weight, c_emb piece
        "gat_w2": nrm(((L - 1) * MP, HF, HF)),      # layer>=1 GAT weights (144,144)
        "attn_l": attn_l, "attn_r": attn_r, "gat_b": gat_b,
        "sem_w1": nrm((L, HF, SEM_HID)),            # semantic attention Linear(144,128)
        "proj_w": nrm((HF, NET_OUT)),               # HAT.project Linear(144,64)
        "na_w1": nrm((NET_OUT, SEM_HID)),           # network attention Linear(64,128)
        "pred_w": nrm((NET_OUT, OUT_SIZE)),         # HAT.predict Linear(64,4)
        "vecs": vecs,
    }


# ------------------------------- wrapper -------------------------------------
def hat_forward(adj, h, c_feat, params):
    """adj[net, mp, src, dst] = 1.0 for edge src->dst (self-loops included);
    h: (N, IN_H); c_feat: (N, K_NEIGH, I_DIM)."""
    # [dst, src] orientation so GAT softmax reductions are along lanes.
    adj_ds = jnp.swapaxes(adj, -1, -2).reshape(
        NUM_NETWORKS * NUM_META_PATHS, N_NODES, N_NODES)
    # flatten neighbour slots onto sublanes: one (48,42) FeatureAttention matmul
    cf = jnp.transpose(c_feat, (1, 0, 2)).reshape(K_NEIGH * N_NODES, I_DIM)

    args = (adj_ds, h, cf,
            params["feat_w1"], params["gat_w1_h"], params["gat_w1_c"],
            params["gat_w2"], params["attn_l"], params["attn_r"],
            params["gat_b"], params["sem_w1"], params["proj_w"],
            params["na_w1"], params["pred_w"], params["vecs"])

    return pl.pallas_call(
        _hat_kernel,
        out_shape=jax.ShapeDtypeStruct((N_NODES, OUT_SIZE), jnp.float32),
        in_specs=[VMEM_SPEC] * len(args),
        out_specs=VMEM_SPEC,
    )(*args)


# --------------------------------- main ---------------------------------------
if __name__ == "__main__":
    key = jax.random.PRNGKey(0)
    k_par, k_h, k_c, k_adj = jax.random.split(key, 4)

    params = init_params(k_par)

    h = jax.random.normal(k_h, (N_NODES, IN_H), jnp.float32)
    c_ineigh_feature = jax.random.normal(k_c, (N_NODES, K_NEIGH, I_DIM),
                                         jnp.float32)

    # random adjacency with self-loops, one graph per (network, metapath)
    bern = (jax.random.uniform(
        k_adj, (NUM_NETWORKS, NUM_META_PATHS, N_NODES, N_NODES)) < 0.35
            ).astype(jnp.float32)
    eye = jnp.eye(N_NODES, dtype=jnp.float32)[None, None]
    adj = jnp.maximum(bern, eye)

    fwd = jax.jit(hat_forward)
    out = jax.block_until_ready(fwd(adj, h, c_ineigh_feature, params))

    assert out.shape == (N_NODES, OUT_SIZE), out.shape
    assert bool(jnp.all(jnp.isfinite(out)))
    print("KERNEL_OK")
</pallas_src>

<mosaic_0001>
module attributes {stable_mosaic.version = 11 : i64} {
  func.func @_hat_kernel(%arg0: memref<4x16x16xf32, #tpu.memory_space<vmem>>, %arg1: memref<16x8xf32, #tpu.memory_space<vmem>>, %arg2: memref<48x42xf32, #tpu.memory_space<vmem>>, %arg3: memref<42x16xf32, #tpu.memory_space<vmem>>, %arg4: memref<2x8x144xf32, #tpu.memory_space<vmem>>, %arg5: memref<2x42x144xf32, #tpu.memory_space<vmem>>, %arg6: memref<2x144x144xf32, #tpu.memory_space<vmem>>, %arg7: memref<4x4x144xf32, #tpu.memory_space<vmem>>, %arg8: memref<4x144x4xf32, #tpu.memory_space<vmem>>, %arg9: memref<4x1x144xf32, #tpu.memory_space<vmem>>, %arg10: memref<2x144x128xf32, #tpu.memory_space<vmem>>, %arg11: memref<144x64xf32, #tpu.memory_space<vmem>>, %arg12: memref<64x128xf32, #tpu.memory_space<vmem>>, %arg13: memref<64x4xf32, #tpu.memory_space<vmem>>, %arg14: memref<10x128xf32, #tpu.memory_space<vmem>>, %arg15: memref<16x4xf32, #tpu.memory_space<vmem>>) attributes {dimension_semantics = [], scalar_prefetch = 0 : i64, scratch_operands = 0 : i64, tpu.core_type = #tpu.core_type<tc>} {
    %0 = tpu.iota {dimensions = array<i32: 1>} : vector<1x144xi32>
    %c0_i32 = arith.constant 0 : i32
    %1 = vector.broadcast %c0_i32 : i32 to vector<1x144xi32>
    %2 = arith.cmpi sge, %0, %1 : vector<1x144xi32>
    %c36_i32 = arith.constant 36 : i32
    %3 = vector.broadcast %c36_i32 : i32 to vector<1x144xi32>
    %4 = arith.cmpi slt, %0, %3 : vector<1x144xi32>
    %5 = arith.andi %2, %4 : vector<1x144xi1>
    %c36_i32_0 = arith.constant 36 : i32
    %6 = vector.broadcast %c36_i32_0 : i32 to vector<1x144xi32>
    %7 = arith.cmpi sge, %0, %6 : vector<1x144xi32>
    %c72_i32 = arith.constant 72 : i32
    %8 = vector.broadcast %c72_i32 : i32 to vector<1x144xi32>
    %9 = arith.cmpi slt, %0, %8 : vector<1x144xi32>
    %10 = arith.andi %7, %9 : vector<1x144xi1>
    %c72_i32_1 = arith.constant 72 : i32
    %11 = vector.broadcast %c72_i32_1 : i32 to vector<1x144xi32>
    %12 = arith.cmpi sge, %0, %11 : vector<1x144xi32>
    %c108_i32 = arith.constant 108 : i32
    %13 = vector.broadcast %c108_i32 : i32 to vector<1x144xi32>
    %14 = arith.cmpi slt, %0, %13 : vector<1x144xi32>
    %15 = arith.andi %12, %14 : vector<1x144xi1>
    %c108_i32_2 = arith.constant 108 : i32
    %16 = vector.broadcast %c108_i32_2 : i32 to vector<1x144xi32>
    %17 = arith.cmpi sge, %0, %16 : vector<1x144xi32>
    %c144_i32 = arith.constant 144 : i32
    %18 = vector.broadcast %c144_i32 : i32 to vector<1x144xi32>
    %19 = arith.cmpi slt, %0, %18 : vector<1x144xi32>
    %20 = arith.andi %17, %19 : vector<1x144xi1>
    %c0 = arith.constant 0 : index
    %c0_3 = arith.constant 0 : index
    %21 = vector.load %arg2[%c0, %c0_3] : memref<48x42xf32, #tpu.memory_space<vmem>>, vector<48x42xf32>
    %c0_4 = arith.constant 0 : index
    %c0_5 = arith.constant 0 : index
    %22 = vector.load %arg3[%c0_4, %c0_5] : memref<42x16xf32, #tpu.memory_space<vmem>>, vector<42x16xf32>
    %cst = arith.constant dense<0.000000e+00> : vector<48x16xf32>
    %23 = tpu.matmul %21, %22, %cst {dimension_numbers = #tpu.dot_dimension_numbers<[1], [0], [0], [1], [0, 0, 1, 1], [], []>} : vector<48x42xf32>, vector<42x16xf32>, vector<48x16xf32> -> vector<48x16xf32>
    %c0_6 = arith.constant 0 : index
    %c0_7 = arith.constant 0 : index
    %24 = vector.load %arg14[%c0_6, %c0_7] : memref<10x128xf32, #tpu.memory_space<vmem>>, vector<1x16xf32>
    %25 = vector.broadcast %24 : vector<1x16xf32> to vector<48x16xf32>
    %26 = arith.addf %23, %25 : vector<48x16xf32>
    %27 = math.tanh %26 : vector<48x16xf32>
    %c1 = arith.constant 1 : index
    %c0_8 = arith.constant 0 : index
    %28 = vector.load %arg14[%c1, %c0_8] : memref<10x128xf32, #tpu.memory_space<vmem>>, vector<1x16xf32>
    %29 = vector.broadcast %28 : vector<1x16xf32> to vector<48x16xf32>
    %30 = arith.mulf %27, %29 : vector<48x16xf32>
    %cst_9 = arith.constant dense<0.000000e+00> : vector<48xf32>
    %31 = vector.multi_reduction <add>, %30, %cst_9 [1] : vector<48x16xf32> to vector<48xf32>
    %32 = vector.shape_cast %31 : vector<48xf32> to vector<48x1xf32>
    %33 = vector.extract_strided_slice %32 {offsets = [0, 0], sizes = [16, 1], strides = [1, 1]} : vector<48x1xf32> to vector<16x1xf32>
    %34 = vector.extract_strided_slice %32 {offsets = [16, 0], sizes = [16, 1], strides = [1, 1]} : vector<48x1xf32> to vector<16x1xf32>
    %35 = vector.extract_strided_slice %32 {offsets = [32, 0], sizes = [16, 1], strides = [1, 1]} : vector<48x1xf32> to vector<16x1xf32>
    %36 = arith.maximumf %33, %34 : vector<16x1xf32>
    %37 = arith.maximumf %36, %35 : vector<16x1xf32>
    %38 = arith.subf %33, %37 : vector<16x1xf32>
    %39 = math.exp %38 : vector<16x1xf32>
    %40 = arith.subf %34, %37 : vector<16x1xf32>
    %41 = math.exp %40 : vector<16x1xf32>
    %42 = arith.subf %35, %37 : vector<16x1xf32>
    %43 = math.exp %42 : vector<16x1xf32>
    %44 = arith.addf %39, %41 : vector<16x1xf32>
    %45 = arith.addf %44, %43 : vector<16x1xf32>
    %46 = tpu.reciprocal %45 {approx = true} : vector<16x1xf32> -> vector<16x1xf32>
    %47 = vector.extract_strided_slice %21 {offsets = [0, 0], sizes = [16, 42], strides = [1, 1]} : vector<48x42xf32> to vector<16x42xf32>
    %48 = arith.mulf %39, %46 : vector<16x1xf32>
    %49 = vector.broadcast %48 : vector<16x1xf32> to vector<16x42xf32>
    %50 = arith.mulf %49, %47 : vector<16x42xf32>
    %51 = vector.extract_strided_slice %21 {offsets = [16, 0], sizes = [16, 42], strides = [1, 1]} : vector<48x42xf32> to vector<16x42xf32>
    %52 = arith.mulf %41, %46 : vector<16x1xf32>
    %53 = vector.broadcast %52 : vector<16x1xf32> to vector<16x42xf32>
    %54 = arith.mulf %53, %51 : vector<16x42xf32>
    %55 = arith.addf %50, %54 : vector<16x42xf32>
    %56 = vector.extract_strided_slice %21 {offsets = [32, 0], sizes = [16, 42], strides = [1, 1]} : vector<48x42xf32> to vector<16x42xf32>
    %57 = arith.mulf %43, %46 : vector<16x1xf32>
    %58 = vector.broadcast %57 : vector<16x1xf32> to vector<16x42xf32>
    %59 = arith.mulf %58, %56 : vector<16x42xf32>
    %60 = arith.addf %55, %59 : vector<16x42xf32>
    %c0_10 = arith.constant 0 : index
    %c0_11 = arith.constant 0 : index
    %61 = vector.load %arg1[%c0_10, %c0_11] : memref<16x8xf32, #tpu.memory_space<vmem>>, vector<16x8xf32>
    %c0_12 = arith.constant 0 : index
    %c0_13 = arith.constant 0 : index
    %c0_14 = arith.constant 0 : index
    %62 = vector.load %arg4[%c0_12, %c0_13, %c0_14] : memref<2x8x144xf32, #tpu.memory_space<vmem>>, vector<1x8x144xf32>
    %63 = vector.shape_cast %62 : vector<1x8x144xf32> to vector<8x144xf32>
    %cst_15 = arith.constant dense<0.000000e+00> : vector<16x144xf32>
    %64 = tpu.matmul %61, %63, %cst_15 {dimension_numbers = #tpu.dot_dimension_numbers<[1], [0], [0], [1], [0, 0, 1, 1], [], []>} : vector<16x8xf32>, vector<8x144xf32>, vector<16x144xf32> -> vector<16x144xf32>
    %c0_16 = arith.constant 0 : index
    %c0_17 = arith.constant 0 : index
    %c0_18 = arith.constant 0 : index
    %65 = vector.load %arg5[%c0_16, %c0_17, %c0_18] : memref<2x42x144xf32, #tpu.memory_space<vmem>>, vector<1x42x144xf32>
    %66 = vector.shape_cast %65 : vector<1x42x144xf32> to vector<42x144xf32>
    %cst_19 = arith.constant dense<0.000000e+00> : vector<16x144xf32>
    %67 = tpu.matmul %60, %66, %cst_19 {dimension_numbers = #tpu.dot_dimension_numbers<[1], [0], [0], [1], [0, 0, 1, 1], [], []>} : vector<16x42xf32>, vector<42x144xf32>, vector<16x144xf32> -> vector<16x144xf32>
    %68 = arith.addf %64, %67 : vector<16x144xf32>
    %c0_20 = arith.constant 0 : index
    %c0_21 = arith.constant 0 : index
    %c0_22 = arith.constant 0 : index
    %69 = vector.load %arg0[%c0_20, %c0_21, %c0_22] : memref<4x16x16xf32, #tpu.memory_space<vmem>>, vector<1x16x16xf32>
    %70 = vector.shape_cast %69 : vector<1x16x16xf32> to vector<16x16xf32>
    %c0_23 = arith.constant 0 : index
    %c0_24 = arith.constant 0 : index
    %c0_25 = arith.constant 0 : index
    %71 = vector.load %arg7[%c0_23, %c0_24, %c0_25] : memref<4x4x144xf32, #tpu.memory_space<vmem>>, vector<1x4x144xf32>
    %72 = vector.shape_cast %71 : vector<1x4x144xf32> to vector<4x144xf32>
    %cst_26 = arith.constant dense<0.000000e+00> : vector<4x16xf32>
    %73 = tpu.matmul %72, %68, %cst_26 {dimension_numbers = #tpu.dot_dimension_numbers<[1], [1], [0], [0], [0, 0, 1, 0], [], []>} : vector<4x144xf32>, vector<16x144xf32>, vector<4x16xf32> -> vector<4x16xf32>
    %c0_27 = arith.constant 0 : index
    %c0_28 = arith.constant 0 : index
    %c0_29 = arith.constant 0 : index
    %74 = vector.load %arg8[%c0_27, %c0_28, %c0_29] : memref<4x144x4xf32, #tpu.memory_space<vmem>>, vector<1x144x4xf32>
    %75 = vector.shape_cast %74 : vector<1x144x4xf32> to vector<144x4xf32>
    %cst_30 = arith.constant dense<0.000000e+00> : vector<16x4xf32>
    %76 = tpu.matmul %68, %75, %cst_30 {dimension_numbers = #tpu.dot_dimension_numbers<[1], [0], [0], [1], [0, 0, 1, 1], [], []>} : vector<16x144xf32>, vector<144x4xf32>, vector<16x4xf32> -> vector<16x4xf32>
    %cst_31 = arith.constant 5.000000e-01 : f32
    %77 = vector.broadcast %cst_31 : f32 to vector<16x16xf32>
    %78 = arith.cmpf ogt, %70, %77 : vector<16x16xf32>
    %c0_32 = arith.constant 0 : index
    %c0_33 = arith.constant 0 : index
    %c0_34 = arith.constant 0 : index
    %79 = vector.load %arg9[%c0_32, %c0_33, %c0_34] : memref<4x1x144xf32, #tpu.memory_space<vmem>>, vector<1x1x144xf32>
    %80 = vector.shape_cast %79 : vector<1x1x144xf32> to vector<1x144xf32>
    %81 = vector.extract_strided_slice %76 {offsets = [0, 0], sizes = [16, 1], strides = [1, 1]} : vector<16x4xf32> to vector<16x1xf32>
    %82 = vector.extract_strided_slice %73 {offsets = [0, 0], sizes = [1, 16], strides = [1, 1]} : vector<4x16xf32> to vector<1x16xf32>
    %83 = vector.broadcast %81 : vector<16x1xf32> to vector<16x16xf32>
    %84 = vector.broadcast %82 : vector<1x16xf32> to vector<16x16xf32>
    %85 = arith.addf %83, %84 : vector<16x16xf32>
    %cst_35 = arith.constant 0.000000e+00 : f32
    %86 = vector.broadcast %cst_35 : f32 to vector<16x16xf32>
    %87 = arith.cmpf oge, %85, %86 : vector<16x16xf32>
    %cst_36 = arith.constant 2.000000e-01 : f32
    %88 = vector.broadcast %cst_36 : f32 to vector<16x16xf32>
    %89 = arith.mulf %88, %85 : vector<16x16xf32>
    %90 = arith.select %87, %85, %89 : vector<16x16xi1>, vector<16x16xf32>
    %cst_37 = arith.constant -1.000000e+30 : f32
    %91 = vector.broadcast %cst_37 : f32 to vector<16x16xf32>
    %92 = arith.select %78, %90, %91 : vector<16x16xi1>, vector<16x16xf32>
    %cst_38 = arith.constant dense<0xFF800000> : vector<16xf32>
    %93 = vector.multi_reduction <maximumf>, %92, %cst_38 [1] : vector<16x16xf32> to vector<16xf32>
    %94 = vector.shape_cast %93 : vector<16xf32> to vector<16x1xf32>
    %95 = vector.broadcast %94 : vector<16x1xf32> to vector<16x16xf32>
    %96 = arith.subf %92, %95 : vector<16x16xf32>
    %97 = math.exp %96 : vector<16x16xf32>
    %cst_39 = arith.constant 0.000000e+00 : f32
    %98 = vector.broadcast %cst_39 : f32 to vector<16x16xf32>
    %99 = arith.select %78, %97, %98 : vector<16x16xi1>, vector<16x16xf32>
    %cst_40 = arith.constant dense<0.000000e+00> : vector<16xf32>
    %100 = vector.multi_reduction <add>, %99, %cst_40 [1] : vector<16x16xf32> to vector<16xf32>
    %101 = vector.shape_cast %100 : vector<16xf32> to vector<16x1xf32>
    %102 = tpu.reciprocal %101 {approx = true} : vector<16x1xf32> -> vector<16x1xf32>
    %103 = vector.broadcast %102 : vector<16x1xf32> to vector<16x16xf32>
    %104 = arith.mulf %99, %103 : vector<16x16xf32>
    %cst_41 = arith.constant 0.000000e+00 : f32
    %105 = vector.shape_cast %5 : vector<1x144xi1> to vector<1x144xi1>
    %106 = vector.broadcast %105 : vector<1x144xi1> to vector<16x144xi1>
    %107 = vector.broadcast %cst_41 : f32 to vector<16x144xf32>
    %108 = arith.select %106, %68, %107 : vector<16x144xi1>, vector<16x144xf32>
    %cst_42 = arith.constant dense<0.000000e+00> : vector<16x144xf32>
    %109 = tpu.matmul %104, %108, %cst_42 {dimension_numbers = #tpu.dot_dimension_numbers<[1], [0], [0], [1], [0, 0, 1, 1], [], []>} : vector<16x16xf32>, vector<16x144xf32>, vector<16x144xf32> -> vector<16x144xf32>
    %110 = vector.broadcast %80 : vector<1x144xf32> to vector<16x144xf32>
    %111 = arith.addf %110, %109 : vector<16x144xf32>
    %112 = vector.extract_strided_slice %76 {offsets = [0, 1], sizes = [16, 1], strides = [1, 1]} : vector<16x4xf32> to vector<16x1xf32>
    %113 = vector.extract_strided_slice %73 {offsets = [1, 0], sizes = [1, 16], strides = [1, 1]} : vector<4x16xf32> to vector<1x16xf32>
    %114 = vector.broadcast %112 : vector<16x1xf32> to vector<16x16xf32>
    %115 = vector.broadcast %113 : vector<1x16xf32> to vector<16x16xf32>
    %116 = arith.addf %114, %115 : vector<16x16xf32>
    %cst_43 = arith.constant 0.000000e+00 : f32
    %117 = vector.broadcast %cst_43 : f32 to vector<16x16xf32>
    %118 = arith.cmpf oge, %116, %117 : vector<16x16xf32>
    %cst_44 = arith.constant 2.000000e-01 : f32
    %119 = vector.broadcast %cst_44 : f32 to vector<16x16xf32>
    %120 = arith.mulf %119, %116 : vector<16x16xf32>
    %121 = arith.select %118, %116, %120 : vector<16x16xi1>, vector<16x16xf32>
    %cst_45 = arith.constant -1.000000e+30 : f32
    %122 = vector.broadcast %cst_45 : f32 to vector<16x16xf32>
    %123 = arith.select %78, %121, %122 : vector<16x16xi1>, vector<16x16xf32>
    %cst_46 = arith.constant dense<0xFF800000> : vector<16xf32>
    %124 = vector.multi_reduction <maximumf>, %123, %cst_46 [1] : vector<16x16xf32> to vector<16xf32>
    %125 = vector.shape_cast %124 : vector<16xf32> to vector<16x1xf32>
    %126 = vector.broadcast %125 : vector<16x1xf32> to vector<16x16xf32>
    %127 = arith.subf %123, %126 : vector<16x16xf32>
    %128 = math.exp %127 : vector<16x16xf32>
    %cst_47 = arith.constant 0.000000e+00 : f32
    %129 = vector.broadcast %cst_47 : f32 to vector<16x16xf32>
    %130 = arith.select %78, %128, %129 : vector<16x16xi1>, vector<16x16xf32>
    %cst_48 = arith.constant dense<0.000000e+00> : vector<16xf32>
    %131 = vector.multi_reduction <add>, %130, %cst_48 [1] : vector<16x16xf32> to vector<16xf32>
    %132 = vector.shape_cast %131 : vector<16xf32> to vector<16x1xf32>
    %133 = tpu.reciprocal %132 {approx = true} : vector<16x1xf32> -> vector<16x1xf32>
    %134 = vector.broadcast %133 : vector<16x1xf32> to vector<16x16xf32>
    %135 = arith.mulf %130, %134 : vector<16x16xf32>
    %cst_49 = arith.constant 0.000000e+00 : f32
    %136 = vector.shape_cast %10 : vector<1x144xi1> to vector<1x144xi1>
    %137 = vector.broadcast %136 : vector<1x144xi1> to vector<16x144xi1>
    %138 = vector.broadcast %cst_49 : f32 to vector<16x144xf32>
    %139 = arith.select %137, %68, %138 : vector<16x144xi1>, vector<16x144xf32>
    %cst_50 = arith.constant dense<0.000000e+00> : vector<16x144xf32>
    %140 = tpu.matmul %135, %139, %cst_50 {dimension_numbers = #tpu.dot_dimension_numbers<[1], [0], [0], [1], [0, 0, 1, 1], [], []>} : vector<16x16xf32>, vector<16x144xf32>, vector<16x144xf32> -> vector<16x144xf32>
    %141 = arith.addf %111, %140 : vector<16x144xf32>
    %142 = vector.extract_strided_slice %76 {offsets = [0, 2], sizes = [16, 1], strides = [1, 1]} : vector<16x4xf32> to vector<16x1xf32>
    %143 = vector.extract_strided_slice %73 {offsets = [2, 0], sizes = [1, 16], strides = [1, 1]} : vector<4x16xf32> to vector<1x16xf32>
    %144 = vector.broadcast %142 : vector<16x1xf32> to vector<16x16xf32>
    %145 = vector.broadcast %143 : vector<1x16xf32> to vector<16x16xf32>
    %146 = arith.addf %144, %145 : vector<16x16xf32>
    %cst_51 = arith.constant 0.000000e+00 : f32
    %147 = vector.broadcast %cst_51 : f32 to vector<16x16xf32>
    %148 = arith.cmpf oge, %146, %147 : vector<16x16xf32>
    %cst_52 = arith.constant 2.000000e-01 : f32
    %149 = vector.broadcast %cst_52 : f32 to vector<16x16xf32>
    %150 = arith.mulf %149, %146 : vector<16x16xf32>
    %151 = arith.select %148, %146, %150 : vector<16x16xi1>, vector<16x16xf32>
    %cst_53 = arith.constant -1.000000e+30 : f32
    %152 = vector.broadcast %cst_53 : f32 to vector<16x16xf32>
    %153 = arith.select %78, %151, %152 : vector<16x16xi1>, vector<16x16xf32>
    %cst_54 = arith.constant dense<0xFF800000> : vector<16xf32>
    %154 = vector.multi_reduction <maximumf>, %153, %cst_54 [1] : vector<16x16xf32> to vector<16xf32>
    %155 = vector.shape_cast %154 : vector<16xf32> to vector<16x1xf32>
    %156 = vector.broadcast %155 : vector<16x1xf32> to vector<16x16xf32>
    %157 = arith.subf %153, %156 : vector<16x16xf32>
    %158 = math.exp %157 : vector<16x16xf32>
    %cst_55 = arith.constant 0.000000e+00 : f32
    %159 = vector.broadcast %cst_55 : f32 to vector<16x16xf32>
    %160 = arith.select %78, %158, %159 : vector<16x16xi1>, vector<16x16xf32>
    %cst_56 = arith.constant dense<0.000000e+00> : vector<16xf32>
    %161 = vector.multi_reduction <add>, %160, %cst_56 [1] : vector<16x16xf32> to vector<16xf32>
    %162 = vector.shape_cast %161 : vector<16xf32> to vector<16x1xf32>
    %163 = tpu.reciprocal %162 {approx = true} : vector<16x1xf32> -> vector<16x1xf32>
    %164 = vector.broadcast %163 : vector<16x1xf32> to vector<16x16xf32>
    %165 = arith.mulf %160, %164 : vector<16x16xf32>
    %cst_57 = arith.constant 0.000000e+00 : f32
    %166 = vector.shape_cast %15 : vector<1x144xi1> to vector<1x144xi1>
    %167 = vector.broadcast %166 : vector<1x144xi1> to vector<16x144xi1>
    %168 = vector.broadcast %cst_57 : f32 to vector<16x144xf32>
    %169 = arith.select %167, %68, %168 : vector<16x144xi1>, vector<16x144xf32>
    %cst_58 = arith.constant dense<0.000000e+00> : vector<16x144xf32>
    %170 = tpu.matmul %165, %169, %cst_58 {dimension_numbers = #tpu.dot_dimension_numbers<[1], [0], [0], [1], [0, 0, 1, 1], [], []>} : vector<16x16xf32>, vector<16x144xf32>, vector<16x144xf32> -> vector<16x144xf32>
    %171 = arith.addf %141, %170 : vector<16x144xf32>
    %172 = vector.extract_strided_slice %76 {offsets = [0, 3], sizes = [16, 1], strides = [1, 1]} : vector<16x4xf32> to vector<16x1xf32>
    %173 = vector.extract_strided_slice %73 {offsets = [3, 0], sizes = [1, 16], strides = [1, 1]} : vector<4x16xf32> to vector<1x16xf32>
    %174 = vector.broadcast %172 : vector<16x1xf32> to vector<16x16xf32>
    %175 = vector.broadcast %173 : vector<1x16xf32> to vector<16x16xf32>
    %176 = arith.addf %174, %175 : vector<16x16xf32>
    %cst_59 = arith.constant 0.000000e+00 : f32
    %177 = vector.broadcast %cst_59 : f32 to vector<16x16xf32>
    %178 = arith.cmpf oge, %176, %177 : vector<16x16xf32>
    %cst_60 = arith.constant 2.000000e-01 : f32
    %179 = vector.broadcast %cst_60 : f32 to vector<16x16xf32>
    %180 = arith.mulf %179, %176 : vector<16x16xf32>
    %181 = arith.select %178, %176, %180 : vector<16x16xi1>, vector<16x16xf32>
    %cst_61 = arith.constant -1.000000e+30 : f32
    %182 = vector.broadcast %cst_61 : f32 to vector<16x16xf32>
    %183 = arith.select %78, %181, %182 : vector<16x16xi1>, vector<16x16xf32>
    %cst_62 = arith.constant dense<0xFF800000> : vector<16xf32>
    %184 = vector.multi_reduction <maximumf>, %183, %cst_62 [1] : vector<16x16xf32> to vector<16xf32>
    %185 = vector.shape_cast %184 : vector<16xf32> to vector<16x1xf32>
    %186 = vector.broadcast %185 : vector<16x1xf32> to vector<16x16xf32>
    %187 = arith.subf %183, %186 : vector<16x16xf32>
    %188 = math.exp %187 : vector<16x16xf32>
    %cst_63 = arith.constant 0.000000e+00 : f32
    %189 = vector.broadcast %cst_63 : f32 to vector<16x16xf32>
    %190 = arith.select %78, %188, %189 : vector<16x16xi1>, vector<16x16xf32>
    %cst_64 = arith.constant dense<0.000000e+00> : vector<16xf32>
    %191 = vector.multi_reduction <add>, %190, %cst_64 [1] : vector<16x16xf32> to vector<16xf32>
    %192 = vector.shape_cast %191 : vector<16xf32> to vector<16x1xf32>
    %193 = tpu.reciprocal %192 {approx = true} : vector<16x1xf32> -> vector<16x1xf32>
    %194 = vector.broadcast %193 : vector<16x1xf32> to vector<16x16xf32>
    %195 = arith.mulf %190, %194 : vector<16x16xf32>
    %cst_65 = arith.constant 0.000000e+00 : f32
    %196 = vector.shape_cast %20 : vector<1x144xi1> to vector<1x144xi1>
    %197 = vector.broadcast %196 : vector<1x144xi1> to vector<16x144xi1>
    %198 = vector.broadcast %cst_65 : f32 to vector<16x144xf32>
    %199 = arith.select %197, %68, %198 : vector<16x144xi1>, vector<16x144xf32>
    %cst_66 = arith.constant dense<0.000000e+00> : vector<16x144xf32>
    %200 = tpu.matmul %195, %199, %cst_66 {dimension_numbers = #tpu.dot_dimension_numbers<[1], [0], [0], [1], [0, 0, 1, 1], [], []>} : vector<16x16xf32>, vector<16x144xf32>, vector<16x144xf32> -> vector<16x144xf32>
    %201 = arith.addf %171, %200 : vector<16x144xf32>
    %cst_67 = arith.constant 0.000000e+00 : f32
    %202 = vector.broadcast %cst_67 : f32 to vector<16x144xf32>
    %203 = arith.cmpf ogt, %201, %202 : vector<16x144xf32>
    %cst_68 = arith.constant 0.000000e+00 : f32
    %204 = vector.broadcast %cst_68 : f32 to vector<16x144xf32>
    %205 = arith.minimumf %201, %204 : vector<16x144xf32>
    %206 = math.exp %205 : vector<16x144xf32>
    %cst_69 = arith.constant 1.000000e+00 : f32
    %207 = vector.broadcast %cst_69 : f32 to vector<16x144xf32>
    %208 = arith.subf %206, %207 : vector<16x144xf32>
    %209 = arith.select %203, %201, %208 : vector<16x144xi1>, vector<16x144xf32>
    %c1_70 = arith.constant 1 : index
    %c0_71 = arith.constant 0 : index
    %c0_72 = arith.constant 0 : index
    %210 = vector.load %arg4[%c1_70, %c0_71, %c0_72] : memref<2x8x144xf32, #tpu.memory_space<vmem>>, vector<1x8x144xf32>
    %211 = vector.shape_cast %210 : vector<1x8x144xf32> to vector<8x144xf32>
    %cst_73 = arith.constant dense<0.000000e+00> : vector<16x144xf32>
    %212 = tpu.matmul %61, %211, %cst_73 {dimension_numbers = #tpu.dot_dimension_numbers<[1], [0], [0], [1], [0, 0, 1, 1], [], []>} : vector<16x8xf32>, vector<8x144xf32>, vector<16x144xf32> -> vector<16x144xf32>
    %c1_74 = arith.constant 1 : index
    %c0_75 = arith.constant 0 : index
    %c0_76 = arith.constant 0 : index
    %213 = vector.load %arg5[%c1_74, %c0_75, %c0_76] : memref<2x42x144xf32, #tpu.memory_space<vmem>>, vector<1x42x144xf32>
    %214 = vector.shape_cast %213 : vector<1x42x144xf32> to vector<42x144xf32>
    %cst_77 = arith.constant dense<0.000000e+00> : vector<16x144xf32>
    %215 = tpu.matmul %60, %214, %cst_77 {dimension_numbers = #tpu.dot_dimension_numbers<[1], [0], [0], [1], [0, 0, 1, 1], [], []>} : vector<16x42xf32>, vector<42x144xf32>, vector<16x144xf32> -> vector<16x144xf32>
    %216 = arith.addf %212, %215 : vector<16x144xf32>
    %c1_78 = arith.constant 1 : index
    %c0_79 = arith.constant 0 : index
    %c0_80 = arith.constant 0 : index
    %217 = vector.load %arg0[%c1_78, %c0_79, %c0_80] : memref<4x16x16xf32, #tpu.memory_space<vmem>>, vector<1x16x16xf32>
    %218 = vector.shape_cast %217 : vector<1x16x16xf32> to vector<16x16xf32>
    %c1_81 = arith.constant 1 : index
    %c0_82 = arith.constant 0 : index
    %c0_83 = arith.constant 0 : index
    %219 = vector.load %arg7[%c1_81, %c0_82, %c0_83] : memref<4x4x144xf32, #tpu.memory_space<vmem>>, vector<1x4x144xf32>
    %220 = vector.shape_cast %219 : vector<1x4x144xf32> to vector<4x144xf32>
    %cst_84 = arith.constant dense<0.000000e+00> : vector<4x16xf32>
    %221 = tpu.matmul %220, %216, %cst_84 {dimension_numbers = #tpu.dot_dimension_numbers<[1], [1], [0], [0], [0, 0, 1, 0], [], []>} : vector<4x144xf32>, vector<16x144xf32>, vector<4x16xf32> -> vector<4x16xf32>
    %c1_85 = arith.constant 1 : index
    %c0_86 = arith.constant 0 : index
    %c0_87 = arith.constant 0 : index
    %222 = vector.load %arg8[%c1_85, %c0_86, %c0_87] : memref<4x144x4xf32, #tpu.memory_space<vmem>>, vector<1x144x4xf32>
    %223 = vector.shape_cast %222 : vector<1x144x4xf32> to vector<144x4xf32>
    %cst_88 = arith.constant dense<0.000000e+00> : vector<16x4xf32>
    %224 = tpu.matmul %216, %223, %cst_88 {dimension_numbers = #tpu.dot_dimension_numbers<[1], [0], [0], [1], [0, 0, 1, 1], [], []>} : vector<16x144xf32>, vector<144x4xf32>, vector<16x4xf32> -> vector<16x4xf32>
    %cst_89 = arith.constant 5.000000e-01 : f32
    %225 = vector.broadcast %cst_89 : f32 to vector<16x16xf32>
    %226 = arith.cmpf ogt, %218, %225 : vector<16x16xf32>
    %c1_90 = arith.constant 1 : index
    %c0_91 = arith.constant 0 : index
    %c0_92 = arith.constant 0 : index
    %227 = vector.load %arg9[%c1_90, %c0_91, %c0_92] : memref<4x1x144xf32, #tpu.memory_space<vmem>>, vector<1x1x144xf32>
    %228 = vector.shape_cast %227 : vector<1x1x144xf32> to vector<1x144xf32>
    %229 = vector.extract_strided_slice %224 {offsets = [0, 0], sizes = [16, 1], strides = [1, 1]} : vector<16x4xf32> to vector<16x1xf32>
    %230 = vector.extract_strided_slice %221 {offsets = [0, 0], sizes = [1, 16], strides = [1, 1]} : vector<4x16xf32> to vector<1x16xf32>
    %231 = vector.broadcast %229 : vector<16x1xf32> to vector<16x16xf32>
    %232 = vector.broadcast %230 : vector<1x16xf32> to vector<16x16xf32>
    %233 = arith.addf %231, %232 : vector<16x16xf32>
    %cst_93 = arith.constant 0.000000e+00 : f32
    %234 = vector.broadcast %cst_93 : f32 to vector<16x16xf32>
    %235 = arith.cmpf oge, %233, %234 : vector<16x16xf32>
    %cst_94 = arith.constant 2.000000e-01 : f32
    %236 = vector.broadcast %cst_94 : f32 to vector<16x16xf32>
    %237 = arith.mulf %236, %233 : vector<16x16xf32>
    %238 = arith.select %235, %233, %237 : vector<16x16xi1>, vector<16x16xf32>
    %cst_95 = arith.constant -1.000000e+30 : f32
    %239 = vector.broadcast %cst_95 : f32 to vector<16x16xf32>
    %240 = arith.select %226, %238, %239 : vector<16x16xi1>, vector<16x16xf32>
    %cst_96 = arith.constant dense<0xFF800000> : vector<16xf32>
    %241 = vector.multi_reduction <maximumf>, %240, %cst_96 [1] : vector<16x16xf32> to vector<16xf32>
    %242 = vector.shape_cast %241 : vector<16xf32> to vector<16x1xf32>
    %243 = vector.broadcast %242 : vector<16x1xf32> to vector<16x16xf32>
    %244 = arith.subf %240, %243 : vector<16x16xf32>
    %245 = math.exp %244 : vector<16x16xf32>
    %cst_97 = arith.constant 0.000000e+00 : f32
    %246 = vector.broadcast %cst_97 : f32 to vector<16x16xf32>
    %247 = arith.select %226, %245, %246 : vector<16x16xi1>, vector<16x16xf32>
    %cst_98 = arith.constant dense<0.000000e+00> : vector<16xf32>
    %248 = vector.multi_reduction <add>, %247, %cst_98 [1] : vector<16x16xf32> to vector<16xf32>
    %249 = vector.shape_cast %248 : vector<16xf32> to vector<16x1xf32>
    %250 = tpu.reciprocal %249 {approx = true} : vector<16x1xf32> -> vector<16x1xf32>
    %251 = vector.broadcast %250 : vector<16x1xf32> to vector<16x16xf32>
    %252 = arith.mulf %247, %251 : vector<16x16xf32>
    %cst_99 = arith.constant 0.000000e+00 : f32
    %253 = vector.shape_cast %5 : vector<1x144xi1> to vector<1x144xi1>
    %254 = vector.broadcast %253 : vector<1x144xi1> to vector<16x144xi1>
    %255 = vector.broadcast %cst_99 : f32 to vector<16x144xf32>
    %256 = arith.select %254, %216, %255 : vector<16x144xi1>, vector<16x144xf32>
    %cst_100 = arith.constant dense<0.000000e+00> : vector<16x144xf32>
    %257 = tpu.matmul %252, %256, %cst_100 {dimension_numbers = #tpu.dot_dimension_numbers<[1], [0], [0], [1], [0, 0, 1, 1], [], []>} : vector<16x16xf32>, vector<16x144xf32>, vector<16x144xf32> -> vector<16x144xf32>
    %258 = vector.broadcast %228 : vector<1x144xf32> to vector<16x144xf32>
    %259 = arith.addf %258, %257 : vector<16x144xf32>
    %260 = vector.extract_strided_slice %224 {offsets = [0, 1], sizes = [16, 1], strides = [1, 1]} : vector<16x4xf32> to vector<16x1xf32>
    %261 = vector.extract_strided_slice %221 {offsets = [1, 0], sizes = [1, 16], strides = [1, 1]} : vector<4x16xf32> to vector<1x16xf32>
    %262 = vector.broadcast %260 : vector<16x1xf32> to vector<16x16xf32>
    %263 = vector.broadcast %261 : vector<1x16xf32> to vector<16x16xf32>
    %264 = arith.addf %262, %263 : vector<16x16xf32>
    %cst_101 = arith.constant 0.000000e+00 : f32
    %265 = vector.broadcast %cst_101 : f32 to vector<16x16xf32>
    %266 = arith.cmpf oge, %264, %265 : vector<16x16xf32>
    %cst_102 = arith.constant 2.000000e-01 : f32
    %267 = vector.broadcast %cst_102 : f32 to vector<16x16xf32>
    %268 = arith.mulf %267, %264 : vector<16x16xf32>
    %269 = arith.select %266, %264, %268 : vector<16x16xi1>, vector<16x16xf32>
    %cst_103 = arith.constant -1.000000e+30 : f32
    %270 = vector.broadcast %cst_103 : f32 to vector<16x16xf32>
    %271 = arith.select %226, %269, %270 : vector<16x16xi1>, vector<16x16xf32>
    %cst_104 = arith.constant dense<0xFF800000> : vector<16xf32>
    %272 = vector.multi_reduction <maximumf>, %271, %cst_104 [1] : vector<16x16xf32> to vector<16xf32>
    %273 = vector.shape_cast %272 : vector<16xf32> to vector<16x1xf32>
    %274 = vector.broadcast %273 : vector<16x1xf32> to vector<16x16xf32>
    %275 = arith.subf %271, %274 : vector<16x16xf32>
    %276 = math.exp %275 : vector<16x16xf32>
    %cst_105 = arith.constant 0.000000e+00 : f32
    %277 = vector.broadcast %cst_105 : f32 to vector<16x16xf32>
    %278 = arith.select %226, %276, %277 : vector<16x16xi1>, vector<16x16xf32>
    %cst_106 = arith.constant dense<0.000000e+00> : vector<16xf32>
    %279 = vector.multi_reduction <add>, %278, %cst_106 [1] : vector<16x16xf32> to vector<16xf32>
    %280 = vector.shape_cast %279 : vector<16xf32> to vector<16x1xf32>
    %281 = tpu.reciprocal %280 {approx = true} : vector<16x1xf32> -> vector<16x1xf32>
    %282 = vector.broadcast %281 : vector<16x1xf32> to vector<16x16xf32>
    %283 = arith.mulf %278, %282 : vector<16x16xf32>
    %cst_107 = arith.constant 0.000000e+00 : f32
    %284 = vector.shape_cast %10 : vector<1x144xi1> to vector<1x144xi1>
    %285 = vector.broadcast %284 : vector<1x144xi1> to vector<16x144xi1>
    %286 = vector.broadcast %cst_107 : f32 to vector<16x144xf32>
    %287 = arith.select %285, %216, %286 : vector<16x144xi1>, vector<16x144xf32>
    %cst_108 = arith.constant dense<0.000000e+00> : vector<16x144xf32>
    %288 = tpu.matmul %283, %287, %cst_108 {dimension_numbers = #tpu.dot_dimension_numbers<[1], [0], [0], [1], [0, 0, 1, 1], [], []>} : vector<16x16xf32>, vector<16x144xf32>, vector<16x144xf32> -> vector<16x144xf32>
    %289 = arith.addf %259, %288 : vector<16x144xf32>
    %290 = vector.extract_strided_slice %224 {offsets = [0, 2], sizes = [16, 1], strides = [1, 1]} : vector<16x4xf32> to vector<16x1xf32>
    %291 = vector.extract_strided_slice %221 {offsets = [2, 0], sizes = [1, 16], strides = [1, 1]} : vector<4x16xf32> to vector<1x16xf32>
    %292 = vector.broadcast %290 : vector<16x1xf32> to vector<16x16xf32>
    %293 = vector.broadcast %291 : vector<1x16xf32> to vector<16x16xf32>
    %294 = arith.addf %292, %293 : vector<16x16xf32>
    %cst_109 = arith.constant 0.000000e+00 : f32
    %295 = vector.broadcast %cst_109 : f32 to vector<16x16xf32>
    %296 = arith.cmpf oge, %294, %295 : vector<16x16xf32>
    %cst_110 = arith.constant 2.000000e-01 : f32
    %297 = vector.broadcast %cst_110 : f32 to vector<16x16xf32>
    %298 = arith.mulf %297, %294 : vector<16x16xf32>
    %299 = arith.select %296, %294, %298 : vector<16x16xi1>, vector<16x16xf32>
    %cst_111 = arith.constant -1.000000e+30 : f32
    %300 = vector.broadcast %cst_111 : f32 to vector<16x16xf32>
    %301 = arith.select %226, %299, %300 : vector<16x16xi1>, vector<16x16xf32>
    %cst_112 = arith.constant dense<0xFF800000> : vector<16xf32>
    %302 = vector.multi_reduction <maximumf>, %301, %cst_112 [1] : vector<16x16xf32> to vector<16xf32>
    %303 = vector.shape_cast %302 : vector<16xf32> to vector<16x1xf32>
    %304 = vector.broadcast %303 : vector<16x1xf32> to vector<16x16xf32>
    %305 = arith.subf %301, %304 : vector<16x16xf32>
    %306 = math.exp %305 : vector<16x16xf32>
    %cst_113 = arith.constant 0.000000e+00 : f32
    %307 = vector.broadcast %cst_113 : f32 to vector<16x16xf32>
    %308 = arith.select %226, %306, %307 : vector<16x16xi1>, vector<16x16xf32>
    %cst_114 = arith.constant dense<0.000000e+00> : vector<16xf32>
    %309 = vector.multi_reduction <add>, %308, %cst_114 [1] : vector<16x16xf32> to vector<16xf32>
    %310 = vector.shape_cast %309 : vector<16xf32> to vector<16x1xf32>
    %311 = tpu.reciprocal %310 {approx = true} : vector<16x1xf32> -> vector<16x1xf32>
    %312 = vector.broadcast %311 : vector<16x1xf32> to vector<16x16xf32>
    %313 = arith.mulf %308, %312 : vector<16x16xf32>
    %cst_115 = arith.constant 0.000000e+00 : f32
    %314 = vector.shape_cast %15 : vector<1x144xi1> to vector<1x144xi1>
    %315 = vector.broadcast %314 : vector<1x144xi1> to vector<16x144xi1>
    %316 = vector.broadcast %cst_115 : f32 to vector<16x144xf32>
    %317 = arith.select %315, %216, %316 : vector<16x144xi1>, vector<16x144xf32>
    %cst_116 = arith.constant dense<0.000000e+00> : vector<16x144xf32>
    %318 = tpu.matmul %313, %317, %cst_116 {dimension_numbers = #tpu.dot_dimension_numbers<[1], [0], [0], [1], [0, 0, 1, 1], [], []>} : vector<16x16xf32>, vector<16x144xf32>, vector<16x144xf32> -> vector<16x144xf32>
    %319 = arith.addf %289, %318 : vector<16x144xf32>
    %320 = vector.extract_strided_slice %224 {offsets = [0, 3], sizes = [16, 1], strides = [1, 1]} : vector<16x4xf32> to vector<16x1xf32>
    %321 = vector.extract_strided_slice %221 {offsets = [3, 0], sizes = [1, 16], strides = [1, 1]} : vector<4x16xf32> to vector<1x16xf32>
    %322 = vector.broadcast %320 : vector<16x1xf32> to vector<16x16xf32>
    %323 = vector.broadcast %321 : vector<1x16xf32> to vector<16x16xf32>
    %324 = arith.addf %322, %323 : vector<16x16xf32>
    %cst_117 = arith.constant 0.000000e+00 : f32
    %325 = vector.broadcast %cst_117 : f32 to vector<16x16xf32>
    %326 = arith.cmpf oge, %324, %325 : vector<16x16xf32>
    %cst_118 = arith.constant 2.000000e-01 : f32
    %327 = vector.broadcast %cst_118 : f32 to vector<16x16xf32>
    %328 = arith.mulf %327, %324 : vector<16x16xf32>
    %329 = arith.select %326, %324, %328 : vector<16x16xi1>, vector<16x16xf32>
    %cst_119 = arith.constant -1.000000e+30 : f32
    %330 = vector.broadcast %cst_119 : f32 to vector<16x16xf32>
    %331 = arith.select %226, %329, %330 : vector<16x16xi1>, vector<16x16xf32>
    %cst_120 = arith.constant dense<0xFF800000> : vector<16xf32>
    %332 = vector.multi_reduction <maximumf>, %331, %cst_120 [1] : vector<16x16xf32> to vector<16xf32>
    %333 = vector.shape_cast %332 : vector<16xf32> to vector<16x1xf32>
    %334 = vector.broadcast %333 : vector<16x1xf32> to vector<16x16xf32>
    %335 = arith.subf %331, %334 : vector<16x16xf32>
    %336 = math.exp %335 : vector<16x16xf32>
    %cst_121 = arith.constant 0.000000e+00 : f32
    %337 = vector.broadcast %cst_121 : f32 to vector<16x16xf32>
    %338 = arith.select %226, %336, %337 : vector<16x16xi1>, vector<16x16xf32>
    %cst_122 = arith.constant dense<0.000000e+00> : vector<16xf32>
    %339 = vector.multi_reduction <add>, %338, %cst_122 [1] : vector<16x16xf32> to vector<16xf32>
    %340 = vector.shape_cast %339 : vector<16xf32> to vector<16x1xf32>
    %341 = tpu.reciprocal %340 {approx = true} : vector<16x1xf32> -> vector<16x1xf32>
    %342 = vector.broadcast %341 : vector<16x1xf32> to vector<16x16xf32>
    %343 = arith.mulf %338, %342 : vector<16x16xf32>
    %cst_123 = arith.constant 0.000000e+00 : f32
    %344 = vector.shape_cast %20 : vector<1x144xi1> to vector<1x144xi1>
    %345 = vector.broadcast %344 : vector<1x144xi1> to vector<16x144xi1>
    %346 = vector.broadcast %cst_123 : f32 to vector<16x144xf32>
    %347 = arith.select %345, %216, %346 : vector<16x144xi1>, vector<16x144xf32>
    %cst_124 = arith.constant dense<0.000000e+00> : vector<16x144xf32>
    %348 = tpu.matmul %343, %347, %cst_124 {dimension_numbers = #tpu.dot_dimension_numbers<[1], [0], [0], [1], [0, 0, 1, 1], [], []>} : vector<16x16xf32>, vector<16x144xf32>, vector<16x144xf32> -> vector<16x144xf32>
    %349 = arith.addf %319, %348 : vector<16x144xf32>
    %cst_125 = arith.constant 0.000000e+00 : f32
    %350 = vector.broadcast %cst_125 : f32 to vector<16x144xf32>
    %351 = arith.cmpf ogt, %349, %350 : vector<16x144xf32>
    %cst_126 = arith.constant 0.000000e+00 : f32
    %352 = vector.broadcast %cst_126 : f32 to vector<16x144xf32>
    %353 = arith.minimumf %349, %352 : vector<16x144xf32>
    %354 = math.exp %353 : vector<16x144xf32>
    %cst_127 = arith.constant 1.000000e+00 : f32
    %355 = vector.broadcast %cst_127 : f32 to vector<16x144xf32>
    %356 = arith.subf %354, %355 : vector<16x144xf32>
    %357 = arith.select %351, %349, %356 : vector<16x144xi1>, vector<16x144xf32>
    %c0_128 = arith.constant 0 : index
    %c0_129 = arith.constant 0 : index
    %c0_130 = arith.constant 0 : index
    %358 = vector.load %arg10[%c0_128, %c0_129, %c0_130] : memref<2x144x128xf32, #tpu.memory_space<vmem>>, vector<1x144x128xf32>
    %359 = vector.shape_cast %358 : vector<1x144x128xf32> to vector<144x128xf32>
    %c2 = arith.constant 2 : index
    %c0_131 = arith.constant 0 : index
    %360 = vector.load %arg14[%c2, %c0_131] : memref<10x128xf32, #tpu.memory_space<vmem>>, vector<1x128xf32>
    %c3 = arith.constant 3 : index
    %c0_132 = arith.constant 0 : index
    %361 = vector.load %arg14[%c3, %c0_132] : memref<10x128xf32, #tpu.memory_space<vmem>>, vector<1x128xf32>
    %cst_133 = arith.constant dense<0.000000e+00> : vector<16x128xf32>
    %362 = tpu.matmul %209, %359, %cst_133 {dimension_numbers = #tpu.dot_dimension_numbers<[1], [0], [0], [1], [0, 0, 1, 1], [], []>} : vector<16x144xf32>, vector<144x128xf32>, vector<16x128xf32> -> vector<16x128xf32>
    %363 = vector.broadcast %360 : vector<1x128xf32> to vector<16x128xf32>
    %364 = arith.addf %362, %363 : vector<16x128xf32>
    %365 = math.tanh %364 : vector<16x128xf32>
    %366 = vector.broadcast %361 : vector<1x128xf32> to vector<16x128xf32>
    %367 = arith.mulf %365, %366 : vector<16x128xf32>
    %cst_134 = arith.constant dense<0.000000e+00> : vector<16xf32>
    %368 = vector.multi_reduction <add>, %367, %cst_134 [1] : vector<16x128xf32> to vector<16xf32>
    %369 = vector.shape_cast %368 : vector<16xf32> to vector<16x1xf32>
    %370 = vector.shape_cast %369 : vector<16x1xf32> to vector<1x16x1xf32>
    %cst_135 = arith.constant dense<0.000000e+00> : vector<1xf32>
    %371 = vector.multi_reduction <add>, %370, %cst_135 [1, 2] : vector<1x16x1xf32> to vector<1xf32>
    %372 = vector.shape_cast %371 : vector<1xf32> to vector<1x1x1xf32>
    %373 = vector.extract %372[0, 0, 0] : f32 from vector<1x1x1xf32>
    %cst_136 = arith.constant 1.600000e+01 : f32
    %374 = arith.divf %373, %cst_136 : f32
    %cst_137 = arith.constant dense<0.000000e+00> : vector<16x128xf32>
    %375 = tpu.matmul %357, %359, %cst_137 {dimension_numbers = #tpu.dot_dimension_numbers<[1], [0], [0], [1], [0, 0, 1, 1], [], []>} : vector<16x144xf32>, vector<144x128xf32>, vector<16x128xf32> -> vector<16x128xf32>
    %376 = vector.broadcast %360 : vector<1x128xf32> to vector<16x128xf32>
    %377 = arith.addf %375, %376 : vector<16x128xf32>
    %378 = math.tanh %377 : vector<16x128xf32>
    %379 = vector.broadcast %361 : vector<1x128xf32> to vector<16x128xf32>
    %380 = arith.mulf %378, %379 : vector<16x128xf32>
    %cst_138 = arith.constant dense<0.000000e+00> : vector<16xf32>
    %381 = vector.multi_reduction <add>, %380, %cst_138 [1] : vector<16x128xf32> to vector<16xf32>
    %382 = vector.shape_cast %381 : vector<16xf32> to vector<16x1xf32>
    %383 = vector.shape_cast %382 : vector<16x1xf32> to vector<1x16x1xf32>
    %cst_139 = arith.constant dense<0.000000e+00> : vector<1xf32>
    %384 = vector.multi_reduction <add>, %383, %cst_139 [1, 2] : vector<1x16x1xf32> to vector<1xf32>
    %385 = vector.shape_cast %384 : vector<1xf32> to vector<1x1x1xf32>
    %386 = vector.extract %385[0, 0, 0] : f32 from vector<1x1x1xf32>
    %cst_140 = arith.constant 1.600000e+01 : f32
    %387 = arith.divf %386, %cst_140 : f32
    %388 = arith.maximumf %374, %387 : f32
    %389 = arith.subf %374, %388 : f32
    %390 = math.exp %389 : f32
    %391 = arith.subf %387, %388 : f32
    %392 = math.exp %391 : f32
    %393 = arith.addf %390, %392 : f32
    %cst_141 = arith.constant 1.000000e+00 : f32
    %394 = arith.divf %cst_141, %393 : f32
    %395 = arith.mulf %390, %394 : f32
    %396 = vector.broadcast %395 : f32 to vector<16x144xf32>
    %397 = arith.mulf %396, %209 : vector<16x144xf32>
    %398 = arith.mulf %392, %394 : f32
    %399 = vector.broadcast %398 : f32 to vector<16x144xf32>
    %400 = arith.mulf %399, %357 : vector<16x144xf32>
    %401 = arith.addf %397, %400 : vector<16x144xf32>
    %c0_142 = arith.constant 0 : index
    %c0_143 = arith.constant 0 : index
    %c0_144 = arith.constant 0 : index
    %402 = vector.load %arg6[%c0_142, %c0_143, %c0_144] : memref<2x144x144xf32, #tpu.memory_space<vmem>>, vector<1x144x144xf32>
    %403 = vector.shape_cast %402 : vector<1x144x144xf32> to vector<144x144xf32>
    %cst_145 = arith.constant dense<0.000000e+00> : vector<16x144xf32>
    %404 = tpu.matmul %401, %403, %cst_145 {dimension_numbers = #tpu.dot_dimension_numbers<[1], [0], [0], [1], [0, 0, 1, 1], [], []>} : vector<16x144xf32>, vector<144x144xf32>, vector<16x144xf32> -> vector<16x144xf32>
    %c0_146 = arith.constant 0 : index
    %c0_147 = arith.constant 0 : index
    %c0_148 = arith.constant 0 : index
    %405 = vector.load %arg0[%c0_146, %c0_147, %c0_148] : memref<4x16x16xf32, #tpu.memory_space<vmem>>, vector<1x16x16xf32>
    %406 = vector.shape_cast %405 : vector<1x16x16xf32> to vector<16x16xf32>
    %c2_149 = arith.constant 2 : index
    %c0_150 = arith.constant 0 : index
    %c0_151 = arith.constant 0 : index
    %407 = vector.load %arg7[%c2_149, %c0_150, %c0_151] : memref<4x4x144xf32, #tpu.memory_space<vmem>>, vector<1x4x144xf32>
    %408 = vector.shape_cast %407 : vector<1x4x144xf32> to vector<4x144xf32>
    %cst_152 = arith.constant dense<0.000000e+00> : vector<4x16xf32>
    %409 = tpu.matmul %408, %404, %cst_152 {dimension_numbers = #tpu.dot_dimension_numbers<[1], [1], [0], [0], [0, 0, 1, 0], [], []>} : vector<4x144xf32>, vector<16x144xf32>, vector<4x16xf32> -> vector<4x16xf32>
    %c2_153 = arith.constant 2 : index
    %c0_154 = arith.constant 0 : index
    %c0_155 = arith.constant 0 : index
    %410 = vector.load %arg8[%c2_153, %c0_154, %c0_155] : memref<4x144x4xf32, #tpu.memory_space<vmem>>, vector<1x144x4xf32>
    %411 = vector.shape_cast %410 : vector<1x144x4xf32> to vector<144x4xf32>
    %cst_156 = arith.constant dense<0.000000e+00> : vector<16x4xf32>
    %412 = tpu.matmul %404, %411, %cst_156 {dimension_numbers = #tpu.dot_dimension_numbers<[1], [0], [0], [1], [0, 0, 1, 1], [], []>} : vector<16x144xf32>, vector<144x4xf32>, vector<16x4xf32> -> vector<16x4xf32>
    %cst_157 = arith.constant 5.000000e-01 : f32
    %413 = vector.broadcast %cst_157 : f32 to vector<16x16xf32>
    %414 = arith.cmpf ogt, %406, %413 : vector<16x16xf32>
    %c2_158 = arith.constant 2 : index
    %c0_159 = arith.constant 0 : index
    %c0_160 = arith.constant 0 : index
    %415 = vector.load %arg9[%c2_158, %c0_159, %c0_160] : memref<4x1x144xf32, #tpu.memory_space<vmem>>, vector<1x1x144xf32>
    %416 = vector.shape_cast %415 : vector<1x1x144xf32> to vector<1x144xf32>
    %417 = vector.extract_strided_slice %412 {offsets = [0, 0], sizes = [16, 1], strides = [1, 1]} : vector<16x4xf32> to vector<16x1xf32>
    %418 = vector.extract_strided_slice %409 {offsets = [0, 0], sizes = [1, 16], strides = [1, 1]} : vector<4x16xf32> to vector<1x16xf32>
    %419 = vector.broadcast %417 : vector<16x1xf32> to vector<16x16xf32>
    %420 = vector.broadcast %418 : vector<1x16xf32> to vector<16x16xf32>
    %421 = arith.addf %419, %420 : vector<16x16xf32>
    %cst_161 = arith.constant 0.000000e+00 : f32
    %422 = vector.broadcast %cst_161 : f32 to vector<16x16xf32>
    %423 = arith.cmpf oge, %421, %422 : vector<16x16xf32>
    %cst_162 = arith.constant 2.000000e-01 : f32
    %424 = vector.broadcast %cst_162 : f32 to vector<16x16xf32>
    %425 = arith.mulf %424, %421 : vector<16x16xf32>
    %426 = arith.select %423, %421, %425 : vector<16x16xi1>, vector<16x16xf32>
    %cst_163 = arith.constant -1.000000e+30 : f32
    %427 = vector.broadcast %cst_163 : f32 to vector<16x16xf32>
    %428 = arith.select %414, %426, %427 : vector<16x16xi1>, vector<16x16xf32>
    %cst_164 = arith.constant dense<0xFF800000> : vector<16xf32>
    %429 = vector.multi_reduction <maximumf>, %428, %cst_164 [1] : vector<16x16xf32> to vector<16xf32>
    %430 = vector.shape_cast %429 : vector<16xf32> to vector<16x1xf32>
    %431 = vector.broadcast %430 : vector<16x1xf32> to vector<16x16xf32>
    %432 = arith.subf %428, %431 : vector<16x16xf32>
    %433 = math.exp %432 : vector<16x16xf32>
    %cst_165 = arith.constant 0.000000e+00 : f32
    %434 = vector.broadcast %cst_165 : f32 to vector<16x16xf32>
    %435 = arith.select %414, %433, %434 : vector<16x16xi1>, vector<16x16xf32>
    %cst_166 = arith.constant dense<0.000000e+00> : vector<16xf32>
    %436 = vector.multi_reduction <add>, %435, %cst_166 [1] : vector<16x16xf32> to vector<16xf32>
    %437 = vector.shape_cast %436 : vector<16xf32> to vector<16x1xf32>
    %438 = tpu.reciprocal %437 {approx = true} : vector<16x1xf32> -> vector<16x1xf32>
    %439 = vector.broadcast %438 : vector<16x1xf32> to vector<16x16xf32>
    %440 = arith.mulf %435, %439 : vector<16x16xf32>
    %cst_167 = arith.constant 0.000000e+00 : f32
    %441 = vector.shape_cast %5 : vector<1x144xi1> to vector<1x144xi1>
    %442 = vector.broadcast %441 : vector<1x144xi1> to vector<16x144xi1>
    %443 = vector.broadcast %cst_167 : f32 to vector<16x144xf32>
    %444 = arith.select %442, %404, %443 : vector<16x144xi1>, vector<16x144xf32>
    %cst_168 = arith.constant dense<0.000000e+00> : vector<16x144xf32>
    %445 = tpu.matmul %440, %444, %cst_168 {dimension_numbers = #tpu.dot_dimension_numbers<[1], [0], [0], [1], [0, 0, 1, 1], [], []>} : vector<16x16xf32>, vector<16x144xf32>, vector<16x144xf32> -> vector<16x144xf32>
    %446 = vector.broadcast %416 : vector<1x144xf32> to vector<16x144xf32>
    %447 = arith.addf %446, %445 : vector<16x144xf32>
    %448 = vector.extract_strided_slice %412 {offsets = [0, 1], sizes = [16, 1], strides = [1, 1]} : vector<16x4xf32> to vector<16x1xf32>
    %449 = vector.extract_strided_slice %409 {offsets = [1, 0], sizes = [1, 16], strides = [1, 1]} : vector<4x16xf32> to vector<1x16xf32>
    %450 = vector.broadcast %448 : vector<16x1xf32> to vector<16x16xf32>
    %451 = vector.broadcast %449 : vector<1x16xf32> to vector<16x16xf32>
    %452 = arith.addf %450, %451 : vector<16x16xf32>
    %cst_169 = arith.constant 0.000000e+00 : f32
    %453 = vector.broadcast %cst_169 : f32 to vector<16x16xf32>
    %454 = arith.cmpf oge, %452, %453 : vector<16x16xf32>
    %cst_170 = arith.constant 2.000000e-01 : f32
    %455 = vector.broadcast %cst_170 : f32 to vector<16x16xf32>
    %456 = arith.mulf %455, %452 : vector<16x16xf32>
    %457 = arith.select %454, %452, %456 : vector<16x16xi1>, vector<16x16xf32>
    %cst_171 = arith.constant -1.000000e+30 : f32
    %458 = vector.broadcast %cst_171 : f32 to vector<16x16xf32>
    %459 = arith.select %414, %457, %458 : vector<16x16xi1>, vector<16x16xf32>
    %cst_172 = arith.constant dense<0xFF800000> : vector<16xf32>
    %460 = vector.multi_reduction <maximumf>, %459, %cst_172 [1] : vector<16x16xf32> to vector<16xf32>
    %461 = vector.shape_cast %460 : vector<16xf32> to vector<16x1xf32>
    %462 = vector.broadcast %461 : vector<16x1xf32> to vector<16x16xf32>
    %463 = arith.subf %459, %462 : vector<16x16xf32>
    %464 = math.exp %463 : vector<16x16xf32>
    %cst_173 = arith.constant 0.000000e+00 : f32
    %465 = vector.broadcast %cst_173 : f32 to vector<16x16xf32>
    %466 = arith.select %414, %464, %465 : vector<16x16xi1>, vector<16x16xf32>
    %cst_174 = arith.constant dense<0.000000e+00> : vector<16xf32>
    %467 = vector.multi_reduction <add>, %466, %cst_174 [1] : vector<16x16xf32> to vector<16xf32>
    %468 = vector.shape_cast %467 : vector<16xf32> to vector<16x1xf32>
    %469 = tpu.reciprocal %468 {approx = true} : vector<16x1xf32> -> vector<16x1xf32>
    %470 = vector.broadcast %469 : vector<16x1xf32> to vector<16x16xf32>
    %471 = arith.mulf %466, %470 : vector<16x16xf32>
    %cst_175 = arith.constant 0.000000e+00 : f32
    %472 = vector.shape_cast %10 : vector<1x144xi1> to vector<1x144xi1>
    %473 = vector.broadcast %472 : vector<1x144xi1> to vector<16x144xi1>
    %474 = vector.broadcast %cst_175 : f32 to vector<16x144xf32>
    %475 = arith.select %473, %404, %474 : vector<16x144xi1>, vector<16x144xf32>
    %cst_176 = arith.constant dense<0.000000e+00> : vector<16x144xf32>
    %476 = tpu.matmul %471, %475, %cst_176 {dimension_numbers = #tpu.dot_dimension_numbers<[1], [0], [0], [1], [0, 0, 1, 1], [], []>} : vector<16x16xf32>, vector<16x144xf32>, vector<16x144xf32> -> vector<16x144xf32>
    %477 = arith.addf %447, %476 : vector<16x144xf32>
    %478 = vector.extract_strided_slice %412 {offsets = [0, 2], sizes = [16, 1], strides = [1, 1]} : vector<16x4xf32> to vector<16x1xf32>
    %479 = vector.extract_strided_slice %409 {offsets = [2, 0], sizes = [1, 16], strides = [1, 1]} : vector<4x16xf32> to vector<1x16xf32>
    %480 = vector.broadcast %478 : vector<16x1xf32> to vector<16x16xf32>
    %481 = vector.broadcast %479 : vector<1x16xf32> to vector<16x16xf32>
    %482 = arith.addf %480, %481 : vector<16x16xf32>
    %cst_177 = arith.constant 0.000000e+00 : f32
    %483 = vector.broadcast %cst_177 : f32 to vector<16x16xf32>
    %484 = arith.cmpf oge, %482, %483 : vector<16x16xf32>
    %cst_178 = arith.constant 2.000000e-01 : f32
    %485 = vector.broadcast %cst_178 : f32 to vector<16x16xf32>
    %486 = arith.mulf %485, %482 : vector<16x16xf32>
    %487 = arith.select %484, %482, %486 : vector<16x16xi1>, vector<16x16xf32>
    %cst_179 = arith.constant -1.000000e+30 : f32
    %488 = vector.broadcast %cst_179 : f32 to vector<16x16xf32>
    %489 = arith.select %414, %487, %488 : vector<16x16xi1>, vector<16x16xf32>
    %cst_180 = arith.constant dense<0xFF800000> : vector<16xf32>
    %490 = vector.multi_reduction <maximumf>, %489, %cst_180 [1] : vector<16x16xf32> to vector<16xf32>
    %491 = vector.shape_cast %490 : vector<16xf32> to vector<16x1xf32>
    %492 = vector.broadcast %491 : vector<16x1xf32> to vector<16x16xf32>
    %493 = arith.subf %489, %492 : vector<16x16xf32>
    %494 = math.exp %493 : vector<16x16xf32>
    %cst_181 = arith.constant 0.000000e+00 : f32
    %495 = vector.broadcast %cst_181 : f32 to vector<16x16xf32>
    %496 = arith.select %414, %494, %495 : vector<16x16xi1>, vector<16x16xf32>
    %cst_182 = arith.constant dense<0.000000e+00> : vector<16xf32>
    %497 = vector.multi_reduction <add>, %496, %cst_182 [1] : vector<16x16xf32> to vector<16xf32>
    %498 = vector.shape_cast %497 : vector<16xf32> to vector<16x1xf32>
    %499 = tpu.reciprocal %498 {approx = true} : vector<16x1xf32> -> vector<16x1xf32>
    %500 = vector.broadcast %499 : vector<16x1xf32> to vector<16x16xf32>
    %501 = arith.mulf %496, %500 : vector<16x16xf32>
    %cst_183 = arith.constant 0.000000e+00 : f32
    %502 = vector.shape_cast %15 : vector<1x144xi1> to vector<1x144xi1>
    %503 = vector.broadcast %502 : vector<1x144xi1> to vector<16x144xi1>
    %504 = vector.broadcast %cst_183 : f32 to vector<16x144xf32>
    %505 = arith.select %503, %404, %504 : vector<16x144xi1>, vector<16x144xf32>
    %cst_184 = arith.constant dense<0.000000e+00> : vector<16x144xf32>
    %506 = tpu.matmul %501, %505, %cst_184 {dimension_numbers = #tpu.dot_dimension_numbers<[1], [0], [0], [1], [0, 0, 1, 1], [], []>} : vector<16x16xf32>, vector<16x144xf32>, vector<16x144xf32> -> vector<16x144xf32>
    %507 = arith.addf %477, %506 : vector<16x144xf32>
    %508 = vector.extract_strided_slice %412 {offsets = [0, 3], sizes = [16, 1], strides = [1, 1]} : vector<16x4xf32> to vector<16x1xf32>
    %509 = vector.extract_strided_slice %409 {offsets = [3, 0], sizes = [1, 16], strides = [1, 1]} : vector<4x16xf32> to vector<1x16xf32>
    %510 = vector.broadcast %508 : vector<16x1xf32> to vector<16x16xf32>
    %511 = vector.broadcast %509 : vector<1x16xf32> to vector<16x16xf32>
    %512 = arith.addf %510, %511 : vector<16x16xf32>
    %cst_185 = arith.constant 0.000000e+00 : f32
    %513 = vector.broadcast %cst_185 : f32 to vector<16x16xf32>
    %514 = arith.cmpf oge, %512, %513 : vector<16x16xf32>
    %cst_186 = arith.constant 2.000000e-01 : f32
    %515 = vector.broadcast %cst_186 : f32 to vector<16x16xf32>
    %516 = arith.mulf %515, %512 : vector<16x16xf32>
    %517 = arith.select %514, %512, %516 : vector<16x16xi1>, vector<16x16xf32>
    %cst_187 = arith.constant -1.000000e+30 : f32
    %518 = vector.broadcast %cst_187 : f32 to vector<16x16xf32>
    %519 = arith.select %414, %517, %518 : vector<16x16xi1>, vector<16x16xf32>
    %cst_188 = arith.constant dense<0xFF800000> : vector<16xf32>
    %520 = vector.multi_reduction <maximumf>, %519, %cst_188 [1] : vector<16x16xf32> to vector<16xf32>
    %521 = vector.shape_cast %520 : vector<16xf32> to vector<16x1xf32>
    %522 = vector.broadcast %521 : vector<16x1xf32> to vector<16x16xf32>
    %523 = arith.subf %519, %522 : vector<16x16xf32>
    %524 = math.exp %523 : vector<16x16xf32>
    %cst_189 = arith.constant 0.000000e+00 : f32
    %525 = vector.broadcast %cst_189 : f32 to vector<16x16xf32>
    %526 = arith.select %414, %524, %525 : vector<16x16xi1>, vector<16x16xf32>
    %cst_190 = arith.constant dense<0.000000e+00> : vector<16xf32>
    %527 = vector.multi_reduction <add>, %526, %cst_190 [1] : vector<16x16xf32> to vector<16xf32>
    %528 = vector.shape_cast %527 : vector<16xf32> to vector<16x1xf32>
    %529 = tpu.reciprocal %528 {approx = true} : vector<16x1xf32> -> vector<16x1xf32>
    %530 = vector.broadcast %529 : vector<16x1xf32> to vector<16x16xf32>
    %531 = arith.mulf %526, %530 : vector<16x16xf32>
    %cst_191 = arith.constant 0.000000e+00 : f32
    %532 = vector.shape_cast %20 : vector<1x144xi1> to vector<1x144xi1>
    %533 = vector.broadcast %532 : vector<1x144xi1> to vector<16x144xi1>
    %534 = vector.broadcast %cst_191 : f32 to vector<16x144xf32>
    %535 = arith.select %533, %404, %534 : vector<16x144xi1>, vector<16x144xf32>
    %cst_192 = arith.constant dense<0.000000e+00> : vector<16x144xf32>
    %536 = tpu.matmul %531, %535, %cst_192 {dimension_numbers = #tpu.dot_dimension_numbers<[1], [0], [0], [1], [0, 0, 1, 1], [], []>} : vector<16x16xf32>, vector<16x144xf32>, vector<16x144xf32> -> vector<16x144xf32>
    %537 = arith.addf %507, %536 : vector<16x144xf32>
    %cst_193 = arith.constant 0.000000e+00 : f32
    %538 = vector.broadcast %cst_193 : f32 to vector<16x144xf32>
    %539 = arith.cmpf ogt, %537, %538 : vector<16x144xf32>
    %cst_194 = arith.constant 0.000000e+00 : f32
    %540 = vector.broadcast %cst_194 : f32 to vector<16x144xf32>
    %541 = arith.minimumf %537, %540 : vector<16x144xf32>
    %542 = math.exp %541 : vector<16x144xf32>
    %cst_195 = arith.constant 1.000000e+00 : f32
    %543 = vector.broadcast %cst_195 : f32 to vector<16x144xf32>
    %544 = arith.subf %542, %543 : vector<16x144xf32>
    %545 = arith.select %539, %537, %544 : vector<16x144xi1>, vector<16x144xf32>
    %c1_196 = arith.constant 1 : index
    %c0_197 = arith.constant 0 : index
    %c0_198 = arith.constant 0 : index
    %546 = vector.load %arg6[%c1_196, %c0_197, %c0_198] : memref<2x144x144xf32, #tpu.memory_space<vmem>>, vector<1x144x144xf32>
    %547 = vector.shape_cast %546 : vector<1x144x144xf32> to vector<144x144xf32>
    %cst_199 = arith.constant dense<0.000000e+00> : vector<16x144xf32>
    %548 = tpu.matmul %401, %547, %cst_199 {dimension_numbers = #tpu.dot_dimension_numbers<[1], [0], [0], [1], [0, 0, 1, 1], [], []>} : vector<16x144xf32>, vector<144x144xf32>, vector<16x144xf32> -> vector<16x144xf32>
    %c1_200 = arith.constant 1 : index
    %c0_201 = arith.constant 0 : index
    %c0_202 = arith.constant 0 : index
    %549 = vector.load %arg0[%c1_200, %c0_201, %c0_202] : memref<4x16x16xf32, #tpu.memory_space<vmem>>, vector<1x16x16xf32>
    %550 = vector.shape_cast %549 : vector<1x16x16xf32> to vector<16x16xf32>
    %c3_203 = arith.constant 3 : index
    %c0_204 = arith.constant 0 : index
    %c0_205 = arith.constant 0 : index
    %551 = vector.load %arg7[%c3_203, %c0_204, %c0_205] : memref<4x4x144xf32, #tpu.memory_space<vmem>>, vector<1x4x144xf32>
    %552 = vector.shape_cast %551 : vector<1x4x144xf32> to vector<4x144xf32>
    %cst_206 = arith.constant dense<0.000000e+00> : vector<4x16xf32>
    %553 = tpu.matmul %552, %548, %cst_206 {dimension_numbers = #tpu.dot_dimension_numbers<[1], [1], [0], [0], [0, 0, 1, 0], [], []>} : vector<4x144xf32>, vector<16x144xf32>, vector<4x16xf32> -> vector<4x16xf32>
    %c3_207 = arith.constant 3 : index
    %c0_208 = arith.constant 0 : index
    %c0_209 = arith.constant 0 : index
    %554 = vector.load %arg8[%c3_207, %c0_208, %c0_209] : memref<4x144x4xf32, #tpu.memory_space<vmem>>, vector<1x144x4xf32>
    %555 = vector.shape_cast %554 : vector<1x144x4xf32> to vector<144x4xf32>
    %cst_210 = arith.constant dense<0.000000e+00> : vector<16x4xf32>
    %556 = tpu.matmul %548, %555, %cst_210 {dimension_numbers = #tpu.dot_dimension_numbers<[1], [0], [0], [1], [0, 0, 1, 1], [], []>} : vector<16x144xf32>, vector<144x4xf32>, vector<16x4xf32> -> vector<16x4xf32>
    %cst_211 = arith.constant 5.000000e-01 : f32
    %557 = vector.broadcast %cst_211 : f32 to vector<16x16xf32>
    %558 = arith.cmpf ogt, %550, %557 : vector<16x16xf32>
    %c3_212 = arith.constant 3 : index
    %c0_213 = arith.constant 0 : index
    %c0_214 = arith.constant 0 : index
    %559 = vector.load %arg9[%c3_212, %c0_213, %c0_214] : memref<4x1x144xf32, #tpu.memory_space<vmem>>, vector<1x1x144xf32>
    %560 = vector.shape_cast %559 : vector<1x1x144xf32> to vector<1x144xf32>
    %561 = vector.extract_strided_slice %556 {offsets = [0, 0], sizes = [16, 1], strides = [1, 1]} : vector<16x4xf32> to vector<16x1xf32>
    %562 = vector.extract_strided_slice %553 {offsets = [0, 0], sizes = [1, 16], strides = [1, 1]} : vector<4x16xf32> to vector<1x16xf32>
    %563 = vector.broadcast %561 : vector<16x1xf32> to vector<16x16xf32>
    %564 = vector.broadcast %562 : vector<1x16xf32> to vector<16x16xf32>
    %565 = arith.addf %563, %564 : vector<16x16xf32>
    %cst_215 = arith.constant 0.000000e+00 : f32
    %566 = vector.broadcast %cst_215 : f32 to vector<16x16xf32>
    %567 = arith.cmpf oge, %565, %566 : vector<16x16xf32>
    %cst_216 = arith.constant 2.000000e-01 : f32
    %568 = vector.broadcast %cst_216 : f32 to vector<16x16xf32>
    %569 = arith.mulf %568, %565 : vector<16x16xf32>
    %570 = arith.select %567, %565, %569 : vector<16x16xi1>, vector<16x16xf32>
    %cst_217 = arith.constant -1.000000e+30 : f32
    %571 = vector.broadcast %cst_217 : f32 to vector<16x16xf32>
    %572 = arith.select %558, %570, %571 : vector<16x16xi1>, vector<16x16xf32>
    %cst_218 = arith.constant dense<0xFF800000> : vector<16xf32>
    %573 = vector.multi_reduction <maximumf>, %572, %cst_218 [1] : vector<16x16xf32> to vector<16xf32>
    %574 = vector.shape_cast %573 : vector<16xf32> to vector<16x1xf32>
    %575 = vector.broadcast %574 : vector<16x1xf32> to vector<16x16xf32>
    %576 = arith.subf %572, %575 : vector<16x16xf32>
    %577 = math.exp %576 : vector<16x16xf32>
    %cst_219 = arith.constant 0.000000e+00 : f32
    %578 = vector.broadcast %cst_219 : f32 to vector<16x16xf32>
    %579 = arith.select %558, %577, %578 : vector<16x16xi1>, vector<16x16xf32>
    %cst_220 = arith.constant dense<0.000000e+00> : vector<16xf32>
    %580 = vector.multi_reduction <add>, %579, %cst_220 [1] : vector<16x16xf32> to vector<16xf32>
    %581 = vector.shape_cast %580 : vector<16xf32> to vector<16x1xf32>
    %582 = tpu.reciprocal %581 {approx = true} : vector<16x1xf32> -> vector<16x1xf32>
    %583 = vector.broadcast %582 : vector<16x1xf32> to vector<16x16xf32>
    %584 = arith.mulf %579, %583 : vector<16x16xf32>
    %cst_221 = arith.constant 0.000000e+00 : f32
    %585 = vector.shape_cast %5 : vector<1x144xi1> to vector<1x144xi1>
    %586 = vector.broadcast %585 : vector<1x144xi1> to vector<16x144xi1>
    %587 = vector.broadcast %cst_221 : f32 to vector<16x144xf32>
    %588 = arith.select %586, %548, %587 : vector<16x144xi1>, vector<16x144xf32>
    %cst_222 = arith.constant dense<0.000000e+00> : vector<16x144xf32>
    %589 = tpu.matmul %584, %588, %cst_222 {dimension_numbers = #tpu.dot_dimension_numbers<[1], [0], [0], [1], [0, 0, 1, 1], [], []>} : vector<16x16xf32>, vector<16x144xf32>, vector<16x144xf32> -> vector<16x144xf32>
    %590 = vector.broadcast %560 : vector<1x144xf32> to vector<16x144xf32>
    %591 = arith.addf %590, %589 : vector<16x144xf32>
    %592 = vector.extract_strided_slice %556 {offsets = [0, 1], sizes = [16, 1], strides = [1, 1]} : vector<16x4xf32> to vector<16x1xf32>
    %593 = vector.extract_strided_slice %553 {offsets = [1, 0], sizes = [1, 16], strides = [1, 1]} : vector<4x16xf32> to vector<1x16xf32>
    %594 = vector.broadcast %592 : vector<16x1xf32> to vector<16x16xf32>
    %595 = vector.broadcast %593 : vector<1x16xf32> to vector<16x16xf32>
    %596 = arith.addf %594, %595 : vector<16x16xf32>
    %cst_223 = arith.constant 0.000000e+00 : f32
    %597 = vector.broadcast %cst_223 : f32 to vector<16x16xf32>
    %598 = arith.cmpf oge, %596, %597 : vector<16x16xf32>
    %cst_224 = arith.constant 2.000000e-01 : f32
    %599 = vector.broadcast %cst_224 : f32 to vector<16x16xf32>
    %600 = arith.mulf %599, %596 : vector<16x16xf32>
    %601 = arith.select %598, %596, %600 : vector<16x16xi1>, vector<16x16xf32>
    %cst_225 = arith.constant -1.000000e+30 : f32
    %602 = vector.broadcast %cst_225 : f32 to vector<16x16xf32>
    %603 = arith.select %558, %601, %602 : vector<16x16xi1>, vector<16x16xf32>
    %cst_226 = arith.constant dense<0xFF800000> : vector<16xf32>
    %604 = vector.multi_reduction <maximumf>, %603, %cst_226 [1] : vector<16x16xf32> to vector<16xf32>
    %605 = vector.shape_cast %604 : vector<16xf32> to vector<16x1xf32>
    %606 = vector.broadcast %605 : vector<16x1xf32> to vector<16x16xf32>
    %607 = arith.subf %603, %606 : vector<16x16xf32>
    %608 = math.exp %607 : vector<16x16xf32>
    %cst_227 = arith.constant 0.000000e+00 : f32
    %609 = vector.broadcast %cst_227 : f32 to vector<16x16xf32>
    %610 = arith.select %558, %608, %609 : vector<16x16xi1>, vector<16x16xf32>
    %cst_228 = arith.constant dense<0.000000e+00> : vector<16xf32>
    %611 = vector.multi_reduction <add>, %610, %cst_228 [1] : vector<16x16xf32> to vector<16xf32>
    %612 = vector.shape_cast %611 : vector<16xf32> to vector<16x1xf32>
    %613 = tpu.reciprocal %612 {approx = true} : vector<16x1xf32> -> vector<16x1xf32>
    %614 = vector.broadcast %613 : vector<16x1xf32> to vector<16x16xf32>
    %615 = arith.mulf %610, %614 : vector<16x16xf32>
    %cst_229 = arith.constant 0.000000e+00 : f32
    %616 = vector.shape_cast %10 : vector<1x144xi1> to vector<1x144xi1>
    %617 = vector.broadcast %616 : vector<1x144xi1> to vector<16x144xi1>
    %618 = vector.broadcast %cst_229 : f32 to vector<16x144xf32>
    %619 = arith.select %617, %548, %618 : vector<16x144xi1>, vector<16x144xf32>
    %cst_230 = arith.constant dense<0.000000e+00> : vector<16x144xf32>
    %620 = tpu.matmul %615, %619, %cst_230 {dimension_numbers = #tpu.dot_dimension_numbers<[1], [0], [0], [1], [0, 0, 1, 1], [], []>} : vector<16x16xf32>, vector<16x144xf32>, vector<16x144xf32> -> vector<16x144xf32>
    %621 = arith.addf %591, %620 : vector<16x144xf32>
    %622 = vector.extract_strided_slice %556 {offsets = [0, 2], sizes = [16, 1], strides = [1, 1]} : vector<16x4xf32> to vector<16x1xf32>
    %623 = vector.extract_strided_slice %553 {offsets = [2, 0], sizes = [1, 16], strides = [1, 1]} : vector<4x16xf32> to vector<1x16xf32>
    %624 = vector.broadcast %622 : vector<16x1xf32> to vector<16x16xf32>
    %625 = vector.broadcast %623 : vector<1x16xf32> to vector<16x16xf32>
    %626 = arith.addf %624, %625 : vector<16x16xf32>
    %cst_231 = arith.constant 0.000000e+00 : f32
    %627 = vector.broadcast %cst_231 : f32 to vector<16x16xf32>
    %628 = arith.cmpf oge, %626, %627 : vector<16x16xf32>
    %cst_232 = arith.constant 2.000000e-01 : f32
    %629 = vector.broadcast %cst_232 : f32 to vector<16x16xf32>
    %630 = arith.mulf %629, %626 : vector<16x16xf32>
    %631 = arith.select %628, %626, %630 : vector<16x16xi1>, vector<16x16xf32>
    %cst_233 = arith.constant -1.000000e+30 : f32
    %632 = vector.broadcast %cst_233 : f32 to vector<16x16xf32>
    %633 = arith.select %558, %631, %632 : vector<16x16xi1>, vector<16x16xf32>
    %cst_234 = arith.constant dense<0xFF800000> : vector<16xf32>
    %634 = vector.multi_reduction <maximumf>, %633, %cst_234 [1] : vector<16x16xf32> to vector<16xf32>
    %635 = vector.shape_cast %634 : vector<16xf32> to vector<16x1xf32>
    %636 = vector.broadcast %635 : vector<16x1xf32> to vector<16x16xf32>
    %637 = arith.subf %633, %636 : vector<16x16xf32>
    %638 = math.exp %637 : vector<16x16xf32>
    %cst_235 = arith.constant 0.000000e+00 : f32
    %639 = vector.broadcast %cst_235 : f32 to vector<16x16xf32>
    %640 = arith.select %558, %638, %639 : vector<16x16xi1>, vector<16x16xf32>
    %cst_236 = arith.constant dense<0.000000e+00> : vector<16xf32>
    %641 = vector.multi_reduction <add>, %640, %cst_236 [1] : vector<16x16xf32> to vector<16xf32>
    %642 = vector.shape_cast %641 : vector<16xf32> to vector<16x1xf32>
    %643 = tpu.reciprocal %642 {approx = true} : vector<16x1xf32> -> vector<16x1xf32>
    %644 = vector.broadcast %643 : vector<16x1xf32> to vector<16x16xf32>
    %645 = arith.mulf %640, %644 : vector<16x16xf32>
    %cst_237 = arith.constant 0.000000e+00 : f32
    %646 = vector.shape_cast %15 : vector<1x144xi1> to vector<1x144xi1>
    %647 = vector.broadcast %646 : vector<1x144xi1> to vector<16x144xi1>
    %648 = vector.broadcast %cst_237 : f32 to vector<16x144xf32>
    %649 = arith.select %647, %548, %648 : vector<16x144xi1>, vector<16x144xf32>
    %cst_238 = arith.constant dense<0.000000e+00> : vector<16x144xf32>
    %650 = tpu.matmul %645, %649, %cst_238 {dimension_numbers = #tpu.dot_dimension_numbers<[1], [0], [0], [1], [0, 0, 1, 1], [], []>} : vector<16x16xf32>, vector<16x144xf32>, vector<16x144xf32> -> vector<16x144xf32>
    %651 = arith.addf %621, %650 : vector<16x144xf32>
    %652 = vector.extract_strided_slice %556 {offsets = [0, 3], sizes = [16, 1], strides = [1, 1]} : vector<16x4xf32> to vector<16x1xf32>
    %653 = vector.extract_strided_slice %553 {offsets = [3, 0], sizes = [1, 16], strides = [1, 1]} : vector<4x16xf32> to vector<1x16xf32>
    %654 = vector.broadcast %652 : vector<16x1xf32> to vector<16x16xf32>
    %655 = vector.broadcast %653 : vector<1x16xf32> to vector<16x16xf32>
    %656 = arith.addf %654, %655 : vector<16x16xf32>
    %cst_239 = arith.constant 0.000000e+00 : f32
    %657 = vector.broadcast %cst_239 : f32 to vector<16x16xf32>
    %658 = arith.cmpf oge, %656, %657 : vector<16x16xf32>
    %cst_240 = arith.constant 2.000000e-01 : f32
    %659 = vector.broadcast %cst_240 : f32 to vector<16x16xf32>
    %660 = arith.mulf %659, %656 : vector<16x16xf32>
    %661 = arith.select %658, %656, %660 : vector<16x16xi1>, vector<16x16xf32>
    %cst_241 = arith.constant -1.000000e+30 : f32
    %662 = vector.broadcast %cst_241 : f32 to vector<16x16xf32>
    %663 = arith.select %558, %661, %662 : vector<16x16xi1>, vector<16x16xf32>
    %cst_242 = arith.constant dense<0xFF800000> : vector<16xf32>
    %664 = vector.multi_reduction <maximumf>, %663, %cst_242 [1] : vector<16x16xf32> to vector<16xf32>
    %665 = vector.shape_cast %664 : vector<16xf32> to vector<16x1xf32>
    %666 = vector.broadcast %665 : vector<16x1xf32> to vector<16x16xf32>
    %667 = arith.subf %663, %666 : vector<16x16xf32>
    %668 = math.exp %667 : vector<16x16xf32>
    %cst_243 = arith.constant 0.000000e+00 : f32
    %669 = vector.broadcast %cst_243 : f32 to vector<16x16xf32>
    %670 = arith.select %558, %668, %669 : vector<16x16xi1>, vector<16x16xf32>
    %cst_244 = arith.constant dense<0.000000e+00> : vector<16xf32>
    %671 = vector.multi_reduction <add>, %670, %cst_244 [1] : vector<16x16xf32> to vector<16xf32>
    %672 = vector.shape_cast %671 : vector<16xf32> to vector<16x1xf32>
    %673 = tpu.reciprocal %672 {approx = true} : vector<16x1xf32> -> vector<16x1xf32>
    %674 = vector.broadcast %673 : vector<16x1xf32> to vector<16x16xf32>
    %675 = arith.mulf %670, %674 : vector<16x16xf32>
    %cst_245 = arith.constant 0.000000e+00 : f32
    %676 = vector.shape_cast %20 : vector<1x144xi1> to vector<1x144xi1>
    %677 = vector.broadcast %676 : vector<1x144xi1> to vector<16x144xi1>
    %678 = vector.broadcast %cst_245 : f32 to vector<16x144xf32>
    %679 = arith.select %677, %548, %678 : vector<16x144xi1>, vector<16x144xf32>
    %cst_246 = arith.constant dense<0.000000e+00> : vector<16x144xf32>
    %680 = tpu.matmul %675, %679, %cst_246 {dimension_numbers = #tpu.dot_dimension_numbers<[1], [0], [0], [1], [0, 0, 1, 1], [], []>} : vector<16x16xf32>, vector<16x144xf32>, vector<16x144xf32> -> vector<16x144xf32>
    %681 = arith.addf %651, %680 : vector<16x144xf32>
    %cst_247 = arith.constant 0.000000e+00 : f32
    %682 = vector.broadcast %cst_247 : f32 to vector<16x144xf32>
    %683 = arith.cmpf ogt, %681, %682 : vector<16x144xf32>
    %cst_248 = arith.constant 0.000000e+00 : f32
    %684 = vector.broadcast %cst_248 : f32 to vector<16x144xf32>
    %685 = arith.minimumf %681, %684 : vector<16x144xf32>
    %686 = math.exp %685 : vector<16x144xf32>
    %cst_249 = arith.constant 1.000000e+00 : f32
    %687 = vector.broadcast %cst_249 : f32 to vector<16x144xf32>
    %688 = arith.subf %686, %687 : vector<16x144xf32>
    %689 = arith.select %683, %681, %688 : vector<16x144xi1>, vector<16x144xf32>
    %c1_250 = arith.constant 1 : index
    %c0_251 = arith.constant 0 : index
    %c0_252 = arith.constant 0 : index
    %690 = vector.load %arg10[%c1_250, %c0_251, %c0_252] : memref<2x144x128xf32, #tpu.memory_space<vmem>>, vector<1x144x128xf32>
    %691 = vector.shape_cast %690 : vector<1x144x128xf32> to vector<144x128xf32>
    %c4 = arith.constant 4 : index
    %c0_253 = arith.constant 0 : index
    %692 = vector.load %arg14[%c4, %c0_253] : memref<10x128xf32, #tpu.memory_space<vmem>>, vector<1x128xf32>
    %c5 = arith.constant 5 : index
    %c0_254 = arith.constant 0 : index
    %693 = vector.load %arg14[%c5, %c0_254] : memref<10x128xf32, #tpu.memory_space<vmem>>, vector<1x128xf32>
    %cst_255 = arith.constant dense<0.000000e+00> : vector<16x128xf32>
    %694 = tpu.matmul %545, %691, %cst_255 {dimension_numbers = #tpu.dot_dimension_numbers<[1], [0], [0], [1], [0, 0, 1, 1], [], []>} : vector<16x144xf32>, vector<144x128xf32>, vector<16x128xf32> -> vector<16x128xf32>
    %695 = vector.broadcast %692 : vector<1x128xf32> to vector<16x128xf32>
    %696 = arith.addf %694, %695 : vector<16x128xf32>
    %697 = math.tanh %696 : vector<16x128xf32>
    %698 = vector.broadcast %693 : vector<1x128xf32> to vector<16x128xf32>
    %699 = arith.mulf %697, %698 : vector<16x128xf32>
    %cst_256 = arith.constant dense<0.000000e+00> : vector<16xf32>
    %700 = vector.multi_reduction <add>, %699, %cst_256 [1] : vector<16x128xf32> to vector<16xf32>
    %701 = vector.shape_cast %700 : vector<16xf32> to vector<16x1xf32>
    %702 = vector.shape_cast %701 : vector<16x1xf32> to vector<1x16x1xf32>
    %cst_257 = arith.constant dense<0.000000e+00> : vector<1xf32>
    %703 = vector.multi_reduction <add>, %702, %cst_257 [1, 2] : vector<1x16x1xf32> to vector<1xf32>
    %704 = vector.shape_cast %703 : vector<1xf32> to vector<1x1x1xf32>
    %705 = vector.extract %704[0, 0, 0] : f32 from vector<1x1x1xf32>
    %cst_258 = arith.constant 1.600000e+01 : f32
    %706 = arith.divf %705, %cst_258 : f32
    %cst_259 = arith.constant dense<0.000000e+00> : vector<16x128xf32>
    %707 = tpu.matmul %689, %691, %cst_259 {dimension_numbers = #tpu.dot_dimension_numbers<[1], [0], [0], [1], [0, 0, 1, 1], [], []>} : vector<16x144xf32>, vector<144x128xf32>, vector<16x128xf32> -> vector<16x128xf32>
    %708 = vector.broadcast %692 : vector<1x128xf32> to vector<16x128xf32>
    %709 = arith.addf %707, %708 : vector<16x128xf32>
    %710 = math.tanh %709 : vector<16x128xf32>
    %711 = vector.broadcast %693 : vector<1x128xf32> to vector<16x128xf32>
    %712 = arith.mulf %710, %711 : vector<16x128xf32>
    %cst_260 = arith.constant dense<0.000000e+00> : vector<16xf32>
    %713 = vector.multi_reduction <add>, %712, %cst_260 [1] : vector<16x128xf32> to vector<16xf32>
    %714 = vector.shape_cast %713 : vector<16xf32> to vector<16x1xf32>
    %715 = vector.shape_cast %714 : vector<16x1xf32> to vector<1x16x1xf32>
    %cst_261 = arith.constant dense<0.000000e+00> : vector<1xf32>
    %716 = vector.multi_reduction <add>, %715, %cst_261 [1, 2] : vector<1x16x1xf32> to vector<1xf32>
    %717 = vector.shape_cast %716 : vector<1xf32> to vector<1x1x1xf32>
    %718 = vector.extract %717[0, 0, 0] : f32 from vector<1x1x1xf32>
    %cst_262 = arith.constant 1.600000e+01 : f32
    %719 = arith.divf %718, %cst_262 : f32
    %720 = arith.maximumf %706, %719 : f32
    %721 = arith.subf %706, %720 : f32
    %722 = math.exp %721 : f32
    %723 = arith.subf %719, %720 : f32
    %724 = math.exp %723 : f32
    %725 = arith.addf %722, %724 : f32
    %cst_263 = arith.constant 1.000000e+00 : f32
    %726 = arith.divf %cst_263, %725 : f32
    %727 = arith.mulf %722, %726 : f32
    %728 = vector.broadcast %727 : f32 to vector<16x144xf32>
    %729 = arith.mulf %728, %545 : vector<16x144xf32>
    %730 = arith.mulf %724, %726 : f32
    %731 = vector.broadcast %730 : f32 to vector<16x144xf32>
    %732 = arith.mulf %731, %689 : vector<16x144xf32>
    %733 = arith.addf %729, %732 : vector<16x144xf32>
    %c0_264 = arith.constant 0 : index
    %c0_265 = arith.constant 0 : index
    %734 = vector.load %arg11[%c0_264, %c0_265] : memref<144x64xf32, #tpu.memory_space<vmem>>, vector<144x64xf32>
    %cst_266 = arith.constant dense<0.000000e+00> : vector<16x64xf32>
    %735 = tpu.matmul %733, %734, %cst_266 {dimension_numbers = #tpu.dot_dimension_numbers<[1], [0], [0], [1], [0, 0, 1, 1], [], []>} : vector<16x144xf32>, vector<144x64xf32>, vector<16x64xf32> -> vector<16x64xf32>
    %c6 = arith.constant 6 : index
    %c0_267 = arith.constant 0 : index
    %736 = vector.load %arg14[%c6, %c0_267] : memref<10x128xf32, #tpu.memory_space<vmem>>, vector<1x64xf32>
    %737 = vector.broadcast %736 : vector<1x64xf32> to vector<16x64xf32>
    %738 = arith.addf %735, %737 : vector<16x64xf32>
    %c0_268 = arith.constant 0 : index
    %c0_269 = arith.constant 0 : index
    %c0_270 = arith.constant 0 : index
    %739 = vector.load %arg4[%c0_268, %c0_269, %c0_270] : memref<2x8x144xf32, #tpu.memory_space<vmem>>, vector<1x8x144xf32>
    %740 = vector.shape_cast %739 : vector<1x8x144xf32> to vector<8x144xf32>
    %cst_271 = arith.constant dense<0.000000e+00> : vector<16x144xf32>
    %741 = tpu.matmul %61, %740, %cst_271 {dimension_numbers = #tpu.dot_dimension_numbers<[1], [0], [0], [1], [0, 0, 1, 1], [], []>} : vector<16x8xf32>, vector<8x144xf32>, vector<16x144xf32> -> vector<16x144xf32>
    %c0_272 = arith.constant 0 : index
    %c0_273 = arith.constant 0 : index
    %c0_274 = arith.constant 0 : index
    %742 = vector.load %arg5[%c0_272, %c0_273, %c0_274] : memref<2x42x144xf32, #tpu.memory_space<vmem>>, vector<1x42x144xf32>
    %743 = vector.shape_cast %742 : vector<1x42x144xf32> to vector<42x144xf32>
    %cst_275 = arith.constant dense<0.000000e+00> : vector<16x144xf32>
    %744 = tpu.matmul %60, %743, %cst_275 {dimension_numbers = #tpu.dot_dimension_numbers<[1], [0], [0], [1], [0, 0, 1, 1], [], []>} : vector<16x42xf32>, vector<42x144xf32>, vector<16x144xf32> -> vector<16x144xf32>
    %745 = arith.addf %741, %744 : vector<16x144xf32>
    %c2_276 = arith.constant 2 : index
    %c0_277 = arith.constant 0 : index
    %c0_278 = arith.constant 0 : index
    %746 = vector.load %arg0[%c2_276, %c0_277, %c0_278] : memref<4x16x16xf32, #tpu.memory_space<vmem>>, vector<1x16x16xf32>
    %747 = vector.shape_cast %746 : vector<1x16x16xf32> to vector<16x16xf32>
    %c0_279 = arith.constant 0 : index
    %c0_280 = arith.constant 0 : index
    %c0_281 = arith.constant 0 : index
    %748 = vector.load %arg7[%c0_279, %c0_280, %c0_281] : memref<4x4x144xf32, #tpu.memory_space<vmem>>, vector<1x4x144xf32>
    %749 = vector.shape_cast %748 : vector<1x4x144xf32> to vector<4x144xf32>
    %cst_282 = arith.constant dense<0.000000e+00> : vector<4x16xf32>
    %750 = tpu.matmul %749, %745, %cst_282 {dimension_numbers = #tpu.dot_dimension_numbers<[1], [1], [0], [0], [0, 0, 1, 0], [], []>} : vector<4x144xf32>, vector<16x144xf32>, vector<4x16xf32> -> vector<4x16xf32>
    %c0_283 = arith.constant 0 : index
    %c0_284 = arith.constant 0 : index
    %c0_285 = arith.constant 0 : index
    %751 = vector.load %arg8[%c0_283, %c0_284, %c0_285] : memref<4x144x4xf32, #tpu.memory_space<vmem>>, vector<1x144x4xf32>
    %752 = vector.shape_cast %751 : vector<1x144x4xf32> to vector<144x4xf32>
    %cst_286 = arith.constant dense<0.000000e+00> : vector<16x4xf32>
    %753 = tpu.matmul %745, %752, %cst_286 {dimension_numbers = #tpu.dot_dimension_numbers<[1], [0], [0], [1], [0, 0, 1, 1], [], []>} : vector<16x144xf32>, vector<144x4xf32>, vector<16x4xf32> -> vector<16x4xf32>
    %cst_287 = arith.constant 5.000000e-01 : f32
    %754 = vector.broadcast %cst_287 : f32 to vector<16x16xf32>
    %755 = arith.cmpf ogt, %747, %754 : vector<16x16xf32>
    %c0_288 = arith.constant 0 : index
    %c0_289 = arith.constant 0 : index
    %c0_290 = arith.constant 0 : index
    %756 = vector.load %arg9[%c0_288, %c0_289, %c0_290] : memref<4x1x144xf32, #tpu.memory_space<vmem>>, vector<1x1x144xf32>
    %757 = vector.shape_cast %756 : vector<1x1x144xf32> to vector<1x144xf32>
    %758 = vector.extract_strided_slice %753 {offsets = [0, 0], sizes = [16, 1], strides = [1, 1]} : vector<16x4xf32> to vector<16x1xf32>
    %759 = vector.extract_strided_slice %750 {offsets = [0, 0], sizes = [1, 16], strides = [1, 1]} : vector<4x16xf32> to vector<1x16xf32>
    %760 = vector.broadcast %758 : vector<16x1xf32> to vector<16x16xf32>
    %761 = vector.broadcast %759 : vector<1x16xf32> to vector<16x16xf32>
    %762 = arith.addf %760, %761 : vector<16x16xf32>
    %cst_291 = arith.constant 0.000000e+00 : f32
    %763 = vector.broadcast %cst_291 : f32 to vector<16x16xf32>
    %764 = arith.cmpf oge, %762, %763 : vector<16x16xf32>
    %cst_292 = arith.constant 2.000000e-01 : f32
    %765 = vector.broadcast %cst_292 : f32 to vector<16x16xf32>
    %766 = arith.mulf %765, %762 : vector<16x16xf32>
    %767 = arith.select %764, %762, %766 : vector<16x16xi1>, vector<16x16xf32>
    %cst_293 = arith.constant -1.000000e+30 : f32
    %768 = vector.broadcast %cst_293 : f32 to vector<16x16xf32>
    %769 = arith.select %755, %767, %768 : vector<16x16xi1>, vector<16x16xf32>
    %cst_294 = arith.constant dense<0xFF800000> : vector<16xf32>
    %770 = vector.multi_reduction <maximumf>, %769, %cst_294 [1] : vector<16x16xf32> to vector<16xf32>
    %771 = vector.shape_cast %770 : vector<16xf32> to vector<16x1xf32>
    %772 = vector.broadcast %771 : vector<16x1xf32> to vector<16x16xf32>
    %773 = arith.subf %769, %772 : vector<16x16xf32>
    %774 = math.exp %773 : vector<16x16xf32>
    %cst_295 = arith.constant 0.000000e+00 : f32
    %775 = vector.broadcast %cst_295 : f32 to vector<16x16xf32>
    %776 = arith.select %755, %774, %775 : vector<16x16xi1>, vector<16x16xf32>
    %cst_296 = arith.constant dense<0.000000e+00> : vector<16xf32>
    %777 = vector.multi_reduction <add>, %776, %cst_296 [1] : vector<16x16xf32> to vector<16xf32>
    %778 = vector.shape_cast %777 : vector<16xf32> to vector<16x1xf32>
    %779 = tpu.reciprocal %778 {approx = true} : vector<16x1xf32> -> vector<16x1xf32>
    %780 = vector.broadcast %779 : vector<16x1xf32> to vector<16x16xf32>
    %781 = arith.mulf %776, %780 : vector<16x16xf32>
    %cst_297 = arith.constant 0.000000e+00 : f32
    %782 = vector.shape_cast %5 : vector<1x144xi1> to vector<1x144xi1>
    %783 = vector.broadcast %782 : vector<1x144xi1> to vector<16x144xi1>
    %784 = vector.broadcast %cst_297 : f32 to vector<16x144xf32>
    %785 = arith.select %783, %745, %784 : vector<16x144xi1>, vector<16x144xf32>
    %cst_298 = arith.constant dense<0.000000e+00> : vector<16x144xf32>
    %786 = tpu.matmul %781, %785, %cst_298 {dimension_numbers = #tpu.dot_dimension_numbers<[1], [0], [0], [1], [0, 0, 1, 1], [], []>} : vector<16x16xf32>, vector<16x144xf32>, vector<16x144xf32> -> vector<16x144xf32>
    %787 = vector.broadcast %757 : vector<1x144xf32> to vector<16x144xf32>
    %788 = arith.addf %787, %786 : vector<16x144xf32>
    %789 = vector.extract_strided_slice %753 {offsets = [0, 1], sizes = [16, 1], strides = [1, 1]} : vector<16x4xf32> to vector<16x1xf32>
    %790 = vector.extract_strided_slice %750 {offsets = [1, 0], sizes = [1, 16], strides = [1, 1]} : vector<4x16xf32> to vector<1x16xf32>
    %791 = vector.broadcast %789 : vector<16x1xf32> to vector<16x16xf32>
    %792 = vector.broadcast %790 : vector<1x16xf32> to vector<16x16xf32>
    %793 = arith.addf %791, %792 : vector<16x16xf32>
    %cst_299 = arith.constant 0.000000e+00 : f32
    %794 = vector.broadcast %cst_299 : f32 to vector<16x16xf32>
    %795 = arith.cmpf oge, %793, %794 : vector<16x16xf32>
    %cst_300 = arith.constant 2.000000e-01 : f32
    %796 = vector.broadcast %cst_300 : f32 to vector<16x16xf32>
    %797 = arith.mulf %796, %793 : vector<16x16xf32>
    %798 = arith.select %795, %793, %797 : vector<16x16xi1>, vector<16x16xf32>
    %cst_301 = arith.constant -1.000000e+30 : f32
    %799 = vector.broadcast %cst_301 : f32 to vector<16x16xf32>
    %800 = arith.select %755, %798, %799 : vector<16x16xi1>, vector<16x16xf32>
    %cst_302 = arith.constant dense<0xFF800000> : vector<16xf32>
    %801 = vector.multi_reduction <maximumf>, %800, %cst_302 [1] : vector<16x16xf32> to vector<16xf32>
    %802 = vector.shape_cast %801 : vector<16xf32> to vector<16x1xf32>
    %803 = vector.broadcast %802 : vector<16x1xf32> to vector<16x16xf32>
    %804 = arith.subf %800, %803 : vector<16x16xf32>
    %805 = math.exp %804 : vector<16x16xf32>
    %cst_303 = arith.constant 0.000000e+00 : f32
    %806 = vector.broadcast %cst_303 : f32 to vector<16x16xf32>
    %807 = arith.select %755, %805, %806 : vector<16x16xi1>, vector<16x16xf32>
    %cst_304 = arith.constant dense<0.000000e+00> : vector<16xf32>
    %808 = vector.multi_reduction <add>, %807, %cst_304 [1] : vector<16x16xf32> to vector<16xf32>
    %809 = vector.shape_cast %808 : vector<16xf32> to vector<16x1xf32>
    %810 = tpu.reciprocal %809 {approx = true} : vector<16x1xf32> -> vector<16x1xf32>
    %811 = vector.broadcast %810 : vector<16x1xf32> to vector<16x16xf32>
    %812 = arith.mulf %807, %811 : vector<16x16xf32>
    %cst_305 = arith.constant 0.000000e+00 : f32
    %813 = vector.shape_cast %10 : vector<1x144xi1> to vector<1x144xi1>
    %814 = vector.broadcast %813 : vector<1x144xi1> to vector<16x144xi1>
    %815 = vector.broadcast %cst_305 : f32 to vector<16x144xf32>
    %816 = arith.select %814, %745, %815 : vector<16x144xi1>, vector<16x144xf32>
    %cst_306 = arith.constant dense<0.000000e+00> : vector<16x144xf32>
    %817 = tpu.matmul %812, %816, %cst_306 {dimension_numbers = #tpu.dot_dimension_numbers<[1], [0], [0], [1], [0, 0, 1, 1], [], []>} : vector<16x16xf32>, vector<16x144xf32>, vector<16x144xf32> -> vector<16x144xf32>
    %818 = arith.addf %788, %817 : vector<16x144xf32>
    %819 = vector.extract_strided_slice %753 {offsets = [0, 2], sizes = [16, 1], strides = [1, 1]} : vector<16x4xf32> to vector<16x1xf32>
    %820 = vector.extract_strided_slice %750 {offsets = [2, 0], sizes = [1, 16], strides = [1, 1]} : vector<4x16xf32> to vector<1x16xf32>
    %821 = vector.broadcast %819 : vector<16x1xf32> to vector<16x16xf32>
    %822 = vector.broadcast %820 : vector<1x16xf32> to vector<16x16xf32>
    %823 = arith.addf %821, %822 : vector<16x16xf32>
    %cst_307 = arith.constant 0.000000e+00 : f32
    %824 = vector.broadcast %cst_307 : f32 to vector<16x16xf32>
    %825 = arith.cmpf oge, %823, %824 : vector<16x16xf32>
    %cst_308 = arith.constant 2.000000e-01 : f32
    %826 = vector.broadcast %cst_308 : f32 to vector<16x16xf32>
    %827 = arith.mulf %826, %823 : vector<16x16xf32>
    %828 = arith.select %825, %823, %827 : vector<16x16xi1>, vector<16x16xf32>
    %cst_309 = arith.constant -1.000000e+30 : f32
    %829 = vector.broadcast %cst_309 : f32 to vector<16x16xf32>
    %830 = arith.select %755, %828, %829 : vector<16x16xi1>, vector<16x16xf32>
    %cst_310 = arith.constant dense<0xFF800000> : vector<16xf32>
    %831 = vector.multi_reduction <maximumf>, %830, %cst_310 [1] : vector<16x16xf32> to vector<16xf32>
    %832 = vector.shape_cast %831 : vector<16xf32> to vector<16x1xf32>
    %833 = vector.broadcast %832 : vector<16x1xf32> to vector<16x16xf32>
    %834 = arith.subf %830, %833 : vector<16x16xf32>
    %835 = math.exp %834 : vector<16x16xf32>
    %cst_311 = arith.constant 0.000000e+00 : f32
    %836 = vector.broadcast %cst_311 : f32 to vector<16x16xf32>
    %837 = arith.select %755, %835, %836 : vector<16x16xi1>, vector<16x16xf32>
    %cst_312 = arith.constant dense<0.000000e+00> : vector<16xf32>
    %838 = vector.multi_reduction <add>, %837, %cst_312 [1] : vector<16x16xf32> to vector<16xf32>
    %839 = vector.shape_cast %838 : vector<16xf32> to vector<16x1xf32>
    %840 = tpu.reciprocal %839 {approx = true} : vector<16x1xf32> -> vector<16x1xf32>
    %841 = vector.broadcast %840 : vector<16x1xf32> to vector<16x16xf32>
    %842 = arith.mulf %837, %841 : vector<16x16xf32>
    %cst_313 = arith.constant 0.000000e+00 : f32
    %843 = vector.shape_cast %15 : vector<1x144xi1> to vector<1x144xi1>
    %844 = vector.broadcast %843 : vector<1x144xi1> to vector<16x144xi1>
    %845 = vector.broadcast %cst_313 : f32 to vector<16x144xf32>
    %846 = arith.select %844, %745, %845 : vector<16x144xi1>, vector<16x144xf32>
    %cst_314 = arith.constant dense<0.000000e+00> : vector<16x144xf32>
    %847 = tpu.matmul %842, %846, %cst_314 {dimension_numbers = #tpu.dot_dimension_numbers<[1], [0], [0], [1], [0, 0, 1, 1], [], []>} : vector<16x16xf32>, vector<16x144xf32>, vector<16x144xf32> -> vector<16x144xf32>
    %848 = arith.addf %818, %847 : vector<16x144xf32>
    %849 = vector.extract_strided_slice %753 {offsets = [0, 3], sizes = [16, 1], strides = [1, 1]} : vector<16x4xf32> to vector<16x1xf32>
    %850 = vector.extract_strided_slice %750 {offsets = [3, 0], sizes = [1, 16], strides = [1, 1]} : vector<4x16xf32> to vector<1x16xf32>
    %851 = vector.broadcast %849 : vector<16x1xf32> to vector<16x16xf32>
    %852 = vector.broadcast %850 : vector<1x16xf32> to vector<16x16xf32>
    %853 = arith.addf %851, %852 : vector<16x16xf32>
    %cst_315 = arith.constant 0.000000e+00 : f32
    %854 = vector.broadcast %cst_315 : f32 to vector<16x16xf32>
    %855 = arith.cmpf oge, %853, %854 : vector<16x16xf32>
    %cst_316 = arith.constant 2.000000e-01 : f32
    %856 = vector.broadcast %cst_316 : f32 to vector<16x16xf32>
    %857 = arith.mulf %856, %853 : vector<16x16xf32>
    %858 = arith.select %855, %853, %857 : vector<16x16xi1>, vector<16x16xf32>
    %cst_317 = arith.constant -1.000000e+30 : f32
    %859 = vector.broadcast %cst_317 : f32 to vector<16x16xf32>
    %860 = arith.select %755, %858, %859 : vector<16x16xi1>, vector<16x16xf32>
    %cst_318 = arith.constant dense<0xFF800000> : vector<16xf32>
    %861 = vector.multi_reduction <maximumf>, %860, %cst_318 [1] : vector<16x16xf32> to vector<16xf32>
    %862 = vector.shape_cast %861 : vector<16xf32> to vector<16x1xf32>
    %863 = vector.broadcast %862 : vector<16x1xf32> to vector<16x16xf32>
    %864 = arith.subf %860, %863 : vector<16x16xf32>
    %865 = math.exp %864 : vector<16x16xf32>
    %cst_319 = arith.constant 0.000000e+00 : f32
    %866 = vector.broadcast %cst_319 : f32 to vector<16x16xf32>
    %867 = arith.select %755, %865, %866 : vector<16x16xi1>, vector<16x16xf32>
    %cst_320 = arith.constant dense<0.000000e+00> : vector<16xf32>
    %868 = vector.multi_reduction <add>, %867, %cst_320 [1] : vector<16x16xf32> to vector<16xf32>
    %869 = vector.shape_cast %868 : vector<16xf32> to vector<16x1xf32>
    %870 = tpu.reciprocal %869 {approx = true} : vector<16x1xf32> -> vector<16x1xf32>
    %871 = vector.broadcast %870 : vector<16x1xf32> to vector<16x16xf32>
    %872 = arith.mulf %867, %871 : vector<16x16xf32>
    %cst_321 = arith.constant 0.000000e+00 : f32
    %873 = vector.shape_cast %20 : vector<1x144xi1> to vector<1x144xi1>
    %874 = vector.broadcast %873 : vector<1x144xi1> to vector<16x144xi1>
    %875 = vector.broadcast %cst_321 : f32 to vector<16x144xf32>
    %876 = arith.select %874, %745, %875 : vector<16x144xi1>, vector<16x144xf32>
    %cst_322 = arith.constant dense<0.000000e+00> : vector<16x144xf32>
    %877 = tpu.matmul %872, %876, %cst_322 {dimension_numbers = #tpu.dot_dimension_numbers<[1], [0], [0], [1], [0, 0, 1, 1], [], []>} : vector<16x16xf32>, vector<16x144xf32>, vector<16x144xf32> -> vector<16x144xf32>
    %878 = arith.addf %848, %877 : vector<16x144xf32>
    %cst_323 = arith.constant 0.000000e+00 : f32
    %879 = vector.broadcast %cst_323 : f32 to vector<16x144xf32>
    %880 = arith.cmpf ogt, %878, %879 : vector<16x144xf32>
    %cst_324 = arith.constant 0.000000e+00 : f32
    %881 = vector.broadcast %cst_324 : f32 to vector<16x144xf32>
    %882 = arith.minimumf %878, %881 : vector<16x144xf32>
    %883 = math.exp %882 : vector<16x144xf32>
    %cst_325 = arith.constant 1.000000e+00 : f32
    %884 = vector.broadcast %cst_325 : f32 to vector<16x144xf32>
    %885 = arith.subf %883, %884 : vector<16x144xf32>
    %886 = arith.select %880, %878, %885 : vector<16x144xi1>, vector<16x144xf32>
    %c1_326 = arith.constant 1 : index
    %c0_327 = arith.constant 0 : index
    %c0_328 = arith.constant 0 : index
    %887 = vector.load %arg4[%c1_326, %c0_327, %c0_328] : memref<2x8x144xf32, #tpu.memory_space<vmem>>, vector<1x8x144xf32>
    %888 = vector.shape_cast %887 : vector<1x8x144xf32> to vector<8x144xf32>
    %cst_329 = arith.constant dense<0.000000e+00> : vector<16x144xf32>
    %889 = tpu.matmul %61, %888, %cst_329 {dimension_numbers = #tpu.dot_dimension_numbers<[1], [0], [0], [1], [0, 0, 1, 1], [], []>} : vector<16x8xf32>, vector<8x144xf32>, vector<16x144xf32> -> vector<16x144xf32>
    %c1_330 = arith.constant 1 : index
    %c0_331 = arith.constant 0 : index
    %c0_332 = arith.constant 0 : index
    %890 = vector.load %arg5[%c1_330, %c0_331, %c0_332] : memref<2x42x144xf32, #tpu.memory_space<vmem>>, vector<1x42x144xf32>
    %891 = vector.shape_cast %890 : vector<1x42x144xf32> to vector<42x144xf32>
    %cst_333 = arith.constant dense<0.000000e+00> : vector<16x144xf32>
    %892 = tpu.matmul %60, %891, %cst_333 {dimension_numbers = #tpu.dot_dimension_numbers<[1], [0], [0], [1], [0, 0, 1, 1], [], []>} : vector<16x42xf32>, vector<42x144xf32>, vector<16x144xf32> -> vector<16x144xf32>
    %893 = arith.addf %889, %892 : vector<16x144xf32>
    %c3_334 = arith.constant 3 : index
    %c0_335 = arith.constant 0 : index
    %c0_336 = arith.constant 0 : index
    %894 = vector.load %arg0[%c3_334, %c0_335, %c0_336] : memref<4x16x16xf32, #tpu.memory_space<vmem>>, vector<1x16x16xf32>
    %895 = vector.shape_cast %894 : vector<1x16x16xf32> to vector<16x16xf32>
    %c1_337 = arith.constant 1 : index
    %c0_338 = arith.constant 0 : index
    %c0_339 = arith.constant 0 : index
    %896 = vector.load %arg7[%c1_337, %c0_338, %c0_339] : memref<4x4x144xf32, #tpu.memory_space<vmem>>, vector<1x4x144xf32>
    %897 = vector.shape_cast %896 : vector<1x4x144xf32> to vector<4x144xf32>
    %cst_340 = arith.constant dense<0.000000e+00> : vector<4x16xf32>
    %898 = tpu.matmul %897, %893, %cst_340 {dimension_numbers = #tpu.dot_dimension_numbers<[1], [1], [0], [0], [0, 0, 1, 0], [], []>} : vector<4x144xf32>, vector<16x144xf32>, vector<4x16xf32> -> vector<4x16xf32>
    %c1_341 = arith.constant 1 : index
    %c0_342 = arith.constant 0 : index
    %c0_343 = arith.constant 0 : index
    %899 = vector.load %arg8[%c1_341, %c0_342, %c0_343] : memref<4x144x4xf32, #tpu.memory_space<vmem>>, vector<1x144x4xf32>
    %900 = vector.shape_cast %899 : vector<1x144x4xf32> to vector<144x4xf32>
    %cst_344 = arith.constant dense<0.000000e+00> : vector<16x4xf32>
    %901 = tpu.matmul %893, %900, %cst_344 {dimension_numbers = #tpu.dot_dimension_numbers<[1], [0], [0], [1], [0, 0, 1, 1], [], []>} : vector<16x144xf32>, vector<144x4xf32>, vector<16x4xf32> -> vector<16x4xf32>
    %cst_345 = arith.constant 5.000000e-01 : f32
    %902 = vector.broadcast %cst_345 : f32 to vector<16x16xf32>
    %903 = arith.cmpf ogt, %895, %902 : vector<16x16xf32>
    %c1_346 = arith.constant 1 : index
    %c0_347 = arith.constant 0 : index
    %c0_348 = arith.constant 0 : index
    %904 = vector.load %arg9[%c1_346, %c0_347, %c0_348] : memref<4x1x144xf32, #tpu.memory_space<vmem>>, vector<1x1x144xf32>
    %905 = vector.shape_cast %904 : vector<1x1x144xf32> to vector<1x144xf32>
    %906 = vector.extract_strided_slice %901 {offsets = [0, 0], sizes = [16, 1], strides = [1, 1]} : vector<16x4xf32> to vector<16x1xf32>
    %907 = vector.extract_strided_slice %898 {offsets = [0, 0], sizes = [1, 16], strides = [1, 1]} : vector<4x16xf32> to vector<1x16xf32>
    %908 = vector.broadcast %906 : vector<16x1xf32> to vector<16x16xf32>
    %909 = vector.broadcast %907 : vector<1x16xf32> to vector<16x16xf32>
    %910 = arith.addf %908, %909 : vector<16x16xf32>
    %cst_349 = arith.constant 0.000000e+00 : f32
    %911 = vector.broadcast %cst_349 : f32 to vector<16x16xf32>
    %912 = arith.cmpf oge, %910, %911 : vector<16x16xf32>
    %cst_350 = arith.constant 2.000000e-01 : f32
    %913 = vector.broadcast %cst_350 : f32 to vector<16x16xf32>
    %914 = arith.mulf %913, %910 : vector<16x16xf32>
    %915 = arith.select %912, %910, %914 : vector<16x16xi1>, vector<16x16xf32>
    %cst_351 = arith.constant -1.000000e+30 : f32
    %916 = vector.broadcast %cst_351 : f32 to vector<16x16xf32>
    %917 = arith.select %903, %915, %916 : vector<16x16xi1>, vector<16x16xf32>
    %cst_352 = arith.constant dense<0xFF800000> : vector<16xf32>
    %918 = vector.multi_reduction <maximumf>, %917, %cst_352 [1] : vector<16x16xf32> to vector<16xf32>
    %919 = vector.shape_cast %918 : vector<16xf32> to vector<16x1xf32>
    %920 = vector.broadcast %919 : vector<16x1xf32> to vector<16x16xf32>
    %921 = arith.subf %917, %920 : vector<16x16xf32>
    %922 = math.exp %921 : vector<16x16xf32>
    %cst_353 = arith.constant 0.000000e+00 : f32
    %923 = vector.broadcast %cst_353 : f32 to vector<16x16xf32>
    %924 = arith.select %903, %922, %923 : vector<16x16xi1>, vector<16x16xf32>
    %cst_354 = arith.constant dense<0.000000e+00> : vector<16xf32>
    %925 = vector.multi_reduction <add>, %924, %cst_354 [1] : vector<16x16xf32> to vector<16xf32>
    %926 = vector.shape_cast %925 : vector<16xf32> to vector<16x1xf32>
    %927 = tpu.reciprocal %926 {approx = true} : vector<16x1xf32> -> vector<16x1xf32>
    %928 = vector.broadcast %927 : vector<16x1xf32> to vector<16x16xf32>
    %929 = arith.mulf %924, %928 : vector<16x16xf32>
    %cst_355 = arith.constant 0.000000e+00 : f32
    %930 = vector.shape_cast %5 : vector<1x144xi1> to vector<1x144xi1>
    %931 = vector.broadcast %930 : vector<1x144xi1> to vector<16x144xi1>
    %932 = vector.broadcast %cst_355 : f32 to vector<16x144xf32>
    %933 = arith.select %931, %893, %932 : vector<16x144xi1>, vector<16x144xf32>
    %cst_356 = arith.constant dense<0.000000e+00> : vector<16x144xf32>
    %934 = tpu.matmul %929, %933, %cst_356 {dimension_numbers = #tpu.dot_dimension_numbers<[1], [0], [0], [1], [0, 0, 1, 1], [], []>} : vector<16x16xf32>, vector<16x144xf32>, vector<16x144xf32> -> vector<16x144xf32>
    %935 = vector.broadcast %905 : vector<1x144xf32> to vector<16x144xf32>
    %936 = arith.addf %935, %934 : vector<16x144xf32>
    %937 = vector.extract_strided_slice %901 {offsets = [0, 1], sizes = [16, 1], strides = [1, 1]} : vector<16x4xf32> to vector<16x1xf32>
    %938 = vector.extract_strided_slice %898 {offsets = [1, 0], sizes = [1, 16], strides = [1, 1]} : vector<4x16xf32> to vector<1x16xf32>
    %939 = vector.broadcast %937 : vector<16x1xf32> to vector<16x16xf32>
    %940 = vector.broadcast %938 : vector<1x16xf32> to vector<16x16xf32>
    %941 = arith.addf %939, %940 : vector<16x16xf32>
    %cst_357 = arith.constant 0.000000e+00 : f32
    %942 = vector.broadcast %cst_357 : f32 to vector<16x16xf32>
    %943 = arith.cmpf oge, %941, %942 : vector<16x16xf32>
    %cst_358 = arith.constant 2.000000e-01 : f32
    %944 = vector.broadcast %cst_358 : f32 to vector<16x16xf32>
    %945 = arith.mulf %944, %941 : vector<16x16xf32>
    %946 = arith.select %943, %941, %945 : vector<16x16xi1>, vector<16x16xf32>
    %cst_359 = arith.constant -1.000000e+30 : f32
    %947 = vector.broadcast %cst_359 : f32 to vector<16x16xf32>
    %948 = arith.select %903, %946, %947 : vector<16x16xi1>, vector<16x16xf32>
    %cst_360 = arith.constant dense<0xFF800000> : vector<16xf32>
    %949 = vector.multi_reduction <maximumf>, %948, %cst_360 [1] : vector<16x16xf32> to vector<16xf32>
    %950 = vector.shape_cast %949 : vector<16xf32> to vector<16x1xf32>
    %951 = vector.broadcast %950 : vector<16x1xf32> to vector<16x16xf32>
    %952 = arith.subf %948, %951 : vector<16x16xf32>
    %953 = math.exp %952 : vector<16x16xf32>
    %cst_361 = arith.constant 0.000000e+00 : f32
    %954 = vector.broadcast %cst_361 : f32 to vector<16x16xf32>
    %955 = arith.select %903, %953, %954 : vector<16x16xi1>, vector<16x16xf32>
    %cst_362 = arith.constant dense<0.000000e+00> : vector<16xf32>
    %956 = vector.multi_reduction <add>, %955, %cst_362 [1] : vector<16x16xf32> to vector<16xf32>
    %957 = vector.shape_cast %956 : vector<16xf32> to vector<16x1xf32>
    %958 = tpu.reciprocal %957 {approx = true} : vector<16x1xf32> -> vector<16x1xf32>
    %959 = vector.broadcast %958 : vector<16x1xf32> to vector<16x16xf32>
    %960 = arith.mulf %955, %959 : vector<16x16xf32>
    %cst_363 = arith.constant 0.000000e+00 : f32
    %961 = vector.shape_cast %10 : vector<1x144xi1> to vector<1x144xi1>
    %962 = vector.broadcast %961 : vector<1x144xi1> to vector<16x144xi1>
    %963 = vector.broadcast %cst_363 : f32 to vector<16x144xf32>
    %964 = arith.select %962, %893, %963 : vector<16x144xi1>, vector<16x144xf32>
    %cst_364 = arith.constant dense<0.000000e+00> : vector<16x144xf32>
    %965 = tpu.matmul %960, %964, %cst_364 {dimension_numbers = #tpu.dot_dimension_numbers<[1], [0], [0], [1], [0, 0, 1, 1], [], []>} : vector<16x16xf32>, vector<16x144xf32>, vector<16x144xf32> -> vector<16x144xf32>
    %966 = arith.addf %936, %965 : vector<16x144xf32>
    %967 = vector.extract_strided_slice %901 {offsets = [0, 2], sizes = [16, 1], strides = [1, 1]} : vector<16x4xf32> to vector<16x1xf32>
    %968 = vector.extract_strided_slice %898 {offsets = [2, 0], sizes = [1, 16], strides = [1, 1]} : vector<4x16xf32> to vector<1x16xf32>
    %969 = vector.broadcast %967 : vector<16x1xf32> to vector<16x16xf32>
    %970 = vector.broadcast %968 : vector<1x16xf32> to vector<16x16xf32>
    %971 = arith.addf %969, %970 : vector<16x16xf32>
    %cst_365 = arith.constant 0.000000e+00 : f32
    %972 = vector.broadcast %cst_365 : f32 to vector<16x16xf32>
    %973 = arith.cmpf oge, %971, %972 : vector<16x16xf32>
    %cst_366 = arith.constant 2.000000e-01 : f32
    %974 = vector.broadcast %cst_366 : f32 to vector<16x16xf32>
    %975 = arith.mulf %974, %971 : vector<16x16xf32>
    %976 = arith.select %973, %971, %975 : vector<16x16xi1>, vector<16x16xf32>
    %cst_367 = arith.constant -1.000000e+30 : f32
    %977 = vector.broadcast %cst_367 : f32 to vector<16x16xf32>
    %978 = arith.select %903, %976, %977 : vector<16x16xi1>, vector<16x16xf32>
    %cst_368 = arith.constant dense<0xFF800000> : vector<16xf32>
    %979 = vector.multi_reduction <maximumf>, %978, %cst_368 [1] : vector<16x16xf32> to vector<16xf32>
    %980 = vector.shape_cast %979 : vector<16xf32> to vector<16x1xf32>
    %981 = vector.broadcast %980 : vector<16x1xf32> to vector<16x16xf32>
    %982 = arith.subf %978, %981 : vector<16x16xf32>
    %983 = math.exp %982 : vector<16x16xf32>
    %cst_369 = arith.constant 0.000000e+00 : f32
    %984 = vector.broadcast %cst_369 : f32 to vector<16x16xf32>
    %985 = arith.select %903, %983, %984 : vector<16x16xi1>, vector<16x16xf32>
    %cst_370 = arith.constant dense<0.000000e+00> : vector<16xf32>
    %986 = vector.multi_reduction <add>, %985, %cst_370 [1] : vector<16x16xf32> to vector<16xf32>
    %987 = vector.shape_cast %986 : vector<16xf32> to vector<16x1xf32>
    %988 = tpu.reciprocal %987 {approx = true} : vector<16x1xf32> -> vector<16x1xf32>
    %989 = vector.broadcast %988 : vector<16x1xf32> to vector<16x16xf32>
    %990 = arith.mulf %985, %989 : vector<16x16xf32>
    %cst_371 = arith.constant 0.000000e+00 : f32
    %991 = vector.shape_cast %15 : vector<1x144xi1> to vector<1x144xi1>
    %992 = vector.broadcast %991 : vector<1x144xi1> to vector<16x144xi1>
    %993 = vector.broadcast %cst_371 : f32 to vector<16x144xf32>
    %994 = arith.select %992, %893, %993 : vector<16x144xi1>, vector<16x144xf32>
    %cst_372 = arith.constant dense<0.000000e+00> : vector<16x144xf32>
    %995 = tpu.matmul %990, %994, %cst_372 {dimension_numbers = #tpu.dot_dimension_numbers<[1], [0], [0], [1], [0, 0, 1, 1], [], []>} : vector<16x16xf32>, vector<16x144xf32>, vector<16x144xf32> -> vector<16x144xf32>
    %996 = arith.addf %966, %995 : vector<16x144xf32>
    %997 = vector.extract_strided_slice %901 {offsets = [0, 3], sizes = [16, 1], strides = [1, 1]} : vector<16x4xf32> to vector<16x1xf32>
    %998 = vector.extract_strided_slice %898 {offsets = [3, 0], sizes = [1, 16], strides = [1, 1]} : vector<4x16xf32> to vector<1x16xf32>
    %999 = vector.broadcast %997 : vector<16x1xf32> to vector<16x16xf32>
    %1000 = vector.broadcast %998 : vector<1x16xf32> to vector<16x16xf32>
    %1001 = arith.addf %999, %1000 : vector<16x16xf32>
    %cst_373 = arith.constant 0.000000e+00 : f32
    %1002 = vector.broadcast %cst_373 : f32 to vector<16x16xf32>
    %1003 = arith.cmpf oge, %1001, %1002 : vector<16x16xf32>
    %cst_374 = arith.constant 2.000000e-01 : f32
    %1004 = vector.broadcast %cst_374 : f32 to vector<16x16xf32>
    %1005 = arith.mulf %1004, %1001 : vector<16x16xf32>
    %1006 = arith.select %1003, %1001, %1005 : vector<16x16xi1>, vector<16x16xf32>
    %cst_375 = arith.constant -1.000000e+30 : f32
    %1007 = vector.broadcast %cst_375 : f32 to vector<16x16xf32>
    %1008 = arith.select %903, %1006, %1007 : vector<16x16xi1>, vector<16x16xf32>
    %cst_376 = arith.constant dense<0xFF800000> : vector<16xf32>
    %1009 = vector.multi_reduction <maximumf>, %1008, %cst_376 [1] : vector<16x16xf32> to vector<16xf32>
    %1010 = vector.shape_cast %1009 : vector<16xf32> to vector<16x1xf32>
    %1011 = vector.broadcast %1010 : vector<16x1xf32> to vector<16x16xf32>
    %1012 = arith.subf %1008, %1011 : vector<16x16xf32>
    %1013 = math.exp %1012 : vector<16x16xf32>
    %cst_377 = arith.constant 0.000000e+00 : f32
    %1014 = vector.broadcast %cst_377 : f32 to vector<16x16xf32>
    %1015 = arith.select %903, %1013, %1014 : vector<16x16xi1>, vector<16x16xf32>
    %cst_378 = arith.constant dense<0.000000e+00> : vector<16xf32>
    %1016 = vector.multi_reduction <add>, %1015, %cst_378 [1] : vector<16x16xf32> to vector<16xf32>
    %1017 = vector.shape_cast %1016 : vector<16xf32> to vector<16x1xf32>
    %1018 = tpu.reciprocal %1017 {approx = true} : vector<16x1xf32> -> vector<16x1xf32>
    %1019 = vector.broadcast %1018 : vector<16x1xf32> to vector<16x16xf32>
    %1020 = arith.mulf %1015, %1019 : vector<16x16xf32>
    %cst_379 = arith.constant 0.000000e+00 : f32
    %1021 = vector.shape_cast %20 : vector<1x144xi1> to vector<1x144xi1>
    %1022 = vector.broadcast %1021 : vector<1x144xi1> to vector<16x144xi1>
    %1023 = vector.broadcast %cst_379 : f32 to vector<16x144xf32>
    %1024 = arith.select %1022, %893, %1023 : vector<16x144xi1>, vector<16x144xf32>
    %cst_380 = arith.constant dense<0.000000e+00> : vector<16x144xf32>
    %1025 = tpu.matmul %1020, %1024, %cst_380 {dimension_numbers = #tpu.dot_dimension_numbers<[1], [0], [0], [1], [0, 0, 1, 1], [], []>} : vector<16x16xf32>, vector<16x144xf32>, vector<16x144xf32> -> vector<16x144xf32>
    %1026 = arith.addf %996, %1025 : vector<16x144xf32>
    %cst_381 = arith.constant 0.000000e+00 : f32
    %1027 = vector.broadcast %cst_381 : f32 to vector<16x144xf32>
    %1028 = arith.cmpf ogt, %1026, %1027 : vector<16x144xf32>
    %cst_382 = arith.constant 0.000000e+00 : f32
    %1029 = vector.broadcast %cst_382 : f32 to vector<16x144xf32>
    %1030 = arith.minimumf %1026, %1029 : vector<16x144xf32>
    %1031 = math.exp %1030 : vector<16x144xf32>
    %cst_383 = arith.constant 1.000000e+00 : f32
    %1032 = vector.broadcast %cst_383 : f32 to vector<16x144xf32>
    %1033 = arith.subf %1031, %1032 : vector<16x144xf32>
    %1034 = arith.select %1028, %1026, %1033 : vector<16x144xi1>, vector<16x144xf32>
    %c0_384 = arith.constant 0 : index
    %c0_385 = arith.constant 0 : index
    %c0_386 = arith.constant 0 : index
    %1035 = vector.load %arg10[%c0_384, %c0_385, %c0_386] : memref<2x144x128xf32, #tpu.memory_space<vmem>>, vector<1x144x128xf32>
    %1036 = vector.shape_cast %1035 : vector<1x144x128xf32> to vector<144x128xf32>
    %c2_387 = arith.constant 2 : index
    %c0_388 = arith.constant 0 : index
    %1037 = vector.load %arg14[%c2_387, %c0_388] : memref<10x128xf32, #tpu.memory_space<vmem>>, vector<1x128xf32>
    %c3_389 = arith.constant 3 : index
    %c0_390 = arith.constant 0 : index
    %1038 = vector.load %arg14[%c3_389, %c0_390] : memref<10x128xf32, #tpu.memory_space<vmem>>, vector<1x128xf32>
    %cst_391 = arith.constant dense<0.000000e+00> : vector<16x128xf32>
    %1039 = tpu.matmul %886, %1036, %cst_391 {dimension_numbers = #tpu.dot_dimension_numbers<[1], [0], [0], [1], [0, 0, 1, 1], [], []>} : vector<16x144xf32>, vector<144x128xf32>, vector<16x128xf32> -> vector<16x128xf32>
    %1040 = vector.broadcast %1037 : vector<1x128xf32> to vector<16x128xf32>
    %1041 = arith.addf %1039, %1040 : vector<16x128xf32>
    %1042 = math.tanh %1041 : vector<16x128xf32>
    %1043 = vector.broadcast %1038 : vector<1x128xf32> to vector<16x128xf32>
    %1044 = arith.mulf %1042, %1043 : vector<16x128xf32>
    %cst_392 = arith.constant dense<0.000000e+00> : vector<16xf32>
    %1045 = vector.multi_reduction <add>, %1044, %cst_392 [1] : vector<16x128xf32> to vector<16xf32>
    %1046 = vector.shape_cast %1045 : vector<16xf32> to vector<16x1xf32>
    %1047 = vector.shape_cast %1046 : vector<16x1xf32> to vector<1x16x1xf32>
    %cst_393 = arith.constant dense<0.000000e+00> : vector<1xf32>
    %1048 = vector.multi_reduction <add>, %1047, %cst_393 [1, 2] : vector<1x16x1xf32> to vector<1xf32>
    %1049 = vector.shape_cast %1048 : vector<1xf32> to vector<1x1x1xf32>
    %1050 = vector.extract %1049[0, 0, 0] : f32 from vector<1x1x1xf32>
    %cst_394 = arith.constant 1.600000e+01 : f32
    %1051 = arith.divf %1050, %cst_394 : f32
    %cst_395 = arith.constant dense<0.000000e+00> : vector<16x128xf32>
    %1052 = tpu.matmul %1034, %1036, %cst_395 {dimension_numbers = #tpu.dot_dimension_numbers<[1], [0], [0], [1], [0, 0, 1, 1], [], []>} : vector<16x144xf32>, vector<144x128xf32>, vector<16x128xf32> -> vector<16x128xf32>
    %1053 = vector.broadcast %1037 : vector<1x128xf32> to vector<16x128xf32>
    %1054 = arith.addf %1052, %1053 : vector<16x128xf32>
    %1055 = math.tanh %1054 : vector<16x128xf32>
    %1056 = vector.broadcast %1038 : vector<1x128xf32> to vector<16x128xf32>
    %1057 = arith.mulf %1055, %1056 : vector<16x128xf32>
    %cst_396 = arith.constant dense<0.000000e+00> : vector<16xf32>
    %1058 = vector.multi_reduction <add>, %1057, %cst_396 [1] : vector<16x128xf32> to vector<16xf32>
    %1059 = vector.shape_cast %1058 : vector<16xf32> to vector<16x1xf32>
    %1060 = vector.shape_cast %1059 : vector<16x1xf32> to vector<1x16x1xf32>
    %cst_397 = arith.constant dense<0.000000e+00> : vector<1xf32>
    %1061 = vector.multi_reduction <add>, %1060, %cst_397 [1, 2] : vector<1x16x1xf32> to vector<1xf32>
    %1062 = vector.shape_cast %1061 : vector<1xf32> to vector<1x1x1xf32>
    %1063 = vector.extract %1062[0, 0, 0] : f32 from vector<1x1x1xf32>
    %cst_398 = arith.constant 1.600000e+01 : f32
    %1064 = arith.divf %1063, %cst_398 : f32
    %1065 = arith.maximumf %1051, %1064 : f32
    %1066 = arith.subf %1051, %1065 : f32
    %1067 = math.exp %1066 : f32
    %1068 = arith.subf %1064, %1065 : f32
    %1069 = math.exp %1068 : f32
    %1070 = arith.addf %1067, %1069 : f32
    %cst_399 = arith.constant 1.000000e+00 : f32
    %1071 = arith.divf %cst_399, %1070 : f32
    %1072 = arith.mulf %1067, %1071 : f32
    %1073 = vector.broadcast %1072 : f32 to vector<16x144xf32>
    %1074 = arith.mulf %1073, %886 : vector<16x144xf32>
    %1075 = arith.mulf %1069, %1071 : f32
    %1076 = vector.broadcast %1075 : f32 to vector<16x144xf32>
    %1077 = arith.mulf %1076, %1034 : vector<16x144xf32>
    %1078 = arith.addf %1074, %1077 : vector<16x144xf32>
    %c0_400 = arith.constant 0 : index
    %c0_401 = arith.constant 0 : index
    %c0_402 = arith.constant 0 : index
    %1079 = vector.load %arg6[%c0_400, %c0_401, %c0_402] : memref<2x144x144xf32, #tpu.memory_space<vmem>>, vector<1x144x144xf32>
    %1080 = vector.shape_cast %1079 : vector<1x144x144xf32> to vector<144x144xf32>
    %cst_403 = arith.constant dense<0.000000e+00> : vector<16x144xf32>
    %1081 = tpu.matmul %1078, %1080, %cst_403 {dimension_numbers = #tpu.dot_dimension_numbers<[1], [0], [0], [1], [0, 0, 1, 1], [], []>} : vector<16x144xf32>, vector<144x144xf32>, vector<16x144xf32> -> vector<16x144xf32>
    %c2_404 = arith.constant 2 : index
    %c0_405 = arith.constant 0 : index
    %c0_406 = arith.constant 0 : index
    %1082 = vector.load %arg0[%c2_404, %c0_405, %c0_406] : memref<4x16x16xf32, #tpu.memory_space<vmem>>, vector<1x16x16xf32>
    %1083 = vector.shape_cast %1082 : vector<1x16x16xf32> to vector<16x16xf32>
    %c2_407 = arith.constant 2 : index
    %c0_408 = arith.constant 0 : index
    %c0_409 = arith.constant 0 : index
    %1084 = vector.load %arg7[%c2_407, %c0_408, %c0_409] : memref<4x4x144xf32, #tpu.memory_space<vmem>>, vector<1x4x144xf32>
    %1085 = vector.shape_cast %1084 : vector<1x4x144xf32> to vector<4x144xf32>
    %cst_410 = arith.constant dense<0.000000e+00> : vector<4x16xf32>
    %1086 = tpu.matmul %1085, %1081, %cst_410 {dimension_numbers = #tpu.dot_dimension_numbers<[1], [1], [0], [0], [0, 0, 1, 0], [], []>} : vector<4x144xf32>, vector<16x144xf32>, vector<4x16xf32> -> vector<4x16xf32>
    %c2_411 = arith.constant 2 : index
    %c0_412 = arith.constant 0 : index
    %c0_413 = arith.constant 0 : index
    %1087 = vector.load %arg8[%c2_411, %c0_412, %c0_413] : memref<4x144x4xf32, #tpu.memory_space<vmem>>, vector<1x144x4xf32>
    %1088 = vector.shape_cast %1087 : vector<1x144x4xf32> to vector<144x4xf32>
    %cst_414 = arith.constant dense<0.000000e+00> : vector<16x4xf32>
    %1089 = tpu.matmul %1081, %1088, %cst_414 {dimension_numbers = #tpu.dot_dimension_numbers<[1], [0], [0], [1], [0, 0, 1, 1], [], []>} : vector<16x144xf32>, vector<144x4xf32>, vector<16x4xf32> -> vector<16x4xf32>
    %cst_415 = arith.constant 5.000000e-01 : f32
    %1090 = vector.broadcast %cst_415 : f32 to vector<16x16xf32>
    %1091 = arith.cmpf ogt, %1083, %1090 : vector<16x16xf32>
    %c2_416 = arith.constant 2 : index
    %c0_417 = arith.constant 0 : index
    %c0_418 = arith.constant 0 : index
    %1092 = vector.load %arg9[%c2_416, %c0_417, %c0_418] : memref<4x1x144xf32, #tpu.memory_space<vmem>>, vector<1x1x144xf32>
    %1093 = vector.shape_cast %1092 : vector<1x1x144xf32> to vector<1x144xf32>
    %1094 = vector.extract_strided_slice %1089 {offsets = [0, 0], sizes = [16, 1], strides = [1, 1]} : vector<16x4xf32> to vector<16x1xf32>
    %1095 = vector.extract_strided_slice %1086 {offsets = [0, 0], sizes = [1, 16], strides = [1, 1]} : vector<4x16xf32> to vector<1x16xf32>
    %1096 = vector.broadcast %1094 : vector<16x1xf32> to vector<16x16xf32>
    %1097 = vector.broadcast %1095 : vector<1x16xf32> to vector<16x16xf32>
    %1098 = arith.addf %1096, %1097 : vector<16x16xf32>
    %cst_419 = arith.constant 0.000000e+00 : f32
    %1099 = vector.broadcast %cst_419 : f32 to vector<16x16xf32>
    %1100 = arith.cmpf oge, %1098, %1099 : vector<16x16xf32>
    %cst_420 = arith.constant 2.000000e-01 : f32
    %1101 = vector.broadcast %cst_420 : f32 to vector<16x16xf32>
    %1102 = arith.mulf %1101, %1098 : vector<16x16xf32>
    %1103 = arith.select %1100, %1098, %1102 : vector<16x16xi1>, vector<16x16xf32>
    %cst_421 = arith.constant -1.000000e+30 : f32
    %1104 = vector.broadcast %cst_421 : f32 to vector<16x16xf32>
    %1105 = arith.select %1091, %1103, %1104 : vector<16x16xi1>, vector<16x16xf32>
    %cst_422 = arith.constant dense<0xFF800000> : vector<16xf32>
    %1106 = vector.multi_reduction <maximumf>, %1105, %cst_422 [1] : vector<16x16xf32> to vector<16xf32>
    %1107 = vector.shape_cast %1106 : vector<16xf32> to vector<16x1xf32>
    %1108 = vector.broadcast %1107 : vector<16x1xf32> to vector<16x16xf32>
    %1109 = arith.subf %1105, %1108 : vector<16x16xf32>
    %1110 = math.exp %1109 : vector<16x16xf32>
    %cst_423 = arith.constant 0.000000e+00 : f32
    %1111 = vector.broadcast %cst_423 : f32 to vector<16x16xf32>
    %1112 = arith.select %1091, %1110, %1111 : vector<16x16xi1>, vector<16x16xf32>
    %cst_424 = arith.constant dense<0.000000e+00> : vector<16xf32>
    %1113 = vector.multi_reduction <add>, %1112, %cst_424 [1] : vector<16x16xf32> to vector<16xf32>
    %1114 = vector.shape_cast %1113 : vector<16xf32> to vector<16x1xf32>
    %1115 = tpu.reciprocal %1114 {approx = true} : vector<16x1xf32> -> vector<16x1xf32>
    %1116 = vector.broadcast %1115 : vector<16x1xf32> to vector<16x16xf32>
    %1117 = arith.mulf %1112, %1116 : vector<16x16xf32>
    %cst_425 = arith.constant 0.000000e+00 : f32
    %1118 = vector.shape_cast %5 : vector<1x144xi1> to vector<1x144xi1>
    %1119 = vector.broadcast %1118 : vector<1x144xi1> to vector<16x144xi1>
    %1120 = vector.broadcast %cst_425 : f32 to vector<16x144xf32>
    %1121 = arith.select %1119, %1081, %1120 : vector<16x144xi1>, vector<16x144xf32>
    %cst_426 = arith.constant dense<0.000000e+00> : vector<16x144xf32>
    %1122 = tpu.matmul %1117, %1121, %cst_426 {dimension_numbers = #tpu.dot_dimension_numbers<[1], [0], [0], [1], [0, 0, 1, 1], [], []>} : vector<16x16xf32>, vector<16x144xf32>, vector<16x144xf32> -> vector<16x144xf32>
    %1123 = vector.broadcast %1093 : vector<1x144xf32> to vector<16x144xf32>
    %1124 = arith.addf %1123, %1122 : vector<16x144xf32>
    %1125 = vector.extract_strided_slice %1089 {offsets = [0, 1], sizes = [16, 1], strides = [1, 1]} : vector<16x4xf32> to vector<16x1xf32>
    %1126 = vector.extract_strided_slice %1086 {offsets = [1, 0], sizes = [1, 16], strides = [1, 1]} : vector<4x16xf32> to vector<1x16xf32>
    %1127 = vector.broadcast %1125 : vector<16x1xf32> to vector<16x16xf32>
    %1128 = vector.broadcast %1126 : vector<1x16xf32> to vector<16x16xf32>
    %1129 = arith.addf %1127, %1128 : vector<16x16xf32>
    %cst_427 = arith.constant 0.000000e+00 : f32
    %1130 = vector.broadcast %cst_427 : f32 to vector<16x16xf32>
    %1131 = arith.cmpf oge, %1129, %1130 : vector<16x16xf32>
    %cst_428 = arith.constant 2.000000e-01 : f32
    %1132 = vector.broadcast %cst_428 : f32 to vector<16x16xf32>
    %1133 = arith.mulf %1132, %1129 : vector<16x16xf32>
    %1134 = arith.select %1131, %1129, %1133 : vector<16x16xi1>, vector<16x16xf32>
    %cst_429 = arith.constant -1.000000e+30 : f32
    %1135 = vector.broadcast %cst_429 : f32 to vector<16x16xf32>
    %1136 = arith.select %1091, %1134, %1135 : vector<16x16xi1>, vector<16x16xf32>
    %cst_430 = arith.constant dense<0xFF800000> : vector<16xf32>
    %1137 = vector.multi_reduction <maximumf>, %1136, %cst_430 [1] : vector<16x16xf32> to vector<16xf32>
    %1138 = vector.shape_cast %1137 : vector<16xf32> to vector<16x1xf32>
    %1139 = vector.broadcast %1138 : vector<16x1xf32> to vector<16x16xf32>
    %1140 = arith.subf %1136, %1139 : vector<16x16xf32>
    %1141 = math.exp %1140 : vector<16x16xf32>
    %cst_431 = arith.constant 0.000000e+00 : f32
    %1142 = vector.broadcast %cst_431 : f32 to vector<16x16xf32>
    %1143 = arith.select %1091, %1141, %1142 : vector<16x16xi1>, vector<16x16xf32>
    %cst_432 = arith.constant dense<0.000000e+00> : vector<16xf32>
    %1144 = vector.multi_reduction <add>, %1143, %cst_432 [1] : vector<16x16xf32> to vector<16xf32>
    %1145 = vector.shape_cast %1144 : vector<16xf32> to vector<16x1xf32>
    %1146 = tpu.reciprocal %1145 {approx = true} : vector<16x1xf32> -> vector<16x1xf32>
    %1147 = vector.broadcast %1146 : vector<16x1xf32> to vector<16x16xf32>
    %1148 = arith.mulf %1143, %1147 : vector<16x16xf32>
    %cst_433 = arith.constant 0.000000e+00 : f32
    %1149 = vector.shape_cast %10 : vector<1x144xi1> to vector<1x144xi1>
    %1150 = vector.broadcast %1149 : vector<1x144xi1> to vector<16x144xi1>
    %1151 = vector.broadcast %cst_433 : f32 to vector<16x144xf32>
    %1152 = arith.select %1150, %1081, %1151 : vector<16x144xi1>, vector<16x144xf32>
    %cst_434 = arith.constant dense<0.000000e+00> : vector<16x144xf32>
    %1153 = tpu.matmul %1148, %1152, %cst_434 {dimension_numbers = #tpu.dot_dimension_numbers<[1], [0], [0], [1], [0, 0, 1, 1], [], []>} : vector<16x16xf32>, vector<16x144xf32>, vector<16x144xf32> -> vector<16x144xf32>
    %1154 = arith.addf %1124, %1153 : vector<16x144xf32>
    %1155 = vector.extract_strided_slice %1089 {offsets = [0, 2], sizes = [16, 1], strides = [1, 1]} : vector<16x4xf32> to vector<16x1xf32>
    %1156 = vector.extract_strided_slice %1086 {offsets = [2, 0], sizes = [1, 16], strides = [1, 1]} : vector<4x16xf32> to vector<1x16xf32>
    %1157 = vector.broadcast %1155 : vector<16x1xf32> to vector<16x16xf32>
    %1158 = vector.broadcast %1156 : vector<1x16xf32> to vector<16x16xf32>
    %1159 = arith.addf %1157, %1158 : vector<16x16xf32>
    %cst_435 = arith.constant 0.000000e+00 : f32
    %1160 = vector.broadcast %cst_435 : f32 to vector<16x16xf32>
    %1161 = arith.cmpf oge, %1159, %1160 : vector<16x16xf32>
    %cst_436 = arith.constant 2.000000e-01 : f32
    %1162 = vector.broadcast %cst_436 : f32 to vector<16x16xf32>
    %1163 = arith.mulf %1162, %1159 : vector<16x16xf32>
    %1164 = arith.select %1161, %1159, %1163 : vector<16x16xi1>, vector<16x16xf32>
    %cst_437 = arith.constant -1.000000e+30 : f32
    %1165 = vector.broadcast %cst_437 : f32 to vector<16x16xf32>
    %1166 = arith.select %1091, %1164, %1165 : vector<16x16xi1>, vector<16x16xf32>
    %cst_438 = arith.constant dense<0xFF800000> : vector<16xf32>
    %1167 = vector.multi_reduction <maximumf>, %1166, %cst_438 [1] : vector<16x16xf32> to vector<16xf32>
    %1168 = vector.shape_cast %1167 : vector<16xf32> to vector<16x1xf32>
    %1169 = vector.broadcast %1168 : vector<16x1xf32> to vector<16x16xf32>
    %1170 = arith.subf %1166, %1169 : vector<16x16xf32>
    %1171 = math.exp %1170 : vector<16x16xf32>
    %cst_439 = arith.constant 0.000000e+00 : f32
    %1172 = vector.broadcast %cst_439 : f32 to vector<16x16xf32>
    %1173 = arith.select %1091, %1171, %1172 : vector<16x16xi1>, vector<16x16xf32>
    %cst_440 = arith.constant dense<0.000000e+00> : vector<16xf32>
    %1174 = vector.multi_reduction <add>, %1173, %cst_440 [1] : vector<16x16xf32> to vector<16xf32>
    %1175 = vector.shape_cast %1174 : vector<16xf32> to vector<16x1xf32>
    %1176 = tpu.reciprocal %1175 {approx = true} : vector<16x1xf32> -> vector<16x1xf32>
    %1177 = vector.broadcast %1176 : vector<16x1xf32> to vector<16x16xf32>
    %1178 = arith.mulf %1173, %1177 : vector<16x16xf32>
    %cst_441 = arith.constant 0.000000e+00 : f32
    %1179 = vector.shape_cast %15 : vector<1x144xi1> to vector<1x144xi1>
    %1180 = vector.broadcast %1179 : vector<1x144xi1> to vector<16x144xi1>
    %1181 = vector.broadcast %cst_441 : f32 to vector<16x144xf32>
    %1182 = arith.select %1180, %1081, %1181 : vector<16x144xi1>, vector<16x144xf32>
    %cst_442 = arith.constant dense<0.000000e+00> : vector<16x144xf32>
    %1183 = tpu.matmul %1178, %1182, %cst_442 {dimension_numbers = #tpu.dot_dimension_numbers<[1], [0], [0], [1], [0, 0, 1, 1], [], []>} : vector<16x16xf32>, vector<16x144xf32>, vector<16x144xf32> -> vector<16x144xf32>
    %1184 = arith.addf %1154, %1183 : vector<16x144xf32>
    %1185 = vector.extract_strided_slice %1089 {offsets = [0, 3], sizes = [16, 1], strides = [1, 1]} : vector<16x4xf32> to vector<16x1xf32>
    %1186 = vector.extract_strided_slice %1086 {offsets = [3, 0], sizes = [1, 16], strides = [1, 1]} : vector<4x16xf32> to vector<1x16xf32>
    %1187 = vector.broadcast %1185 : vector<16x1xf32> to vector<16x16xf32>
    %1188 = vector.broadcast %1186 : vector<1x16xf32> to vector<16x16xf32>
    %1189 = arith.addf %1187, %1188 : vector<16x16xf32>
    %cst_443 = arith.constant 0.000000e+00 : f32
    %1190 = vector.broadcast %cst_443 : f32 to vector<16x16xf32>
    %1191 = arith.cmpf oge, %1189, %1190 : vector<16x16xf32>
    %cst_444 = arith.constant 2.000000e-01 : f32
    %1192 = vector.broadcast %cst_444 : f32 to vector<16x16xf32>
    %1193 = arith.mulf %1192, %1189 : vector<16x16xf32>
    %1194 = arith.select %1191, %1189, %1193 : vector<16x16xi1>, vector<16x16xf32>
    %cst_445 = arith.constant -1.000000e+30 : f32
    %1195 = vector.broadcast %cst_445 : f32 to vector<16x16xf32>
    %1196 = arith.select %1091, %1194, %1195 : vector<16x16xi1>, vector<16x16xf32>
    %cst_446 = arith.constant dense<0xFF800000> : vector<16xf32>
    %1197 = vector.multi_reduction <maximumf>, %1196, %cst_446 [1] : vector<16x16xf32> to vector<16xf32>
    %1198 = vector.shape_cast %1197 : vector<16xf32> to vector<16x1xf32>
    %1199 = vector.broadcast %1198 : vector<16x1xf32> to vector<16x16xf32>
    %1200 = arith.subf %1196, %1199 : vector<16x16xf32>
    %1201 = math.exp %1200 : vector<16x16xf32>
    %cst_447 = arith.constant 0.000000e+00 : f32
    %1202 = vector.broadcast %cst_447 : f32 to vector<16x16xf32>
    %1203 = arith.select %1091, %1201, %1202 : vector<16x16xi1>, vector<16x16xf32>
    %cst_448 = arith.constant dense<0.000000e+00> : vector<16xf32>
    %1204 = vector.multi_reduction <add>, %1203, %cst_448 [1] : vector<16x16xf32> to vector<16xf32>
    %1205 = vector.shape_cast %1204 : vector<16xf32> to vector<16x1xf32>
    %1206 = tpu.reciprocal %1205 {approx = true} : vector<16x1xf32> -> vector<16x1xf32>
    %1207 = vector.broadcast %1206 : vector<16x1xf32> to vector<16x16xf32>
    %1208 = arith.mulf %1203, %1207 : vector<16x16xf32>
    %cst_449 = arith.constant 0.000000e+00 : f32
    %1209 = vector.shape_cast %20 : vector<1x144xi1> to vector<1x144xi1>
    %1210 = vector.broadcast %1209 : vector<1x144xi1> to vector<16x144xi1>
    %1211 = vector.broadcast %cst_449 : f32 to vector<16x144xf32>
    %1212 = arith.select %1210, %1081, %1211 : vector<16x144xi1>, vector<16x144xf32>
    %cst_450 = arith.constant dense<0.000000e+00> : vector<16x144xf32>
    %1213 = tpu.matmul %1208, %1212, %cst_450 {dimension_numbers = #tpu.dot_dimension_numbers<[1], [0], [0], [1], [0, 0, 1, 1], [], []>} : vector<16x16xf32>, vector<16x144xf32>, vector<16x144xf32> -> vector<16x144xf32>
    %1214 = arith.addf %1184, %1213 : vector<16x144xf32>
    %cst_451 = arith.constant 0.000000e+00 : f32
    %1215 = vector.broadcast %cst_451 : f32 to vector<16x144xf32>
    %1216 = arith.cmpf ogt, %1214, %1215 : vector<16x144xf32>
    %cst_452 = arith.constant 0.000000e+00 : f32
    %1217 = vector.broadcast %cst_452 : f32 to vector<16x144xf32>
    %1218 = arith.minimumf %1214, %1217 : vector<16x144xf32>
    %1219 = math.exp %1218 : vector<16x144xf32>
    %cst_453 = arith.constant 1.000000e+00 : f32
    %1220 = vector.broadcast %cst_453 : f32 to vector<16x144xf32>
    %1221 = arith.subf %1219, %1220 : vector<16x144xf32>
    %1222 = arith.select %1216, %1214, %1221 : vector<16x144xi1>, vector<16x144xf32>
    %c1_454 = arith.constant 1 : index
    %c0_455 = arith.constant 0 : index
    %c0_456 = arith.constant 0 : index
    %1223 = vector.load %arg6[%c1_454, %c0_455, %c0_456] : memref<2x144x144xf32, #tpu.memory_space<vmem>>, vector<1x144x144xf32>
    %1224 = vector.shape_cast %1223 : vector<1x144x144xf32> to vector<144x144xf32>
    %cst_457 = arith.constant dense<0.000000e+00> : vector<16x144xf32>
    %1225 = tpu.matmul %1078, %1224, %cst_457 {dimension_numbers = #tpu.dot_dimension_numbers<[1], [0], [0], [1], [0, 0, 1, 1], [], []>} : vector<16x144xf32>, vector<144x144xf32>, vector<16x144xf32> -> vector<16x144xf32>
    %c3_458 = arith.constant 3 : index
    %c0_459 = arith.constant 0 : index
    %c0_460 = arith.constant 0 : index
    %1226 = vector.load %arg0[%c3_458, %c0_459, %c0_460] : memref<4x16x16xf32, #tpu.memory_space<vmem>>, vector<1x16x16xf32>
    %1227 = vector.shape_cast %1226 : vector<1x16x16xf32> to vector<16x16xf32>
    %c3_461 = arith.constant 3 : index
    %c0_462 = arith.constant 0 : index
    %c0_463 = arith.constant 0 : index
    %1228 = vector.load %arg7[%c3_461, %c0_462, %c0_463] : memref<4x4x144xf32, #tpu.memory_space<vmem>>, vector<1x4x144xf32>
    %1229 = vector.shape_cast %1228 : vector<1x4x144xf32> to vector<4x144xf32>
    %cst_464 = arith.constant dense<0.000000e+00> : vector<4x16xf32>
    %1230 = tpu.matmul %1229, %1225, %cst_464 {dimension_numbers = #tpu.dot_dimension_numbers<[1], [1], [0], [0], [0, 0, 1, 0], [], []>} : vector<4x144xf32>, vector<16x144xf32>, vector<4x16xf32> -> vector<4x16xf32>
    %c3_465 = arith.constant 3 : index
    %c0_466 = arith.constant 0 : index
    %c0_467 = arith.constant 0 : index
    %1231 = vector.load %arg8[%c3_465, %c0_466, %c0_467] : memref<4x144x4xf32, #tpu.memory_space<vmem>>, vector<1x144x4xf32>
    %1232 = vector.shape_cast %1231 : vector<1x144x4xf32> to vector<144x4xf32>
    %cst_468 = arith.constant dense<0.000000e+00> : vector<16x4xf32>
    %1233 = tpu.matmul %1225, %1232, %cst_468 {dimension_numbers = #tpu.dot_dimension_numbers<[1], [0], [0], [1], [0, 0, 1, 1], [], []>} : vector<16x144xf32>, vector<144x4xf32>, vector<16x4xf32> -> vector<16x4xf32>
    %cst_469 = arith.constant 5.000000e-01 : f32
    %1234 = vector.broadcast %cst_469 : f32 to vector<16x16xf32>
    %1235 = arith.cmpf ogt, %1227, %1234 : vector<16x16xf32>
    %c3_470 = arith.constant 3 : index
    %c0_471 = arith.constant 0 : index
    %c0_472 = arith.constant 0 : index
    %1236 = vector.load %arg9[%c3_470, %c0_471, %c0_472] : memref<4x1x144xf32, #tpu.memory_space<vmem>>, vector<1x1x144xf32>
    %1237 = vector.shape_cast %1236 : vector<1x1x144xf32> to vector<1x144xf32>
    %1238 = vector.extract_strided_slice %1233 {offsets = [0, 0], sizes = [16, 1], strides = [1, 1]} : vector<16x4xf32> to vector<16x1xf32>
    %1239 = vector.extract_strided_slice %1230 {offsets = [0, 0], sizes = [1, 16], strides = [1, 1]} : vector<4x16xf32> to vector<1x16xf32>
    %1240 = vector.broadcast %1238 : vector<16x1xf32> to vector<16x16xf32>
    %1241 = vector.broadcast %1239 : vector<1x16xf32> to vector<16x16xf32>
    %1242 = arith.addf %1240, %1241 : vector<16x16xf32>
    %cst_473 = arith.constant 0.000000e+00 : f32
    %1243 = vector.broadcast %cst_473 : f32 to vector<16x16xf32>
    %1244 = arith.cmpf oge, %1242, %1243 : vector<16x16xf32>
    %cst_474 = arith.constant 2.000000e-01 : f32
    %1245 = vector.broadcast %cst_474 : f32 to vector<16x16xf32>
    %1246 = arith.mulf %1245, %1242 : vector<16x16xf32>
    %1247 = arith.select %1244, %1242, %1246 : vector<16x16xi1>, vector<16x16xf32>
    %cst_475 = arith.constant -1.000000e+30 : f32
    %1248 = vector.broadcast %cst_475 : f32 to vector<16x16xf32>
    %1249 = arith.select %1235, %1247, %1248 : vector<16x16xi1>, vector<16x16xf32>
    %cst_476 = arith.constant dense<0xFF800000> : vector<16xf32>
    %1250 = vector.multi_reduction <maximumf>, %1249, %cst_476 [1] : vector<16x16xf32> to vector<16xf32>
    %1251 = vector.shape_cast %1250 : vector<16xf32> to vector<16x1xf32>
    %1252 = vector.broadcast %1251 : vector<16x1xf32> to vector<16x16xf32>
    %1253 = arith.subf %1249, %1252 : vector<16x16xf32>
    %1254 = math.exp %1253 : vector<16x16xf32>
    %cst_477 = arith.constant 0.000000e+00 : f32
    %1255 = vector.broadcast %cst_477 : f32 to vector<16x16xf32>
    %1256 = arith.select %1235, %1254, %1255 : vector<16x16xi1>, vector<16x16xf32>
    %cst_478 = arith.constant dense<0.000000e+00> : vector<16xf32>
    %1257 = vector.multi_reduction <add>, %1256, %cst_478 [1] : vector<16x16xf32> to vector<16xf32>
    %1258 = vector.shape_cast %1257 : vector<16xf32> to vector<16x1xf32>
    %1259 = tpu.reciprocal %1258 {approx = true} : vector<16x1xf32> -> vector<16x1xf32>
    %1260 = vector.broadcast %1259 : vector<16x1xf32> to vector<16x16xf32>
    %1261 = arith.mulf %1256, %1260 : vector<16x16xf32>
    %cst_479 = arith.constant 0.000000e+00 : f32
    %1262 = vector.shape_cast %5 : vector<1x144xi1> to vector<1x144xi1>
    %1263 = vector.broadcast %1262 : vector<1x144xi1> to vector<16x144xi1>
    %1264 = vector.broadcast %cst_479 : f32 to vector<16x144xf32>
    %1265 = arith.select %1263, %1225, %1264 : vector<16x144xi1>, vector<16x144xf32>
    %cst_480 = arith.constant dense<0.000000e+00> : vector<16x144xf32>
    %1266 = tpu.matmul %1261, %1265, %cst_480 {dimension_numbers = #tpu.dot_dimension_numbers<[1], [0], [0], [1], [0, 0, 1, 1], [], []>} : vector<16x16xf32>, vector<16x144xf32>, vector<16x144xf32> -> vector<16x144xf32>
    %1267 = vector.broadcast %1237 : vector<1x144xf32> to vector<16x144xf32>
    %1268 = arith.addf %1267, %1266 : vector<16x144xf32>
    %1269 = vector.extract_strided_slice %1233 {offsets = [0, 1], sizes = [16, 1], strides = [1, 1]} : vector<16x4xf32> to vector<16x1xf32>
    %1270 = vector.extract_strided_slice %1230 {offsets = [1, 0], sizes = [1, 16], strides = [1, 1]} : vector<4x16xf32> to vector<1x16xf32>
    %1271 = vector.broadcast %1269 : vector<16x1xf32> to vector<16x16xf32>
    %1272 = vector.broadcast %1270 : vector<1x16xf32> to vector<16x16xf32>
    %1273 = arith.addf %1271, %1272 : vector<16x16xf32>
    %cst_481 = arith.constant 0.000000e+00 : f32
    %1274 = vector.broadcast %cst_481 : f32 to vector<16x16xf32>
    %1275 = arith.cmpf oge, %1273, %1274 : vector<16x16xf32>
    %cst_482 = arith.constant 2.000000e-01 : f32
    %1276 = vector.broadcast %cst_482 : f32 to vector<16x16xf32>
    %1277 = arith.mulf %1276, %1273 : vector<16x16xf32>
    %1278 = arith.select %1275, %1273, %1277 : vector<16x16xi1>, vector<16x16xf32>
    %cst_483 = arith.constant -1.000000e+30 : f32
    %1279 = vector.broadcast %cst_483 : f32 to vector<16x16xf32>
    %1280 = arith.select %1235, %1278, %1279 : vector<16x16xi1>, vector<16x16xf32>
    %cst_484 = arith.constant dense<0xFF800000> : vector<16xf32>
    %1281 = vector.multi_reduction <maximumf>, %1280, %cst_484 [1] : vector<16x16xf32> to vector<16xf32>
    %1282 = vector.shape_cast %1281 : vector<16xf32> to vector<16x1xf32>
    %1283 = vector.broadcast %1282 : vector<16x1xf32> to vector<16x16xf32>
    %1284 = arith.subf %1280, %1283 : vector<16x16xf32>
    %1285 = math.exp %1284 : vector<16x16xf32>
    %cst_485 = arith.constant 0.000000e+00 : f32
    %1286 = vector.broadcast %cst_485 : f32 to vector<16x16xf32>
    %1287 = arith.select %1235, %1285, %1286 : vector<16x16xi1>, vector<16x16xf32>
    %cst_486 = arith.constant dense<0.000000e+00> : vector<16xf32>
    %1288 = vector.multi_reduction <add>, %1287, %cst_486 [1] : vector<16x16xf32> to vector<16xf32>
    %1289 = vector.shape_cast %1288 : vector<16xf32> to vector<16x1xf32>
    %1290 = tpu.reciprocal %1289 {approx = true} : vector<16x1xf32> -> vector<16x1xf32>
    %1291 = vector.broadcast %1290 : vector<16x1xf32> to vector<16x16xf32>
    %1292 = arith.mulf %1287, %1291 : vector<16x16xf32>
    %cst_487 = arith.constant 0.000000e+00 : f32
    %1293 = vector.shape_cast %10 : vector<1x144xi1> to vector<1x144xi1>
    %1294 = vector.broadcast %1293 : vector<1x144xi1> to vector<16x144xi1>
    %1295 = vector.broadcast %cst_487 : f32 to vector<16x144xf32>
    %1296 = arith.select %1294, %1225, %1295 : vector<16x144xi1>, vector<16x144xf32>
    %cst_488 = arith.constant dense<0.000000e+00> : vector<16x144xf32>
    %1297 = tpu.matmul %1292, %1296, %cst_488 {dimension_numbers = #tpu.dot_dimension_numbers<[1], [0], [0], [1], [0, 0, 1, 1], [], []>} : vector<16x16xf32>, vector<16x144xf32>, vector<16x144xf32> -> vector<16x144xf32>
    %1298 = arith.addf %1268, %1297 : vector<16x144xf32>
    %1299 = vector.extract_strided_slice %1233 {offsets = [0, 2], sizes = [16, 1], strides = [1, 1]} : vector<16x4xf32> to vector<16x1xf32>
    %1300 = vector.extract_strided_slice %1230 {offsets = [2, 0], sizes = [1, 16], strides = [1, 1]} : vector<4x16xf32> to vector<1x16xf32>
    %1301 = vector.broadcast %1299 : vector<16x1xf32> to vector<16x16xf32>
    %1302 = vector.broadcast %1300 : vector<1x16xf32> to vector<16x16xf32>
    %1303 = arith.addf %1301, %1302 : vector<16x16xf32>
    %cst_489 = arith.constant 0.000000e+00 : f32
    %1304 = vector.broadcast %cst_489 : f32 to vector<16x16xf32>
    %1305 = arith.cmpf oge, %1303, %1304 : vector<16x16xf32>
    %cst_490 = arith.constant 2.000000e-01 : f32
    %1306 = vector.broadcast %cst_490 : f32 to vector<16x16xf32>
    %1307 = arith.mulf %1306, %1303 : vector<16x16xf32>
    %1308 = arith.select %1305, %1303, %1307 : vector<16x16xi1>, vector<16x16xf32>
    %cst_491 = arith.constant -1.000000e+30 : f32
    %1309 = vector.broadcast %cst_491 : f32 to vector<16x16xf32>
    %1310 = arith.select %1235, %1308, %1309 : vector<16x16xi1>, vector<16x16xf32>
    %cst_492 = arith.constant dense<0xFF800000> : vector<16xf32>
    %1311 = vector.multi_reduction <maximumf>, %1310, %cst_492 [1] : vector<16x16xf32> to vector<16xf32>
    %1312 = vector.shape_cast %1311 : vector<16xf32> to vector<16x1xf32>
    %1313 = vector.broadcast %1312 : vector<16x1xf32> to vector<16x16xf32>
    %1314 = arith.subf %1310, %1313 : vector<16x16xf32>
    %1315 = math.exp %1314 : vector<16x16xf32>
    %cst_493 = arith.constant 0.000000e+00 : f32
    %1316 = vector.broadcast %cst_493 : f32 to vector<16x16xf32>
    %1317 = arith.select %1235, %1315, %1316 : vector<16x16xi1>, vector<16x16xf32>
    %cst_494 = arith.constant dense<0.000000e+00> : vector<16xf32>
    %1318 = vector.multi_reduction <add>, %1317, %cst_494 [1] : vector<16x16xf32> to vector<16xf32>
    %1319 = vector.shape_cast %1318 : vector<16xf32> to vector<16x1xf32>
    %1320 = tpu.reciprocal %1319 {approx = true} : vector<16x1xf32> -> vector<16x1xf32>
    %1321 = vector.broadcast %1320 : vector<16x1xf32> to vector<16x16xf32>
    %1322 = arith.mulf %1317, %1321 : vector<16x16xf32>
    %cst_495 = arith.constant 0.000000e+00 : f32
    %1323 = vector.shape_cast %15 : vector<1x144xi1> to vector<1x144xi1>
    %1324 = vector.broadcast %1323 : vector<1x144xi1> to vector<16x144xi1>
    %1325 = vector.broadcast %cst_495 : f32 to vector<16x144xf32>
    %1326 = arith.select %1324, %1225, %1325 : vector<16x144xi1>, vector<16x144xf32>
    %cst_496 = arith.constant dense<0.000000e+00> : vector<16x144xf32>
    %1327 = tpu.matmul %1322, %1326, %cst_496 {dimension_numbers = #tpu.dot_dimension_numbers<[1], [0], [0], [1], [0, 0, 1, 1], [], []>} : vector<16x16xf32>, vector<16x144xf32>, vector<16x144xf32> -> vector<16x144xf32>
    %1328 = arith.addf %1298, %1327 : vector<16x144xf32>
    %1329 = vector.extract_strided_slice %1233 {offsets = [0, 3], sizes = [16, 1], strides = [1, 1]} : vector<16x4xf32> to vector<16x1xf32>
    %1330 = vector.extract_strided_slice %1230 {offsets = [3, 0], sizes = [1, 16], strides = [1, 1]} : vector<4x16xf32> to vector<1x16xf32>
    %1331 = vector.broadcast %1329 : vector<16x1xf32> to vector<16x16xf32>
    %1332 = vector.broadcast %1330 : vector<1x16xf32> to vector<16x16xf32>
    %1333 = arith.addf %1331, %1332 : vector<16x16xf32>
    %cst_497 = arith.constant 0.000000e+00 : f32
    %1334 = vector.broadcast %cst_497 : f32 to vector<16x16xf32>
    %1335 = arith.cmpf oge, %1333, %1334 : vector<16x16xf32>
    %cst_498 = arith.constant 2.000000e-01 : f32
    %1336 = vector.broadcast %cst_498 : f32 to vector<16x16xf32>
    %1337 = arith.mulf %1336, %1333 : vector<16x16xf32>
    %1338 = arith.select %1335, %1333, %1337 : vector<16x16xi1>, vector<16x16xf32>
    %cst_499 = arith.constant -1.000000e+30 : f32
    %1339 = vector.broadcast %cst_499 : f32 to vector<16x16xf32>
    %1340 = arith.select %1235, %1338, %1339 : vector<16x16xi1>, vector<16x16xf32>
    %cst_500 = arith.constant dense<0xFF800000> : vector<16xf32>
    %1341 = vector.multi_reduction <maximumf>, %1340, %cst_500 [1] : vector<16x16xf32> to vector<16xf32>
    %1342 = vector.shape_cast %1341 : vector<16xf32> to vector<16x1xf32>
    %1343 = vector.broadcast %1342 : vector<16x1xf32> to vector<16x16xf32>
    %1344 = arith.subf %1340, %1343 : vector<16x16xf32>
    %1345 = math.exp %1344 : vector<16x16xf32>
    %cst_501 = arith.constant 0.000000e+00 : f32
    %1346 = vector.broadcast %cst_501 : f32 to vector<16x16xf32>
    %1347 = arith.select %1235, %1345, %1346 : vector<16x16xi1>, vector<16x16xf32>
    %cst_502 = arith.constant dense<0.000000e+00> : vector<16xf32>
    %1348 = vector.multi_reduction <add>, %1347, %cst_502 [1] : vector<16x16xf32> to vector<16xf32>
    %1349 = vector.shape_cast %1348 : vector<16xf32> to vector<16x1xf32>
    %1350 = tpu.reciprocal %1349 {approx = true} : vector<16x1xf32> -> vector<16x1xf32>
    %1351 = vector.broadcast %1350 : vector<16x1xf32> to vector<16x16xf32>
    %1352 = arith.mulf %1347, %1351 : vector<16x16xf32>
    %cst_503 = arith.constant 0.000000e+00 : f32
    %1353 = vector.shape_cast %20 : vector<1x144xi1> to vector<1x144xi1>
    %1354 = vector.broadcast %1353 : vector<1x144xi1> to vector<16x144xi1>
    %1355 = vector.broadcast %cst_503 : f32 to vector<16x144xf32>
    %1356 = arith.select %1354, %1225, %1355 : vector<16x144xi1>, vector<16x144xf32>
    %cst_504 = arith.constant dense<0.000000e+00> : vector<16x144xf32>
    %1357 = tpu.matmul %1352, %1356, %cst_504 {dimension_numbers = #tpu.dot_dimension_numbers<[1], [0], [0], [1], [0, 0, 1, 1], [], []>} : vector<16x16xf32>, vector<16x144xf32>, vector<16x144xf32> -> vector<16x144xf32>
    %1358 = arith.addf %1328, %1357 : vector<16x144xf32>
    %cst_505 = arith.constant 0.000000e+00 : f32
    %1359 = vector.broadcast %cst_505 : f32 to vector<16x144xf32>
    %1360 = arith.cmpf ogt, %1358, %1359 : vector<16x144xf32>
    %cst_506 = arith.constant 0.000000e+00 : f32
    %1361 = vector.broadcast %cst_506 : f32 to vector<16x144xf32>
    %1362 = arith.minimumf %1358, %1361 : vector<16x144xf32>
    %1363 = math.exp %1362 : vector<16x144xf32>
    %cst_507 = arith.constant 1.000000e+00 : f32
    %1364 = vector.broadcast %cst_507 : f32 to vector<16x144xf32>
    %1365 = arith.subf %1363, %1364 : vector<16x144xf32>
    %1366 = arith.select %1360, %1358, %1365 : vector<16x144xi1>, vector<16x144xf32>
    %c1_508 = arith.constant 1 : index
    %c0_509 = arith.constant 0 : index
    %c0_510 = arith.constant 0 : index
    %1367 = vector.load %arg10[%c1_508, %c0_509, %c0_510] : memref<2x144x128xf32, #tpu.memory_space<vmem>>, vector<1x144x128xf32>
    %1368 = vector.shape_cast %1367 : vector<1x144x128xf32> to vector<144x128xf32>
    %c4_511 = arith.constant 4 : index
    %c0_512 = arith.constant 0 : index
    %1369 = vector.load %arg14[%c4_511, %c0_512] : memref<10x128xf32, #tpu.memory_space<vmem>>, vector<1x128xf32>
    %c5_513 = arith.constant 5 : index
    %c0_514 = arith.constant 0 : index
    %1370 = vector.load %arg14[%c5_513, %c0_514] : memref<10x128xf32, #tpu.memory_space<vmem>>, vector<1x128xf32>
    %cst_515 = arith.constant dense<0.000000e+00> : vector<16x128xf32>
    %1371 = tpu.matmul %1222, %1368, %cst_515 {dimension_numbers = #tpu.dot_dimension_numbers<[1], [0], [0], [1], [0, 0, 1, 1], [], []>} : vector<16x144xf32>, vector<144x128xf32>, vector<16x128xf32> -> vector<16x128xf32>
    %1372 = vector.broadcast %1369 : vector<1x128xf32> to vector<16x128xf32>
    %1373 = arith.addf %1371, %1372 : vector<16x128xf32>
    %1374 = math.tanh %1373 : vector<16x128xf32>
    %1375 = vector.broadcast %1370 : vector<1x128xf32> to vector<16x128xf32>
    %1376 = arith.mulf %1374, %1375 : vector<16x128xf32>
    %cst_516 = arith.constant dense<0.000000e+00> : vector<16xf32>
    %1377 = vector.multi_reduction <add>, %1376, %cst_516 [1] : vector<16x128xf32> to vector<16xf32>
    %1378 = vector.shape_cast %1377 : vector<16xf32> to vector<16x1xf32>
    %1379 = vector.shape_cast %1378 : vector<16x1xf32> to vector<1x16x1xf32>
    %cst_517 = arith.constant dense<0.000000e+00> : vector<1xf32>
    %1380 = vector.multi_reduction <add>, %1379, %cst_517 [1, 2] : vector<1x16x1xf32> to vector<1xf32>
    %1381 = vector.shape_cast %1380 : vector<1xf32> to vector<1x1x1xf32>
    %1382 = vector.extract %1381[0, 0, 0] : f32 from vector<1x1x1xf32>
    %cst_518 = arith.constant 1.600000e+01 : f32
    %1383 = arith.divf %1382, %cst_518 : f32
    %cst_519 = arith.constant dense<0.000000e+00> : vector<16x128xf32>
    %1384 = tpu.matmul %1366, %1368, %cst_519 {dimension_numbers = #tpu.dot_dimension_numbers<[1], [0], [0], [1], [0, 0, 1, 1], [], []>} : vector<16x144xf32>, vector<144x128xf32>, vector<16x128xf32> -> vector<16x128xf32>
    %1385 = vector.broadcast %1369 : vector<1x128xf32> to vector<16x128xf32>
    %1386 = arith.addf %1384, %1385 : vector<16x128xf32>
    %1387 = math.tanh %1386 : vector<16x128xf32>
    %1388 = vector.broadcast %1370 : vector<1x128xf32> to vector<16x128xf32>
    %1389 = arith.mulf %1387, %1388 : vector<16x128xf32>
    %cst_520 = arith.constant dense<0.000000e+00> : vector<16xf32>
    %1390 = vector.multi_reduction <add>, %1389, %cst_520 [1] : vector<16x128xf32> to vector<16xf32>
    %1391 = vector.shape_cast %1390 : vector<16xf32> to vector<16x1xf32>
    %1392 = vector.shape_cast %1391 : vector<16x1xf32> to vector<1x16x1xf32>
    %cst_521 = arith.constant dense<0.000000e+00> : vector<1xf32>
    %1393 = vector.multi_reduction <add>, %1392, %cst_521 [1, 2] : vector<1x16x1xf32> to vector<1xf32>
    %1394 = vector.shape_cast %1393 : vector<1xf32> to vector<1x1x1xf32>
    %1395 = vector.extract %1394[0, 0, 0] : f32 from vector<1x1x1xf32>
    %cst_522 = arith.constant 1.600000e+01 : f32
    %1396 = arith.divf %1395, %cst_522 : f32
    %1397 = arith.maximumf %1383, %1396 : f32
    %1398 = arith.subf %1383, %1397 : f32
    %1399 = math.exp %1398 : f32
    %1400 = arith.subf %1396, %1397 : f32
    %1401 = math.exp %1400 : f32
    %1402 = arith.addf %1399, %1401 : f32
    %cst_523 = arith.constant 1.000000e+00 : f32
    %1403 = arith.divf %cst_523, %1402 : f32
    %1404 = arith.mulf %1399, %1403 : f32
    %1405 = vector.broadcast %1404 : f32 to vector<16x144xf32>
    %1406 = arith.mulf %1405, %1222 : vector<16x144xf32>
    %1407 = arith.mulf %1401, %1403 : f32
    %1408 = vector.broadcast %1407 : f32 to vector<16x144xf32>
    %1409 = arith.mulf %1408, %1366 : vector<16x144xf32>
    %1410 = arith.addf %1406, %1409 : vector<16x144xf32>
    %c0_524 = arith.constant 0 : index
    %c0_525 = arith.constant 0 : index
    %1411 = vector.load %arg11[%c0_524, %c0_525] : memref<144x64xf32, #tpu.memory_space<vmem>>, vector<144x64xf32>
    %cst_526 = arith.constant dense<0.000000e+00> : vector<16x64xf32>
    %1412 = tpu.matmul %1410, %1411, %cst_526 {dimension_numbers = #tpu.dot_dimension_numbers<[1], [0], [0], [1], [0, 0, 1, 1], [], []>} : vector<16x144xf32>, vector<144x64xf32>, vector<16x64xf32> -> vector<16x64xf32>
    %c6_527 = arith.constant 6 : index
    %c0_528 = arith.constant 0 : index
    %1413 = vector.load %arg14[%c6_527, %c0_528] : memref<10x128xf32, #tpu.memory_space<vmem>>, vector<1x64xf32>
    %1414 = vector.broadcast %1413 : vector<1x64xf32> to vector<16x64xf32>
    %1415 = arith.addf %1412, %1414 : vector<16x64xf32>
    %c0_529 = arith.constant 0 : index
    %c0_530 = arith.constant 0 : index
    %1416 = vector.load %arg12[%c0_529, %c0_530] : memref<64x128xf32, #tpu.memory_space<vmem>>, vector<64x128xf32>
    %c7 = arith.constant 7 : index
    %c0_531 = arith.constant 0 : index
    %1417 = vector.load %arg14[%c7, %c0_531] : memref<10x128xf32, #tpu.memory_space<vmem>>, vector<1x128xf32>
    %c8 = arith.constant 8 : index
    %c0_532 = arith.constant 0 : index
    %1418 = vector.load %arg14[%c8, %c0_532] : memref<10x128xf32, #tpu.memory_space<vmem>>, vector<1x128xf32>
    %cst_533 = arith.constant dense<0.000000e+00> : vector<16x128xf32>
    %1419 = tpu.matmul %738, %1416, %cst_533 {dimension_numbers = #tpu.dot_dimension_numbers<[1], [0], [0], [1], [0, 0, 1, 1], [], []>} : vector<16x64xf32>, vector<64x128xf32>, vector<16x128xf32> -> vector<16x128xf32>
    %1420 = vector.broadcast %1417 : vector<1x128xf32> to vector<16x128xf32>
    %1421 = arith.addf %1419, %1420 : vector<16x128xf32>
    %1422 = math.tanh %1421 : vector<16x128xf32>
    %1423 = vector.broadcast %1418 : vector<1x128xf32> to vector<16x128xf32>
    %1424 = arith.mulf %1422, %1423 : vector<16x128xf32>
    %cst_534 = arith.constant dense<0.000000e+00> : vector<16xf32>
    %1425 = vector.multi_reduction <add>, %1424, %cst_534 [1] : vector<16x128xf32> to vector<16xf32>
    %1426 = vector.shape_cast %1425 : vector<16xf32> to vector<16x1xf32>
    %1427 = vector.shape_cast %1426 : vector<16x1xf32> to vector<1x16x1xf32>
    %cst_535 = arith.constant dense<0.000000e+00> : vector<1xf32>
    %1428 = vector.multi_reduction <add>, %1427, %cst_535 [1, 2] : vector<1x16x1xf32> to vector<1xf32>
    %1429 = vector.shape_cast %1428 : vector<1xf32> to vector<1x1x1xf32>
    %1430 = vector.extract %1429[0, 0, 0] : f32 from vector<1x1x1xf32>
    %cst_536 = arith.constant 1.600000e+01 : f32
    %1431 = arith.divf %1430, %cst_536 : f32
    %cst_537 = arith.constant dense<0.000000e+00> : vector<16x128xf32>
    %1432 = tpu.matmul %1415, %1416, %cst_537 {dimension_numbers = #tpu.dot_dimension_numbers<[1], [0], [0], [1], [0, 0, 1, 1], [], []>} : vector<16x64xf32>, vector<64x128xf32>, vector<16x128xf32> -> vector<16x128xf32>
    %1433 = vector.broadcast %1417 : vector<1x128xf32> to vector<16x128xf32>
    %1434 = arith.addf %1432, %1433 : vector<16x128xf32>
    %1435 = math.tanh %1434 : vector<16x128xf32>
    %1436 = vector.broadcast %1418 : vector<1x128xf32> to vector<16x128xf32>
    %1437 = arith.mulf %1435, %1436 : vector<16x128xf32>
    %cst_538 = arith.constant dense<0.000000e+00> : vector<16xf32>
    %1438 = vector.multi_reduction <add>, %1437, %cst_538 [1] : vector<16x128xf32> to vector<16xf32>
    %1439 = vector.shape_cast %1438 : vector<16xf32> to vector<16x1xf32>
    %1440 = vector.shape_cast %1439 : vector<16x1xf32> to vector<1x16x1xf32>
    %cst_539 = arith.constant dense<0.000000e+00> : vector<1xf32>
    %1441 = vector.multi_reduction <add>, %1440, %cst_539 [1, 2] : vector<1x16x1xf32> to vector<1xf32>
    %1442 = vector.shape_cast %1441 : vector<1xf32> to vector<1x1x1xf32>
    %1443 = vector.extract %1442[0, 0, 0] : f32 from vector<1x1x1xf32>
    %cst_540 = arith.constant 1.600000e+01 : f32
    %1444 = arith.divf %1443, %cst_540 : f32
    %1445 = arith.maximumf %1431, %1444 : f32
    %1446 = arith.subf %1431, %1445 : f32
    %1447 = math.exp %1446 : f32
    %1448 = arith.subf %1444, %1445 : f32
    %1449 = math.exp %1448 : f32
    %1450 = arith.addf %1447, %1449 : f32
    %cst_541 = arith.constant 1.000000e+00 : f32
    %1451 = arith.divf %cst_541, %1450 : f32
    %1452 = arith.mulf %1447, %1451 : f32
    %1453 = vector.broadcast %1452 : f32 to vector<16x64xf32>
    %1454 = arith.mulf %1453, %738 : vector<16x64xf32>
    %1455 = arith.mulf %1449, %1451 : f32
    %1456 = vector.broadcast %1455 : f32 to vector<16x64xf32>
    %1457 = arith.mulf %1456, %1415 : vector<16x64xf32>
    %1458 = arith.addf %1454, %1457 : vector<16x64xf32>
    %c0_542 = arith.constant 0 : index
    %c0_543 = arith.constant 0 : index
    %1459 = vector.load %arg13[%c0_542, %c0_543] : memref<64x4xf32, #tpu.memory_space<vmem>>, vector<64x4xf32>
    %cst_544 = arith.constant dense<0.000000e+00> : vector<16x4xf32>
    %1460 = tpu.matmul %1458, %1459, %cst_544 {dimension_numbers = #tpu.dot_dimension_numbers<[1], [0], [0], [1], [0, 0, 1, 1], [], []>} : vector<16x64xf32>, vector<64x4xf32>, vector<16x4xf32> -> vector<16x4xf32>
    %c9 = arith.constant 9 : index
    %c0_545 = arith.constant 0 : index
    %1461 = vector.load %arg14[%c9, %c0_545] : memref<10x128xf32, #tpu.memory_space<vmem>>, vector<1x4xf32>
    %1462 = vector.broadcast %1461 : vector<1x4xf32> to vector<16x4xf32>
    %1463 = arith.addf %1460, %1462 : vector<16x4xf32>
    %c0_546 = arith.constant 0 : index
    %c0_547 = arith.constant 0 : index
    %1464 = vector.load %arg15[%c0_546, %c0_547] : memref<16x4xf32, #tpu.memory_space<vmem>>, vector<16x4xf32>
    tpu.vector_store %arg15[%c0_546, %c0_547], %1463 {strides = array<i32>} : memref<16x4xf32, #tpu.memory_space<vmem>>, vector<16x4xf32>,
    return
  }
}

</mosaic_0001>

<llo_original>
// kernel: hat_forward.1
$region0: #{hat_forward.1}
  #allocation0 [shape = 'u32[]', space=smem, size = 0x4, offset = 0x4, fixed_abs, tag = 'smem constant byte address 0x4 - core index']
  #allocation1 [shape = 'u32[144,128]{1,0:T(1,128)}', space=vmem, size = 0x12000, scoped, tag = 'internal scratch']
  %s0 = inlined_call_operand.vmem [shape: f32[4,16,16], index: 0, kind: input, shape index: {}]
  %s1 = inlined_call_operand.vmem [shape: f32[16,8], index: 1, kind: input, shape index: {}]
  %s2 = inlined_call_operand.vmem [shape: f32[48,42], index: 2, kind: input, shape index: {}]
  %s3 = inlined_call_operand.vmem [shape: f32[42,16], index: 3, kind: input, shape index: {}]
  %s4 = inlined_call_operand.vmem [shape: f32[2,8,144], index: 4, kind: input, shape index: {}]
  %s5 = inlined_call_operand.vmem [shape: f32[2,42,144], index: 5, kind: input, shape index: {}]
  %s6 = inlined_call_operand.vmem [shape: f32[2,144,144], index: 6, kind: input, shape index: {}]
  %s7 = inlined_call_operand.vmem [shape: f32[4,4,144], index: 7, kind: input, shape index: {}]
  %s8 = inlined_call_operand.vmem [shape: f32[4,144,4], index: 8, kind: input, shape index: {}]
  %s9 = inlined_call_operand.vmem [shape: f32[4,1,144], index: 9, kind: input, shape index: {}]
  %s10 = inlined_call_operand.vmem [shape: f32[2,144,128], index: 10, kind: input, shape index: {}]
  %s11 = inlined_call_operand.vmem [shape: f32[144,64], index: 11, kind: input, shape index: {}]
  %s12 = inlined_call_operand.vmem [shape: f32[64,128], index: 12, kind: input, shape index: {}]
  %s13 = inlined_call_operand.vmem [shape: f32[64,4], index: 13, kind: input, shape index: {}]
  %s14 = inlined_call_operand.vmem [shape: f32[10,128], index: 14, kind: input, shape index: {}]
  %s15 = inlined_call_operand.vmem [shape: f32[16,4], index: 15, kind: output, shape index: {}]
  %s16 = sld [smem:[#allocation0]]
  $region70: #{hat_forward.1} parent=0
    _
  %s18 = ssub.s32 1, %s16
  %s19 = scalar_select 0, %s18, %s16
  // Predicated region
  $region2: #{hat_forward.1} parent=0 // pred_check
    _
  $region3: #{hat_forward.1} parent=0 // pred_check_branch
    %21 = sbr.rel (0) target = $region5
  $region4: #{hat_forward.1} parent=0 // pred_region
    _
  $region5: #{hat_forward.1} parent=0 // pred_fallthru
    _
  // Predicated region
  $region6: #{hat_forward.1} parent=0 // pred_check
    _
  $region7: #{hat_forward.1} parent=0 // pred_check_branch
    %23 = sbr.rel (0) target = $region9
  $region8: #{hat_forward.1} parent=0 // pred_region
    _
  $region9: #{hat_forward.1} parent=0 // pred_fallthru
    _
  // Predicated region
  $region10: #{hat_forward.1} parent=0 // pred_check
    _
  $region11: #{hat_forward.1} parent=0 // pred_check_branch
    %25 = sbr.rel (0) target = $region13
  $region12: #{hat_forward.1} parent=0 // pred_region
    _
  $region13: #{hat_forward.1} parent=0 // pred_fallthru
    _
  // Predicated region
  $region14: #{hat_forward.1} parent=0 // pred_check
    _
  $region15: #{hat_forward.1} parent=0 // pred_check_branch
    %27 = sbr.rel (0) target = $region17
  $region16: #{hat_forward.1} parent=0 // pred_region
    _
  $region17: #{hat_forward.1} parent=0 // pred_fallthru
    _
  // Predicated region
  $region18: #{hat_forward.1} parent=0 // pred_check
    _
  $region19: #{hat_forward.1} parent=0 // pred_check_branch
    %29 = sbr.rel (0) target = $region21
  $region20: #{hat_forward.1} parent=0 // pred_region
    _
  $region21: #{hat_forward.1} parent=0 // pred_fallthru
    _
  // Predicated region
  $region22: #{hat_forward.1} parent=0 // pred_check
    _
  $region23: #{hat_forward.1} parent=0 // pred_check_branch
    %31 = sbr.rel (0) target = $region25
  $region24: #{hat_forward.1} parent=0 // pred_region
    _
  $region25: #{hat_forward.1} parent=0 // pred_fallthru
    _
  // Predicated region
  $region26: #{hat_forward.1} parent=0 // pred_check
    _
  $region27: #{hat_forward.1} parent=0 // pred_check_branch
    %33 = sbr.rel (0) target = $region29
  $region28: #{hat_forward.1} parent=0 // pred_region
    _
  $region29: #{hat_forward.1} parent=0 // pred_fallthru
    _
  // Predicated region
  $region30: #{hat_forward.1} parent=0 // pred_check
    _
  $region31: #{hat_forward.1} parent=0 // pred_check_branch
    %35 = sbr.rel (0) target = $region33
  $region32: #{hat_forward.1} parent=0 // pred_region
    _
  $region33: #{hat_forward.1} parent=0 // pred_fallthru
    _
  // Predicated region
  $region34: #{hat_forward.1} parent=0 // pred_check
    _
  $region35: #{hat_forward.1} parent=0 // pred_check_branch
    %37 = sbr.rel (0) target = $region37
  $region36: #{hat_forward.1} parent=0 // pred_region
    _
  $region37: #{hat_forward.1} parent=0 // pred_fallthru
    _
  // Predicated region
  $region38: #{hat_forward.1} parent=0 // pred_check
    _
  $region39: #{hat_forward.1} parent=0 // pred_check_branch
    %39 = sbr.rel (0) target = $region41
  $region40: #{hat_forward.1} parent=0 // pred_region
    _
  $region41: #{hat_forward.1} parent=0 // pred_fallthru
    _
  // Predicated region
  $region42: #{hat_forward.1} parent=0 // pred_check
    _
  $region43: #{hat_forward.1} parent=0 // pred_check_branch
    %41 = sbr.rel (0) target = $region45
  $region44: #{hat_forward.1} parent=0 // pred_region
    _
  $region45: #{hat_forward.1} parent=0 // pred_fallthru
    _
  // Predicated region
  $region46: #{hat_forward.1} parent=0 // pred_check
    _
  $region47: #{hat_forward.1} parent=0 // pred_check_branch
    %43 = sbr.rel (0) target = $region49
  $region48: #{hat_forward.1} parent=0 // pred_region
    _
  $region49: #{hat_forward.1} parent=0 // pred_fallthru
    _
  // Predicated region
  $region50: #{hat_forward.1} parent=0 // pred_check
    _
  $region51: #{hat_forward.1} parent=0 // pred_check_branch
    %45 = sbr.rel (0) target = $region53
  $region52: #{hat_forward.1} parent=0 // pred_region
    _
  $region53: #{hat_forward.1} parent=0 // pred_fallthru
    _
  // Predicated region
  $region54: #{hat_forward.1} parent=0 // pred_check
    _
  $region55: #{hat_forward.1} parent=0 // pred_check_branch
    %47 = sbr.rel (0) target = $region57
  $region56: #{hat_forward.1} parent=0 // pred_region
    _
  $region57: #{hat_forward.1} parent=0 // pred_fallthru
    _
  // Predicated region
  $region58: #{hat_forward.1} parent=0 // pred_check
    _
  $region59: #{hat_forward.1} parent=0 // pred_check_branch
    %49 = sbr.rel (0) target = $region61
  $region60: #{hat_forward.1} parent=0 // pred_region
    _
  $region61: #{hat_forward.1} parent=0 // pred_fallthru
    _
  %v50 = vlaneseq
  %v51 = vand.u32 %v50, 127
  %v52 = vadd.s32 %v51, 128
  %vm53 = vcmp.ge.s32.totalorder %v51, 0
  %vm54 = vcmp.ge.s32.totalorder %v52, 0
  %vm55 = vcmp.lt.s32.totalorder %v51, 36
  %vm56 = vcmp.lt.s32.totalorder %v52, 36
  %vm57 = vmand %vm53, %vm55
  %vm58 = vmand %vm54, %vm56
  %vm59 = vcmp.ge.s32.totalorder %v51, 36
  %vm60 = vcmp.ge.s32.totalorder %v52, 36
  %vm61 = vcmp.lt.s32.totalorder %v51, 72
  %vm62 = vcmp.lt.s32.totalorder %v52, 72
  %vm63 = vmand %vm59, %vm61
  %vm64 = vmand %vm60, %vm62
  %vm65 = vcmp.ge.s32.totalorder %v51, 72
  %vm66 = vcmp.ge.s32.totalorder %v52, 72
  %vm67 = vcmp.lt.s32.totalorder %v51, 108
  %vm68 = vcmp.lt.s32.totalorder %v52, 108
  %vm69 = vmand %vm65, %vm67
  %vm70 = vmand %vm66, %vm68
  %vm71 = vcmp.ge.s32.totalorder %v51, 108
  %vm72 = vcmp.ge.s32.totalorder %v52, 108
  %vm73 = vcmp.lt.s32.totalorder %v51, 144
  %vm74 = vcmp.lt.s32.totalorder %v52, 144
  %vm75 = vmand %vm71, %vm73
  %vm76 = vmand %vm72, %vm74
  %v77 = vld [vmem:[%s2] sm:$0xff]
  %v78 = vld [vmem:[%s2 + $0x8] sm:$0xff]
  %v79 = vld [vmem:[%s2 + $0x10] sm:$0xff]
  %v80 = vld [vmem:[%s2 + $0x18] sm:$0xff]
  %v81 = vld [vmem:[%s2 + $0x20] sm:$0xff]
  %v82 = vld [vmem:[%s2 + $0x28] sm:$0xff]
  %v83 = vld [vmem:[%s3] sm:$0xff]
  %v84 = vld [vmem:[%s3 + $0x8] sm:$0xff]
  %v85 = vld [vmem:[%s3 + $0x10] sm:$0xff]
  %v86 = vld [vmem:[%s3 + $0x18] sm:$0xff]
  %v87 = vld [vmem:[%s3 + $0x20] sm:$0xff]
  %v88 = vld [vmem:[%s3 + $0x28] sm:$0x3]
  %v89 = vld [vmem:[%s14] sm:$0x1]
  %v90 = vlaneseq
  %v91 = vshrl.u32 %v90, 7
  %v92 = vsub.s32 0, %v91
  %v93 = vrot.slane %v89, %v92
  %vm94 = vcmask 343040
  %v96 = vsel %vm94, %v77, 0
  %v99 = vsel %vm94, %v78, 0
  %v102 = vsel %vm94, %v79, 0
  %v105 = vsel %vm94, %v80, 0
  %v108 = vsel %vm94, %v81, 0
  %v111 = vsel %vm94, %v82, 0
  %vm113 = vcmask 1041408
  %v115 = vsel %vm113, %v88, 0
  %117 = vmatprep.subr.mxu0 0.0
  %118 = vmatpush1.msra.mxu0 %v83
  %119 = vmatprep.subr.mxu0 0.0
  %120 = vmatpush1.msra.mxu0 %v84
  %121 = vmatprep.subr.mxu0 0.0
  %122 = vmatpush1.msra.mxu0 %v85
  %123 = vmatprep.subr.mxu0 0.0
  %124 = vmatpush1.msra.mxu0 %v86
  %125 = vmatprep.subr.mxu0 0.0
  %126 = vmatpush1.msra.mxu0 %v87
  %127 = vmatprep.subr.mxu0 0.0
  %128 = vmatpush1.msra.mxu0 %v115
  %129 = vmatprep.subr.mxu0 0.0
  %130 = vmatpush1.msra.mxu0 0.0
  %131 = vmatprep.subr.mxu0 0.0
  %132 = vmatpush1.msra.mxu0 0.0
  %133 = vmatprep.subr.mxu0 0.0
  %134 = vmatpush1.msra.mxu0 0.0
  %135 = vmatprep.subr.mxu0 0.0
  %136 = vmatpush1.msra.mxu0 0.0
  %137 = vmatprep.subr.mxu0 0.0
  %138 = vmatpush1.msra.mxu0 0.0
  %139 = vmatprep.subr.mxu0 0.0
  %140 = vmatpush1.msra.mxu0 0.0
  %141 = vmatprep.subr.mxu0 0.0
  %142 = vmatpush1.msra.mxu0 0.0
  %143 = vmatprep.subr.mxu0 0.0
  %144 = vmatpush1.msra.mxu0 0.0
  %145 = vmatprep.subr.mxu0 0.0
  %146 = vmatpush1.msra.mxu0 0.0
  %147 = vmatprep.subr.mxu0 0.0
  %148 = vmatpush1.msra.mxu0 0.0
  %149 = vmatprep.subr.mxu0 0.0
  %150 = vmatpush1.msra.mxu0 0.0
  %151 = vmatprep.subr.mxu0 0.0
  %152 = vmatpush1.msra.mxu0 0.0
  %153 = vmatprep.subr.mxu0 0.0
  %154 = vmatpush1.msra.mxu0 0.0
  %155 = vmatprep.subr.mxu0 0.0
  %156 = vmatpush1.msra.mxu0 0.0
  %157 = vmatprep.subr.mxu0 0.0
  %158 = vmatpush1.msra.mxu0 0.0
  %159 = vmatprep.subr.mxu0 0.0
  %160 = vmatpush1.msra.mxu0 0.0
  %161 = vmatprep.subr.mxu0 0.0
  %162 = vmatpush1.msra.mxu0 0.0
  %163 = vmatprep.subr.mxu0 0.0
  %164 = vmatpush1.msra.mxu0 0.0
  %165 = vmatprep.subr.mxu0 0.0
  %166 = vmatpush1.msra.mxu0 0.0
  %167 = vmatprep.subr.mxu0 0.0
  %168 = vmatpush1.msra.mxu0 0.0
  %169 = vmatprep.subr.mxu0 0.0
  %170 = vmatpush1.msra.mxu0 0.0
  %171 = vmatprep.subr.mxu0 0.0
  %172 = vmatpush1.msra.mxu0 0.0
  %173 = vmatprep.subr.mxu0 0.0
  %174 = vmatpush1.msra.mxu0 0.0
  %175 = vmatprep.subr.mxu0 0.0
  %176 = vmatpush1.msra.mxu0 0.0
  %177 = vmatprep.subr.mxu0 0.0
  %178 = vmatpush1.msra.mxu0 0.0
  %179 = vmatprep.subr.mxu0 0.0
  %180 = vmatpush1.msra.mxu0 0.0
  %181 = vmatprep.mubr.f32.mxu0 0.0
  %182 = vmatmul.mubr.f32.gmra.mrb[0].mxu0 %v96
  %v183 = vpop.f32.mrb[0].mxu0
  %v184 = vadd.f32 %v93, %v183
  %v185 = vpop.f32.mrb[0].mxu0
  %186 = vmatprep.mubr.f32.mxu0 0.0
  %187 = vmatmul.mubr.f32.gmra.mrb[0].mxu0 %v99
  %v188 = vpop.f32.mrb[0].mxu0
  %v189 = vadd.f32 %v93, %v188
  %v190 = vpop.f32.mrb[0].mxu0
  %191 = vmatprep.mubr.f32.mxu0 0.0
  %192 = vmatmul.mubr.f32.gmra.mrb[0].mxu0 %v102
  %v193 = vpop.f32.mrb[0].mxu0
  %v194 = vadd.f32 %v93, %v193
  %v195 = vpop.f32.mrb[0].mxu0
  %196 = vmatprep.mubr.f32.mxu0 0.0
  %197 = vmatmul.mubr.f32.gmra.mrb[0].mxu0 %v105
  %v198 = vpop.f32.mrb[0].mxu0
  %v199 = vadd.f32 %v93, %v198
  %v200 = vpop.f32.mrb[0].mxu0
  %201 = vmatprep.mubr.f32.mxu0 0.0
  %202 = vmatmul.mubr.f32.gmra.mrb[0].mxu0 %v108
  %v203 = vpop.f32.mrb[0].mxu0
  %v204 = vadd.f32 %v93, %v203
  %v205 = vpop.f32.mrb[0].mxu0
  %206 = vmatprep.mubr.f32.mxu0 0.0
  %207 = vmatmul.mubr.f32.gmra.mrb[0].mxu0 %v111
  %v208 = vpop.f32.mrb[0].mxu0
  %v209 = vadd.f32 %v93, %v208
  %v210 = vpop.f32.mrb[0].mxu0
  %211 = vdwg.mxu0
  %v212 = vtanh.pop %v184
  %v213 = vtanh.pop %v189
  %v214 = vtanh.pop %v194
  %v215 = vtanh.pop %v199
  %v216 = vtanh.pop %v204
  %v217 = vtanh.pop %v209
  %v218 = vld [vmem:[%s14 + $0x1] sm:$0x1]
  %v219 = vlaneseq
  %v220 = vshrl.u32 %v219, 7
  %v221 = vsub.s32 0, %v220
  %v222 = vrot.slane %v218, %v221
  %v223 = vmul.f32 %v212, %v222
  %v224 = vmul.f32 %v213, %v222
  %v225 = vmul.f32 %v214, %v222
  %v226 = vmul.f32 %v215, %v222
  %v227 = vmul.f32 %v216, %v222
  %v228 = vmul.f32 %v217, %v222
  %vm229 = vcmask 130048
  %v230 = vsel %vm229, %v223, 0.0
  %231 = vadd.xlane.f32.xlu0 %v230
  %v232 = vpop.xlane.xlu0 %231
  %v233 = vsel %vm229, %v224, 0.0
  %234 = vadd.xlane.f32.xlu0 %v233
  %v235 = vpop.xlane.xlu0 %234
  %v236 = vsel %vm229, %v225, 0.0
  %237 = vadd.xlane.f32.xlu0 %v236
  %v238 = vpop.xlane.xlu0 %237
  %v239 = vsel %vm229, %v226, 0.0
  %240 = vadd.xlane.f32.xlu0 %v239
  %v241 = vpop.xlane.xlu0 %240
  %v242 = vsel %vm229, %v227, 0.0
  %243 = vadd.xlane.f32.xlu0 %v242
  %v244 = vpop.xlane.xlu0 %243
  %v245 = vsel %vm229, %v228, 0.0
  %246 = vadd.xlane.f32.xlu0 %v245
  %v247 = vpop.xlane.xlu0 %246
  %v248 = vmax.f32 %v232, %v238
  %v249 = vmax.f32 %v235, %v241
  %v250 = vmax.f32 %v248, %v244
  %v251 = vmax.f32 %v249, %v247
  %v252 = vsub.f32 %v232, %v250
  %v253 = vsub.f32 %v235, %v251
  %v254 = vmul.f32 %v252, 1.442695
  %v255 = vpow.pop %v254
  %v256 = vmul.f32 %v253, 1.442695
  %v257 = vpow.pop %v256
  %v258 = vsub.f32 %v238, %v250
  %v259 = vsub.f32 %v241, %v251
  %v260 = vmul.f32 %v258, 1.442695
  %v261 = vpow.pop %v260
  %v262 = vmul.f32 %v259, 1.442695
  %v263 = vpow.pop %v262
  %v264 = vsub.f32 %v244, %v250
  %v265 = vsub.f32 %v247, %v251
  %v266 = vmul.f32 %v264, 1.442695
  %v267 = vpow.pop %v266
  %v268 = vmul.f32 %v265, 1.442695
  %v269 = vpow.pop %v268
  %v270 = vadd.f32 %v255, %v261
  %v271 = vadd.f32 %v257, %v263
  %v272 = vadd.f32 %v270, %v267
  %v273 = vadd.f32 %v271, %v269
  %v274 = vrcp.pop %v272
  %v275 = vrcp.pop %v273
  %v276 = vmul.f32 %v255, %v274
  %v277 = vmul.f32 %v257, %v275
  %v278 = vmul.f32 %v276, %v77
  %v279 = vmul.f32 %v277, %v78
  %v280 = vmul.f32 %v261, %v274
  %v281 = vmul.f32 %v263, %v275
  %v282 = vmul.f32 %v280, %v79
  %v283 = vmul.f32 %v281, %v80
  %v284 = vadd.f32 %v278, %v282
  %v285 = vadd.f32 %v279, %v283
  %v286 = vmul.f32 %v267, %v274
  %v287 = vmul.f32 %v269, %v275
  %v288 = vmul.f32 %v286, %v81
  %v289 = vmul.f32 %v287, %v82
  %v290 = vadd.f32 %v284, %v288
  %v291 = vadd.f32 %v285, %v289
  %v292 = vld [vmem:[%s1] sm:$0xff]
  %v293 = vld [vmem:[%s1 + $0x8] sm:$0xff]
  %v294 = vld [vmem:[%s4] sm:$0xff]
  %v295 = vld [vmem:[%s4 + $0x8] sm:$0xff]
  %v296 = vld [vmem:[%s5] sm:$0xff]
  %v297 = vld [vmem:[%s5 + $0x8] sm:$0xff]
  %v298 = vld [vmem:[%s5 + $0x10] sm:$0xff]
  %v299 = vld [vmem:[%s5 + $0x18] sm:$0xff]
  %v300 = vld [vmem:[%s5 + $0x20] sm:$0xff]
  %v301 = vld [vmem:[%s5 + $0x28] sm:$0xff]
  %v302 = vld [vmem:[%s5 + $0x30] sm:$0xff]
  %v303 = vld [vmem:[%s5 + $0x38] sm:$0xff]
  %v304 = vld [vmem:[%s5 + $0x40] sm:$0xff]
  %v305 = vld [vmem:[%s5 + $0x48] sm:$0xff]
  %v306 = vld [vmem:[%s5 + $0x50] sm:$0x3]
  %v307 = vld [vmem:[%s5 + $0x58] sm:$0x3]
  %v309 = vsel %vm94, %v290, 0
  %v312 = vsel %vm94, %v291, 0
  %v315 = vsel %vm113, %v306, 0
  %v318 = vsel %vm113, %v307, 0
  %320 = vmatprep.subr.mxu0 %v297
  %321 = vmatpush1.msra.mxu0 %v296
  %322 = vmatprep.subr.mxu0 %v299
  %323 = vmatpush1.msra.mxu0 %v298
  %324 = vmatprep.subr.mxu0 %v301
  %325 = vmatpush1.msra.mxu0 %v300
  %326 = vmatprep.subr.mxu0 %v303
  %327 = vmatpush1.msra.mxu0 %v302
  %328 = vmatprep.subr.mxu0 %v305
  %329 = vmatpush1.msra.mxu0 %v304
  %330 = vmatprep.subr.mxu0 %v318
  %331 = vmatpush1.msra.mxu0 %v315
  %332 = vmatprep.subr.mxu0 0.0
  %333 = vmatpush1.msra.mxu0 0.0
  %334 = vmatprep.subr.mxu0 0.0
  %335 = vmatpush1.msra.mxu0 0.0
  %336 = vmatprep.subr.mxu0 0.0
  %337 = vmatpush1.msra.mxu0 0.0
  %338 = vmatprep.subr.mxu0 0.0
  %339 = vmatpush1.msra.mxu0 0.0
  %340 = vmatprep.subr.mxu0 0.0
  %341 = vmatpush1.msra.mxu0 0.0
  %342 = vmatprep.subr.mxu0 0.0
  %343 = vmatpush1.msra.mxu0 0.0
  %344 = vmatprep.subr.mxu0 0.0
  %345 = vmatpush1.msra.mxu0 0.0
  %346 = vmatprep.subr.mxu0 0.0
  %347 = vmatpush1.msra.mxu0 0.0
  %348 = vmatprep.subr.mxu0 0.0
  %349 = vmatpush1.msra.mxu0 0.0
  %350 = vmatprep.subr.mxu0 0.0
  %351 = vmatpush1.msra.mxu0 0.0
  %352 = vmatprep.subr.mxu0 0.0
  %353 = vmatpush1.msra.mxu0 0.0
  %354 = vmatprep.subr.mxu0 0.0
  %355 = vmatpush1.msra.mxu0 0.0
  %356 = vmatprep.subr.mxu0 0.0
  %357 = vmatpush1.msra.mxu0 0.0
  %358 = vmatprep.subr.mxu0 0.0
  %359 = vmatpush1.msra.mxu0 0.0
  %360 = vmatprep.subr.mxu0 0.0
  %361 = vmatpush1.msra.mxu0 0.0
  %362 = vmatprep.subr.mxu0 0.0
  %363 = vmatpush1.msra.mxu0 0.0
  %364 = vmatprep.subr.mxu0 0.0
  %365 = vmatpush1.msra.mxu0 0.0
  %366 = vmatprep.subr.mxu0 0.0
  %367 = vmatpush1.msra.mxu0 0.0
  %368 = vmatprep.subr.mxu0 0.0
  %369 = vmatpush1.msra.mxu0 0.0
  %370 = vmatprep.subr.mxu0 0.0
  %371 = vmatpush1.msra.mxu0 0.0
  %372 = vmatprep.subr.mxu0 0.0
  %373 = vmatpush1.msra.mxu0 0.0
  %374 = vmatprep.subr.mxu0 0.0
  %375 = vmatpush1.msra.mxu0 0.0
  %376 = vmatprep.subr.mxu0 0.0
  %377 = vmatpush1.msra.mxu0 0.0
  %378 = vmatprep.subr.mxu0 0.0
  %379 = vmatpush1.msra.mxu0 0.0
  %380 = vmatprep.subr.mxu0 0.0
  %381 = vmatpush1.msra.mxu0 0.0
  %382 = vmatprep.subr.mxu0 0.0
  %383 = vmatpush1.msra.mxu0 0.0
  %384 = vmatprep.mubr.f32.mxu0 0.0
  %385 = vmatmul.mubr.f32.gmra.mrb[0].mxu0 %v309
  %v386 = vpop.f32.mrb[0].mxu0
  %v387 = vadd.f32 0.0, %v386
  %v388 = vpop.f32.mrb[0].mxu0
  %v389 = vadd.f32 0.0, %v388
  %390 = vmatprep.mubr.f32.mxu0 0.0
  %391 = vmatmul.mubr.f32.gmra.mrb[0].mxu0 %v312
  %v392 = vpop.f32.mrb[0].mxu0
  %v393 = vadd.f32 0.0, %v392
  %v394 = vpop.f32.mrb[0].mxu0
  %v395 = vadd.f32 0.0, %v394
  %396 = vdwg.mxu0
  %vm397 = vcmask 64512
  %v399 = vsel %vm397, %v292, 0
  %v402 = vsel %vm397, %v293, 0
  %404 = vmatprep.subr.mxu0 %v295
  %405 = vmatpush1.msra.mxu0 %v294
  %406 = vmatprep.subr.mxu0 0.0
  %407 = vmatpush1.msra.mxu0 0.0
  %408 = vmatprep.subr.mxu0 0.0
  %409 = vmatpush1.msra.mxu0 0.0
  %410 = vmatprep.subr.mxu0 0.0
  %411 = vmatpush1.msra.mxu0 0.0
  %412 = vmatprep.subr.mxu0 0.0
  %413 = vmatpush1.msra.mxu0 0.0
  %414 = vmatprep.subr.mxu0 0.0
  %415 = vmatpush1.msra.mxu0 0.0
  %416 = vmatprep.subr.mxu0 0.0
  %417 = vmatpush1.msra.mxu0 0.0
  %418 = vmatprep.subr.mxu0 0.0
  %419 = vmatpush1.msra.mxu0 0.0
  %420 = vmatprep.subr.mxu0 0.0
  %421 = vmatpush1.msra.mxu0 0.0
  %422 = vmatprep.subr.mxu0 0.0
  %423 = vmatpush1.msra.mxu0 0.0
  %424 = vmatprep.subr.mxu0 0.0
  %425 = vmatpush1.msra.mxu0 0.0
  %426 = vmatprep.subr.mxu0 0.0
  %427 = vmatpush1.msra.mxu0 0.0
  %428 = vmatprep.subr.mxu0 0.0
  %429 = vmatpush1.msra.mxu0 0.0
  %430 = vmatprep.subr.mxu0 0.0
  %431 = vmatpush1.msra.mxu0 0.0
  %432 = vmatprep.subr.mxu0 0.0
  %433 = vmatpush1.msra.mxu0 0.0
  %434 = vmatprep.subr.mxu0 0.0
  %435 = vmatpush1.msra.mxu0 0.0
  %436 = vmatprep.subr.mxu0 0.0
  %437 = vmatpush1.msra.mxu0 0.0
  %438 = vmatprep.subr.mxu0 0.0
  %439 = vmatpush1.msra.mxu0 0.0
  %440 = vmatprep.subr.mxu0 0.0
  %441 = vmatpush1.msra.mxu0 0.0
  %442 = vmatprep.subr.mxu0 0.0
  %443 = vmatpush1.msra.mxu0 0.0
  %444 = vmatprep.subr.mxu0 0.0
  %445 = vmatpush1.msra.mxu0 0.0
  %446 = vmatprep.subr.mxu0 0.0
  %447 = vmatpush1.msra.mxu0 0.0
  %448 = vmatprep.subr.mxu0 0.0
  %449 = vmatpush1.msra.mxu0 0.0
  %450 = vmatprep.subr.mxu0 0.0
  %451 = vmatpush1.msra.mxu0 0.0
  %452 = vmatprep.subr.mxu0 0.0
  %453 = vmatpush1.msra.mxu0 0.0
  %454 = vmatprep.subr.mxu0 0.0
  %455 = vmatpush1.msra.mxu0 0.0
  %456 = vmatprep.subr.mxu0 0.0
  %457 = vmatpush1.msra.mxu0 0.0
  %458 = vmatprep.subr.mxu0 0.0
  %459 = vmatpush1.msra.mxu0 0.0
  %460 = vmatprep.subr.mxu0 0.0
  %461 = vmatpush1.msra.mxu0 0.0
  %462 = vmatprep.subr.mxu0 0.0
  %463 = vmatpush1.msra.mxu0 0.0
  %464 = vmatprep.subr.mxu0 0.0
  %465 = vmatpush1.msra.mxu0 0.0
  %466 = vmatprep.subr.mxu0 0.0
  %467 = vmatpush1.msra.mxu0 0.0
  %468 = vmatprep.mubr.f32.mxu0 0.0
  %469 = vmatmul.mubr.f32.gmra.mrb[0].mxu0 %v399
  %v470 = vpop.f32.mrb[0].mxu0
  %v471 = vadd.f32 %v387, %v470
  %v472 = vpop.f32.mrb[0].mxu0
  %v473 = vadd.f32 %v389, %v472
  %474 = vmatprep.mubr.f32.mxu0 0.0
  %475 = vmatmul.mubr.f32.gmra.mrb[0].mxu0 %v402
  %v476 = vpop.f32.mrb[0].mxu0
  %v477 = vadd.f32 %v393, %v476
  %v478 = vpop.f32.mrb[0].mxu0
  %v479 = vadd.f32 %v395, %v478
  %480 = vdwg.mxu0
  %v481 = vld [vmem:[%s0] sm:$0xff]
  %v482 = vld [vmem:[%s0 + $0x8] sm:$0xff]
  %v483 = vld [vmem:[%s7] sm:$0xff]
  %v485 = vcombine.high %v483, %v483
  %v486 = vsel %vm229, %v485, 0
  %v489 = vsel %vm229, %v473, 0
  %v492 = vsel %vm229, %v479, 0
  %494 = vmatprep.subr.mxu0 %v489
  %495 = vmatpush1.xpose.msra.mxu0 %v471
  %496 = vmatprep.subr.mxu0 %v492
  %497 = vmatpush1.xpose.msra.mxu0 %v477
  %498 = vmatprep.subr.mxu0 0.0
  %499 = vmatpush1.xpose.msra.mxu0 0.0
  %500 = vmatprep.subr.mxu0 0.0
  %501 = vmatpush1.xpose.msra.mxu0 0.0
  %502 = vmatprep.subr.mxu0 0.0
  %503 = vmatpush1.xpose.msra.mxu0 0.0
  %504 = vmatprep.subr.mxu0 0.0
  %505 = vmatpush1.xpose.msra.mxu0 0.0
  %506 = vmatprep.subr.mxu0 0.0
  %507 = vmatpush1.xpose.msra.mxu0 0.0
  %508 = vmatprep.subr.mxu0 0.0
  %509 = vmatpush1.xpose.msra.mxu0 0.0
  %510 = vmatprep.subr.mxu0 0.0
  %511 = vmatpush1.xpose.msra.mxu0 0.0
  %512 = vmatprep.subr.mxu0 0.0
  %513 = vmatpush1.xpose.msra.mxu0 0.0
  %514 = vmatprep.subr.mxu0 0.0
  %515 = vmatpush1.xpose.msra.mxu0 0.0
  %516 = vmatprep.subr.mxu0 0.0
  %517 = vmatpush1.xpose.msra.mxu0 0.0
  %518 = vmatprep.subr.mxu0 0.0
  %519 = vmatpush1.xpose.msra.mxu0 0.0
  %520 = vmatprep.subr.mxu0 0.0
  %521 = vmatpush1.xpose.msra.mxu0 0.0
  %522 = vmatprep.subr.mxu0 0.0
  %523 = vmatpush1.xpose.msra.mxu0 0.0
  %524 = vmatprep.subr.mxu0 0.0
  %525 = vmatpush1.xpose.msra.mxu0 0.0
  %526 = vmatprep.subr.mxu0 0.0
  %527 = vmatpush1.xpose.msra.mxu0 0.0
  %528 = vmatprep.subr.mxu0 0.0
  %529 = vmatpush1.xpose.msra.mxu0 0.0
  %530 = vmatprep.subr.mxu0 0.0
  %531 = vmatpush1.xpose.msra.mxu0 0.0
  %532 = vmatprep.subr.mxu0 0.0
  %533 = vmatpush1.xpose.msra.mxu0 0.0
  %534 = vmatprep.subr.mxu0 0.0
  %535 = vmatpush1.xpose.msra.mxu0 0.0
  %536 = vmatprep.subr.mxu0 0.0
  %537 = vmatpush1.xpose.msra.mxu0 0.0
  %538 = vmatprep.subr.mxu0 0.0
  %539 = vmatpush1.xpose.msra.mxu0 0.0
  %540 = vmatprep.subr.mxu0 0.0
  %541 = vmatpush1.xpose.msra.mxu0 0.0
  %542 = vmatprep.subr.mxu0 0.0
  %543 = vmatpush1.xpose.msra.mxu0 0.0
  %544 = vmatprep.subr.mxu0 0.0
  %545 = vmatpush1.xpose.msra.mxu0 0.0
  %546 = vmatprep.subr.mxu0 0.0
  %547 = vmatpush1.xpose.msra.mxu0 0.0
  %548 = vmatprep.subr.mxu0 0.0
  %549 = vmatpush1.xpose.msra.mxu0 0.0
  %550 = vmatprep.subr.mxu0 0.0
  %551 = vmatpush1.xpose.msra.mxu0 0.0
  %552 = vmatprep.subr.mxu0 0.0
  %553 = vmatpush1.xpose.msra.mxu0 0.0
  %554 = vmatprep.subr.mxu0 0.0
  %555 = vmatpush1.xpose.msra.mxu0 0.0
  %556 = vmatprep.subr.mxu0 0.0
  %557 = vmatpush1.xpose.msra.mxu0 0.0
  %558 = vmatprep.mubr.f32.mxu0 %v486
  %559 = vmatmul.mubr.f32.gmra.mrb[0].mxu0 %v483
  %v560 = vpop.f32.mrb[0].mxu0
  %v561 = vadd.f32 0.0, %v560
  %v562 = vpop.f32.mrb[0].mxu0
  %563 = vdwg.mxu0
  %v564 = vld [vmem:[%s8] sm:$0xff]
  %v565 = vld [vmem:[%s8 + $0x8] sm:$0xff]
  %v566 = vld [vmem:[%s8 + $0x10] sm:$0xff]
  %v567 = vld [vmem:[%s8 + $0x18] sm:$0xff]
  %v568 = vld [vmem:[%s8 + $0x20] sm:$0xff]
  %v569 = vld [vmem:[%s8 + $0x28] sm:$0xff]
  %v570 = vld [vmem:[%s8 + $0x30] sm:$0xff]
  %v571 = vld [vmem:[%s8 + $0x38] sm:$0xff]
  %v572 = vld [vmem:[%s8 + $0x40] sm:$0xff]
  %v573 = vld [vmem:[%s8 + $0x48] sm:$0xff]
  %v574 = vld [vmem:[%s8 + $0x50] sm:$0xff]
  %v575 = vld [vmem:[%s8 + $0x58] sm:$0xff]
  %v576 = vld [vmem:[%s8 + $0x60] sm:$0xff]
  %v577 = vld [vmem:[%s8 + $0x68] sm:$0xff]
  %v578 = vld [vmem:[%s8 + $0x70] sm:$0xff]
  %v579 = vld [vmem:[%s8 + $0x78] sm:$0xff]
  %v580 = vld [vmem:[%s8 + $0x80] sm:$0xff]
  %v581 = vld [vmem:[%s8 + $0x88] sm:$0xff]
  %582 = vmatprep.subr.mxu0 0.0
  %583 = vmatpush1.msra.mxu0 %v564
  %584 = vmatprep.subr.mxu0 0.0
  %585 = vmatpush1.msra.mxu0 %v565
  %586 = vmatprep.subr.mxu0 0.0
  %587 = vmatpush1.msra.mxu0 %v566
  %588 = vmatprep.subr.mxu0 0.0
  %589 = vmatpush1.msra.mxu0 %v567
  %590 = vmatprep.subr.mxu0 0.0
  %591 = vmatpush1.msra.mxu0 %v568
  %592 = vmatprep.subr.mxu0 0.0
  %593 = vmatpush1.msra.mxu0 %v569
  %594 = vmatprep.subr.mxu0 0.0
  %595 = vmatpush1.msra.mxu0 %v570
  %596 = vmatprep.subr.mxu0 0.0
  %597 = vmatpush1.msra.mxu0 %v571
  %598 = vmatprep.subr.mxu0 0.0
  %599 = vmatpush1.msra.mxu0 %v572
  %600 = vmatprep.subr.mxu0 0.0
  %601 = vmatpush1.msra.mxu0 %v573
  %602 = vmatprep.subr.mxu0 0.0
  %603 = vmatpush1.msra.mxu0 %v574
  %604 = vmatprep.subr.mxu0 0.0
  %605 = vmatpush1.msra.mxu0 %v575
  %606 = vmatprep.subr.mxu0 0.0
  %607 = vmatpush1.msra.mxu0 %v576
  %608 = vmatprep.subr.mxu0 0.0
  %609 = vmatpush1.msra.mxu0 %v577
  %610 = vmatprep.subr.mxu0 0.0
  %611 = vmatpush1.msra.mxu0 %v578
  %612 = vmatprep.subr.mxu0 0.0
  %613 = vmatpush1.msra.mxu0 %v579
  %614 = vmatprep.subr.mxu0 0.0
  %615 = vmatpush1.msra.mxu0 %v580
  %616 = vmatprep.subr.mxu0 0.0
  %617 = vmatpush1.msra.mxu0 %v581
  %618 = vmatprep.subr.mxu0 0.0
  %619 = vmatpush1.msra.mxu0 0.0
  %620 = vmatprep.subr.mxu0 0.0
  %621 = vmatpush1.msra.mxu0 0.0
  %622 = vmatprep.subr.mxu0 0.0
  %623 = vmatpush1.msra.mxu0 0.0
  %624 = vmatprep.subr.mxu0 0.0
  %625 = vmatpush1.msra.mxu0 0.0
  %626 = vmatprep.subr.mxu0 0.0
  %627 = vmatpush1.msra.mxu0 0.0
  %628 = vmatprep.subr.mxu0 0.0
  %629 = vmatpush1.msra.mxu0 0.0
  %630 = vmatprep.subr.mxu0 0.0
  %631 = vmatpush1.msra.mxu0 0.0
  %632 = vmatprep.subr.mxu0 0.0
  %633 = vmatpush1.msra.mxu0 0.0
  %634 = vmatprep.subr.mxu0 0.0
  %635 = vmatpush1.msra.mxu0 0.0
  %636 = vmatprep.subr.mxu0 0.0
  %637 = vmatpush1.msra.mxu0 0.0
  %638 = vmatprep.subr.mxu0 0.0
  %639 = vmatpush1.msra.mxu0 0.0
  %640 = vmatprep.subr.mxu0 0.0
  %641 = vmatpush1.msra.mxu0 0.0
  %642 = vmatprep.subr.mxu0 0.0
  %643 = vmatpush1.msra.mxu0 0.0
  %644 = vmatprep.subr.mxu0 0.0
  %645 = vmatpush1.msra.mxu0 0.0
  %646 = vmatprep.mubr.f32.mxu0 %v489
  %647 = vmatmul.mubr.f32.gmra.mrb[0].mxu0 %v471
  %v648 = vpop.f32.mrb[0].mxu0
  %v649 = vadd.f32 0.0, %v648
  %v650 = vpop.f32.mrb[0].mxu0
  %651 = vmatprep.mubr.f32.mxu0 %v492
  %652 = vmatmul.mubr.f32.gmra.mrb[0].mxu0 %v477
  %v653 = vpop.f32.mrb[0].mxu0
  %v654 = vadd.f32 0.0, %v653
  %v655 = vpop.f32.mrb[0].mxu0
  %656 = vdwg.mxu0
  %vm657 = vcmp.gt.f32.partialorder %v481, 0.5
  %vm658 = vcmp.gt.f32.partialorder %v482, 0.5
  %v659 = vld [vmem:[%s9] sm:$0x3]
  %661 = vset.pattern.permute.xlu0 0
  %662 = vperm.xlu0 %661, %v649
  %v663 = vpop.permute.xlu0 %662
  %666 = vset.pattern.permute.xlu0 0
  %667 = vperm.xlu0 %666, %v654
  %v668 = vpop.permute.xlu0 %667
  %v670 = vlaneseq
  %v671 = vshrl.u32 %v670, 7
  %v672 = vsub.s32 0, %v671
  %v673 = vrot.slane %v561, %v672
  %v674 = vadd.f32 %v663, %v673
  %v675 = vadd.f32 %v668, %v673
  %vm676 = vcmp.ge.f32.partialorder %v674, 0.0
  %vm677 = vcmp.ge.f32.partialorder %v675, 0.0
  %v678 = vmul.f32 %v674, 0.2
  %v679 = vmul.f32 %v675, 0.2
  %v680 = vsel %vm676, %v674, %v678
  %v681 = vsel %vm677, %v675, %v679
  %v682 = vsel %vm657, %v680, -1e+30
  %v683 = vsel %vm658, %v681, -1e+30
  %v684 = vsel %vm229, %v682, -inf
  %685 = vmax.xlane.f32.xlu0 %v684
  %v686 = vpop.xlane.xlu0 %685
  %v687 = vsel %vm229, %v683, -inf
  %688 = vmax.xlane.f32.xlu0 %v687
  %v689 = vpop.xlane.xlu0 %688
  %v690 = vsub.f32 %v682, %v686
  %v691 = vsub.f32 %v683, %v689
  %v692 = vmul.f32 %v690, 1.442695
  %v693 = vpow.pop %v692
  %v694 = vmul.f32 %v691, 1.442695
  %v695 = vpow.pop %v694
  %v696 = vsel %vm657, %v693, 0.0
  %v697 = vsel %vm658, %v695, 0.0
  %v698 = vsel %vm229, %v696, 0.0
  %699 = vadd.xlane.f32.xlu0 %v698
  %v700 = vpop.xlane.xlu0 %699
  %v701 = vsel %vm229, %v697, 0.0
  %702 = vadd.xlane.f32.xlu0 %v701
  %v703 = vpop.xlane.xlu0 %702
  %v704 = vrcp.pop %v700
  %v705 = vrcp.pop %v703
  %v706 = vmul.f32 %v696, %v704
  %v707 = vmul.f32 %v697, %v705
  %v708 = vsel %vm57, 1, 0
  %v709 = vsel %vm58, 1, 0
  %vm710 = vcmp.eq.s32.totalorder %v708, 1
  %vm711 = vcmp.eq.s32.totalorder %v709, 1
  %v712 = vsel %vm710, %v471, 0.0
  %v713 = vsel %vm711, %v473, 0.0
  %v714 = vsel %vm710, %v477, 0.0
  %v715 = vsel %vm711, %v479, 0.0
  %v717 = vsel %vm229, %v706, 0
  %v720 = vsel %vm229, %v707, 0
  %722 = vmatprep.subr.mxu0 %v713
  %723 = vmatpush1.msra.mxu0 %v712
  %724 = vmatprep.subr.mxu0 %v715
  %725 = vmatpush1.msra.mxu0 %v714
  %726 = vmatprep.subr.mxu0 0.0
  %727 = vmatpush1.msra.mxu0 0.0
  %728 = vmatprep.subr.mxu0 0.0
  %729 = vmatpush1.msra.mxu0 0.0
  %730 = vmatprep.subr.mxu0 0.0
  %731 = vmatpush1.msra.mxu0 0.0
  %732 = vmatprep.subr.mxu0 0.0
  %733 = vmatpush1.msra.mxu0 0.0
  %734 = vmatprep.subr.mxu0 0.0
  %735 = vmatpush1.msra.mxu0 0.0
  %736 = vmatprep.subr.mxu0 0.0
  %737 = vmatpush1.msra.mxu0 0.0
  %738 = vmatprep.subr.mxu0 0.0
  %739 = vmatpush1.msra.mxu0 0.0
  %740 = vmatprep.subr.mxu0 0.0
  %741 = vmatpush1.msra.mxu0 0.0
  %742 = vmatprep.subr.mxu0 0.0
  %743 = vmatpush1.msra.mxu0 0.0
  %744 = vmatprep.subr.mxu0 0.0
  %745 = vmatpush1.msra.mxu0 0.0
  %746 = vmatprep.subr.mxu0 0.0
  %747 = vmatpush1.msra.mxu0 0.0
  %748 = vmatprep.subr.mxu0 0.0
  %749 = vmatpush1.msra.mxu0 0.0
  %750 = vmatprep.subr.mxu0 0.0
  %751 = vmatpush1.msra.mxu0 0.0
  %752 = vmatprep.subr.mxu0 0.0
  %753 = vmatpush1.msra.mxu0 0.0
  %754 = vmatprep.subr.mxu0 0.0
  %755 = vmatpush1.msra.mxu0 0.0
  %756 = vmatprep.subr.mxu0 0.0
  %757 = vmatpush1.msra.mxu0 0.0
  %758 = vmatprep.subr.mxu0 0.0
  %759 = vmatpush1.msra.mxu0 0.0
  %760 = vmatprep.subr.mxu0 0.0
  %761 = vmatpush1.msra.mxu0 0.0
  %762 = vmatprep.subr.mxu0 0.0
  %763 = vmatpush1.msra.mxu0 0.0
  %764 = vmatprep.subr.mxu0 0.0
  %765 = vmatpush1.msra.mxu0 0.0
  %766 = vmatprep.subr.mxu0 0.0
  %767 = vmatpush1.msra.mxu0 0.0
  %768 = vmatprep.subr.mxu0 0.0
  %769 = vmatpush1.msra.mxu0 0.0
  %770 = vmatprep.subr.mxu0 0.0
  %771 = vmatpush1.msra.mxu0 0.0
  %772 = vmatprep.subr.mxu0 0.0
  %773 = vmatpush1.msra.mxu0 0.0
  %774 = vmatprep.subr.mxu0 0.0
  %775 = vmatpush1.msra.mxu0 0.0
  %776 = vmatprep.subr.mxu0 0.0
  %777 = vmatpush1.msra.mxu0 0.0
  %778 = vmatprep.subr.mxu0 0.0
  %779 = vmatpush1.msra.mxu0 0.0
  %780 = vmatprep.subr.mxu0 0.0
  %781 = vmatpush1.msra.mxu0 0.0
  %782 = vmatprep.subr.mxu0 0.0
  %783 = vmatpush1.msra.mxu0 0.0
  %784 = vmatprep.subr.mxu0 0.0
  %785 = vmatpush1.msra.mxu0 0.0
  %786 = vmatprep.mubr.f32.mxu0 0.0
  %787 = vmatmul.mubr.f32.gmra.mrb[0].mxu0 %v717
  %v788 = vpop.f32.mrb[0].mxu0
  %v789 = vadd.f32 0.0, %v788
  %v790 = vpop.f32.mrb[0].mxu0
  %v791 = vadd.f32 0.0, %v790
  %792 = vmatprep.mubr.f32.mxu0 0.0
  %793 = vmatmul.mubr.f32.gmra.mrb[0].mxu0 %v720
  %v794 = vpop.f32.mrb[0].mxu0
  %v795 = vadd.f32 0.0, %v794
  %v796 = vpop.f32.mrb[0].mxu0
  %v797 = vadd.f32 0.0, %v796
  %798 = vdwg.mxu0
  %v800 = vlaneseq
  %v801 = vshrl.u32 %v800, 7
  %v802 = vsub.s32 0, %v801
  %v803 = vrot.slane %v659, %v802
  %v804 = vlaneseq
  %v805 = vshrl.u32 %v804, 7
  %v806 = vsub.s32 1, %v805
  %v807 = vrot.slane %v659, %v806
  %v810 = vadd.f32 %v803, %v789
  %v811 = vadd.f32 %v807, %v791
  %v812 = vadd.f32 %v803, %v795
  %v813 = vadd.f32 %v807, %v797
  %814 = vset.pattern.permute.xlu0 1
  %815 = vperm.xlu0 %814, %v649
  %v816 = vpop.permute.xlu0 %815
  %818 = vset.pattern.permute.xlu0 1
  %819 = vperm.xlu0 %818, %v654
  %v820 = vpop.permute.xlu0 %819
  %v822 = vlaneseq
  %v823 = vshrl.u32 %v822, 7
  %v824 = vsub.s32 1, %v823
  %v825 = vrot.slane %v561, %v824
  %v826 = vadd.f32 %v816, %v825
  %v827 = vadd.f32 %v820, %v825
  %vm828 = vcmp.ge.f32.partialorder %v826, 0.0
  %vm829 = vcmp.ge.f32.partialorder %v827, 0.0
  %v830 = vmul.f32 %v826, 0.2
  %v831 = vmul.f32 %v827, 0.2
  %v832 = vsel %vm828, %v826, %v830
  %v833 = vsel %vm829, %v827, %v831
  %v834 = vsel %vm657, %v832, -1e+30
  %v835 = vsel %vm658, %v833, -1e+30
  %v836 = vsel %vm229, %v834, -inf
  %837 = vmax.xlane.f32.xlu0 %v836
  %v838 = vpop.xlane.xlu0 %837
  %v839 = vsel %vm229, %v835, -inf
  %840 = vmax.xlane.f32.xlu0 %v839
  %v841 = vpop.xlane.xlu0 %840
  %v842 = vsub.f32 %v834, %v838
  %v843 = vsub.f32 %v835, %v841
  %v844 = vmul.f32 %v842, 1.442695
  %v845 = vpow.pop %v844
  %v846 = vmul.f32 %v843, 1.442695
  %v847 = vpow.pop %v846
  %v848 = vsel %vm657, %v845, 0.0
  %v849 = vsel %vm658, %v847, 0.0
  %v850 = vsel %vm229, %v848, 0.0
  %851 = vadd.xlane.f32.xlu0 %v850
  %v852 = vpop.xlane.xlu0 %851
  %v853 = vsel %vm229, %v849, 0.0
  %854 = vadd.xlane.f32.xlu0 %v853
  %v855 = vpop.xlane.xlu0 %854
  %v856 = vrcp.pop %v852
  %v857 = vrcp.pop %v855
  %v858 = vmul.f32 %v848, %v856
  %v859 = vmul.f32 %v849, %v857
  %v860 = vsel %vm63, 1, 0
  %v861 = vsel %vm64, 1, 0
  %vm862 = vcmp.eq.s32.totalorder %v860, 1
  %vm863 = vcmp.eq.s32.totalorder %v861, 1
  %v864 = vsel %vm862, %v471, 0.0
  %v865 = vsel %vm863, %v473, 0.0
  %v866 = vsel %vm862, %v477, 0.0
  %v867 = vsel %vm863, %v479, 0.0
  %v869 = vsel %vm229, %v858, 0
  %v872 = vsel %vm229, %v859, 0
  %874 = vmatprep.subr.mxu0 %v865
  %875 = vmatpush1.msra.mxu0 %v864
  %876 = vmatprep.subr.mxu0 %v867
  %877 = vmatpush1.msra.mxu0 %v866
  %878 = vmatprep.subr.mxu0 0.0
  %879 = vmatpush1.msra.mxu0 0.0
  %880 = vmatprep.subr.mxu0 0.0
  %881 = vmatpush1.msra.mxu0 0.0
  %882 = vmatprep.subr.mxu0 0.0
  %883 = vmatpush1.msra.mxu0 0.0
  %884 = vmatprep.subr.mxu0 0.0
  %885 = vmatpush1.msra.mxu0 0.0
  %886 = vmatprep.subr.mxu0 0.0
  %887 = vmatpush1.msra.mxu0 0.0
  %888 = vmatprep.subr.mxu0 0.0
  %889 = vmatpush1.msra.mxu0 0.0
  %890 = vmatprep.subr.mxu0 0.0
  %891 = vmatpush1.msra.mxu0 0.0
  %892 = vmatprep.subr.mxu0 0.0
  %893 = vmatpush1.msra.mxu0 0.0
  %894 = vmatprep.subr.mxu0 0.0
  %895 = vmatpush1.msra.mxu0 0.0
  %896 = vmatprep.subr.mxu0 0.0
  %897 = vmatpush1.msra.mxu0 0.0
  %898 = vmatprep.subr.mxu0 0.0
  %899 = vmatpush1.msra.mxu0 0.0
  %900 = vmatprep.subr.mxu0 0.0
  %901 = vmatpush1.msra.mxu0 0.0
  %902 = vmatprep.subr.mxu0 0.0
  %903 = vmatpush1.msra.mxu0 0.0
  %904 = vmatprep.subr.mxu0 0.0
  %905 = vmatpush1.msra.mxu0 0.0
  %906 = vmatprep.subr.mxu0 0.0
  %907 = vmatpush1.msra.mxu0 0.0
  %908 = vmatprep.subr.mxu0 0.0
  %909 = vmatpush1.msra.mxu0 0.0
  %910 = vmatprep.subr.mxu0 0.0
  %911 = vmatpush1.msra.mxu0 0.0
  %912 = vmatprep.subr.mxu0 0.0
  %913 = vmatpush1.msra.mxu0 0.0
  %914 = vmatprep.subr.mxu0 0.0
  %915 = vmatpush1.msra.mxu0 0.0
  %916 = vmatprep.subr.mxu0 0.0
  %917 = vmatpush1.msra.mxu0 0.0
  %918 = vmatprep.subr.mxu0 0.0
  %919 = vmatpush1.msra.mxu0 0.0
  %920 = vmatprep.subr.mxu0 0.0
  %921 = vmatpush1.msra.mxu0 0.0
  %922 = vmatprep.subr.mxu0 0.0
  %923 = vmatpush1.msra.mxu0 0.0
  %924 = vmatprep.subr.mxu0 0.0
  %925 = vmatpush1.msra.mxu0 0.0
  %926 = vmatprep.subr.mxu0 0.0
  %927 = vmatpush1.msra.mxu0 0.0
  %928 = vmatprep.subr.mxu0 0.0
  %929 = vmatpush1.msra.mxu0 0.0
  %930 = vmatprep.subr.mxu0 0.0
  %931 = vmatpush1.msra.mxu0 0.0
  %932 = vmatprep.subr.mxu0 0.0
  %933 = vmatpush1.msra.mxu0 0.0
  %934 = vmatprep.subr.mxu0 0.0
  %935 = vmatpush1.msra.mxu0 0.0
  %936 = vmatprep.subr.mxu0 0.0
  %937 = vmatpush1.msra.mxu0 0.0
  %938 = vmatprep.mubr.f32.mxu0 0.0
  %939 = vmatmul.mubr.f32.gmra.mrb[0].mxu0 %v869
  %v940 = vpop.f32.mrb[0].mxu0
  %v941 = vadd.f32 0.0, %v940
  %v942 = vpop.f32.mrb[0].mxu0
  %v943 = vadd.f32 0.0, %v942
  %944 = vmatprep.mubr.f32.mxu0 0.0
  %945 = vmatmul.mubr.f32.gmra.mrb[0].mxu0 %v872
  %v946 = vpop.f32.mrb[0].mxu0
  %v947 = vadd.f32 0.0, %v946
  %v948 = vpop.f32.mrb[0].mxu0
  %v949 = vadd.f32 0.0, %v948
  %950 = vdwg.mxu0
  %v951 = vadd.f32 %v810, %v941
  %v952 = vadd.f32 %v811, %v943
  %v953 = vadd.f32 %v812, %v947
  %v954 = vadd.f32 %v813, %v949
  %955 = vset.pattern.permute.xlu0 2
  %956 = vperm.xlu0 %955, %v649
  %v957 = vpop.permute.xlu0 %956
  %959 = vset.pattern.permute.xlu0 2
  %960 = vperm.xlu0 %959, %v654
  %v961 = vpop.permute.xlu0 %960
  %v963 = vlaneseq
  %v964 = vshrl.u32 %v963, 7
  %v965 = vsub.s32 2, %v964
  %v966 = vrot.slane %v561, %v965
  %v967 = vadd.f32 %v957, %v966
  %v968 = vadd.f32 %v961, %v966
  %vm969 = vcmp.ge.f32.partialorder %v967, 0.0
  %vm970 = vcmp.ge.f32.partialorder %v968, 0.0
  %v971 = vmul.f32 %v967, 0.2
  %v972 = vmul.f32 %v968, 0.2
  %v973 = vsel %vm969, %v967, %v971
  %v974 = vsel %vm970, %v968, %v972
  %v975 = vsel %vm657, %v973, -1e+30
  %v976 = vsel %vm658, %v974, -1e+30
  %v977 = vsel %vm229, %v975, -inf
  %978 = vmax.xlane.f32.xlu0 %v977
  %v979 = vpop.xlane.xlu0 %978
  %v980 = vsel %vm229, %v976, -inf
  %981 = vmax.xlane.f32.xlu0 %v980
  %v982 = vpop.xlane.xlu0 %981
  %v983 = vsub.f32 %v975, %v979
  %v984 = vsub.f32 %v976, %v982
  %v985 = vmul.f32 %v983, 1.442695
  %v986 = vpow.pop %v985
  %v987 = vmul.f32 %v984, 1.442695
  %v988 = vpow.pop %v987
  %v989 = vsel %vm657, %v986, 0.0
  %v990 = vsel %vm658, %v988, 0.0
  %v991 = vsel %vm229, %v989, 0.0
  %992 = vadd.xlane.f32.xlu0 %v991
  %v993 = vpop.xlane.xlu0 %992
  %v994 = vsel %vm229, %v990, 0.0
  %995 = vadd.xlane.f32.xlu0 %v994
  %v996 = vpop.xlane.xlu0 %995
  %v997 = vrcp.pop %v993
  %v998 = vrcp.pop %v996
  %v999 = vmul.f32 %v989, %v997
  %v1000 = vmul.f32 %v990, %v998
  %v1001 = vsel %vm69, 1, 0
  %v1002 = vsel %vm70, 1, 0
  %vm1003 = vcmp.eq.s32.totalorder %v1001, 1
  %vm1004 = vcmp.eq.s32.totalorder %v1002, 1
  %v1005 = vsel %vm1003, %v471, 0.0
  %v1006 = vsel %vm1004, %v473, 0.0
  %v1007 = vsel %vm1003, %v477, 0.0
  %v1008 = vsel %vm1004, %v479, 0.0
  %v1010 = vsel %vm229, %v999, 0
  %v1013 = vsel %vm229, %v1000, 0
  %1015 = vmatprep.subr.mxu0 %v1006
  %1016 = vmatpush1.msra.mxu0 %v1005
  %1017 = vmatprep.subr.mxu0 %v1008
  %1018 = vmatpush1.msra.mxu0 %v1007
  %1019 = vmatprep.subr.mxu0 0.0
  %1020 = vmatpush1.msra.mxu0 0.0
  %1021 = vmatprep.subr.mxu0 0.0
  %1022 = vmatpush1.msra.mxu0 0.0
  %1023 = vmatprep.subr.mxu0 0.0
  %1024 = vmatpush1.msra.mxu0 0.0
  %1025 = vmatprep.subr.mxu0 0.0
  %1026 = vmatpush1.msra.mxu0 0.0
  %1027 = vmatprep.subr.mxu0 0.0
  %1028 = vmatpush1.msra.mxu0 0.0
  %1029 = vmatprep.subr.mxu0 0.0
  %1030 = vmatpush1.msra.mxu0 0.0
  %1031 = vmatprep.subr.mxu0 0.0
  %1032 = vmatpush1.msra.mxu0 0.0
  %1033 = vmatprep.subr.mxu0 0.0
  %1034 = vmatpush1.msra.mxu0 0.0
  %1035 = vmatprep.subr.mxu0 0.0
  %1036 = vmatpush1.msra.mxu0 0.0
  %1037 = vmatprep.subr.mxu0 0.0
  %1038 = vmatpush1.msra.mxu0 0.0
  %1039 = vmatprep.subr.mxu0 0.0
  %1040 = vmatpush1.msra.mxu0 0.0
  %1041 = vmatprep.subr.mxu0 0.0
  %1042 = vmatpush1.msra.mxu0 0.0
  %1043 = vmatprep.subr.mxu0 0.0
  %1044 = vmatpush1.msra.mxu0 0.0
  %1045 = vmatprep.subr.mxu0 0.0
  %1046 = vmatpush1.msra.mxu0 0.0
  %1047 = vmatprep.subr.mxu0 0.0
  %1048 = vmatpush1.msra.mxu0 0.0
  %1049 = vmatprep.subr.mxu0 0.0
  %1050 = vmatpush1.msra.mxu0 0.0
  %1051 = vmatprep.subr.mxu0 0.0
  %1052 = vmatpush1.msra.mxu0 0.0
  %1053 = vmatprep.subr.mxu0 0.0
  %1054 = vmatpush1.msra.mxu0 0.0
  %1055 = vmatprep.subr.mxu0 0.0
  %1056 = vmatpush1.msra.mxu0 0.0
  %1057 = vmatprep.subr.mxu0 0.0
  %1058 = vmatpush1.msra.mxu0 0.0
  %1059 = vmatprep.subr.mxu0 0.0
  %1060 = vmatpush1.msra.mxu0 0.0
  %1061 = vmatprep.subr.mxu0 0.0
  %1062 = vmatpush1.msra.mxu0 0.0
  %1063 = vmatprep.subr.mxu0 0.0
  %1064 = vmatpush1.msra.mxu0 0.0
  %1065 = vmatprep.subr.mxu0 0.0
  %1066 = vmatpush1.msra.mxu0 0.0
  %1067 = vmatprep.subr.mxu0 0.0
  %1068 = vmatpush1.msra.mxu0 0.0
  %1069 = vmatprep.subr.mxu0 0.0
  %1070 = vmatpush1.msra.mxu0 0.0
  %1071 = vmatprep.subr.mxu0 0.0
  %1072 = vmatpush1.msra.mxu0 0.0
  %1073 = vmatprep.subr.mxu0 0.0
  %1074 = vmatpush1.msra.mxu0 0.0
  %1075 = vmatprep.subr.mxu0 0.0
  %1076 = vmatpush1.msra.mxu0 0.0
  %1077 = vmatprep.subr.mxu0 0.0
  %1078 = vmatpush1.msra.mxu0 0.0
  %1079 = vmatprep.mubr.f32.mxu0 0.0
  %1080 = vmatmul.mubr.f32.gmra.mrb[0].mxu0 %v1010
  %v1081 = vpop.f32.mrb[0].mxu0
  %v1082 = vadd.f32 0.0, %v1081
  %v1083 = vpop.f32.mrb[0].mxu0
  %v1084 = vadd.f32 0.0, %v1083
  %1085 = vmatprep.mubr.f32.mxu0 0.0
  %1086 = vmatmul.mubr.f32.gmra.mrb[0].mxu0 %v1013
  %v1087 = vpop.f32.mrb[0].mxu0
  %v1088 = vadd.f32 0.0, %v1087
  %v1089 = vpop.f32.mrb[0].mxu0
  %v1090 = vadd.f32 0.0, %v1089
  %1091 = vdwg.mxu0
  %v1092 = vadd.f32 %v951, %v1082
  %v1093 = vadd.f32 %v952, %v1084
  %v1094 = vadd.f32 %v953, %v1088
  %v1095 = vadd.f32 %v954, %v1090
  %1096 = vset.pattern.permute.xlu0 3
  %1097 = vperm.xlu0 %1096, %v649
  %v1098 = vpop.permute.xlu0 %1097
  %1100 = vset.pattern.permute.xlu0 3
  %1101 = vperm.xlu0 %1100, %v654
  %v1102 = vpop.permute.xlu0 %1101
  %v1104 = vlaneseq
  %v1105 = vshrl.u32 %v1104, 7
  %v1106 = vsub.s32 3, %v1105
  %v1107 = vrot.slane %v561, %v1106
  %v1108 = vadd.f32 %v1098, %v1107
  %v1109 = vadd.f32 %v1102, %v1107
  %vm1110 = vcmp.ge.f32.partialorder %v1108, 0.0
  %vm1111 = vcmp.ge.f32.partialorder %v1109, 0.0
  %v1112 = vmul.f32 %v1108, 0.2
  %v1113 = vmul.f32 %v1109, 0.2
  %v1114 = vsel %vm1110, %v1108, %v1112
  %v1115 = vsel %vm1111, %v1109, %v1113
  %v1116 = vsel %vm657, %v1114, -1e+30
  %v1117 = vsel %vm658, %v1115, -1e+30
  %v1118 = vsel %vm229, %v1116, -inf
  %1119 = vmax.xlane.f32.xlu0 %v1118
  %v1120 = vpop.xlane.xlu0 %1119
  %v1121 = vsel %vm229, %v1117, -inf
  %1122 = vmax.xlane.f32.xlu0 %v1121
  %v1123 = vpop.xlane.xlu0 %1122
  %v1124 = vsub.f32 %v1116, %v1120
  %v1125 = vsub.f32 %v1117, %v1123
  %v1126 = vmul.f32 %v1124, 1.442695
  %v1127 = vpow.pop %v1126
  %v1128 = vmul.f32 %v1125, 1.442695
  %v1129 = vpow.pop %v1128
  %v1130 = vsel %vm657, %v1127, 0.0
  %v1131 = vsel %vm658, %v1129, 0.0
  %v1132 = vsel %vm229, %v1130, 0.0
  %1133 = vadd.xlane.f32.xlu0 %v1132
  %v1134 = vpop.xlane.xlu0 %1133
  %v1135 = vsel %vm229, %v1131, 0.0
  %1136 = vadd.xlane.f32.xlu0 %v1135
  %v1137 = vpop.xlane.xlu0 %1136
  %v1138 = vrcp.pop %v1134
  %v1139 = vrcp.pop %v1137
  %v1140 = vmul.f32 %v1130, %v1138
  %v1141 = vmul.f32 %v1131, %v1139
  %v1142 = vsel %vm75, 1, 0
  %v1143 = vsel %vm76, 1, 0
  %vm1144 = vcmp.eq.s32.totalorder %v1142, 1
  %vm1145 = vcmp.eq.s32.totalorder %v1143, 1
  %v1146 = vsel %vm1144, %v471, 0.0
  %v1147 = vsel %vm1145, %v473, 0.0
  %v1148 = vsel %vm1144, %v477, 0.0
  %v1149 = vsel %vm1145, %v479, 0.0
  %v1151 = vsel %vm229, %v1140, 0
  %v1154 = vsel %vm229, %v1141, 0
  %1156 = vmatprep.subr.mxu0 %v1147
  %1157 = vmatpush1.msra.mxu0 %v1146
  %1158 = vmatprep.subr.mxu0 %v1149
  %1159 = vmatpush1.msra.mxu0 %v1148
  %1160 = vmatprep.subr.mxu0 0.0
  %1161 = vmatpush1.msra.mxu0 0.0
  %1162 = vmatprep.subr.mxu0 0.0
  %1163 = vmatpush1.msra.mxu0 0.0
  %1164 = vmatprep.subr.mxu0 0.0
  %1165 = vmatpush1.msra.mxu0 0.0
  %1166 = vmatprep.subr.mxu0 0.0
  %1167 = vmatpush1.msra.mxu0 0.0
  %1168 = vmatprep.subr.mxu0 0.0
  %1169 = vmatpush1.msra.mxu0 0.0
  %1170 = vmatprep.subr.mxu0 0.0
  %1171 = vmatpush1.msra.mxu0 0.0
  %1172 = vmatprep.subr.mxu0 0.0
  %1173 = vmatpush1.msra.mxu0 0.0
  %1174 = vmatprep.subr.mxu0 0.0
  %1175 = vmatpush1.msra.mxu0 0.0
  %1176 = vmatprep.subr.mxu0 0.0
  %1177 = vmatpush1.msra.mxu0 0.0
  %1178 = vmatprep.subr.mxu0 0.0
  %1179 = vmatpush1.msra.mxu0 0.0
  %1180 = vmatprep.subr.mxu0 0.0
  %1181 = vmatpush1.msra.mxu0 0.0
  %1182 = vmatprep.subr.mxu0 0.0
  %1183 = vmatpush1.msra.mxu0 0.0
  %1184 = vmatprep.subr.mxu0 0.0
  %1185 = vmatpush1.msra.mxu0 0.0
  %1186 = vmatprep.subr.mxu0 0.0
  %1187 = vmatpush1.msra.mxu0 0.0
  %1188 = vmatprep.subr.mxu0 0.0
  %1189 = vmatpush1.msra.mxu0 0.0
  %1190 = vmatprep.subr.mxu0 0.0
  %1191 = vmatpush1.msra.mxu0 0.0
  %1192 = vmatprep.subr.mxu0 0.0
  %1193 = vmatpush1.msra.mxu0 0.0
  %1194 = vmatprep.subr.mxu0 0.0
  %1195 = vmatpush1.msra.mxu0 0.0
  %1196 = vmatprep.subr.mxu0 0.0
  %1197 = vmatpush1.msra.mxu0 0.0
  %1198 = vmatprep.subr.mxu0 0.0
  %1199 = vmatpush1.msra.mxu0 0.0
  %1200 = vmatprep.subr.mxu0 0.0
  %1201 = vmatpush1.msra.mxu0 0.0
  %1202 = vmatprep.subr.mxu0 0.0
  %1203 = vmatpush1.msra.mxu0 0.0
  %1204 = vmatprep.subr.mxu0 0.0
  %1205 = vmatpush1.msra.mxu0 0.0
  %1206 = vmatprep.subr.mxu0 0.0
  %1207 = vmatpush1.msra.mxu0 0.0
  %1208 = vmatprep.subr.mxu0 0.0
  %1209 = vmatpush1.msra.mxu0 0.0
  %1210 = vmatprep.subr.mxu0 0.0
  %1211 = vmatpush1.msra.mxu0 0.0
  %1212 = vmatprep.subr.mxu0 0.0
  %1213 = vmatpush1.msra.mxu0 0.0
  %1214 = vmatprep.subr.mxu0 0.0
  %1215 = vmatpush1.msra.mxu0 0.0
  %1216 = vmatprep.subr.mxu0 0.0
  %1217 = vmatpush1.msra.mxu0 0.0
  %1218 = vmatprep.subr.mxu0 0.0
  %1219 = vmatpush1.msra.mxu0 0.0
  %1220 = vmatprep.mubr.f32.mxu0 0.0
  %1221 = vmatmul.mubr.f32.gmra.mrb[0].mxu0 %v1151
  %v1222 = vpop.f32.mrb[0].mxu0
  %v1223 = vadd.f32 0.0, %v1222
  %v1224 = vpop.f32.mrb[0].mxu0
  %v1225 = vadd.f32 0.0, %v1224
  %1226 = vmatprep.mubr.f32.mxu0 0.0
  %1227 = vmatmul.mubr.f32.gmra.mrb[0].mxu0 %v1154
  %v1228 = vpop.f32.mrb[0].mxu0
  %v1229 = vadd.f32 0.0, %v1228
  %v1230 = vpop.f32.mrb[0].mxu0
  %v1231 = vadd.f32 0.0, %v1230
  %1232 = vdwg.mxu0
  %v1233 = vadd.f32 %v1092, %v1223
  %v1234 = vadd.f32 %v1093, %v1225
  %v1235 = vadd.f32 %v1094, %v1229
  %v1236 = vadd.f32 %v1095, %v1231
  %vm1237 = vcmp.gt.f32.partialorder %v1233, 0.0
  %vm1238 = vcmp.gt.f32.partialorder %v1234, 0.0
  %vm1239 = vcmp.gt.f32.partialorder %v1235, 0.0
  %vm1240 = vcmp.gt.f32.partialorder %v1236, 0.0
  %v1241 = vmin.f32 %v1233, 0.0
  %v1242 = vmin.f32 %v1234, 0.0
  %v1243 = vmin.f32 %v1235, 0.0
  %v1244 = vmin.f32 %v1236, 0.0
  %v1245 = vmul.f32 %v1241, 1.442695
  %v1246 = vpow.pop %v1245
  %v1247 = vmul.f32 %v1242, 1.442695
  %v1248 = vpow.pop %v1247
  %v1249 = vmul.f32 %v1243, 1.442695
  %v1250 = vpow.pop %v1249
  %v1251 = vmul.f32 %v1244, 1.442695
  %v1252 = vpow.pop %v1251
  %v1253 = vsub.f32 %v1246, 1.0
  %v1254 = vsub.f32 %v1248, 1.0
  %v1255 = vsub.f32 %v1250, 1.0
  %v1256 = vsub.f32 %v1252, 1.0
  %v1257 = vsel %vm1237, %v1233, %v1253
  %v1258 = vsel %vm1238, %v1234, %v1254
  %v1259 = vsel %vm1239, %v1235, %v1255
  %v1260 = vsel %vm1240, %v1236, %v1256
  %s1261 = scalar_lea.vmem %s4, 16
  %v1262 = vld [vmem:[%s1261] sm:$0xff]
  %v1263 = vld [vmem:[%s1261 + $0x8] sm:$0xff]
  %s1264 = scalar_lea.vmem %s5, 96
  %v1265 = vld [vmem:[%s1264] sm:$0xff]
  %v1266 = vld [vmem:[%s1264 + $0x8] sm:$0xff]
  %v1267 = vld [vmem:[%s1264 + $0x10] sm:$0xff]
  %v1268 = vld [vmem:[%s1264 + $0x18] sm:$0xff]
  %v1269 = vld [vmem:[%s1264 + $0x20] sm:$0xff]
  %v1270 = vld [vmem:[%s1264 + $0x28] sm:$0xff]
  %v1271 = vld [vmem:[%s1264 + $0x30] sm:$0xff]
  %v1272 = vld [vmem:[%s1264 + $0x38] sm:$0xff]
  %v1273 = vld [vmem:[%s1264 + $0x40] sm:$0xff]
  %v1274 = vld [vmem:[%s1264 + $0x48] sm:$0xff]
  %v1275 = vld [vmem:[%s1264 + $0x50] sm:$0x3]
  %v1276 = vld [vmem:[%s1264 + $0x58] sm:$0x3]
  %v1278 = vsel %vm113, %v1275, 0
  %v1281 = vsel %vm113, %v1276, 0
  %1283 = vmatprep.subr.mxu0 %v1266
  %1284 = vmatpush1.msra.mxu0 %v1265
  %1285 = vmatprep.subr.mxu0 %v1268
  %1286 = vmatpush1.msra.mxu0 %v1267
  %1287 = vmatprep.subr.mxu0 %v1270
  %1288 = vmatpush1.msra.mxu0 %v1269
  %1289 = vmatprep.subr.mxu0 %v1272
  %1290 = vmatpush1.msra.mxu0 %v1271
  %1291 = vmatprep.subr.mxu0 %v1274
  %1292 = vmatpush1.msra.mxu0 %v1273
  %1293 = vmatprep.subr.mxu0 %v1281
  %1294 = vmatpush1.msra.mxu0 %v1278
  %1295 = vmatprep.subr.mxu0 0.0
  %1296 = vmatpush1.msra.mxu0 0.0
  %1297 = vmatprep.subr.mxu0 0.0
  %1298 = vmatpush1.msra.mxu0 0.0
  %1299 = vmatprep.subr.mxu0 0.0
  %1300 = vmatpush1.msra.mxu0 0.0
  %1301 = vmatprep.subr.mxu0 0.0
  %1302 = vmatpush1.msra.mxu0 0.0
  %1303 = vmatprep.subr.mxu0 0.0
  %1304 = vmatpush1.msra.mxu0 0.0
  %1305 = vmatprep.subr.mxu0 0.0
  %1306 = vmatpush1.msra.mxu0 0.0
  %1307 = vmatprep.subr.mxu0 0.0
  %1308 = vmatpush1.msra.mxu0 0.0
  %1309 = vmatprep.subr.mxu0 0.0
  %1310 = vmatpush1.msra.mxu0 0.0
  %1311 = vmatprep.subr.mxu0 0.0
  %1312 = vmatpush1.msra.mxu0 0.0
  %1313 = vmatprep.subr.mxu0 0.0
  %1314 = vmatpush1.msra.mxu0 0.0
  %1315 = vmatprep.subr.mxu0 0.0
  %1316 = vmatpush1.msra.mxu0 0.0
  %1317 = vmatprep.subr.mxu0 0.0
  %1318 = vmatpush1.msra.mxu0 0.0
  %1319 = vmatprep.subr.mxu0 0.0
  %1320 = vmatpush1.msra.mxu0 0.0
  %1321 = vmatprep.subr.mxu0 0.0
  %1322 = vmatpush1.msra.mxu0 0.0
  %1323 = vmatprep.subr.mxu0 0.0
  %1324 = vmatpush1.msra.mxu0 0.0
  %1325 = vmatprep.subr.mxu0 0.0
  %1326 = vmatpush1.msra.mxu0 0.0
  %1327 = vmatprep.subr.mxu0 0.0
  %1328 = vmatpush1.msra.mxu0 0.0
  %1329 = vmatprep.subr.mxu0 0.0
  %1330 = vmatpush1.msra.mxu0 0.0
  %1331 = vmatprep.subr.mxu0 0.0
  %1332 = vmatpush1.msra.mxu0 0.0
  %1333 = vmatprep.subr.mxu0 0.0
  %1334 = vmatpush1.msra.mxu0 0.0
  %1335 = vmatprep.subr.mxu0 0.0
  %1336 = vmatpush1.msra.mxu0 0.0
  %1337 = vmatprep.subr.mxu0 0.0
  %1338 = vmatpush1.msra.mxu0 0.0
  %1339 = vmatprep.subr.mxu0 0.0
  %1340 = vmatpush1.msra.mxu0 0.0
  %1341 = vmatprep.subr.mxu0 0.0
  %1342 = vmatpush1.msra.mxu0 0.0
  %1343 = vmatprep.subr.mxu0 0.0
  %1344 = vmatpush1.msra.mxu0 0.0
  %1345 = vmatprep.subr.mxu0 0.0
  %1346 = vmatpush1.msra.mxu0 0.0
  %1347 = vmatprep.mubr.f32.mxu0 0.0
  %1348 = vmatmul.mubr.f32.gmra.mrb[0].mxu0 %v309
  %v1349 = vpop.f32.mrb[0].mxu0
  %v1350 = vadd.f32 0.0, %v1349
  %v1351 = vpop.f32.mrb[0].mxu0
  %v1352 = vadd.f32 0.0, %v1351
  %1353 = vmatprep.mubr.f32.mxu0 0.0
  %1354 = vmatmul.mubr.f32.gmra.mrb[0].mxu0 %v312
  %v1355 = vpop.f32.mrb[0].mxu0
  %v1356 = vadd.f32 0.0, %v1355
  %v1357 = vpop.f32.mrb[0].mxu0
  %v1358 = vadd.f32 0.0, %v1357
  %1359 = vdwg.mxu0
  %1360 = vmatprep.subr.mxu0 %v1263
  %1361 = vmatpush1.msra.mxu0 %v1262
  %1362 = vmatprep.subr.mxu0 0.0
  %1363 = vmatpush1.msra.mxu0 0.0
  %1364 = vmatprep.subr.mxu0 0.0
  %1365 = vmatpush1.msra.mxu0 0.0
  %1366 = vmatprep.subr.mxu0 0.0
  %1367 = vmatpush1.msra.mxu0 0.0
  %1368 = vmatprep.subr.mxu0 0.0
  %1369 = vmatpush1.msra.mxu0 0.0
  %1370 = vmatprep.subr.mxu0 0.0
  %1371 = vmatpush1.msra.mxu0 0.0
  %1372 = vmatprep.subr.mxu0 0.0
  %1373 = vmatpush1.msra.mxu0 0.0
  %1374 = vmatprep.subr.mxu0 0.0
  %1375 = vmatpush1.msra.mxu0 0.0
  %1376 = vmatprep.subr.mxu0 0.0
  %1377 = vmatpush1.msra.mxu0 0.0
  %1378 = vmatprep.subr.mxu0 0.0
  %1379 = vmatpush1.msra.mxu0 0.0
  %1380 = vmatprep.subr.mxu0 0.0
  %1381 = vmatpush1.msra.mxu0 0.0
  %1382 = vmatprep.subr.mxu0 0.0
  %1383 = vmatpush1.msra.mxu0 0.0
  %1384 = vmatprep.subr.mxu0 0.0
  %1385 = vmatpush1.msra.mxu0 0.0
  %1386 = vmatprep.subr.mxu0 0.0
  %1387 = vmatpush1.msra.mxu0 0.0
  %1388 = vmatprep.subr.mxu0 0.0
  %1389 = vmatpush1.msra.mxu0 0.0
  %1390 = vmatprep.subr.mxu0 0.0
  %1391 = vmatpush1.msra.mxu0 0.0
  %1392 = vmatprep.subr.mxu0 0.0
  %1393 = vmatpush1.msra.mxu0 0.0
  %1394 = vmatprep.subr.mxu0 0.0
  %1395 = vmatpush1.msra.mxu0 0.0
  %1396 = vmatprep.subr.mxu0 0.0
  %1397 = vmatpush1.msra.mxu0 0.0
  %1398 = vmatprep.subr.mxu0 0.0
  %1399 = vmatpush1.msra.mxu0 0.0
  %1400 = vmatprep.subr.mxu0 0.0
  %1401 = vmatpush1.msra.mxu0 0.0
  %1402 = vmatprep.subr.mxu0 0.0
  %1403 = vmatpush1.msra.mxu0 0.0
  %1404 = vmatprep.subr.mxu0 0.0
  %1405 = vmatpush1.msra.mxu0 0.0
  %1406 = vmatprep.subr.mxu0 0.0
  %1407 = vmatpush1.msra.mxu0 0.0
  %1408 = vmatprep.subr.mxu0 0.0
  %1409 = vmatpush1.msra.mxu0 0.0
  %1410 = vmatprep.subr.mxu0 0.0
  %1411 = vmatpush1.msra.mxu0 0.0
  %1412 = vmatprep.subr.mxu0 0.0
  %1413 = vmatpush1.msra.mxu0 0.0
  %1414 = vmatprep.subr.mxu0 0.0
  %1415 = vmatpush1.msra.mxu0 0.0
  %1416 = vmatprep.subr.mxu0 0.0
  %1417 = vmatpush1.msra.mxu0 0.0
  %1418 = vmatprep.subr.mxu0 0.0
  %1419 = vmatpush1.msra.mxu0 0.0
  %1420 = vmatprep.subr.mxu0 0.0
  %1421 = vmatpush1.msra.mxu0 0.0
  %1422 = vmatprep.subr.mxu0 0.0
  %1423 = vmatpush1.msra.mxu0 0.0
  %1424 = vmatprep.mubr.f32.mxu0 0.0
  %1425 = vmatmul.mubr.f32.gmra.mrb[0].mxu0 %v399
  %v1426 = vpop.f32.mrb[0].mxu0
  %v1427 = vadd.f32 %v1350, %v1426
  %v1428 = vpop.f32.mrb[0].mxu0
  %v1429 = vadd.f32 %v1352, %v1428
  %1430 = vmatprep.mubr.f32.mxu0 0.0
  %1431 = vmatmul.mubr.f32.gmra.mrb[0].mxu0 %v402
  %v1432 = vpop.f32.mrb[0].mxu0
  %v1433 = vadd.f32 %v1356, %v1432
  %v1434 = vpop.f32.mrb[0].mxu0
  %v1435 = vadd.f32 %v1358, %v1434
  %1436 = vdwg.mxu0
  %s1437 = scalar_lea.vmem %s0, 16
  %v1438 = vld [vmem:[%s1437] sm:$0xff]
  %v1439 = vld [vmem:[%s1437 + $0x8] sm:$0xff]
  %s1440 = scalar_lea.vmem %s7, 8
  %v1441 = vld [vmem:[%s1440] sm:$0xff]
  %v1443 = vcombine.high %v1441, %v1441
  %v1444 = vsel %vm229, %v1443, 0
  %v1447 = vsel %vm229, %v1429, 0
  %v1450 = vsel %vm229, %v1435, 0
  %1452 = vmatprep.subr.mxu0 %v1447
  %1453 = vmatpush1.xpose.msra.mxu0 %v1427
  %1454 = vmatprep.subr.mxu0 %v1450
  %1455 = vmatpush1.xpose.msra.mxu0 %v1433
  %1456 = vmatprep.subr.mxu0 0.0
  %1457 = vmatpush1.xpose.msra.mxu0 0.0
  %1458 = vmatprep.subr.mxu0 0.0
  %1459 = vmatpush1.xpose.msra.mxu0 0.0
  %1460 = vmatprep.subr.mxu0 0.0
  %1461 = vmatpush1.xpose.msra.mxu0 0.0
  %1462 = vmatprep.subr.mxu0 0.0
  %1463 = vmatpush1.xpose.msra.mxu0 0.0
  %1464 = vmatprep.subr.mxu0 0.0
  %1465 = vmatpush1.xpose.msra.mxu0 0.0
  %1466 = vmatprep.subr.mxu0 0.0
  %1467 = vmatpush1.xpose.msra.mxu0 0.0
  %1468 = vmatprep.subr.mxu0 0.0
  %1469 = vmatpush1.xpose.msra.mxu0 0.0
  %1470 = vmatprep.subr.mxu0 0.0
  %1471 = vmatpush1.xpose.msra.mxu0 0.0
  %1472 = vmatprep.subr.mxu0 0.0
  %1473 = vmatpush1.xpose.msra.mxu0 0.0
  %1474 = vmatprep.subr.mxu0 0.0
  %1475 = vmatpush1.xpose.msra.mxu0 0.0
  %1476 = vmatprep.subr.mxu0 0.0
  %1477 = vmatpush1.xpose.msra.mxu0 0.0
  %1478 = vmatprep.subr.mxu0 0.0
  %1479 = vmatpush1.xpose.msra.mxu0 0.0
  %1480 = vmatprep.subr.mxu0 0.0
  %1481 = vmatpush1.xpose.msra.mxu0 0.0
  %1482 = vmatprep.subr.mxu0 0.0
  %1483 = vmatpush1.xpose.msra.mxu0 0.0
  %1484 = vmatprep.subr.mxu0 0.0
  %1485 = vmatpush1.xpose.msra.mxu0 0.0
  %1486 = vmatprep.subr.mxu0 0.0
  %1487 = vmatpush1.xpose.msra.mxu0 0.0
  %1488 = vmatprep.subr.mxu0 0.0
  %1489 = vmatpush1.xpose.msra.mxu0 0.0
  %1490 = vmatprep.subr.mxu0 0.0
  %1491 = vmatpush1.xpose.msra.mxu0 0.0
  %1492 = vmatprep.subr.mxu0 0.0
  %1493 = vmatpush1.xpose.msra.mxu0 0.0
  %1494 = vmatprep.subr.mxu0 0.0
  %1495 = vmatpush1.xpose.msra.mxu0 0.0
  %1496 = vmatprep.subr.mxu0 0.0
  %1497 = vmatpush1.xpose.msra.mxu0 0.0
  %1498 = vmatprep.subr.mxu0 0.0
  %1499 = vmatpush1.xpose.msra.mxu0 0.0
  %1500 = vmatprep.subr.mxu0 0.0
  %1501 = vmatpush1.xpose.msra.mxu0 0.0
  %1502 = vmatprep.subr.mxu0 0.0
  %1503 = vmatpush1.xpose.msra.mxu0 0.0
  %1504 = vmatprep.subr.mxu0 0.0
  %1505 = vmatpush1.xpose.msra.mxu0 0.0
  %1506 = vmatprep.subr.mxu0 0.0
  %1507 = vmatpush1.xpose.msra.mxu0 0.0
  %1508 = vmatprep.subr.mxu0 0.0
  %1509 = vmatpush1.xpose.msra.mxu0 0.0
  %1510 = vmatprep.subr.mxu0 0.0
  %1511 = vmatpush1.xpose.msra.mxu0 0.0
  %1512 = vmatprep.subr.mxu0 0.0
  %1513 = vmatpush1.xpose.msra.mxu0 0.0
  %1514 = vmatprep.subr.mxu0 0.0
  %1515 = vmatpush1.xpose.msra.mxu0 0.0
  %1516 = vmatprep.mubr.f32.mxu0 %v1444
  %1517 = vmatmul.mubr.f32.gmra.mrb[0].mxu0 %v1441
  %v1518 = vpop.f32.mrb[0].mxu0
  %v1519 = vadd.f32 0.0, %v1518
  %v1520 = vpop.f32.mrb[0].mxu0
  %1521 = vdwg.mxu0
  %s1522 = scalar_lea.vmem %s8, 144
  %v1523 = vld [vmem:[%s1522] sm:$0xff]
  %v1524 = vld [vmem:[%s1522 + $0x8] sm:$0xff]
  %v1525 = vld [vmem:[%s1522 + $0x10] sm:$0xff]
  %v1526 = vld [vmem:[%s1522 + $0x18] sm:$0xff]
  %v1527 = vld [vmem:[%s1522 + $0x20] sm:$0xff]
  %v1528 = vld [vmem:[%s1522 + $0x28] sm:$0xff]
  %v1529 = vld [vmem:[%s1522 + $0x30] sm:$0xff]
  %v1530 = vld [vmem:[%s1522 + $0x38] sm:$0xff]
  %v1531 = vld [vmem:[%s1522 + $0x40] sm:$0xff]
  %v1532 = vld [vmem:[%s1522 + $0x48] sm:$0xff]
  %v1533 = vld [vmem:[%s1522 + $0x50] sm:$0xff]
  %v1534 = vld [vmem:[%s1522 + $0x58] sm:$0xff]
  %v1535 = vld [vmem:[%s1522 + $0x60] sm:$0xff]
  %v1536 = vld [vmem:[%s1522 + $0x68] sm:$0xff]
  %v1537 = vld [vmem:[%s1522 + $0x70] sm:$0xff]
  %v1538 = vld [vmem:[%s1522 + $0x78] sm:$0xff]
  %v1539 = vld [vmem:[%s1522 + $0x80] sm:$0xff]
  %v1540 = vld [vmem:[%s1522 + $0x88] sm:$0xff]
  %1541 = vmatprep.subr.mxu0 0.0
  %1542 = vmatpush1.msra.mxu0 %v1523
  %1543 = vmatprep.subr.mxu0 0.0
  %1544 = vmatpush1.msra.mxu0 %v1524
  %1545 = vmatprep.subr.mxu0 0.0
  %1546 = vmatpush1.msra.mxu0 %v1525
  %1547 = vmatprep.subr.mxu0 0.0
  %1548 = vmatpush1.msra.mxu0 %v1526
  %1549 = vmatprep.subr.mxu0 0.0
  %1550 = vmatpush1.msra.mxu0 %v1527
  %1551 = vmatprep.subr.mxu0 0.0
  %1552 = vmatpush1.msra.mxu0 %v1528
  %1553 = vmatprep.subr.mxu0 0.0
  %1554 = vmatpush1.msra.mxu0 %v1529
  %1555 = vmatprep.subr.mxu0 0.0
  %1556 = vmatpush1.msra.mxu0 %v1530
  %1557 = vmatprep.subr.mxu0 0.0
  %1558 = vmatpush1.msra.mxu0 %v1531
  %1559 = vmatprep.subr.mxu0 0.0
  %1560 = vmatpush1.msra.mxu0 %v1532
  %1561 = vmatprep.subr.mxu0 0.0
  %1562 = vmatpush1.msra.mxu0 %v1533
  %1563 = vmatprep.subr.mxu0 0.0
  %1564 = vmatpush1.msra.mxu0 %v1534
  %1565 = vmatprep.subr.mxu0 0.0
  %1566 = vmatpush1.msra.mxu0 %v1535
  %1567 = vmatprep.subr.mxu0 0.0
  %1568 = vmatpush1.msra.mxu0 %v1536
  %1569 = vmatprep.subr.mxu0 0.0
  %1570 = vmatpush1.msra.mxu0 %v1537
  %1571 = vmatprep.subr.mxu0 0.0
  %1572 = vmatpush1.msra.mxu0 %v1538
  %1573 = vmatprep.subr.mxu0 0.0
  %1574 = vmatpush1.msra.mxu0 %v1539
  %1575 = vmatprep.subr.mxu0 0.0
  %1576 = vmatpush1.msra.mxu0 %v1540
  %1577 = vmatprep.subr.mxu0 0.0
  %1578 = vmatpush1.msra.mxu0 0.0
  %1579 = vmatprep.subr.mxu0 0.0
  %1580 = vmatpush1.msra.mxu0 0.0
  %1581 = vmatprep.subr.mxu0 0.0
  %1582 = vmatpush1.msra.mxu0 0.0
  %1583 = vmatprep.subr.mxu0 0.0
  %1584 = vmatpush1.msra.mxu0 0.0
  %1585 = vmatprep.subr.mxu0 0.0
  %1586 = vmatpush1.msra.mxu0 0.0
  %1587 = vmatprep.subr.mxu0 0.0
  %1588 = vmatpush1.msra.mxu0 0.0
  %1589 = vmatprep.subr.mxu0 0.0
  %1590 = vmatpush1.msra.mxu0 0.0
  %1591 = vmatprep.subr.mxu0 0.0
  %1592 = vmatpush1.msra.mxu0 0.0
  %1593 = vmatprep.subr.mxu0 0.0
  %1594 = vmatpush1.msra.mxu0 0.0
  %1595 = vmatprep.subr.mxu0 0.0
  %1596 = vmatpush1.msra.mxu0 0.0
  %1597 = vmatprep.subr.mxu0 0.0
  %1598 = vmatpush1.msra.mxu0 0.0
  %1599 = vmatprep.subr.mxu0 0.0
  %1600 = vmatpush1.msra.mxu0 0.0
  %1601 = vmatprep.subr.mxu0 0.0
  %1602 = vmatpush1.msra.mxu0 0.0
  %1603 = vmatprep.subr.mxu0 0.0
  %1604 = vmatpush1.msra.mxu0 0.0
  %1605 = vmatprep.mubr.f32.mxu0 %v1447
  %1606 = vmatmul.mubr.f32.gmra.mrb[0].mxu0 %v1427
  %v1607 = vpop.f32.mrb[0].mxu0
  %v1608 = vadd.f32 0.0, %v1607
  %v1609 = vpop.f32.mrb[0].mxu0
  %1610 = vmatprep.mubr.f32.mxu0 %v1450
  %1611 = vmatmul.mubr.f32.gmra.mrb[0].mxu0 %v1433
  %v1612 = vpop.f32.mrb[0].mxu0
  %v1613 = vadd.f32 0.0, %v1612
  %v1614 = vpop.f32.mrb[0].mxu0
  %1615 = vdwg.mxu0
  %vm1616 = vcmp.gt.f32.partialorder %v1438, 0.5
  %vm1617 = vcmp.gt.f32.partialorder %v1439, 0.5
  %s1618 = scalar_lea.vmem %s9, 2
  %v1619 = vld [vmem:[%s1618] sm:$0x3]
  %1621 = vset.pattern.permute.xlu0 0
  %1622 = vperm.xlu0 %1621, %v1608
  %v1623 = vpop.permute.xlu0 %1622
  %1626 = vset.pattern.permute.xlu0 0
  %1627 = vperm.xlu0 %1626, %v1613
  %v1628 = vpop.permute.xlu0 %1627
  %v1630 = vlaneseq
  %v1631 = vshrl.u32 %v1630, 7
  %v1632 = vsub.s32 0, %v1631
  %v1633 = vrot.slane %v1519, %v1632
  %v1634 = vadd.f32 %v1623, %v1633
  %v1635 = vadd.f32 %v1628, %v1633
  %vm1636 = vcmp.ge.f32.partialorder %v1634, 0.0
  %vm1637 = vcmp.ge.f32.partialorder %v1635, 0.0
  %v1638 = vmul.f32 %v1634, 0.2
  %v1639 = vmul.f32 %v1635, 0.2
  %v1640 = vsel %vm1636, %v1634, %v1638
  %v1641 = vsel %vm1637, %v1635, %v1639
  %v1642 = vsel %vm1616, %v1640, -1e+30
  %v1643 = vsel %vm1617, %v1641, -1e+30
  %v1644 = vsel %vm229, %v1642, -inf
  %1645 = vmax.xlane.f32.xlu0 %v1644
  %v1646 = vpop.xlane.xlu0 %1645
  %v1647 = vsel %vm229, %v1643, -inf
  %1648 = vmax.xlane.f32.xlu0 %v1647
  %v1649 = vpop.xlane.xlu0 %1648
  %v1650 = vsub.f32 %v1642, %v1646
  %v1651 = vsub.f32 %v1643, %v1649
  %v1652 = vmul.f32 %v1650, 1.442695
  %v1653 = vpow.pop %v1652
  %v1654 = vmul.f32 %v1651, 1.442695
  %v1655 = vpow.pop %v1654
  %v1656 = vsel %vm1616, %v1653, 0.0
  %v1657 = vsel %vm1617, %v1655, 0.0
  %v1658 = vsel %vm229, %v1656, 0.0
  %1659 = vadd.xlane.f32.xlu0 %v1658
  %v1660 = vpop.xlane.xlu0 %1659
  %v1661 = vsel %vm229, %v1657, 0.0
  %1662 = vadd.xlane.f32.xlu0 %v1661
  %v1663 = vpop.xlane.xlu0 %1662
  %v1664 = vrcp.pop %v1660
  %v1665 = vrcp.pop %v1663
  %v1666 = vmul.f32 %v1656, %v1664
  %v1667 = vmul.f32 %v1657, %v1665
  %v1668 = vsel %vm710, %v1427, 0.0
  %v1669 = vsel %vm711, %v1429, 0.0
  %v1670 = vsel %vm710, %v1433, 0.0
  %v1671 = vsel %vm711, %v1435, 0.0
  %v1673 = vsel %vm229, %v1666, 0
  %v1676 = vsel %vm229, %v1667, 0
  %1678 = vmatprep.subr.mxu0 %v1669
  %1679 = vmatpush1.msra.mxu0 %v1668
  %1680 = vmatprep.subr.mxu0 %v1671
  %1681 = vmatpush1.msra.mxu0 %v1670
  %1682 = vmatprep.subr.mxu0 0.0
  %1683 = vmatpush1.msra.mxu0 0.0
  %1684 = vmatprep.subr.mxu0 0.0
  %1685 = vmatpush1.msra.mxu0 0.0
  %1686 = vmatprep.subr.mxu0 0.0
  %1687 = vmatpush1.msra.mxu0 0.0
  %1688 = vmatprep.subr.mxu0 0.0
  %1689 = vmatpush1.msra.mxu0 0.0
  %1690 = vmatprep.subr.mxu0 0.0
  %1691 = vmatpush1.msra.mxu0 0.0
  %1692 = vmatprep.subr.mxu0 0.0
  %1693 = vmatpush1.msra.mxu0 0.0
  %1694 = vmatprep.subr.mxu0 0.0
  %1695 = vmatpush1.msra.mxu0 0.0
  %1696 = vmatprep.subr.mxu0 0.0
  %1697 = vmatpush1.msra.mxu0 0.0
  %1698 = vmatprep.subr.mxu0 0.0
  %1699 = vmatpush1.msra.mxu0 0.0
  %1700 = vmatprep.subr.mxu0 0.0
  %1701 = vmatpush1.msra.mxu0 0.0
  %1702 = vmatprep.subr.mxu0 0.0
  %1703 = vmatpush1.msra.mxu0 0.0
  %1704 = vmatprep.subr.mxu0 0.0
  %1705 = vmatpush1.msra.mxu0 0.0
  %1706 = vmatprep.subr.mxu0 0.0
  %1707 = vmatpush1.msra.mxu0 0.0
  %1708 = vmatprep.subr.mxu0 0.0
  %1709 = vmatpush1.msra.mxu0 0.0
  %1710 = vmatprep.subr.mxu0 0.0
  %1711 = vmatpush1.msra.mxu0 0.0
  %1712 = vmatprep.subr.mxu0 0.0
  %1713 = vmatpush1.msra.mxu0 0.0
  %1714 = vmatprep.subr.mxu0 0.0
  %1715 = vmatpush1.msra.mxu0 0.0
  %1716 = vmatprep.subr.mxu0 0.0
  %1717 = vmatpush1.msra.mxu0 0.0
  %1718 = vmatprep.subr.mxu0 0.0
  %1719 = vmatpush1.msra.mxu0 0.0
  %1720 = vmatprep.subr.mxu0 0.0
  %1721 = vmatpush1.msra.mxu0 0.0
  %1722 = vmatprep.subr.mxu0 0.0
  %1723 = vmatpush1.msra.mxu0 0.0
  %1724 = vmatprep.subr.mxu0 0.0
  %1725 = vmatpush1.msra.mxu0 0.0
  %1726 = vmatprep.subr.mxu0 0.0
  %1727 = vmatpush1.msra.mxu0 0.0
  %1728 = vmatprep.subr.mxu0 0.0
  %1729 = vmatpush1.msra.mxu0 0.0
  %1730 = vmatprep.subr.mxu0 0.0
  %1731 = vmatpush1.msra.mxu0 0.0
  %1732 = vmatprep.subr.mxu0 0.0
  %1733 = vmatpush1.msra.mxu0 0.0
  %1734 = vmatprep.subr.mxu0 0.0
  %1735 = vmatpush1.msra.mxu0 0.0
  %1736 = vmatprep.subr.mxu0 0.0
  %1737 = vmatpush1.msra.mxu0 0.0
  %1738 = vmatprep.subr.mxu0 0.0
  %1739 = vmatpush1.msra.mxu0 0.0
  %1740 = vmatprep.subr.mxu0 0.0
  %1741 = vmatpush1.msra.mxu0 0.0
  %1742 = vmatprep.mubr.f32.mxu0 0.0
  %1743 = vmatmul.mubr.f32.gmra.mrb[0].mxu0 %v1673
  %v1744 = vpop.f32.mrb[0].mxu0
  %v1745 = vadd.f32 0.0, %v1744
  %v1746 = vpop.f32.mrb[0].mxu0
  %v1747 = vadd.f32 0.0, %v1746
  %1748 = vmatprep.mubr.f32.mxu0 0.0
  %1749 = vmatmul.mubr.f32.gmra.mrb[0].mxu0 %v1676
  %v1750 = vpop.f32.mrb[0].mxu0
  %v1751 = vadd.f32 0.0, %v1750
  %v1752 = vpop.f32.mrb[0].mxu0
  %v1753 = vadd.f32 0.0, %v1752
  %1754 = vdwg.mxu0
  %v1756 = vlaneseq
  %v1757 = vshrl.u32 %v1756, 7
  %v1758 = vsub.s32 0, %v1757
  %v1759 = vrot.slane %v1619, %v1758
  %v1760 = vlaneseq
  %v1761 = vshrl.u32 %v1760, 7
  %v1762 = vsub.s32 1, %v1761
  %v1763 = vrot.slane %v1619, %v1762
  %v1766 = vadd.f32 %v1759, %v1745
  %v1767 = vadd.f32 %v1763, %v1747
  %v1768 = vadd.f32 %v1759, %v1751
  %v1769 = vadd.f32 %v1763, %v1753
  %1770 = vset.pattern.permute.xlu0 1
  %1771 = vperm.xlu0 %1770, %v1608
  %v1772 = vpop.permute.xlu0 %1771
  %1774 = vset.pattern.permute.xlu0 1
  %1775 = vperm.xlu0 %1774, %v1613
  %v1776 = vpop.permute.xlu0 %1775
  %v1778 = vlaneseq
  %v1779 = vshrl.u32 %v1778, 7
  %v1780 = vsub.s32 1, %v1779
  %v1781 = vrot.slane %v1519, %v1780
  %v1782 = vadd.f32 %v1772, %v1781
  %v1783 = vadd.f32 %v1776, %v1781
  %vm1784 = vcmp.ge.f32.partialorder %v1782, 0.0
  %vm1785 = vcmp.ge.f32.partialorder %v1783, 0.0
  %v1786 = vmul.f32 %v1782, 0.2
  %v1787 = vmul.f32 %v1783, 0.2
  %v1788 = vsel %vm1784, %v1782, %v1786
  %v1789 = vsel %vm1785, %v1783, %v1787
  %v1790 = vsel %vm1616, %v1788, -1e+30
  %v1791 = vsel %vm1617, %v1789, -1e+30
  %v1792 = vsel %vm229, %v1790, -inf
  %1793 = vmax.xlane.f32.xlu0 %v1792
  %v1794 = vpop.xlane.xlu0 %1793
  %v1795 = vsel %vm229, %v1791, -inf
  %1796 = vmax.xlane.f32.xlu0 %v1795
  %v1797 = vpop.xlane.xlu0 %1796
  %v1798 = vsub.f32 %v1790, %v1794
  %v1799 = vsub.f32 %v1791, %v1797
  %v1800 = vmul.f32 %v1798, 1.442695
  %v1801 = vpow.pop %v1800
  %v1802 = vmul.f32 %v1799, 1.442695
  %v1803 = vpow.pop %v1802
  %v1804 = vsel %vm1616, %v1801, 0.0
  %v1805 = vsel %vm1617, %v1803, 0.0
  %v1806 = vsel %vm229, %v1804, 0.0
  %1807 = vadd.xlane.f32.xlu0 %v1806
  %v1808 = vpop.xlane.xlu0 %1807
  %v1809 = vsel %vm229, %v1805, 0.0
  %1810 = vadd.xlane.f32.xlu0 %v1809
  %v1811 = vpop.xlane.xlu0 %1810
  %v1812 = vrcp.pop %v1808
  %v1813 = vrcp.pop %v1811
  %v1814 = vmul.f32 %v1804, %v1812
  %v1815 = vmul.f32 %v1805, %v1813
  %v1816 = vsel %vm862, %v1427, 0.0
  %v1817 = vsel %vm863, %v1429, 0.0
  %v1818 = vsel %vm862, %v1433, 0.0
  %v1819 = vsel %vm863, %v1435, 0.0
  %v1821 = vsel %vm229, %v1814, 0
  %v1824 = vsel %vm229, %v1815, 0
  %1826 = vmatprep.subr.mxu0 %v1817
  %1827 = vmatpush1.msra.mxu0 %v1816
  %1828 = vmatprep.subr.mxu0 %v1819
  %1829 = vmatpush1.msra.mxu0 %v1818
  %1830 = vmatprep.subr.mxu0 0.0
  %1831 = vmatpush1.msra.mxu0 0.0
  %1832 = vmatprep.subr.mxu0 0.0
  %1833 = vmatpush1.msra.mxu0 0.0
  %1834 = vmatprep.subr.mxu0 0.0
  %1835 = vmatpush1.msra.mxu0 0.0
  %1836 = vmatprep.subr.mxu0 0.0
  %1837 = vmatpush1.msra.mxu0 0.0
  %1838 = vmatprep.subr.mxu0 0.0
  %1839 = vmatpush1.msra.mxu0 0.0
  %1840 = vmatprep.subr.mxu0 0.0
  %1841 = vmatpush1.msra.mxu0 0.0
  %1842 = vmatprep.subr.mxu0 0.0
  %1843 = vmatpush1.msra.mxu0 0.0
  %1844 = vmatprep.subr.mxu0 0.0
  %1845 = vmatpush1.msra.mxu0 0.0
  %1846 = vmatprep.subr.mxu0 0.0
  %1847 = vmatpush1.msra.mxu0 0.0
  %1848 = vmatprep.subr.mxu0 0.0
  %1849 = vmatpush1.msra.mxu0 0.0
  %1850 = vmatprep.subr.mxu0 0.0
  %1851 = vmatpush1.msra.mxu0 0.0
  %1852 = vmatprep.subr.mxu0 0.0
  %1853 = vmatpush1.msra.mxu0 0.0
  %1854 = vmatprep.subr.mxu0 0.0
  %1855 = vmatpush1.msra.mxu0 0.0
  %1856 = vmatprep.subr.mxu0 0.0
  %1857 = vmatpush1.msra.mxu0 0.0
  %1858 = vmatprep.subr.mxu0 0.0
  %1859 = vmatpush1.msra.mxu0 0.0
  %1860 = vmatprep.subr.mxu0 0.0
  %1861 = vmatpush1.msra.mxu0 0.0
  %1862 = vmatprep.subr.mxu0 0.0
  %1863 = vmatpush1.msra.mxu0 0.0
  %1864 = vmatprep.subr.mxu0 0.0
  %1865 = vmatpush1.msra.mxu0 0.0
  %1866 = vmatprep.subr.mxu0 0.0
  %1867 = vmatpush1.msra.mxu0 0.0
  %1868 = vmatprep.subr.mxu0 0.0
  %1869 = vmatpush1.msra.mxu0 0.0
  %1870 = vmatprep.subr.mxu0 0.0
  %1871 = vmatpush1.msra.mxu0 0.0
  %1872 = vmatprep.subr.mxu0 0.0
  %1873 = vmatpush1.msra.mxu0 0.0
  %1874 = vmatprep.subr.mxu0 0.0
  %1875 = vmatpush1.msra.mxu0 0.0
  %1876 = vmatprep.subr.mxu0 0.0
  %1877 = vmatpush1.msra.mxu0 0.0
  %1878 = vmatprep.subr.mxu0 0.0
  %1879 = vmatpush1.msra.mxu0 0.0
  %1880 = vmatprep.subr.mxu0 0.0
  %1881 = vmatpush1.msra.mxu0 0.0
  %1882 = vmatprep.subr.mxu0 0.0
  %1883 = vmatpush1.msra.mxu0 0.0
  %1884 = vmatprep.subr.mxu0 0.0
  %1885 = vmatpush1.msra.mxu0 0.0
  %1886 = vmatprep.subr.mxu0 0.0
  %1887 = vmatpush1.msra.mxu0 0.0
  %1888 = vmatprep.subr.mxu0 0.0
  %1889 = vmatpush1.msra.mxu0 0.0
  %1890 = vmatprep.mubr.f32.mxu0 0.0
  %1891 = vmatmul.mubr.f32.gmra.mrb[0].mxu0 %v1821
  %v1892 = vpop.f32.mrb[0].mxu0
  %v1893 = vadd.f32 0.0, %v1892
  %v1894 = vpop.f32.mrb[0].mxu0
  %v1895 = vadd.f32 0.0, %v1894
  %1896 = vmatprep.mubr.f32.mxu0 0.0
  %1897 = vmatmul.mubr.f32.gmra.mrb[0].mxu0 %v1824
  %v1898 = vpop.f32.mrb[0].mxu0
  %v1899 = vadd.f32 0.0, %v1898
  %v1900 = vpop.f32.mrb[0].mxu0
  %v1901 = vadd.f32 0.0, %v1900
  %1902 = vdwg.mxu0
  %v1903 = vadd.f32 %v1766, %v1893
  %v1904 = vadd.f32 %v1767, %v1895
  %v1905 = vadd.f32 %v1768, %v1899
  %v1906 = vadd.f32 %v1769, %v1901
  %1907 = vset.pattern.permute.xlu0 2
  %1908 = vperm.xlu0 %1907, %v1608
  %v1909 = vpop.permute.xlu0 %1908
  %1911 = vset.pattern.permute.xlu0 2
  %1912 = vperm.xlu0 %1911, %v1613
  %v1913 = vpop.permute.xlu0 %1912
  %v1915 = vlaneseq
  %v1916 = vshrl.u32 %v1915, 7
  %v1917 = vsub.s32 2, %v1916
  %v1918 = vrot.slane %v1519, %v1917
  %v1919 = vadd.f32 %v1909, %v1918
  %v1920 = vadd.f32 %v1913, %v1918
  %vm1921 = vcmp.ge.f32.partialorder %v1919, 0.0
  %vm1922 = vcmp.ge.f32.partialorder %v1920, 0.0
  %v1923 = vmul.f32 %v1919, 0.2
  %v1924 = vmul.f32 %v1920, 0.2
  %v1925 = vsel %vm1921, %v1919, %v1923
  %v1926 = vsel %vm1922, %v1920, %v1924
  %v1927 = vsel %vm1616, %v1925, -1e+30
  %v1928 = vsel %vm1617, %v1926, -1e+30
  %v1929 = vsel %vm229, %v1927, -inf
  %1930 = vmax.xlane.f32.xlu0 %v1929
  %v1931 = vpop.xlane.xlu0 %1930
  %v1932 = vsel %vm229, %v1928, -inf
  %1933 = vmax.xlane.f32.xlu0 %v1932
  %v1934 = vpop.xlane.xlu0 %1933
  %v1935 = vsub.f32 %v1927, %v1931
  %v1936 = vsub.f32 %v1928, %v1934
  %v1937 = vmul.f32 %v1935, 1.442695
  %v1938 = vpow.pop %v1937
  %v1939 = vmul.f32 %v1936, 1.442695
  %v1940 = vpow.pop %v1939
  %v1941 = vsel %vm1616, %v1938, 0.0
  %v1942 = vsel %vm1617, %v1940, 0.0
  %v1943 = vsel %vm229, %v1941, 0.0
  %1944 = vadd.xlane.f32.xlu0 %v1943
  %v1945 = vpop.xlane.xlu0 %1944
  %v1946 = vsel %vm229, %v1942, 0.0
  %1947 = vadd.xlane.f32.xlu0 %v1946
  %v1948 = vpop.xlane.xlu0 %1947
  %v1949 = vrcp.pop %v1945
  %v1950 = vrcp.pop %v1948
  %v1951 = vmul.f32 %v1941, %v1949
  %v1952 = vmul.f32 %v1942, %v1950
  %v1953 = vsel %vm1003, %v1427, 0.0
  %v1954 = vsel %vm1004, %v1429, 0.0
  %v1955 = vsel %vm1003, %v1433, 0.0
  %v1956 = vsel %vm1004, %v1435, 0.0
  %v1958 = vsel %vm229, %v1951, 0
  %v1961 = vsel %vm229, %v1952, 0
  %1963 = vmatprep.subr.mxu0 %v1954
  %1964 = vmatpush1.msra.mxu0 %v1953
  %1965 = vmatprep.subr.mxu0 %v1956
  %1966 = vmatpush1.msra.mxu0 %v1955
  %1967 = vmatprep.subr.mxu0 0.0
  %1968 = vmatpush1.msra.mxu0 0.0
  %1969 = vmatprep.subr.mxu0 0.0
  %1970 = vmatpush1.msra.mxu0 0.0
  %1971 = vmatprep.subr.mxu0 0.0
  %1972 = vmatpush1.msra.mxu0 0.0
  %1973 = vmatprep.subr.mxu0 0.0
  %1974 = vmatpush1.msra.mxu0 0.0
  %1975 = vmatprep.subr.mxu0 0.0
  %1976 = vmatpush1.msra.mxu0 0.0
  %1977 = vmatprep.subr.mxu0 0.0
  %1978 = vmatpush1.msra.mxu0 0.0
  %1979 = vmatprep.subr.mxu0 0.0
  %1980 = vmatpush1.msra.mxu0 0.0
  %1981 = vmatprep.subr.mxu0 0.0
  %1982 = vmatpush1.msra.mxu0 0.0
  %1983 = vmatprep.subr.mxu0 0.0
  %1984 = vmatpush1.msra.mxu0 0.0
  %1985 = vmatprep.subr.mxu0 0.0
  %1986 = vmatpush1.msra.mxu0 0.0
  %1987 = vmatprep.subr.mxu0 0.0
  %1988 = vmatpush1.msra.mxu0 0.0
  %1989 = vmatprep.subr.mxu0 0.0
  %1990 = vmatpush1.msra.mxu0 0.0
  %1991 = vmatprep.subr.mxu0 0.0
  %1992 = vmatpush1.msra.mxu0 0.0
  %1993 = vmatprep.subr.mxu0 0.0
  %1994 = vmatpush1.msra.mxu0 0.0
  %1995 = vmatprep.subr.mxu0 0.0
  %1996 = vmatpush1.msra.mxu0 0.0
  %1997 = vmatprep.subr.mxu0 0.0
  %1998 = vmatpush1.msra.mxu0 0.0
  %1999 = vmatprep.subr.mxu0 0.0
  %2000 = vmatpush1.msra.mxu0 0.0
  %2001 = vmatprep.subr.mxu0 0.0
  %2002 = vmatpush1.msra.mxu0 0.0
  %2003 = vmatprep.subr.mxu0 0.0
  %2004 = vmatpush1.msra.mxu0 0.0
  %2005 = vmatprep.subr.mxu0 0.0
  %2006 = vmatpush1.msra.mxu0 0.0
  %2007 = vmatprep.subr.mxu0 0.0
  %2008 = vmatpush1.msra.mxu0 0.0
  %2009 = vmatprep.subr.mxu0 0.0
  %2010 = vmatpush1.msra.mxu0 0.0
  %2011 = vmatprep.subr.mxu0 0.0
  %2012 = vmatpush1.msra.mxu0 0.0
  %2013 = vmatprep.subr.mxu0 0.0
  %2014 = vmatpush1.msra.mxu0 0.0
  %2015 = vmatprep.subr.mxu0 0.0
  %2016 = vmatpush1.msra.mxu0 0.0
  %2017 = vmatprep.subr.mxu0 0.0
  %2018 = vmatpush1.msra.mxu0 0.0
  %2019 = vmatprep.subr.mxu0 0.0
  %2020 = vmatpush1.msra.mxu0 0.0
  %2021 = vmatprep.subr.mxu0 0.0
  %2022 = vmatpush1.msra.mxu0 0.0
  %2023 = vmatprep.subr.mxu0 0.0
  %2024 = vmatpush1.msra.mxu0 0.0
  %2025 = vmatprep.subr.mxu0 0.0
  %2026 = vmatpush1.msra.mxu0 0.0
  %2027 = vmatprep.mubr.f32.mxu0 0.0
  %2028 = vmatmul.mubr.f32.gmra.mrb[0].mxu0 %v1958
  %v2029 = vpop.f32.mrb[0].mxu0
  %v2030 = vadd.f32 0.0, %v2029
  %v2031 = vpop.f32.mrb[0].mxu0
  %v2032 = vadd.f32 0.0, %v2031
  %2033 = vmatprep.mubr.f32.mxu0 0.0
  %2034 = vmatmul.mubr.f32.gmra.mrb[0].mxu0 %v1961
  %v2035 = vpop.f32.mrb[0].mxu0
  %v2036 = vadd.f32 0.0, %v2035
  %v2037 = vpop.f32.mrb[0].mxu0
  %v2038 = vadd.f32 0.0, %v2037
  %2039 = vdwg.mxu0
  %v2040 = vadd.f32 %v1903, %v2030
  %v2041 = vadd.f32 %v1904, %v2032
  %v2042 = vadd.f32 %v1905, %v2036
  %v2043 = vadd.f32 %v1906, %v2038
  %2044 = vset.pattern.permute.xlu0 3
  %2045 = vperm.xlu0 %2044, %v1608
  %v2046 = vpop.permute.xlu0 %2045
  %2048 = vset.pattern.permute.xlu0 3
  %2049 = vperm.xlu0 %2048, %v1613
  %v2050 = vpop.permute.xlu0 %2049
  %v2052 = vlaneseq
  %v2053 = vshrl.u32 %v2052, 7
  %v2054 = vsub.s32 3, %v2053
  %v2055 = vrot.slane %v1519, %v2054
  %v2056 = vadd.f32 %v2046, %v2055
  %v2057 = vadd.f32 %v2050, %v2055
  %vm2058 = vcmp.ge.f32.partialorder %v2056, 0.0
  %vm2059 = vcmp.ge.f32.partialorder %v2057, 0.0
  %v2060 = vmul.f32 %v2056, 0.2
  %v2061 = vmul.f32 %v2057, 0.2
  %v2062 = vsel %vm2058, %v2056, %v2060
  %v2063 = vsel %vm2059, %v2057, %v2061
  %v2064 = vsel %vm1616, %v2062, -1e+30
  %v2065 = vsel %vm1617, %v2063, -1e+30
  %v2066 = vsel %vm229, %v2064, -inf
  %2067 = vmax.xlane.f32.xlu0 %v2066
  %v2068 = vpop.xlane.xlu0 %2067
  %v2069 = vsel %vm229, %v2065, -inf
  %2070 = vmax.xlane.f32.xlu0 %v2069
  %v2071 = vpop.xlane.xlu0 %2070
  %v2072 = vsub.f32 %v2064, %v2068
  %v2073 = vsub.f32 %v2065, %v2071
  %v2074 = vmul.f32 %v2072, 1.442695
  %v2075 = vpow.pop %v2074
  %v2076 = vmul.f32 %v2073, 1.442695
  %v2077 = vpow.pop %v2076
  %v2078 = vsel %vm1616, %v2075, 0.0
  %v2079 = vsel %vm1617, %v2077, 0.0
  %v2080 = vsel %vm229, %v2078, 0.0
  %2081 = vadd.xlane.f32.xlu0 %v2080
  %v2082 = vpop.xlane.xlu0 %2081
  %v2083 = vsel %vm229, %v2079, 0.0
  %2084 = vadd.xlane.f32.xlu0 %v2083
  %v2085 = vpop.xlane.xlu0 %2084
  %v2086 = vrcp.pop %v2082
  %v2087 = vrcp.pop %v2085
  %v2088 = vmul.f32 %v2078, %v2086
  %v2089 = vmul.f32 %v2079, %v2087
  %v2090 = vsel %vm1144, %v1427, 0.0
  %v2091 = vsel %vm1145, %v1429, 0.0
  %v2092 = vsel %vm1144, %v1433, 0.0
  %v2093 = vsel %vm1145, %v1435, 0.0
  %v2095 = vsel %vm229, %v2088, 0
  %v2098 = vsel %vm229, %v2089, 0
  %2100 = vmatprep.subr.mxu0 %v2091
  %2101 = vmatpush1.msra.mxu0 %v2090
  %2102 = vmatprep.subr.mxu0 %v2093
  %2103 = vmatpush1.msra.mxu0 %v2092
  %2104 = vmatprep.subr.mxu0 0.0
  %2105 = vmatpush1.msra.mxu0 0.0
  %2106 = vmatprep.subr.mxu0 0.0
  %2107 = vmatpush1.msra.mxu0 0.0
  %2108 = vmatprep.subr.mxu0 0.0
  %2109 = vmatpush1.msra.mxu0 0.0
  %2110 = vmatprep.subr.mxu0 0.0
  %2111 = vmatpush1.msra.mxu0 0.0
  %2112 = vmatprep.subr.mxu0 0.0
  %2113 = vmatpush1.msra.mxu0 0.0
  %2114 = vmatprep.subr.mxu0 0.0
  %2115 = vmatpush1.msra.mxu0 0.0
  %2116 = vmatprep.subr.mxu0 0.0
  %2117 = vmatpush1.msra.mxu0 0.0
  %2118 = vmatprep.subr.mxu0 0.0
  %2119 = vmatpush1.msra.mxu0 0.0
  %2120 = vmatprep.subr.mxu0 0.0
  %2121 = vmatpush1.msra.mxu0 0.0
  %2122 = vmatprep.subr.mxu0 0.0
  %2123 = vmatpush1.msra.mxu0 0.0
  %2124 = vmatprep.subr.mxu0 0.0
  %2125 = vmatpush1.msra.mxu0 0.0
  %2126 = vmatprep.subr.mxu0 0.0
  %2127 = vmatpush1.msra.mxu0 0.0
  %2128 = vmatprep.subr.mxu0 0.0
  %2129 = vmatpush1.msra.mxu0 0.0
  %2130 = vmatprep.subr.mxu0 0.0
  %2131 = vmatpush1.msra.mxu0 0.0
  %2132 = vmatprep.subr.mxu0 0.0
  %2133 = vmatpush1.msra.mxu0 0.0
  %2134 = vmatprep.subr.mxu0 0.0
  %2135 = vmatpush1.msra.mxu0 0.0
  %2136 = vmatprep.subr.mxu0 0.0
  %2137 = vmatpush1.msra.mxu0 0.0
  %2138 = vmatprep.subr.mxu0 0.0
  %2139 = vmatpush1.msra.mxu0 0.0
  %2140 = vmatprep.subr.mxu0 0.0
  %2141 = vmatpush1.msra.mxu0 0.0
  %2142 = vmatprep.subr.mxu0 0.0
  %2143 = vmatpush1.msra.mxu0 0.0
  %2144 = vmatprep.subr.mxu0 0.0
  %2145 = vmatpush1.msra.mxu0 0.0
  %2146 = vmatprep.subr.mxu0 0.0
  %2147 = vmatpush1.msra.mxu0 0.0
  %2148 = vmatprep.subr.mxu0 0.0
  %2149 = vmatpush1.msra.mxu0 0.0
  %2150 = vmatprep.subr.mxu0 0.0
  %2151 = vmatpush1.msra.mxu0 0.0
  %2152 = vmatprep.subr.mxu0 0.0
  %2153 = vmatpush1.msra.mxu0 0.0
  %2154 = vmatprep.subr.mxu0 0.0
  %2155 = vmatpush1.msra.mxu0 0.0
  %2156 = vmatprep.subr.mxu0 0.0
  %2157 = vmatpush1.msra.mxu0 0.0
  %2158 = vmatprep.subr.mxu0 0.0
  %2159 = vmatpush1.msra.mxu0 0.0
  %2160 = vmatprep.subr.mxu0 0.0
  %2161 = vmatpush1.msra.mxu0 0.0
  %2162 = vmatprep.subr.mxu0 0.0
  %2163 = vmatpush1.msra.mxu0 0.0
  %2164 = vmatprep.mubr.f32.mxu0 0.0
  %2165 = vmatmul.mubr.f32.gmra.mrb[0].mxu0 %v2095
  %v2166 = vpop.f32.mrb[0].mxu0
  %v2167 = vadd.f32 0.0, %v2166
  %v2168 = vpop.f32.mrb[0].mxu0
  %v2169 = vadd.f32 0.0, %v2168
  %2170 = vmatprep.mubr.f32.mxu0 0.0
  %2171 = vmatmul.mubr.f32.gmra.mrb[0].mxu0 %v2098
  %v2172 = vpop.f32.mrb[0].mxu0
  %v2173 = vadd.f32 0.0, %v2172
  %v2174 = vpop.f32.mrb[0].mxu0
  %v2175 = vadd.f32 0.0, %v2174
  %2176 = vdwg.mxu0
  %v2177 = vadd.f32 %v2040, %v2167
  %v2178 = vadd.f32 %v2041, %v2169
  %v2179 = vadd.f32 %v2042, %v2173
  %v2180 = vadd.f32 %v2043, %v2175
  %vm2181 = vcmp.gt.f32.partialorder %v2177, 0.0
  %vm2182 = vcmp.gt.f32.partialorder %v2178, 0.0
  %vm2183 = vcmp.gt.f32.partialorder %v2179, 0.0
  %vm2184 = vcmp.gt.f32.partialorder %v2180, 0.0
  %v2185 = vmin.f32 %v2177, 0.0
  %v2186 = vmin.f32 %v2178, 0.0
  %v2187 = vmin.f32 %v2179, 0.0
  %v2188 = vmin.f32 %v2180, 0.0
  %v2189 = vmul.f32 %v2185, 1.442695
  %v2190 = vpow.pop %v2189
  %v2191 = vmul.f32 %v2186, 1.442695
  %v2192 = vpow.pop %v2191
  %v2193 = vmul.f32 %v2187, 1.442695
  %v2194 = vpow.pop %v2193
  %v2195 = vmul.f32 %v2188, 1.442695
  %v2196 = vpow.pop %v2195
  %v2197 = vsub.f32 %v2190, 1.0
  %v2198 = vsub.f32 %v2192, 1.0
  %v2199 = vsub.f32 %v2194, 1.0
  %v2200 = vsub.f32 %v2196, 1.0
  %v2201 = vsel %vm2181, %v2177, %v2197
  %v2202 = vsel %vm2182, %v2178, %v2198
  %v2203 = vsel %vm2183, %v2179, %v2199
  %v2204 = vsel %vm2184, %v2180, %v2200
  %v2205 = vld [vmem:[%s10] sm:$0xff]
  %v2206 = vld [vmem:[%s10 + $0x8] sm:$0xff]
  %v2207 = vld [vmem:[%s10 + $0x10] sm:$0xff]
  %v2208 = vld [vmem:[%s10 + $0x18] sm:$0xff]
  %v2209 = vld [vmem:[%s10 + $0x20] sm:$0xff]
  %v2210 = vld [vmem:[%s10 + $0x28] sm:$0xff]
  %v2211 = vld [vmem:[%s10 + $0x30] sm:$0xff]
  %v2212 = vld [vmem:[%s10 + $0x38] sm:$0xff]
  %v2213 = vld [vmem:[%s10 + $0x40] sm:$0xff]
  %v2214 = vld [vmem:[%s10 + $0x48] sm:$0xff]
  %v2215 = vld [vmem:[%s10 + $0x50] sm:$0xff]
  %v2216 = vld [vmem:[%s10 + $0x58] sm:$0xff]
  %v2217 = vld [vmem:[%s10 + $0x60] sm:$0xff]
  %v2218 = vld [vmem:[%s10 + $0x68] sm:$0xff]
  %v2219 = vld [vmem:[%s10 + $0x70] sm:$0xff]
  %v2220 = vld [vmem:[%s10 + $0x78] sm:$0xff]
  %v2221 = vld [vmem:[%s10 + $0x80] sm:$0xff]
  %v2222 = vld [vmem:[%s10 + $0x88] sm:$0xff]
  %v2223 = vld [vmem:[%s14 + $0x2] sm:$0x1]
  %v2224 = vld [vmem:[%s14 + $0x3] sm:$0x1]
  %v2225 = vlaneseq
  %v2226 = vshrl.u32 %v2225, 7
  %v2227 = vsub.s32 0, %v2226
  %v2228 = vrot.slane %v2223, %v2227
  %v2230 = vsel %vm229, %v1258, 0
  %v2233 = vsel %vm229, %v1260, 0
  %2235 = vmatprep.subr.mxu0 0.0
  %2236 = vmatpush1.msra.mxu0 %v2205
  %2237 = vmatprep.subr.mxu0 0.0
  %2238 = vmatpush1.msra.mxu0 %v2206
  %2239 = vmatprep.subr.mxu0 0.0
  %2240 = vmatpush1.msra.mxu0 %v2207
  %2241 = vmatprep.subr.mxu0 0.0
  %2242 = vmatpush1.msra.mxu0 %v2208
  %2243 = vmatprep.subr.mxu0 0.0
  %2244 = vmatpush1.msra.mxu0 %v2209
  %2245 = vmatprep.subr.mxu0 0.0
  %2246 = vmatpush1.msra.mxu0 %v2210
  %2247 = vmatprep.subr.mxu0 0.0
  %2248 = vmatpush1.msra.mxu0 %v2211
  %2249 = vmatprep.subr.mxu0 0.0
  %2250 = vmatpush1.msra.mxu0 %v2212
  %2251 = vmatprep.subr.mxu0 0.0
  %2252 = vmatpush1.msra.mxu0 %v2213
  %2253 = vmatprep.subr.mxu0 0.0
  %2254 = vmatpush1.msra.mxu0 %v2214
  %2255 = vmatprep.subr.mxu0 0.0
  %2256 = vmatpush1.msra.mxu0 %v2215
  %2257 = vmatprep.subr.mxu0 0.0
  %2258 = vmatpush1.msra.mxu0 %v2216
  %2259 = vmatprep.subr.mxu0 0.0
  %2260 = vmatpush1.msra.mxu0 %v2217
  %2261 = vmatprep.subr.mxu0 0.0
  %2262 = vmatpush1.msra.mxu0 %v2218
  %2263 = vmatprep.subr.mxu0 0.0
  %2264 = vmatpush1.msra.mxu0 %v2219
  %2265 = vmatprep.subr.mxu0 0.0
  %2266 = vmatpush1.msra.mxu0 %v2220
  %2267 = vmatprep.subr.mxu0 0.0
  %2268 = vmatpush1.msra.mxu0 %v2221
  %2269 = vmatprep.subr.mxu0 0.0
  %2270 = vmatpush1.msra.mxu0 %v2222
  %2271 = vmatprep.subr.mxu0 0.0
  %2272 = vmatpush1.msra.mxu0 0.0
  %2273 = vmatprep.subr.mxu0 0.0
  %2274 = vmatpush1.msra.mxu0 0.0
  %2275 = vmatprep.subr.mxu0 0.0
  %2276 = vmatpush1.msra.mxu0 0.0
  %2277 = vmatprep.subr.mxu0 0.0
  %2278 = vmatpush1.msra.mxu0 0.0
  %2279 = vmatprep.subr.mxu0 0.0
  %2280 = vmatpush1.msra.mxu0 0.0
  %2281 = vmatprep.subr.mxu0 0.0
  %2282 = vmatpush1.msra.mxu0 0.0
  %2283 = vmatprep.subr.mxu0 0.0
  %2284 = vmatpush1.msra.mxu0 0.0
  %2285 = vmatprep.subr.mxu0 0.0
  %2286 = vmatpush1.msra.mxu0 0.0
  %2287 = vmatprep.subr.mxu0 0.0
  %2288 = vmatpush1.msra.mxu0 0.0
  %2289 = vmatprep.subr.mxu0 0.0
  %2290 = vmatpush1.msra.mxu0 0.0
  %2291 = vmatprep.subr.mxu0 0.0
  %2292 = vmatpush1.msra.mxu0 0.0
  %2293 = vmatprep.subr.mxu0 0.0
  %2294 = vmatpush1.msra.mxu0 0.0
  %2295 = vmatprep.subr.mxu0 0.0
  %2296 = vmatpush1.msra.mxu0 0.0
  %2297 = vmatprep.subr.mxu0 0.0
  %2298 = vmatpush1.msra.mxu0 0.0
  %2299 = vmatprep.mubr.f32.mxu0 %v2230
  %2300 = vmatmul.mubr.f32.gmra.mrb[0].mxu0 %v1257
  %v2301 = vpop.f32.mrb[0].mxu0
  %v2302 = vadd.f32 %v2228, %v2301
  %v2303 = vpop.f32.mrb[0].mxu0
  %2304 = vmatprep.mubr.f32.mxu0 %v2233
  %2305 = vmatmul.mubr.f32.gmra.mrb[0].mxu0 %v1259
  %v2306 = vpop.f32.mrb[0].mxu0
  %v2307 = vadd.f32 %v2228, %v2306
  %v2308 = vpop.f32.mrb[0].mxu0
  %2309 = vdwg.mxu0
  %v2310 = vtanh.pop %v2302
  %v2311 = vtanh.pop %v2307
  %v2312 = vlaneseq
  %v2313 = vshrl.u32 %v2312, 7
  %v2314 = vsub.s32 0, %v2313
  %v2315 = vrot.slane %v2224, %v2314
  %v2316 = vmul.f32 %v2310, %v2315
  %v2317 = vmul.f32 %v2311, %v2315
  %2318 = vadd.xlane.f32.xlu0 %v2316
  %v2319 = vpop.xlane.xlu0 %2318
  %2320 = vadd.xlane.f32.xlu0 %v2317
  %v2321 = vpop.xlane.xlu0 %2320
  %vm2322 = vcmask 7168
  %v2323 = vsel %vm2322, %v2319, 0.0
  %v2324 = vsel %vm2322, %v2321, 0.0
  %v2325 = vadd.f32 %v2323, %v2324
  %2326 = vadd.xlane.f32.xlu0 %v2325
  %v2327 = vpop.xlane.xlu0 %2326
  %v2328 = vrot.slane %v2327, 4
  %v2329 = vadd.f32 %v2327, %v2328
  %v2330 = vrot.slane %v2329, 2
  %v2331 = vadd.f32 %v2329, %v2330
  %v2332 = vrot.slane %v2331, 1
  %v2333 = vadd.f32 %v2331, %v2332
  %s2334 = vtos %v2333
  %v2335 = vrcp.pop 16.0
  %s2336 = vtos %v2335
  %s2337 = smul.f32 %s2334, %s2336
  %v2339 = vsel %vm229, %v2202, 0
  %v2342 = vsel %vm229, %v2204, 0
  %2344 = vmatprep.subr.mxu0 0.0
  %2345 = vmatpush1.msra.mxu0 %v2205
  %2346 = vmatprep.subr.mxu0 0.0
  %2347 = vmatpush1.msra.mxu0 %v2206
  %2348 = vmatprep.subr.mxu0 0.0
  %2349 = vmatpush1.msra.mxu0 %v2207
  %2350 = vmatprep.subr.mxu0 0.0
  %2351 = vmatpush1.msra.mxu0 %v2208
  %2352 = vmatprep.subr.mxu0 0.0
  %2353 = vmatpush1.msra.mxu0 %v2209
  %2354 = vmatprep.subr.mxu0 0.0
  %2355 = vmatpush1.msra.mxu0 %v2210
  %2356 = vmatprep.subr.mxu0 0.0
  %2357 = vmatpush1.msra.mxu0 %v2211
  %2358 = vmatprep.subr.mxu0 0.0
  %2359 = vmatpush1.msra.mxu0 %v2212
  %2360 = vmatprep.subr.mxu0 0.0
  %2361 = vmatpush1.msra.mxu0 %v2213
  %2362 = vmatprep.subr.mxu0 0.0
  %2363 = vmatpush1.msra.mxu0 %v2214
  %2364 = vmatprep.subr.mxu0 0.0
  %2365 = vmatpush1.msra.mxu0 %v2215
  %2366 = vmatprep.subr.mxu0 0.0
  %2367 = vmatpush1.msra.mxu0 %v2216
  %2368 = vmatprep.subr.mxu0 0.0
  %2369 = vmatpush1.msra.mxu0 %v2217
  %2370 = vmatprep.subr.mxu0 0.0
  %2371 = vmatpush1.msra.mxu0 %v2218
  %2372 = vmatprep.subr.mxu0 0.0
  %2373 = vmatpush1.msra.mxu0 %v2219
  %2374 = vmatprep.subr.mxu0 0.0
  %2375 = vmatpush1.msra.mxu0 %v2220
  %2376 = vmatprep.subr.mxu0 0.0
  %2377 = vmatpush1.msra.mxu0 %v2221
  %2378 = vmatprep.subr.mxu0 0.0
  %2379 = vmatpush1.msra.mxu0 %v2222
  %2380 = vmatprep.subr.mxu0 0.0
  %2381 = vmatpush1.msra.mxu0 0.0
  %2382 = vmatprep.subr.mxu0 0.0
  %2383 = vmatpush1.msra.mxu0 0.0
  %2384 = vmatprep.subr.mxu0 0.0
  %2385 = vmatpush1.msra.mxu0 0.0
  %2386 = vmatprep.subr.mxu0 0.0
  %2387 = vmatpush1.msra.mxu0 0.0
  %2388 = vmatprep.subr.mxu0 0.0
  %2389 = vmatpush1.msra.mxu0 0.0
  %2390 = vmatprep.subr.mxu0 0.0
  %2391 = vmatpush1.msra.mxu0 0.0
  %2392 = vmatprep.subr.mxu0 0.0
  %2393 = vmatpush1.msra.mxu0 0.0
  %2394 = vmatprep.subr.mxu0 0.0
  %2395 = vmatpush1.msra.mxu0 0.0
  %2396 = vmatprep.subr.mxu0 0.0
  %2397 = vmatpush1.msra.mxu0 0.0
  %2398 = vmatprep.subr.mxu0 0.0
  %2399 = vmatpush1.msra.mxu0 0.0
  %2400 = vmatprep.subr.mxu0 0.0
  %2401 = vmatpush1.msra.mxu0 0.0
  %2402 = vmatprep.subr.mxu0 0.0
  %2403 = vmatpush1.msra.mxu0 0.0
  %2404 = vmatprep.subr.mxu0 0.0
  %2405 = vmatpush1.msra.mxu0 0.0
  %2406 = vmatprep.subr.mxu0 0.0
  %2407 = vmatpush1.msra.mxu0 0.0
  %2408 = vmatprep.mubr.f32.mxu0 %v2339
  %2409 = vmatmul.mubr.f32.gmra.mrb[0].mxu0 %v2201
  %v2410 = vpop.f32.mrb[0].mxu0
  %v2411 = vadd.f32 %v2228, %v2410
  %v2412 = vpop.f32.mrb[0].mxu0
  %2413 = vmatprep.mubr.f32.mxu0 %v2342
  %2414 = vmatmul.mubr.f32.gmra.mrb[0].mxu0 %v2203
  %v2415 = vpop.f32.mrb[0].mxu0
  %v2416 = vadd.f32 %v2228, %v2415
  %v2417 = vpop.f32.mrb[0].mxu0
  %2418 = vdwg.mxu0
  %v2419 = vtanh.pop %v2411
  %v2420 = vtanh.pop %v2416
  %v2421 = vmul.f32 %v2419, %v2315
  %v2422 = vmul.f32 %v2420, %v2315
  %2423 = vadd.xlane.f32.xlu0 %v2421
  %v2424 = vpop.xlane.xlu0 %2423
  %2425 = vadd.xlane.f32.xlu0 %v2422
  %v2426 = vpop.xlane.xlu0 %2425
  %v2427 = vsel %vm2322, %v2424, 0.0
  %v2428 = vsel %vm2322, %v2426, 0.0
  %v2429 = vadd.f32 %v2427, %v2428
  %2430 = vadd.xlane.f32.xlu0 %v2429
  %v2431 = vpop.xlane.xlu0 %2430
  %v2432 = vrot.slane %v2431, 4
  %v2433 = vadd.f32 %v2431, %v2432
  %v2434 = vrot.slane %v2433, 2
  %v2435 = vadd.f32 %v2433, %v2434
  %v2436 = vrot.slane %v2435, 1
  %v2437 = vadd.f32 %v2435, %v2436
  %s2438 = vtos %v2437
  %v2439 = vrcp.pop 16.0
  %s2440 = vtos %v2439
  %s2441 = smul.f32 %s2438, %s2440
  %s2442 = smax.f32 %s2337, %s2441
  %s2443 = ssub.f32 %s2337, %s2442
  %v2444 = vstv %s2443
  %v2445 = vmul.f32 %v2444, 1.442695
  %v2446 = vpow.pop %v2445
  %s2447 = vtos %v2446
  %s2448 = ssub.f32 %s2441, %s2442
  %v2449 = vstv %s2448
  %v2450 = vmul.f32 %v2449, 1.442695
  %v2451 = vpow.pop %v2450
  %s2452 = vtos %v2451
  %s2453 = sadd.f32 %s2447, %s2452
  %v2454 = vstv %s2453
  %v2455 = vrcp.pop %v2454
  %s2456 = vtos %v2455
  %s2457 = smul.f32 %s2447, %s2456
  %v2458 = vstv %s2457
  %v2459 = vmul.f32 %v2458, %v1257
  %v2460 = vmul.f32 %v2458, %v1258
  %v2461 = vmul.f32 %v2458, %v1259
  %v2462 = vmul.f32 %v2458, %v1260
  %s2463 = smul.f32 %s2452, %s2456
  %v2464 = vstv %s2463
  %v2465 = vmul.f32 %v2464, %v2201
  %v2466 = vmul.f32 %v2464, %v2202
  %v2467 = vmul.f32 %v2464, %v2203
  %v2468 = vmul.f32 %v2464, %v2204
  %v2469 = vadd.f32 %v2459, %v2465
  %v2470 = vadd.f32 %v2460, %v2466
  %v2471 = vadd.f32 %v2461, %v2467
  %v2472 = vadd.f32 %v2462, %v2468
  %v2473 = vld [vmem:[%s6] sm:$0xff]
  %v2474 = vld [vmem:[%s6 + $0x8] sm:$0xff]
  %v2475 = vld [vmem:[%s6 + $0x10] sm:$0xff]
  %v2476 = vld [vmem:[%s6 + $0x18] sm:$0xff]
  %v2477 = vld [vmem:[%s6 + $0x20] sm:$0xff]
  %v2478 = vld [vmem:[%s6 + $0x28] sm:$0xff]
  %v2479 = vld [vmem:[%s6 + $0x30] sm:$0xff]
  %v2480 = vld [vmem:[%s6 + $0x38] sm:$0xff]
  %v2481 = vld [vmem:[%s6 + $0x40] sm:$0xff]
  %v2482 = vld [vmem:[%s6 + $0x48] sm:$0xff]
  %v2483 = vld [vmem:[%s6 + $0x50] sm:$0xff]
  %v2484 = vld [vmem:[%s6 + $0x58] sm:$0xff]
  %v2485 = vld [vmem:[%s6 + $0x60] sm:$0xff]
  %v2486 = vld [vmem:[%s6 + $0x68] sm:$0xff]
  %v2487 = vld [vmem:[%s6 + $0x70] sm:$0xff]
  %v2488 = vld [vmem:[%s6 + $0x78] sm:$0xff]
  %v2489 = vld [vmem:[%s6 + $0x80] sm:$0xff]
  %v2490 = vld [vmem:[%s6 + $0x88] sm:$0xff]
  %v2491 = vld [vmem:[%s6 + $0x90] sm:$0xff]
  %v2492 = vld [vmem:[%s6 + $0x98] sm:$0xff]
  %v2493 = vld [vmem:[%s6 + $0xa0] sm:$0xff]
  %v2494 = vld [vmem:[%s6 + $0xa8] sm:$0xff]
  %v2495 = vld [vmem:[%s6 + $0xb0] sm:$0xff]
  %v2496 = vld [vmem:[%s6 + $0xb8] sm:$0xff]
  %v2497 = vld [vmem:[%s6 + $0xc0] sm:$0xff]
  %v2498 = vld [vmem:[%s6 + $0xc8] sm:$0xff]
  %v2499 = vld [vmem:[%s6 + $0xd0] sm:$0xff]
  %v2500 = vld [vmem:[%s6 + $0xd8] sm:$0xff]
  %v2501 = vld [vmem:[%s6 + $0xe0] sm:$0xff]
  %v2502 = vld [vmem:[%s6 + $0xe8] sm:$0xff]
  %v2503 = vld [vmem:[%s6 + $0xf0] sm:$0xff]
  %v2504 = vld [vmem:[%s6 + $0xf8] sm:$0xff]
  %v2505 = vld [vmem:[%s6 + $0x100] sm:$0xff]
  %v2506 = vld [vmem:[%s6 + $0x108] sm:$0xff]
  %v2507 = vld [vmem:[%s6 + $0x110] sm:$0xff]
  %v2508 = vld [vmem:[%s6 + $0x118] sm:$0xff]
  %v2510 = vsel %vm229, %v2470, 0
  %v2513 = vsel %vm229, %v2472, 0
  %2515 = vmatprep.subr.mxu0 %v2474
  %2516 = vmatpush1.msra.mxu0 %v2473
  %2517 = vmatprep.subr.mxu0 %v2476
  %2518 = vmatpush1.msra.mxu0 %v2475
  %2519 = vmatprep.subr.mxu0 %v2478
  %2520 = vmatpush1.msra.mxu0 %v2477
  %2521 = vmatprep.subr.mxu0 %v2480
  %2522 = vmatpush1.msra.mxu0 %v2479
  %2523 = vmatprep.subr.mxu0 %v2482
  %2524 = vmatpush1.msra.mxu0 %v2481
  %2525 = vmatprep.subr.mxu0 %v2484
  %2526 = vmatpush1.msra.mxu0 %v2483
  %2527 = vmatprep.subr.mxu0 %v2486
  %2528 = vmatpush1.msra.mxu0 %v2485
  %2529 = vmatprep.subr.mxu0 %v2488
  %2530 = vmatpush1.msra.mxu0 %v2487
  %2531 = vmatprep.subr.mxu0 %v2490
  %2532 = vmatpush1.msra.mxu0 %v2489
  %2533 = vmatprep.subr.mxu0 %v2492
  %2534 = vmatpush1.msra.mxu0 %v2491
  %2535 = vmatprep.subr.mxu0 %v2494
  %2536 = vmatpush1.msra.mxu0 %v2493
  %2537 = vmatprep.subr.mxu0 %v2496
  %2538 = vmatpush1.msra.mxu0 %v2495
  %2539 = vmatprep.subr.mxu0 %v2498
  %2540 = vmatpush1.msra.mxu0 %v2497
  %2541 = vmatprep.subr.mxu0 %v2500
  %2542 = vmatpush1.msra.mxu0 %v2499
  %2543 = vmatprep.subr.mxu0 %v2502
  %2544 = vmatpush1.msra.mxu0 %v2501
  %2545 = vmatprep.subr.mxu0 %v2504
  %2546 = vmatpush1.msra.mxu0 %v2503
  %2547 = vmatprep.subr.mxu0 %v2506
  %2548 = vmatpush1.msra.mxu0 %v2505
  %2549 = vmatprep.subr.mxu0 %v2508
  %2550 = vmatpush1.msra.mxu0 %v2507
  %2551 = vmatprep.subr.mxu0 0.0
  %2552 = vmatpush1.msra.mxu0 0.0
  %2553 = vmatprep.subr.mxu0 0.0
  %2554 = vmatpush1.msra.mxu0 0.0
  %2555 = vmatprep.subr.mxu0 0.0
  %2556 = vmatpush1.msra.mxu0 0.0
  %2557 = vmatprep.subr.mxu0 0.0
  %2558 = vmatpush1.msra.mxu0 0.0
  %2559 = vmatprep.subr.mxu0 0.0
  %2560 = vmatpush1.msra.mxu0 0.0
  %2561 = vmatprep.subr.mxu0 0.0
  %2562 = vmatpush1.msra.mxu0 0.0
  %2563 = vmatprep.subr.mxu0 0.0
  %2564 = vmatpush1.msra.mxu0 0.0
  %2565 = vmatprep.subr.mxu0 0.0
  %2566 = vmatpush1.msra.mxu0 0.0
  %2567 = vmatprep.subr.mxu0 0.0
  %2568 = vmatpush1.msra.mxu0 0.0
  %2569 = vmatprep.subr.mxu0 0.0
  %2570 = vmatpush1.msra.mxu0 0.0
  %2571 = vmatprep.subr.mxu0 0.0
  %2572 = vmatpush1.msra.mxu0 0.0
  %2573 = vmatprep.subr.mxu0 0.0
  %2574 = vmatpush1.msra.mxu0 0.0
  %2575 = vmatprep.subr.mxu0 0.0
  %2576 = vmatpush1.msra.mxu0 0.0
  %2577 = vmatprep.subr.mxu0 0.0
  %2578 = vmatpush1.msra.mxu0 0.0
  %2579 = vmatprep.mubr.f32.mxu0 %v2510
  %2580 = vmatmul.mubr.f32.gmra.mrb[0].mxu0 %v2469
  %v2581 = vpop.f32.mrb[0].mxu0
  %v2582 = vadd.f32 0.0, %v2581
  %v2583 = vpop.f32.mrb[0].mxu0
  %v2584 = vadd.f32 0.0, %v2583
  %2585 = vmatprep.mubr.f32.mxu0 %v2513
  %2586 = vmatmul.mubr.f32.gmra.mrb[0].mxu0 %v2471
  %v2587 = vpop.f32.mrb[0].mxu0
  %v2588 = vadd.f32 0.0, %v2587
  %v2589 = vpop.f32.mrb[0].mxu0
  %v2590 = vadd.f32 0.0, %v2589
  %2591 = vdwg.mxu0
  %s2592 = scalar_lea.vmem %s7, 16
  %v2593 = vld [vmem:[%s2592] sm:$0xff]
  %v2595 = vcombine.high %v2593, %v2593
  %v2596 = vsel %vm229, %v2595, 0
  %v2599 = vsel %vm229, %v2584, 0
  %v2602 = vsel %vm229, %v2590, 0
  %2604 = vmatprep.subr.mxu0 %v2599
  %2605 = vmatpush1.xpose.msra.mxu0 %v2582
  %2606 = vmatprep.subr.mxu0 %v2602
  %2607 = vmatpush1.xpose.msra.mxu0 %v2588
  %2608 = vmatprep.subr.mxu0 0.0
  %2609 = vmatpush1.xpose.msra.mxu0 0.0
  %2610 = vmatprep.subr.mxu0 0.0
  %2611 = vmatpush1.xpose.msra.mxu0 0.0
  %2612 = vmatprep.subr.mxu0 0.0
  %2613 = vmatpush1.xpose.msra.mxu0 0.0
  %2614 = vmatprep.subr.mxu0 0.0
  %2615 = vmatpush1.xpose.msra.mxu0 0.0
  %2616 = vmatprep.subr.mxu0 0.0
  %2617 = vmatpush1.xpose.msra.mxu0 0.0
  %2618 = vmatprep.subr.mxu0 0.0
  %2619 = vmatpush1.xpose.msra.mxu0 0.0
  %2620 = vmatprep.subr.mxu0 0.0
  %2621 = vmatpush1.xpose.msra.mxu0 0.0
  %2622 = vmatprep.subr.mxu0 0.0
  %2623 = vmatpush1.xpose.msra.mxu0 0.0
  %2624 = vmatprep.subr.mxu0 0.0
  %2625 = vmatpush1.xpose.msra.mxu0 0.0
  %2626 = vmatprep.subr.mxu0 0.0
  %2627 = vmatpush1.xpose.msra.mxu0 0.0
  %2628 = vmatprep.subr.mxu0 0.0
  %2629 = vmatpush1.xpose.msra.mxu0 0.0
  %2630 = vmatprep.subr.mxu0 0.0
  %2631 = vmatpush1.xpose.msra.mxu0 0.0
  %2632 = vmatprep.subr.mxu0 0.0
  %2633 = vmatpush1.xpose.msra.mxu0 0.0
  %2634 = vmatprep.subr.mxu0 0.0
  %2635 = vmatpush1.xpose.msra.mxu0 0.0
  %2636 = vmatprep.subr.mxu0 0.0
  %2637 = vmatpush1.xpose.msra.mxu0 0.0
  %2638 = vmatprep.subr.mxu0 0.0
  %2639 = vmatpush1.xpose.msra.mxu0 0.0
  %2640 = vmatprep.subr.mxu0 0.0
  %2641 = vmatpush1.xpose.msra.mxu0 0.0
  %2642 = vmatprep.subr.mxu0 0.0
  %2643 = vmatpush1.xpose.msra.mxu0 0.0
  %2644 = vmatprep.subr.mxu0 0.0
  %2645 = vmatpush1.xpose.msra.mxu0 0.0
  %2646 = vmatprep.subr.mxu0 0.0
  %2647 = vmatpush1.xpose.msra.mxu0 0.0
  %2648 = vmatprep.subr.mxu0 0.0
  %2649 = vmatpush1.xpose.msra.mxu0 0.0
  %2650 = vmatprep.subr.mxu0 0.0
  %2651 = vmatpush1.xpose.msra.mxu0 0.0
  %2652 = vmatprep.subr.mxu0 0.0
  %2653 = vmatpush1.xpose.msra.mxu0 0.0
  %2654 = vmatprep.subr.mxu0 0.0
  %2655 = vmatpush1.xpose.msra.mxu0 0.0
  %2656 = vmatprep.subr.mxu0 0.0
  %2657 = vmatpush1.xpose.msra.mxu0 0.0
  %2658 = vmatprep.subr.mxu0 0.0
  %2659 = vmatpush1.xpose.msra.mxu0 0.0
  %2660 = vmatprep.subr.mxu0 0.0
  %2661 = vmatpush1.xpose.msra.mxu0 0.0
  %2662 = vmatprep.subr.mxu0 0.0
  %2663 = vmatpush1.xpose.msra.mxu0 0.0
  %2664 = vmatprep.subr.mxu0 0.0
  %2665 = vmatpush1.xpose.msra.mxu0 0.0
  %2666 = vmatprep.subr.mxu0 0.0
  %2667 = vmatpush1.xpose.msra.mxu0 0.0
  %2668 = vmatprep.mubr.f32.mxu0 %v2596
  %2669 = vmatmul.mubr.f32.gmra.mrb[0].mxu0 %v2593
  %v2670 = vpop.f32.mrb[0].mxu0
  %v2671 = vadd.f32 0.0, %v2670
  %v2672 = vpop.f32.mrb[0].mxu0
  %2673 = vdwg.mxu0
  %s2674 = scalar_lea.vmem %s8, 288
  %v2675 = vld [vmem:[%s2674] sm:$0xff]
  %v2676 = vld [vmem:[%s2674 + $0x8] sm:$0xff]
  %v2677 = vld [vmem:[%s2674 + $0x10] sm:$0xff]
  %v2678 = vld [vmem:[%s2674 + $0x18] sm:$0xff]
  %v2679 = vld [vmem:[%s2674 + $0x20] sm:$0xff]
  %v2680 = vld [vmem:[%s2674 + $0x28] sm:$0xff]
  %v2681 = vld [vmem:[%s2674 + $0x30] sm:$0xff]
  %v2682 = vld [vmem:[%s2674 + $0x38] sm:$0xff]
  %v2683 = vld [vmem:[%s2674 + $0x40] sm:$0xff]
  %v2684 = vld [vmem:[%s2674 + $0x48] sm:$0xff]
  %v2685 = vld [vmem:[%s2674 + $0x50] sm:$0xff]
  %v2686 = vld [vmem:[%s2674 + $0x58] sm:$0xff]
  %v2687 = vld [vmem:[%s2674 + $0x60] sm:$0xff]
  %v2688 = vld [vmem:[%s2674 + $0x68] sm:$0xff]
  %v2689 = vld [vmem:[%s2674 + $0x70] sm:$0xff]
  %v2690 = vld [vmem:[%s2674 + $0x78] sm:$0xff]
  %v2691 = vld [vmem:[%s2674 + $0x80] sm:$0xff]
  %v2692 = vld [vmem:[%s2674 + $0x88] sm:$0xff]
  %2693 = vmatprep.subr.mxu0 0.0
  %2694 = vmatpush1.msra.mxu0 %v2675
  %2695 = vmatprep.subr.mxu0 0.0
  %2696 = vmatpush1.msra.mxu0 %v2676
  %2697 = vmatprep.subr.mxu0 0.0
  %2698 = vmatpush1.msra.mxu0 %v2677
  %2699 = vmatprep.subr.mxu0 0.0
  %2700 = vmatpush1.msra.mxu0 %v2678
  %2701 = vmatprep.subr.mxu0 0.0
  %2702 = vmatpush1.msra.mxu0 %v2679
  %2703 = vmatprep.subr.mxu0 0.0
  %2704 = vmatpush1.msra.mxu0 %v2680
  %2705 = vmatprep.subr.mxu0 0.0
  %2706 = vmatpush1.msra.mxu0 %v2681
  %2707 = vmatprep.subr.mxu0 0.0
  %2708 = vmatpush1.msra.mxu0 %v2682
  %2709 = vmatprep.subr.mxu0 0.0
  %2710 = vmatpush1.msra.mxu0 %v2683
  %2711 = vmatprep.subr.mxu0 0.0
  %2712 = vmatpush1.msra.mxu0 %v2684
  %2713 = vmatprep.subr.mxu0 0.0
  %2714 = vmatpush1.msra.mxu0 %v2685
  %2715 = vmatprep.subr.mxu0 0.0
  %2716 = vmatpush1.msra.mxu0 %v2686
  %2717 = vmatprep.subr.mxu0 0.0
  %2718 = vmatpush1.msra.mxu0 %v2687
  %2719 = vmatprep.subr.mxu0 0.0
  %2720 = vmatpush1.msra.mxu0 %v2688
  %2721 = vmatprep.subr.mxu0 0.0
  %2722 = vmatpush1.msra.mxu0 %v2689
  %2723 = vmatprep.subr.mxu0 0.0
  %2724 = vmatpush1.msra.mxu0 %v2690
  %2725 = vmatprep.subr.mxu0 0.0
  %2726 = vmatpush1.msra.mxu0 %v2691
  %2727 = vmatprep.subr.mxu0 0.0
  %2728 = vmatpush1.msra.mxu0 %v2692
  %2729 = vmatprep.subr.mxu0 0.0
  %2730 = vmatpush1.msra.mxu0 0.0
  %2731 = vmatprep.subr.mxu0 0.0
  %2732 = vmatpush1.msra.mxu0 0.0
  %2733 = vmatprep.subr.mxu0 0.0
  %2734 = vmatpush1.msra.mxu0 0.0
  %2735 = vmatprep.subr.mxu0 0.0
  %2736 = vmatpush1.msra.mxu0 0.0
  %2737 = vmatprep.subr.mxu0 0.0
  %2738 = vmatpush1.msra.mxu0 0.0
  %2739 = vmatprep.subr.mxu0 0.0
  %2740 = vmatpush1.msra.mxu0 0.0
  %2741 = vmatprep.subr.mxu0 0.0
  %2742 = vmatpush1.msra.mxu0 0.0
  %2743 = vmatprep.subr.mxu0 0.0
  %2744 = vmatpush1.msra.mxu0 0.0
  %2745 = vmatprep.subr.mxu0 0.0
  %2746 = vmatpush1.msra.mxu0 0.0
  %2747 = vmatprep.subr.mxu0 0.0
  %2748 = vmatpush1.msra.mxu0 0.0
  %2749 = vmatprep.subr.mxu0 0.0
  %2750 = vmatpush1.msra.mxu0 0.0
  %2751 = vmatprep.subr.mxu0 0.0
  %2752 = vmatpush1.msra.mxu0 0.0
  %2753 = vmatprep.subr.mxu0 0.0
  %2754 = vmatpush1.msra.mxu0 0.0
  %2755 = vmatprep.subr.mxu0 0.0
  %2756 = vmatpush1.msra.mxu0 0.0
  %2757 = vmatprep.mubr.f32.mxu0 %v2599
  %2758 = vmatmul.mubr.f32.gmra.mrb[0].mxu0 %v2582
  %v2759 = vpop.f32.mrb[0].mxu0
  %v2760 = vadd.f32 0.0, %v2759
  %v2761 = vpop.f32.mrb[0].mxu0
  %2762 = vmatprep.mubr.f32.mxu0 %v2602
  %2763 = vmatmul.mubr.f32.gmra.mrb[0].mxu0 %v2588
  %v2764 = vpop.f32.mrb[0].mxu0
  %v2765 = vadd.f32 0.0, %v2764
  %v2766 = vpop.f32.mrb[0].mxu0
  %2767 = vdwg.mxu0
  %s2768 = scalar_lea.vmem %s9, 4
  %v2769 = vld [vmem:[%s2768] sm:$0x3]
  %2771 = vset.pattern.permute.xlu0 0
  %2772 = vperm.xlu0 %2771, %v2760
  %v2773 = vpop.permute.xlu0 %2772
  %2776 = vset.pattern.permute.xlu0 0
  %2777 = vperm.xlu0 %2776, %v2765
  %v2778 = vpop.permute.xlu0 %2777
  %v2780 = vlaneseq
  %v2781 = vshrl.u32 %v2780, 7
  %v2782 = vsub.s32 0, %v2781
  %v2783 = vrot.slane %v2671, %v2782
  %v2784 = vadd.f32 %v2773, %v2783
  %v2785 = vadd.f32 %v2778, %v2783
  %vm2786 = vcmp.ge.f32.partialorder %v2784, 0.0
  %vm2787 = vcmp.ge.f32.partialorder %v2785, 0.0
  %v2788 = vmul.f32 %v2784, 0.2
  %v2789 = vmul.f32 %v2785, 0.2
  %v2790 = vsel %vm2786, %v2784, %v2788
  %v2791 = vsel %vm2787, %v2785, %v2789
  %v2792 = vsel %vm657, %v2790, -1e+30
  %v2793 = vsel %vm658, %v2791, -1e+30
  %v2794 = vsel %vm229, %v2792, -inf
  %2795 = vmax.xlane.f32.xlu0 %v2794
  %v2796 = vpop.xlane.xlu0 %2795
  %v2797 = vsel %vm229, %v2793, -inf
  %2798 = vmax.xlane.f32.xlu0 %v2797
  %v2799 = vpop.xlane.xlu0 %2798
  %v2800 = vsub.f32 %v2792, %v2796
  %v2801 = vsub.f32 %v2793, %v2799
  %v2802 = vmul.f32 %v2800, 1.442695
  %v2803 = vpow.pop %v2802
  %v2804 = vmul.f32 %v2801, 1.442695
  %v2805 = vpow.pop %v2804
  %v2806 = vsel %vm657, %v2803, 0.0
  %v2807 = vsel %vm658, %v2805, 0.0
  %v2808 = vsel %vm229, %v2806, 0.0
  %2809 = vadd.xlane.f32.xlu0 %v2808
  %v2810 = vpop.xlane.xlu0 %2809
  %v2811 = vsel %vm229, %v2807, 0.0
  %2812 = vadd.xlane.f32.xlu0 %v2811
  %v2813 = vpop.xlane.xlu0 %2812
  %v2814 = vrcp.pop %v2810
  %v2815 = vrcp.pop %v2813
  %v2816 = vmul.f32 %v2806, %v2814
  %v2817 = vmul.f32 %v2807, %v2815
  %v2818 = vsel %vm710, %v2582, 0.0
  %v2819 = vsel %vm711, %v2584, 0.0
  %v2820 = vsel %vm710, %v2588, 0.0
  %v2821 = vsel %vm711, %v2590, 0.0
  %v2823 = vsel %vm229, %v2816, 0
  %v2826 = vsel %vm229, %v2817, 0
  %2828 = vmatprep.subr.mxu0 %v2819
  %2829 = vmatpush1.msra.mxu0 %v2818
  %2830 = vmatprep.subr.mxu0 %v2821
  %2831 = vmatpush1.msra.mxu0 %v2820
  %2832 = vmatprep.subr.mxu0 0.0
  %2833 = vmatpush1.msra.mxu0 0.0
  %2834 = vmatprep.subr.mxu0 0.0
  %2835 = vmatpush1.msra.mxu0 0.0
  %2836 = vmatprep.subr.mxu0 0.0
  %2837 = vmatpush1.msra.mxu0 0.0
  %2838 = vmatprep.subr.mxu0 0.0
  %2839 = vmatpush1.msra.mxu0 0.0
  %2840 = vmatprep.subr.mxu0 0.0
  %2841 = vmatpush1.msra.mxu0 0.0
  %2842 = vmatprep.subr.mxu0 0.0
  %2843 = vmatpush1.msra.mxu0 0.0
  %2844 = vmatprep.subr.mxu0 0.0
  %2845 = vmatpush1.msra.mxu0 0.0
  %2846 = vmatprep.subr.mxu0 0.0
  %2847 = vmatpush1.msra.mxu0 0.0
  %2848 = vmatprep.subr.mxu0 0.0
  %2849 = vmatpush1.msra.mxu0 0.0
  %2850 = vmatprep.subr.mxu0 0.0
  %2851 = vmatpush1.msra.mxu0 0.0
  %2852 = vmatprep.subr.mxu0 0.0
  %2853 = vmatpush1.msra.mxu0 0.0
  %2854 = vmatprep.subr.mxu0 0.0
  %2855 = vmatpush1.msra.mxu0 0.0
  %2856 = vmatprep.subr.mxu0 0.0
  %2857 = vmatpush1.msra.mxu0 0.0
  %2858 = vmatprep.subr.mxu0 0.0
  %2859 = vmatpush1.msra.mxu0 0.0
  %2860 = vmatprep.subr.mxu0 0.0
  %2861 = vmatpush1.msra.mxu0 0.0
  %2862 = vmatprep.subr.mxu0 0.0
  %2863 = vmatpush1.msra.mxu0 0.0
  %2864 = vmatprep.subr.mxu0 0.0
  %2865 = vmatpush1.msra.mxu0 0.0
  %2866 = vmatprep.subr.mxu0 0.0
  %2867 = vmatpush1.msra.mxu0 0.0
  %2868 = vmatprep.subr.mxu0 0.0
  %2869 = vmatpush1.msra.mxu0 0.0
  %2870 = vmatprep.subr.mxu0 0.0
  %2871 = vmatpush1.msra.mxu0 0.0
  %2872 = vmatprep.subr.mxu0 0.0
  %2873 = vmatpush1.msra.mxu0 0.0
  %2874 = vmatprep.subr.mxu0 0.0
  %2875 = vmatpush1.msra.mxu0 0.0
  %2876 = vmatprep.subr.mxu0 0.0
  %2877 = vmatpush1.msra.mxu0 0.0
  %2878 = vmatprep.subr.mxu0 0.0
  %2879 = vmatpush1.msra.mxu0 0.0
  %2880 = vmatprep.subr.mxu0 0.0
  %2881 = vmatpush1.msra.mxu0 0.0
  %2882 = vmatprep.subr.mxu0 0.0
  %2883 = vmatpush1.msra.mxu0 0.0
  %2884 = vmatprep.subr.mxu0 0.0
  %2885 = vmatpush1.msra.mxu0 0.0
  %2886 = vmatprep.subr.mxu0 0.0
  %2887 = vmatpush1.msra.mxu0 0.0
  %2888 = vmatprep.subr.mxu0 0.0
  %2889 = vmatpush1.msra.mxu0 0.0
  %2890 = vmatprep.subr.mxu0 0.0
  %2891 = vmatpush1.msra.mxu0 0.0
  %2892 = vmatprep.mubr.f32.mxu0 0.0
  %2893 = vmatmul.mubr.f32.gmra.mrb[0].mxu0 %v2823
  %v2894 = vpop.f32.mrb[0].mxu0
  %v2895 = vadd.f32 0.0, %v2894
  %v2896 = vpop.f32.mrb[0].mxu0
  %v2897 = vadd.f32 0.0, %v2896
  %2898 = vmatprep.mubr.f32.mxu0 0.0
  %2899 = vmatmul.mubr.f32.gmra.mrb[0].mxu0 %v2826
  %v2900 = vpop.f32.mrb[0].mxu0
  %v2901 = vadd.f32 0.0, %v2900
  %v2902 = vpop.f32.mrb[0].mxu0
  %v2903 = vadd.f32 0.0, %v2902
  %2904 = vdwg.mxu0
  %v2906 = vlaneseq
  %v2907 = vshrl.u32 %v2906, 7
  %v2908 = vsub.s32 0, %v2907
  %v2909 = vrot.slane %v2769, %v2908
  %v2910 = vlaneseq
  %v2911 = vshrl.u32 %v2910, 7
  %v2912 = vsub.s32 1, %v2911
  %v2913 = vrot.slane %v2769, %v2912
  %v2916 = vadd.f32 %v2909, %v2895
  %v2917 = vadd.f32 %v2913, %v2897
  %v2918 = vadd.f32 %v2909, %v2901
  %v2919 = vadd.f32 %v2913, %v2903
  %2920 = vset.pattern.permute.xlu0 1
  %2921 = vperm.xlu0 %2920, %v2760
  %v2922 = vpop.permute.xlu0 %2921
  %2924 = vset.pattern.permute.xlu0 1
  %2925 = vperm.xlu0 %2924, %v2765
  %v2926 = vpop.permute.xlu0 %2925
  %v2928 = vlaneseq
  %v2929 = vshrl.u32 %v2928, 7
  %v2930 = vsub.s32 1, %v2929
  %v2931 = vrot.slane %v2671, %v2930
  %v2932 = vadd.f32 %v2922, %v2931
  %v2933 = vadd.f32 %v2926, %v2931
  %vm2934 = vcmp.ge.f32.partialorder %v2932, 0.0
  %vm2935 = vcmp.ge.f32.partialorder %v2933, 0.0
  %v2936 = vmul.f32 %v2932, 0.2
  %v2937 = vmul.f32 %v2933, 0.2
  %v2938 = vsel %vm2934, %v2932, %v2936
  %v2939 = vsel %vm2935, %v2933, %v2937
  %v2940 = vsel %vm657, %v2938, -1e+30
  %v2941 = vsel %vm658, %v2939, -1e+30
  %v2942 = vsel %vm229, %v2940, -inf
  %2943 = vmax.xlane.f32.xlu0 %v2942
  %v2944 = vpop.xlane.xlu0 %2943
  %v2945 = vsel %vm229, %v2941, -inf
  %2946 = vmax.xlane.f32.xlu0 %v2945
  %v2947 = vpop.xlane.xlu0 %2946
  %v2948 = vsub.f32 %v2940, %v2944
  %v2949 = vsub.f32 %v2941, %v2947
  %v2950 = vmul.f32 %v2948, 1.442695
  %v2951 = vpow.pop %v2950
  %v2952 = vmul.f32 %v2949, 1.442695
  %v2953 = vpow.pop %v2952
  %v2954 = vsel %vm657, %v2951, 0.0
  %v2955 = vsel %vm658, %v2953, 0.0
  %v2956 = vsel %vm229, %v2954, 0.0
  %2957 = vadd.xlane.f32.xlu0 %v2956
  %v2958 = vpop.xlane.xlu0 %2957
  %v2959 = vsel %vm229, %v2955, 0.0
  %2960 = vadd.xlane.f32.xlu0 %v2959
  %v2961 = vpop.xlane.xlu0 %2960
  %v2962 = vrcp.pop %v2958
  %v2963 = vrcp.pop %v2961
  %v2964 = vmul.f32 %v2954, %v2962
  %v2965 = vmul.f32 %v2955, %v2963
  %v2966 = vsel %vm862, %v2582, 0.0
  %v2967 = vsel %vm863, %v2584, 0.0
  %v2968 = vsel %vm862, %v2588, 0.0
  %v2969 = vsel %vm863, %v2590, 0.0
  %v2971 = vsel %vm229, %v2964, 0
  %v2974 = vsel %vm229, %v2965, 0
  %2976 = vmatprep.subr.mxu0 %v2967
  %2977 = vmatpush1.msra.mxu0 %v2966
  %2978 = vmatprep.subr.mxu0 %v2969
  %2979 = vmatpush1.msra.mxu0 %v2968
  %2980 = vmatprep.subr.mxu0 0.0
  %2981 = vmatpush1.msra.mxu0 0.0
  %2982 = vmatprep.subr.mxu0 0.0
  %2983 = vmatpush1.msra.mxu0 0.0
  %2984 = vmatprep.subr.mxu0 0.0
  %2985 = vmatpush1.msra.mxu0 0.0
  %2986 = vmatprep.subr.mxu0 0.0
  %2987 = vmatpush1.msra.mxu0 0.0
  %2988 = vmatprep.subr.mxu0 0.0
  %2989 = vmatpush1.msra.mxu0 0.0
  %2990 = vmatprep.subr.mxu0 0.0
  %2991 = vmatpush1.msra.mxu0 0.0
  %2992 = vmatprep.subr.mxu0 0.0
  %2993 = vmatpush1.msra.mxu0 0.0
  %2994 = vmatprep.subr.mxu0 0.0
  %2995 = vmatpush1.msra.mxu0 0.0
  %2996 = vmatprep.subr.mxu0 0.0
  %2997 = vmatpush1.msra.mxu0 0.0
  %2998 = vmatprep.subr.mxu0 0.0
  %2999 = vmatpush1.msra.mxu0 0.0
  %3000 = vmatprep.subr.mxu0 0.0
  %3001 = vmatpush1.msra.mxu0 0.0
  %3002 = vmatprep.subr.mxu0 0.0
  %3003 = vmatpush1.msra.mxu0 0.0
  %3004 = vmatprep.subr.mxu0 0.0
  %3005 = vmatpush1.msra.mxu0 0.0
  %3006 = vmatprep.subr.mxu0 0.0
  %3007 = vmatpush1.msra.mxu0 0.0
  %3008 = vmatprep.subr.mxu0 0.0
  %3009 = vmatpush1.msra.mxu0 0.0
  %3010 = vmatprep.subr.mxu0 0.0
  %3011 = vmatpush1.msra.mxu0 0.0
  %3012 = vmatprep.subr.mxu0 0.0
  %3013 = vmatpush1.msra.mxu0 0.0
  %3014 = vmatprep.subr.mxu0 0.0
  %3015 = vmatpush1.msra.mxu0 0.0
  %3016 = vmatprep.subr.mxu0 0.0
  %3017 = vmatpush1.msra.mxu0 0.0
  %3018 = vmatprep.subr.mxu0 0.0
  %3019 = vmatpush1.msra.mxu0 0.0
  %3020 = vmatprep.subr.mxu0 0.0
  %3021 = vmatpush1.msra.mxu0 0.0
  %3022 = vmatprep.subr.mxu0 0.0
  %3023 = vmatpush1.msra.mxu0 0.0
  %3024 = vmatprep.subr.mxu0 0.0
  %3025 = vmatpush1.msra.mxu0 0.0
  %3026 = vmatprep.subr.mxu0 0.0
  %3027 = vmatpush1.msra.mxu0 0.0
  %3028 = vmatprep.subr.mxu0 0.0
  %3029 = vmatpush1.msra.mxu0 0.0
  %3030 = vmatprep.subr.mxu0 0.0
  %3031 = vmatpush1.msra.mxu0 0.0
  %3032 = vmatprep.subr.mxu0 0.0
  %3033 = vmatpush1.msra.mxu0 0.0
  %3034 = vmatprep.subr.mxu0 0.0
  %3035 = vmatpush1.msra.mxu0 0.0
  %3036 = vmatprep.subr.mxu0 0.0
  %3037 = vmatpush1.msra.mxu0 0.0
  %3038 = vmatprep.subr.mxu0 0.0
  %3039 = vmatpush1.msra.mxu0 0.0
  %3040 = vmatprep.mubr.f32.mxu0 0.0
  %3041 = vmatmul.mubr.f32.gmra.mrb[0].mxu0 %v2971
  %v3042 = vpop.f32.mrb[0].mxu0
  %v3043 = vadd.f32 0.0, %v3042
  %v3044 = vpop.f32.mrb[0].mxu0
  %v3045 = vadd.f32 0.0, %v3044
  %3046 = vmatprep.mubr.f32.mxu0 0.0
  %3047 = vmatmul.mubr.f32.gmra.mrb[0].mxu0 %v2974
  %v3048 = vpop.f32.mrb[0].mxu0
  %v3049 = vadd.f32 0.0, %v3048
  %v3050 = vpop.f32.mrb[0].mxu0
  %v3051 = vadd.f32 0.0, %v3050
  %3052 = vdwg.mxu0
  %v3053 = vadd.f32 %v2916, %v3043
  %v3054 = vadd.f32 %v2917, %v3045
  %v3055 = vadd.f32 %v2918, %v3049
  %v3056 = vadd.f32 %v2919, %v3051
  %3057 = vset.pattern.permute.xlu0 2
  %3058 = vperm.xlu0 %3057, %v2760
  %v3059 = vpop.permute.xlu0 %3058
  %3061 = vset.pattern.permute.xlu0 2
  %3062 = vperm.xlu0 %3061, %v2765
  %v3063 = vpop.permute.xlu0 %3062
  %v3065 = vlaneseq
  %v3066 = vshrl.u32 %v3065, 7
  %v3067 = vsub.s32 2, %v3066
  %v3068 = vrot.slane %v2671, %v3067
  %v3069 = vadd.f32 %v3059, %v3068
  %v3070 = vadd.f32 %v3063, %v3068
  %vm3071 = vcmp.ge.f32.partialorder %v3069, 0.0
  %vm3072 = vcmp.ge.f32.partialorder %v3070, 0.0
  %v3073 = vmul.f32 %v3069, 0.2
  %v3074 = vmul.f32 %v3070, 0.2
  %v3075 = vsel %vm3071, %v3069, %v3073
  %v3076 = vsel %vm3072, %v3070, %v3074
  %v3077 = vsel %vm657, %v3075, -1e+30
  %v3078 = vsel %vm658, %v3076, -1e+30
  %v3079 = vsel %vm229, %v3077, -inf
  %3080 = vmax.xlane.f32.xlu0 %v3079
  %v3081 = vpop.xlane.xlu0 %3080
  %v3082 = vsel %vm229, %v3078, -inf
  %3083 = vmax.xlane.f32.xlu0 %v3082
  %v3084 = vpop.xlane.xlu0 %3083
  %v3085 = vsub.f32 %v3077, %v3081
  %v3086 = vsub.f32 %v3078, %v3084
  %v3087 = vmul.f32 %v3085, 1.442695
  %v3088 = vpow.pop %v3087
  %v3089 = vmul.f32 %v3086, 1.442695
  %v3090 = vpow.pop %v3089
  %v3091 = vsel %vm657, %v3088, 0.0
  %v3092 = vsel %vm658, %v3090, 0.0
  %v3093 = vsel %vm229, %v3091, 0.0
  %3094 = vadd.xlane.f32.xlu0 %v3093
  %v3095 = vpop.xlane.xlu0 %3094
  %v3096 = vsel %vm229, %v3092, 0.0
  %3097 = vadd.xlane.f32.xlu0 %v3096
  %v3098 = vpop.xlane.xlu0 %3097
  %v3099 = vrcp.pop %v3095
  %v3100 = vrcp.pop %v3098
  %v3101 = vmul.f32 %v3091, %v3099
  %v3102 = vmul.f32 %v3092, %v3100
  %v3103 = vsel %vm1003, %v2582, 0.0
  %v3104 = vsel %vm1004, %v2584, 0.0
  %v3105 = vsel %vm1003, %v2588, 0.0
  %v3106 = vsel %vm1004, %v2590, 0.0
  %v3108 = vsel %vm229, %v3101, 0
  %v3111 = vsel %vm229, %v3102, 0
  %3113 = vmatprep.subr.mxu0 %v3104
  %3114 = vmatpush1.msra.mxu0 %v3103
  %3115 = vmatprep.subr.mxu0 %v3106
  %3116 = vmatpush1.msra.mxu0 %v3105
  %3117 = vmatprep.subr.mxu0 0.0
  %3118 = vmatpush1.msra.mxu0 0.0
  %3119 = vmatprep.subr.mxu0 0.0
  %3120 = vmatpush1.msra.mxu0 0.0
  %3121 = vmatprep.subr.mxu0 0.0
  %3122 = vmatpush1.msra.mxu0 0.0
  %3123 = vmatprep.subr.mxu0 0.0
  %3124 = vmatpush1.msra.mxu0 0.0
  %3125 = vmatprep.subr.mxu0 0.0
  %3126 = vmatpush1.msra.mxu0 0.0
  %3127 = vmatprep.subr.mxu0 0.0
  %3128 = vmatpush1.msra.mxu0 0.0
  %3129 = vmatprep.subr.mxu0 0.0
  %3130 = vmatpush1.msra.mxu0 0.0
  %3131 = vmatprep.subr.mxu0 0.0
  %3132 = vmatpush1.msra.mxu0 0.0
  %3133 = vmatprep.subr.mxu0 0.0
  %3134 = vmatpush1.msra.mxu0 0.0
  %3135 = vmatprep.subr.mxu0 0.0
  %3136 = vmatpush1.msra.mxu0 0.0
  %3137 = vmatprep.subr.mxu0 0.0
  %3138 = vmatpush1.msra.mxu0 0.0
  %3139 = vmatprep.subr.mxu0 0.0
  %3140 = vmatpush1.msra.mxu0 0.0
  %3141 = vmatprep.subr.mxu0 0.0
  %3142 = vmatpush1.msra.mxu0 0.0
  %3143 = vmatprep.subr.mxu0 0.0
  %3144 = vmatpush1.msra.mxu0 0.0
  %3145 = vmatprep.subr.mxu0 0.0
  %3146 = vmatpush1.msra.mxu0 0.0
  %3147 = vmatprep.subr.mxu0 0.0
  %3148 = vmatpush1.msra.mxu0 0.0
  %3149 = vmatprep.subr.mxu0 0.0
  %3150 = vmatpush1.msra.mxu0 0.0
  %3151 = vmatprep.subr.mxu0 0.0
  %3152 = vmatpush1.msra.mxu0 0.0
  %3153 = vmatprep.subr.mxu0 0.0
  %3154 = vmatpush1.msra.mxu0 0.0
  %3155 = vmatprep.subr.mxu0 0.0
  %3156 = vmatpush1.msra.mxu0 0.0
  %3157 = vmatprep.subr.mxu0 0.0
  %3158 = vmatpush1.msra.mxu0 0.0
  %3159 = vmatprep.subr.mxu0 0.0
  %3160 = vmatpush1.msra.mxu0 0.0
  %3161 = vmatprep.subr.mxu0 0.0
  %3162 = vmatpush1.msra.mxu0 0.0
  %3163 = vmatprep.subr.mxu0 0.0
  %3164 = vmatpush1.msra.mxu0 0.0
  %3165 = vmatprep.subr.mxu0 0.0
  %3166 = vmatpush1.msra.mxu0 0.0
  %3167 = vmatprep.subr.mxu0 0.0
  %3168 = vmatpush1.msra.mxu0 0.0
  %3169 = vmatprep.subr.mxu0 0.0
  %3170 = vmatpush1.msra.mxu0 0.0
  %3171 = vmatprep.subr.mxu0 0.0
  %3172 = vmatpush1.msra.mxu0 0.0
  %3173 = vmatprep.subr.mxu0 0.0
  %3174 = vmatpush1.msra.mxu0 0.0
  %3175 = vmatprep.subr.mxu0 0.0
  %3176 = vmatpush1.msra.mxu0 0.0
  %3177 = vmatprep.mubr.f32.mxu0 0.0
  %3178 = vmatmul.mubr.f32.gmra.mrb[0].mxu0 %v3108
  %v3179 = vpop.f32.mrb[0].mxu0
  %v3180 = vadd.f32 0.0, %v3179
  %v3181 = vpop.f32.mrb[0].mxu0
  %v3182 = vadd.f32 0.0, %v3181
  %3183 = vmatprep.mubr.f32.mxu0 0.0
  %3184 = vmatmul.mubr.f32.gmra.mrb[0].mxu0 %v3111
  %v3185 = vpop.f32.mrb[0].mxu0
  %v3186 = vadd.f32 0.0, %v3185
  %v3187 = vpop.f32.mrb[0].mxu0
  %v3188 = vadd.f32 0.0, %v3187
  %3189 = vdwg.mxu0
  %v3190 = vadd.f32 %v3053, %v3180
  %v3191 = vadd.f32 %v3054, %v3182
  %v3192 = vadd.f32 %v3055, %v3186
  %v3193 = vadd.f32 %v3056, %v3188
  %3194 = vset.pattern.permute.xlu0 3
  %3195 = vperm.xlu0 %3194, %v2760
  %v3196 = vpop.permute.xlu0 %3195
  %3198 = vset.pattern.permute.xlu0 3
  %3199 = vperm.xlu0 %3198, %v2765
  %v3200 = vpop.permute.xlu0 %3199
  %v3202 = vlaneseq
  %v3203 = vshrl.u32 %v3202, 7
  %v3204 = vsub.s32 3, %v3203
  %v3205 = vrot.slane %v2671, %v3204
  %v3206 = vadd.f32 %v3196, %v3205
  %v3207 = vadd.f32 %v3200, %v3205
  %vm3208 = vcmp.ge.f32.partialorder %v3206, 0.0
  %vm3209 = vcmp.ge.f32.partialorder %v3207, 0.0
  %v3210 = vmul.f32 %v3206, 0.2
  %v3211 = vmul.f32 %v3207, 0.2
  %v3212 = vsel %vm3208, %v3206, %v3210
  %v3213 = vsel %vm3209, %v3207, %v3211
  %v3214 = vsel %vm657, %v3212, -1e+30
  %v3215 = vsel %vm658, %v3213, -1e+30
  %v3216 = vsel %vm229, %v3214, -inf
  %3217 = vmax.xlane.f32.xlu0 %v3216
  %v3218 = vpop.xlane.xlu0 %3217
  %v3219 = vsel %vm229, %v3215, -inf
  %3220 = vmax.xlane.f32.xlu0 %v3219
  %v3221 = vpop.xlane.xlu0 %3220
  %v3222 = vsub.f32 %v3214, %v3218
  %v3223 = vsub.f32 %v3215, %v3221
  %v3224 = vmul.f32 %v3222, 1.442695
  %v3225 = vpow.pop %v3224
  %v3226 = vmul.f32 %v3223, 1.442695
  %v3227 = vpow.pop %v3226
  %v3228 = vsel %vm657, %v3225, 0.0
  %v3229 = vsel %vm658, %v3227, 0.0
  %v3230 = vsel %vm229, %v3228, 0.0
  %3231 = vadd.xlane.f32.xlu0 %v3230
  %v3232 = vpop.xlane.xlu0 %3231
  %v3233 = vsel %vm229, %v3229, 0.0
  %3234 = vadd.xlane.f32.xlu0 %v3233
  %v3235 = vpop.xlane.xlu0 %3234
  %v3236 = vrcp.pop %v3232
  %v3237 = vrcp.pop %v3235
  %v3238 = vmul.f32 %v3228, %v3236
  %v3239 = vmul.f32 %v3229, %v3237
  %v3240 = vsel %vm1144, %v2582, 0.0
  %v3241 = vsel %vm1145, %v2584, 0.0
  %v3242 = vsel %vm1144, %v2588, 0.0
  %v3243 = vsel %vm1145, %v2590, 0.0
  %v3245 = vsel %vm229, %v3238, 0
  %v3248 = vsel %vm229, %v3239, 0
  %3250 = vmatprep.subr.mxu0 %v3241
  %3251 = vmatpush1.msra.mxu0 %v3240
  %3252 = vmatprep.subr.mxu0 %v3243
  %3253 = vmatpush1.msra.mxu0 %v3242
  %3254 = vmatprep.subr.mxu0 0.0
  %3255 = vmatpush1.msra.mxu0 0.0
  %3256 = vmatprep.subr.mxu0 0.0
  %3257 = vmatpush1.msra.mxu0 0.0
  %3258 = vmatprep.subr.mxu0 0.0
  %3259 = vmatpush1.msra.mxu0 0.0
  %3260 = vmatprep.subr.mxu0 0.0
  %3261 = vmatpush1.msra.mxu0 0.0
  %3262 = vmatprep.subr.mxu0 0.0
  %3263 = vmatpush1.msra.mxu0 0.0
  %3264 = vmatprep.subr.mxu0 0.0
  %3265 = vmatpush1.msra.mxu0 0.0
  %3266 = vmatprep.subr.mxu0 0.0
  %3267 = vmatpush1.msra.mxu0 0.0
  %3268 = vmatprep.subr.mxu0 0.0
  %3269 = vmatpush1.msra.mxu0 0.0
  %3270 = vmatprep.subr.mxu0 0.0
  %3271 = vmatpush1.msra.mxu0 0.0
  %3272 = vmatprep.subr.mxu0 0.0
  %3273 = vmatpush1.msra.mxu0 0.0
  %3274 = vmatprep.subr.mxu0 0.0
  %3275 = vmatpush1.msra.mxu0 0.0
  %3276 = vmatprep.subr.mxu0 0.0
  %3277 = vmatpush1.msra.mxu0 0.0
  %3278 = vmatprep.subr.mxu0 0.0
  %3279 = vmatpush1.msra.mxu0 0.0
  %3280 = vmatprep.subr.mxu0 0.0
  %3281 = vmatpush1.msra.mxu0 0.0
  %3282 = vmatprep.subr.mxu0 0.0
  %3283 = vmatpush1.msra.mxu0 0.0
  %3284 = vmatprep.subr.mxu0 0.0
  %3285 = vmatpush1.msra.mxu0 0.0
  %3286 = vmatprep.subr.mxu0 0.0
  %3287 = vmatpush1.msra.mxu0 0.0
  %3288 = vmatprep.subr.mxu0 0.0
  %3289 = vmatpush1.msra.mxu0 0.0
  %3290 = vmatprep.subr.mxu0 0.0
  %3291 = vmatpush1.msra.mxu0 0.0
  %3292 = vmatprep.subr.mxu0 0.0
  %3293 = vmatpush1.msra.mxu0 0.0
  %3294 = vmatprep.subr.mxu0 0.0
  %3295 = vmatpush1.msra.mxu0 0.0
  %3296 = vmatprep.subr.mxu0 0.0
  %3297 = vmatpush1.msra.mxu0 0.0
  %3298 = vmatprep.subr.mxu0 0.0
  %3299 = vmatpush1.msra.mxu0 0.0
  %3300 = vmatprep.subr.mxu0 0.0
  %3301 = vmatpush1.msra.mxu0 0.0
  %3302 = vmatprep.subr.mxu0 0.0
  %3303 = vmatpush1.msra.mxu0 0.0
  %3304 = vmatprep.subr.mxu0 0.0
  %3305 = vmatpush1.msra.mxu0 0.0
  %3306 = vmatprep.subr.mxu0 0.0
  %3307 = vmatpush1.msra.mxu0 0.0
  %3308 = vmatprep.subr.mxu0 0.0
  %3309 = vmatpush1.msra.mxu0 0.0
  %3310 = vmatprep.subr.mxu0 0.0
  %3311 = vmatpush1.msra.mxu0 0.0
  %3312 = vmatprep.subr.mxu0 0.0
  %3313 = vmatpush1.msra.mxu0 0.0
  %3314 = vmatprep.mubr.f32.mxu0 0.0
  %3315 = vmatmul.mubr.f32.gmra.mrb[0].mxu0 %v3245
  %v3316 = vpop.f32.mrb[0].mxu0
  %v3317 = vadd.f32 0.0, %v3316
  %v3318 = vpop.f32.mrb[0].mxu0
  %v3319 = vadd.f32 0.0, %v3318
  %3320 = vmatprep.mubr.f32.mxu0 0.0
  %3321 = vmatmul.mubr.f32.gmra.mrb[0].mxu0 %v3248
  %v3322 = vpop.f32.mrb[0].mxu0
  %v3323 = vadd.f32 0.0, %v3322
  %v3324 = vpop.f32.mrb[0].mxu0
  %v3325 = vadd.f32 0.0, %v3324
  %3326 = vdwg.mxu0
  %v3327 = vadd.f32 %v3190, %v3317
  %v3328 = vadd.f32 %v3191, %v3319
  %v3329 = vadd.f32 %v3192, %v3323
  %v3330 = vadd.f32 %v3193, %v3325
  %vm3331 = vcmp.gt.f32.partialorder %v3327, 0.0
  %vm3332 = vcmp.gt.f32.partialorder %v3328, 0.0
  %vm3333 = vcmp.gt.f32.partialorder %v3329, 0.0
  %vm3334 = vcmp.gt.f32.partialorder %v3330, 0.0
  %v3335 = vmin.f32 %v3327, 0.0
  %v3336 = vmin.f32 %v3328, 0.0
  %v3337 = vmin.f32 %v3329, 0.0
  %v3338 = vmin.f32 %v3330, 0.0
  %v3339 = vmul.f32 %v3335, 1.442695
  %v3340 = vpow.pop %v3339
  %v3341 = vmul.f32 %v3336, 1.442695
  %v3342 = vpow.pop %v3341
  %v3343 = vmul.f32 %v3337, 1.442695
  %v3344 = vpow.pop %v3343
  %v3345 = vmul.f32 %v3338, 1.442695
  %v3346 = vpow.pop %v3345
  %v3347 = vsub.f32 %v3340, 1.0
  %v3348 = vsub.f32 %v3342, 1.0
  %v3349 = vsub.f32 %v3344, 1.0
  %v3350 = vsub.f32 %v3346, 1.0
  %v3351 = vsel %vm3331, %v3327, %v3347
  %v3352 = vsel %vm3332, %v3328, %v3348
  %v3353 = vsel %vm3333, %v3329, %v3349
  %v3354 = vsel %vm3334, %v3330, %v3350
  %s3355 = scalar_lea.vmem %s6, 288
  %v3356 = vld [vmem:[%s3355] sm:$0xff]
  %v3357 = vld [vmem:[%s3355 + $0x8] sm:$0xff]
  %v3358 = vld [vmem:[%s3355 + $0x10] sm:$0xff]
  %v3359 = vld [vmem:[%s3355 + $0x18] sm:$0xff]
  %v3360 = vld [vmem:[%s3355 + $0x20] sm:$0xff]
  %v3361 = vld [vmem:[%s3355 + $0x28] sm:$0xff]
  %v3362 = vld [vmem:[%s3355 + $0x30] sm:$0xff]
  %v3363 = vld [vmem:[%s3355 + $0x38] sm:$0xff]
  %v3364 = vld [vmem:[%s3355 + $0x40] sm:$0xff]
  %v3365 = vld [vmem:[%s3355 + $0x48] sm:$0xff]
  %v3366 = vld [vmem:[%s3355 + $0x50] sm:$0xff]
  %v3367 = vld [vmem:[%s3355 + $0x58] sm:$0xff]
  %v3368 = vld [vmem:[%s3355 + $0x60] sm:$0xff]
  %v3369 = vld [vmem:[%s3355 + $0x68] sm:$0xff]
  %v3370 = vld [vmem:[%s3355 + $0x70] sm:$0xff]
  %v3371 = vld [vmem:[%s3355 + $0x78] sm:$0xff]
  %v3372 = vld [vmem:[%s3355 + $0x80] sm:$0xff]
  %v3373 = vld [vmem:[%s3355 + $0x88] sm:$0xff]
  %v3374 = vld [vmem:[%s3355 + $0x90] sm:$0xff]
  %v3375 = vld [vmem:[%s3355 + $0x98] sm:$0xff]
  %v3376 = vld [vmem:[%s3355 + $0xa0] sm:$0xff]
  %v3377 = vld [vmem:[%s3355 + $0xa8] sm:$0xff]
  %v3378 = vld [vmem:[%s3355 + $0xb0] sm:$0xff]
  %v3379 = vld [vmem:[%s3355 + $0xb8] sm:$0xff]
  %v3380 = vld [vmem:[%s3355 + $0xc0] sm:$0xff]
  %v3381 = vld [vmem:[%s3355 + $0xc8] sm:$0xff]
  %v3382 = vld [vmem:[%s3355 + $0xd0] sm:$0xff]
  %v3383 = vld [vmem:[%s3355 + $0xd8] sm:$0xff]
  %v3384 = vld [vmem:[%s3355 + $0xe0] sm:$0xff]
  %v3385 = vld [vmem:[%s3355 + $0xe8] sm:$0xff]
  %v3386 = vld [vmem:[%s3355 + $0xf0] sm:$0xff]
  %v3387 = vld [vmem:[%s3355 + $0xf8] sm:$0xff]
  %v3388 = vld [vmem:[%s3355 + $0x100] sm:$0xff]
  %v3389 = vld [vmem:[%s3355 + $0x108] sm:$0xff]
  %v3390 = vld [vmem:[%s3355 + $0x110] sm:$0xff]
  %v3391 = vld [vmem:[%s3355 + $0x118] sm:$0xff]
  %3392 = vmatprep.subr.mxu0 %v3357
  %3393 = vmatpush1.msra.mxu0 %v3356
  %3394 = vmatprep.subr.mxu0 %v3359
  %3395 = vmatpush1.msra.mxu0 %v3358
  %3396 = vmatprep.subr.mxu0 %v3361
  %3397 = vmatpush1.msra.mxu0 %v3360
  %3398 = vmatprep.subr.mxu0 %v3363
  %3399 = vmatpush1.msra.mxu0 %v3362
  %3400 = vmatprep.subr.mxu0 %v3365
  %3401 = vmatpush1.msra.mxu0 %v3364
  %3402 = vmatprep.subr.mxu0 %v3367
  %3403 = vmatpush1.msra.mxu0 %v3366
  %3404 = vmatprep.subr.mxu0 %v3369
  %3405 = vmatpush1.msra.mxu0 %v3368
  %3406 = vmatprep.subr.mxu0 %v3371
  %3407 = vmatpush1.msra.mxu0 %v3370
  %3408 = vmatprep.subr.mxu0 %v3373
  %3409 = vmatpush1.msra.mxu0 %v3372
  %3410 = vmatprep.subr.mxu0 %v3375
  %3411 = vmatpush1.msra.mxu0 %v3374
  %3412 = vmatprep.subr.mxu0 %v3377
  %3413 = vmatpush1.msra.mxu0 %v3376
  %3414 = vmatprep.subr.mxu0 %v3379
  %3415 = vmatpush1.msra.mxu0 %v3378
  %3416 = vmatprep.subr.mxu0 %v3381
  %3417 = vmatpush1.msra.mxu0 %v3380
  %3418 = vmatprep.subr.mxu0 %v3383
  %3419 = vmatpush1.msra.mxu0 %v3382
  %3420 = vmatprep.subr.mxu0 %v3385
  %3421 = vmatpush1.msra.mxu0 %v3384
  %3422 = vmatprep.subr.mxu0 %v3387
  %3423 = vmatpush1.msra.mxu0 %v3386
  %3424 = vmatprep.subr.mxu0 %v3389
  %3425 = vmatpush1.msra.mxu0 %v3388
  %3426 = vmatprep.subr.mxu0 %v3391
  %3427 = vmatpush1.msra.mxu0 %v3390
  %3428 = vmatprep.subr.mxu0 0.0
  %3429 = vmatpush1.msra.mxu0 0.0
  %3430 = vmatprep.subr.mxu0 0.0
  %3431 = vmatpush1.msra.mxu0 0.0
  %3432 = vmatprep.subr.mxu0 0.0
  %3433 = vmatpush1.msra.mxu0 0.0
  %3434 = vmatprep.subr.mxu0 0.0
  %3435 = vmatpush1.msra.mxu0 0.0
  %3436 = vmatprep.subr.mxu0 0.0
  %3437 = vmatpush1.msra.mxu0 0.0
  %3438 = vmatprep.subr.mxu0 0.0
  %3439 = vmatpush1.msra.mxu0 0.0
  %3440 = vmatprep.subr.mxu0 0.0
  %3441 = vmatpush1.msra.mxu0 0.0
  %3442 = vmatprep.subr.mxu0 0.0
  %3443 = vmatpush1.msra.mxu0 0.0
  %3444 = vmatprep.subr.mxu0 0.0
  %3445 = vmatpush1.msra.mxu0 0.0
  %3446 = vmatprep.subr.mxu0 0.0
  %3447 = vmatpush1.msra.mxu0 0.0
  %3448 = vmatprep.subr.mxu0 0.0
  %3449 = vmatpush1.msra.mxu0 0.0
  %3450 = vmatprep.subr.mxu0 0.0
  %3451 = vmatpush1.msra.mxu0 0.0
  %3452 = vmatprep.subr.mxu0 0.0
  %3453 = vmatpush1.msra.mxu0 0.0
  %3454 = vmatprep.subr.mxu0 0.0
  %3455 = vmatpush1.msra.mxu0 0.0
  %3456 = vmatprep.mubr.f32.mxu0 %v2510
  %3457 = vmatmul.mubr.f32.gmra.mrb[0].mxu0 %v2469
  %v3458 = vpop.f32.mrb[0].mxu0
  %v3459 = vadd.f32 0.0, %v3458
  %v3460 = vpop.f32.mrb[0].mxu0
  %v3461 = vadd.f32 0.0, %v3460
  %3462 = vmatprep.mubr.f32.mxu0 %v2513
  %3463 = vmatmul.mubr.f32.gmra.mrb[0].mxu0 %v2471
  %v3464 = vpop.f32.mrb[0].mxu0
  %v3465 = vadd.f32 0.0, %v3464
  %v3466 = vpop.f32.mrb[0].mxu0
  %v3467 = vadd.f32 0.0, %v3466
  %3468 = vdwg.mxu0
  %s3469 = scalar_lea.vmem %s7, 24
  %v3470 = vld [vmem:[%s3469] sm:$0xff]
  %v3472 = vcombine.high %v3470, %v3470
  %v3473 = vsel %vm229, %v3472, 0
  %v3476 = vsel %vm229, %v3461, 0
  %v3479 = vsel %vm229, %v3467, 0
  %3481 = vmatprep.subr.mxu0 %v3476
  %3482 = vmatpush1.xpose.msra.mxu0 %v3459
  %3483 = vmatprep.subr.mxu0 %v3479
  %3484 = vmatpush1.xpose.msra.mxu0 %v3465
  %3485 = vmatprep.subr.mxu0 0.0
  %3486 = vmatpush1.xpose.msra.mxu0 0.0
  %3487 = vmatprep.subr.mxu0 0.0
  %3488 = vmatpush1.xpose.msra.mxu0 0.0
  %3489 = vmatprep.subr.mxu0 0.0
  %3490 = vmatpush1.xpose.msra.mxu0 0.0
  %3491 = vmatprep.subr.mxu0 0.0
  %3492 = vmatpush1.xpose.msra.mxu0 0.0
  %3493 = vmatprep.subr.mxu0 0.0
  %3494 = vmatpush1.xpose.msra.mxu0 0.0
  %3495 = vmatprep.subr.mxu0 0.0
  %3496 = vmatpush1.xpose.msra.mxu0 0.0
  %3497 = vmatprep.subr.mxu0 0.0
  %3498 = vmatpush1.xpose.msra.mxu0 0.0
  %3499 = vmatprep.subr.mxu0 0.0
  %3500 = vmatpush1.xpose.msra.mxu0 0.0
  %3501 = vmatprep.subr.mxu0 0.0
  %3502 = vmatpush1.xpose.msra.mxu0 0.0
  %3503 = vmatprep.subr.mxu0 0.0
  %3504 = vmatpush1.xpose.msra.mxu0 0.0
  %3505 = vmatprep.subr.mxu0 0.0
  %3506 = vmatpush1.xpose.msra.mxu0 0.0
  %3507 = vmatprep.subr.mxu0 0.0
  %3508 = vmatpush1.xpose.msra.mxu0 0.0
  %3509 = vmatprep.subr.mxu0 0.0
  %3510 = vmatpush1.xpose.msra.mxu0 0.0
  %3511 = vmatprep.subr.mxu0 0.0
  %3512 = vmatpush1.xpose.msra.mxu0 0.0
  %3513 = vmatprep.subr.mxu0 0.0
  %3514 = vmatpush1.xpose.msra.mxu0 0.0
  %3515 = vmatprep.subr.mxu0 0.0
  %3516 = vmatpush1.xpose.msra.mxu0 0.0
  %3517 = vmatprep.subr.mxu0 0.0
  %3518 = vmatpush1.xpose.msra.mxu0 0.0
  %3519 = vmatprep.subr.mxu0 0.0
  %3520 = vmatpush1.xpose.msra.mxu0 0.0
  %3521 = vmatprep.subr.mxu0 0.0
  %3522 = vmatpush1.xpose.msra.mxu0 0.0
  %3523 = vmatprep.subr.mxu0 0.0
  %3524 = vmatpush1.xpose.msra.mxu0 0.0
  %3525 = vmatprep.subr.mxu0 0.0
  %3526 = vmatpush1.xpose.msra.mxu0 0.0
  %3527 = vmatprep.subr.mxu0 0.0
  %3528 = vmatpush1.xpose.msra.mxu0 0.0
  %3529 = vmatprep.subr.mxu0 0.0
  %3530 = vmatpush1.xpose.msra.mxu0 0.0
  %3531 = vmatprep.subr.mxu0 0.0
  %3532 = vmatpush1.xpose.msra.mxu0 0.0
  %3533 = vmatprep.subr.mxu0 0.0
  %3534 = vmatpush1.xpose.msra.mxu0 0.0
  %3535 = vmatprep.subr.mxu0 0.0
  %3536 = vmatpush1.xpose.msra.mxu0 0.0
  %3537 = vmatprep.subr.mxu0 0.0
  %3538 = vmatpush1.xpose.msra.mxu0 0.0
  %3539 = vmatprep.subr.mxu0 0.0
  %3540 = vmatpush1.xpose.msra.mxu0 0.0
  %3541 = vmatprep.subr.mxu0 0.0
  %3542 = vmatpush1.xpose.msra.mxu0 0.0
  %3543 = vmatprep.subr.mxu0 0.0
  %3544 = vmatpush1.xpose.msra.mxu0 0.0
  %3545 = vmatprep.mubr.f32.mxu0 %v3473
  %3546 = vmatmul.mubr.f32.gmra.mrb[0].mxu0 %v3470
  %v3547 = vpop.f32.mrb[0].mxu0
  %v3548 = vadd.f32 0.0, %v3547
  %v3549 = vpop.f32.mrb[0].mxu0
  %3550 = vdwg.mxu0
  %s3551 = scalar_lea.vmem %s8, 432
  %v3552 = vld [vmem:[%s3551] sm:$0xff]
  %v3553 = vld [vmem:[%s3551 + $0x8] sm:$0xff]
  %v3554 = vld [vmem:[%s3551 + $0x10] sm:$0xff]
  %v3555 = vld [vmem:[%s3551 + $0x18] sm:$0xff]
  %v3556 = vld [vmem:[%s3551 + $0x20] sm:$0xff]
  %v3557 = vld [vmem:[%s3551 + $0x28] sm:$0xff]
  %v3558 = vld [vmem:[%s3551 + $0x30] sm:$0xff]
  %v3559 = vld [vmem:[%s3551 + $0x38] sm:$0xff]
  %v3560 = vld [vmem:[%s3551 + $0x40] sm:$0xff]
  %v3561 = vld [vmem:[%s3551 + $0x48] sm:$0xff]
  %v3562 = vld [vmem:[%s3551 + $0x50] sm:$0xff]
  %v3563 = vld [vmem:[%s3551 + $0x58] sm:$0xff]
  %v3564 = vld [vmem:[%s3551 + $0x60] sm:$0xff]
  %v3565 = vld [vmem:[%s3551 + $0x68] sm:$0xff]
  %v3566 = vld [vmem:[%s3551 + $0x70] sm:$0xff]
  %v3567 = vld [vmem:[%s3551 + $0x78] sm:$0xff]
  %v3568 = vld [vmem:[%s3551 + $0x80] sm:$0xff]
  %v3569 = vld [vmem:[%s3551 + $0x88] sm:$0xff]
  %3570 = vmatprep.subr.mxu0 0.0
  %3571 = vmatpush1.msra.mxu0 %v3552
  %3572 = vmatprep.subr.mxu0 0.0
  %3573 = vmatpush1.msra.mxu0 %v3553
  %3574 = vmatprep.subr.mxu0 0.0
  %3575 = vmatpush1.msra.mxu0 %v3554
  %3576 = vmatprep.subr.mxu0 0.0
  %3577 = vmatpush1.msra.mxu0 %v3555
  %3578 = vmatprep.subr.mxu0 0.0
  %3579 = vmatpush1.msra.mxu0 %v3556
  %3580 = vmatprep.subr.mxu0 0.0
  %3581 = vmatpush1.msra.mxu0 %v3557
  %3582 = vmatprep.subr.mxu0 0.0
  %3583 = vmatpush1.msra.mxu0 %v3558
  %3584 = vmatprep.subr.mxu0 0.0
  %3585 = vmatpush1.msra.mxu0 %v3559
  %3586 = vmatprep.subr.mxu0 0.0
  %3587 = vmatpush1.msra.mxu0 %v3560
  %3588 = vmatprep.subr.mxu0 0.0
  %3589 = vmatpush1.msra.mxu0 %v3561
  %3590 = vmatprep.subr.mxu0 0.0
  %3591 = vmatpush1.msra.mxu0 %v3562
  %3592 = vmatprep.subr.mxu0 0.0
  %3593 = vmatpush1.msra.mxu0 %v3563
  %3594 = vmatprep.subr.mxu0 0.0
  %3595 = vmatpush1.msra.mxu0 %v3564
  %3596 = vmatprep.subr.mxu0 0.0
  %3597 = vmatpush1.msra.mxu0 %v3565
  %3598 = vmatprep.subr.mxu0 0.0
  %3599 = vmatpush1.msra.mxu0 %v3566
  %3600 = vmatprep.subr.mxu0 0.0
  %3601 = vmatpush1.msra.mxu0 %v3567
  %3602 = vmatprep.subr.mxu0 0.0
  %3603 = vmatpush1.msra.mxu0 %v3568
  %3604 = vmatprep.subr.mxu0 0.0
  %3605 = vmatpush1.msra.mxu0 %v3569
  %3606 = vmatprep.subr.mxu0 0.0
  %3607 = vmatpush1.msra.mxu0 0.0
  %3608 = vmatprep.subr.mxu0 0.0
  %3609 = vmatpush1.msra.mxu0 0.0
  %3610 = vmatprep.subr.mxu0 0.0
  %3611 = vmatpush1.msra.mxu0 0.0
  %3612 = vmatprep.subr.mxu0 0.0
  %3613 = vmatpush1.msra.mxu0 0.0
  %3614 = vmatprep.subr.mxu0 0.0
  %3615 = vmatpush1.msra.mxu0 0.0
  %3616 = vmatprep.subr.mxu0 0.0
  %3617 = vmatpush1.msra.mxu0 0.0
  %3618 = vmatprep.subr.mxu0 0.0
  %3619 = vmatpush1.msra.mxu0 0.0
  %3620 = vmatprep.subr.mxu0 0.0
  %3621 = vmatpush1.msra.mxu0 0.0
  %3622 = vmatprep.subr.mxu0 0.0
  %3623 = vmatpush1.msra.mxu0 0.0
  %3624 = vmatprep.subr.mxu0 0.0
  %3625 = vmatpush1.msra.mxu0 0.0
  %3626 = vmatprep.subr.mxu0 0.0
  %3627 = vmatpush1.msra.mxu0 0.0
  %3628 = vmatprep.subr.mxu0 0.0
  %3629 = vmatpush1.msra.mxu0 0.0
  %3630 = vmatprep.subr.mxu0 0.0
  %3631 = vmatpush1.msra.mxu0 0.0
  %3632 = vmatprep.subr.mxu0 0.0
  %3633 = vmatpush1.msra.mxu0 0.0
  %3634 = vmatprep.mubr.f32.mxu0 %v3476
  %3635 = vmatmul.mubr.f32.gmra.mrb[0].mxu0 %v3459
  %v3636 = vpop.f32.mrb[0].mxu0
  %v3637 = vadd.f32 0.0, %v3636
  %v3638 = vpop.f32.mrb[0].mxu0
  %3639 = vmatprep.mubr.f32.mxu0 %v3479
  %3640 = vmatmul.mubr.f32.gmra.mrb[0].mxu0 %v3465
  %v3641 = vpop.f32.mrb[0].mxu0
  %v3642 = vadd.f32 0.0, %v3641
  %v3643 = vpop.f32.mrb[0].mxu0
  %3644 = vdwg.mxu0
  %s3645 = scalar_lea.vmem %s9, 6
  %v3646 = vld [vmem:[%s3645] sm:$0x3]
  %3648 = vset.pattern.permute.xlu0 0
  %3649 = vperm.xlu0 %3648, %v3637
  %v3650 = vpop.permute.xlu0 %3649
  %3653 = vset.pattern.permute.xlu0 0
  %3654 = vperm.xlu0 %3653, %v3642
  %v3655 = vpop.permute.xlu0 %3654
  %v3657 = vlaneseq
  %v3658 = vshrl.u32 %v3657, 7
  %v3659 = vsub.s32 0, %v3658
  %v3660 = vrot.slane %v3548, %v3659
  %v3661 = vadd.f32 %v3650, %v3660
  %v3662 = vadd.f32 %v3655, %v3660
  %vm3663 = vcmp.ge.f32.partialorder %v3661, 0.0
  %vm3664 = vcmp.ge.f32.partialorder %v3662, 0.0
  %v3665 = vmul.f32 %v3661, 0.2
  %v3666 = vmul.f32 %v3662, 0.2
  %v3667 = vsel %vm3663, %v3661, %v3665
  %v3668 = vsel %vm3664, %v3662, %v3666
  %v3669 = vsel %vm1616, %v3667, -1e+30
  %v3670 = vsel %vm1617, %v3668, -1e+30
  %v3671 = vsel %vm229, %v3669, -inf
  %3672 = vmax.xlane.f32.xlu0 %v3671
  %v3673 = vpop.xlane.xlu0 %3672
  %v3674 = vsel %vm229, %v3670, -inf
  %3675 = vmax.xlane.f32.xlu0 %v3674
  %v3676 = vpop.xlane.xlu0 %3675
  %v3677 = vsub.f32 %v3669, %v3673
  %v3678 = vsub.f32 %v3670, %v3676
  %v3679 = vmul.f32 %v3677, 1.442695
  %v3680 = vpow.pop %v3679
  %v3681 = vmul.f32 %v3678, 1.442695
  %v3682 = vpow.pop %v3681
  %v3683 = vsel %vm1616, %v3680, 0.0
  %v3684 = vsel %vm1617, %v3682, 0.0
  %v3685 = vsel %vm229, %v3683, 0.0
  %3686 = vadd.xlane.f32.xlu0 %v3685
  %v3687 = vpop.xlane.xlu0 %3686
  %v3688 = vsel %vm229, %v3684, 0.0
  %3689 = vadd.xlane.f32.xlu0 %v3688
  %v3690 = vpop.xlane.xlu0 %3689
  %v3691 = vrcp.pop %v3687
  %v3692 = vrcp.pop %v3690
  %v3693 = vmul.f32 %v3683, %v3691
  %v3694 = vmul.f32 %v3684, %v3692
  %v3695 = vsel %vm710, %v3459, 0.0
  %v3696 = vsel %vm711, %v3461, 0.0
  %v3697 = vsel %vm710, %v3465, 0.0
  %v3698 = vsel %vm711, %v3467, 0.0
  %v3700 = vsel %vm229, %v3693, 0
  %v3703 = vsel %vm229, %v3694, 0
  %3705 = vmatprep.subr.mxu0 %v3696
  %3706 = vmatpush1.msra.mxu0 %v3695
  %3707 = vmatprep.subr.mxu0 %v3698
  %3708 = vmatpush1.msra.mxu0 %v3697
  %3709 = vmatprep.subr.mxu0 0.0
  %3710 = vmatpush1.msra.mxu0 0.0
  %3711 = vmatprep.subr.mxu0 0.0
  %3712 = vmatpush1.msra.mxu0 0.0
  %3713 = vmatprep.subr.mxu0 0.0
  %3714 = vmatpush1.msra.mxu0 0.0
  %3715 = vmatprep.subr.mxu0 0.0
  %3716 = vmatpush1.msra.mxu0 0.0
  %3717 = vmatprep.subr.mxu0 0.0
  %3718 = vmatpush1.msra.mxu0 0.0
  %3719 = vmatprep.subr.mxu0 0.0
  %3720 = vmatpush1.msra.mxu0 0.0
  %3721 = vmatprep.subr.mxu0 0.0
  %3722 = vmatpush1.msra.mxu0 0.0
  %3723 = vmatprep.subr.mxu0 0.0
  %3724 = vmatpush1.msra.mxu0 0.0
  %3725 = vmatprep.subr.mxu0 0.0
  %3726 = vmatpush1.msra.mxu0 0.0
  %3727 = vmatprep.subr.mxu0 0.0
  %3728 = vmatpush1.msra.mxu0 0.0
  %3729 = vmatprep.subr.mxu0 0.0
  %3730 = vmatpush1.msra.mxu0 0.0
  %3731 = vmatprep.subr.mxu0 0.0
  %3732 = vmatpush1.msra.mxu0 0.0
  %3733 = vmatprep.subr.mxu0 0.0
  %3734 = vmatpush1.msra.mxu0 0.0
  %3735 = vmatprep.subr.mxu0 0.0
  %3736 = vmatpush1.msra.mxu0 0.0
  %3737 = vmatprep.subr.mxu0 0.0
  %3738 = vmatpush1.msra.mxu0 0.0
  %3739 = vmatprep.subr.mxu0 0.0
  %3740 = vmatpush1.msra.mxu0 0.0
  %3741 = vmatprep.subr.mxu0 0.0
  %3742 = vmatpush1.msra.mxu0 0.0
  %3743 = vmatprep.subr.mxu0 0.0
  %3744 = vmatpush1.msra.mxu0 0.0
  %3745 = vmatprep.subr.mxu0 0.0
  %3746 = vmatpush1.msra.mxu0 0.0
  %3747 = vmatprep.subr.mxu0 0.0
  %3748 = vmatpush1.msra.mxu0 0.0
  %3749 = vmatprep.subr.mxu0 0.0
  %3750 = vmatpush1.msra.mxu0 0.0
  %3751 = vmatprep.subr.mxu0 0.0
  %3752 = vmatpush1.msra.mxu0 0.0
  %3753 = vmatprep.subr.mxu0 0.0
  %3754 = vmatpush1.msra.mxu0 0.0
  %3755 = vmatprep.subr.mxu0 0.0
  %3756 = vmatpush1.msra.mxu0 0.0
  %3757 = vmatprep.subr.mxu0 0.0
  %3758 = vmatpush1.msra.mxu0 0.0
  %3759 = vmatprep.subr.mxu0 0.0
  %3760 = vmatpush1.msra.mxu0 0.0
  %3761 = vmatprep.subr.mxu0 0.0
  %3762 = vmatpush1.msra.mxu0 0.0
  %3763 = vmatprep.subr.mxu0 0.0
  %3764 = vmatpush1.msra.mxu0 0.0
  %3765 = vmatprep.subr.mxu0 0.0
  %3766 = vmatpush1.msra.mxu0 0.0
  %3767 = vmatprep.subr.mxu0 0.0
  %3768 = vmatpush1.msra.mxu0 0.0
  %3769 = vmatprep.mubr.f32.mxu0 0.0
  %3770 = vmatmul.mubr.f32.gmra.mrb[0].mxu0 %v3700
  %v3771 = vpop.f32.mrb[0].mxu0
  %v3772 = vadd.f32 0.0, %v3771
  %v3773 = vpop.f32.mrb[0].mxu0
  %v3774 = vadd.f32 0.0, %v3773
  %3775 = vmatprep.mubr.f32.mxu0 0.0
  %3776 = vmatmul.mubr.f32.gmra.mrb[0].mxu0 %v3703
  %v3777 = vpop.f32.mrb[0].mxu0
  %v3778 = vadd.f32 0.0, %v3777
  %v3779 = vpop.f32.mrb[0].mxu0
  %v3780 = vadd.f32 0.0, %v3779
  %3781 = vdwg.mxu0
  %v3783 = vlaneseq
  %v3784 = vshrl.u32 %v3783, 7
  %v3785 = vsub.s32 0, %v3784
  %v3786 = vrot.slane %v3646, %v3785
  %v3787 = vlaneseq
  %v3788 = vshrl.u32 %v3787, 7
  %v3789 = vsub.s32 1, %v3788
  %v3790 = vrot.slane %v3646, %v3789
  %v3793 = vadd.f32 %v3786, %v3772
  %v3794 = vadd.f32 %v3790, %v3774
  %v3795 = vadd.f32 %v3786, %v3778
  %v3796 = vadd.f32 %v3790, %v3780
  %3797 = vset.pattern.permute.xlu0 1
  %3798 = vperm.xlu0 %3797, %v3637
  %v3799 = vpop.permute.xlu0 %3798
  %3801 = vset.pattern.permute.xlu0 1
  %3802 = vperm.xlu0 %3801, %v3642
  %v3803 = vpop.permute.xlu0 %3802
  %v3805 = vlaneseq
  %v3806 = vshrl.u32 %v3805, 7
  %v3807 = vsub.s32 1, %v3806
  %v3808 = vrot.slane %v3548, %v3807
  %v3809 = vadd.f32 %v3799, %v3808
  %v3810 = vadd.f32 %v3803, %v3808
  %vm3811 = vcmp.ge.f32.partialorder %v3809, 0.0
  %vm3812 = vcmp.ge.f32.partialorder %v3810, 0.0
  %v3813 = vmul.f32 %v3809, 0.2
  %v3814 = vmul.f32 %v3810, 0.2
  %v3815 = vsel %vm3811, %v3809, %v3813
  %v3816 = vsel %vm3812, %v3810, %v3814
  %v3817 = vsel %vm1616, %v3815, -1e+30
  %v3818 = vsel %vm1617, %v3816, -1e+30
  %v3819 = vsel %vm229, %v3817, -inf
  %3820 = vmax.xlane.f32.xlu0 %v3819
  %v3821 = vpop.xlane.xlu0 %3820
  %v3822 = vsel %vm229, %v3818, -inf
  %3823 = vmax.xlane.f32.xlu0 %v3822
  %v3824 = vpop.xlane.xlu0 %3823
  %v3825 = vsub.f32 %v3817, %v3821
  %v3826 = vsub.f32 %v3818, %v3824
  %v3827 = vmul.f32 %v3825, 1.442695
  %v3828 = vpow.pop %v3827
  %v3829 = vmul.f32 %v3826, 1.442695
  %v3830 = vpow.pop %v3829
  %v3831 = vsel %vm1616, %v3828, 0.0
  %v3832 = vsel %vm1617, %v3830, 0.0
  %v3833 = vsel %vm229, %v3831, 0.0
  %3834 = vadd.xlane.f32.xlu0 %v3833
  %v3835 = vpop.xlane.xlu0 %3834
  %v3836 = vsel %vm229, %v3832, 0.0
  %3837 = vadd.xlane.f32.xlu0 %v3836
  %v3838 = vpop.xlane.xlu0 %3837
  %v3839 = vrcp.pop %v3835
  %v3840 = vrcp.pop %v3838
  %v3841 = vmul.f32 %v3831, %v3839
  %v3842 = vmul.f32 %v3832, %v3840
  %v3843 = vsel %vm862, %v3459, 0.0
  %v3844 = vsel %vm863, %v3461, 0.0
  %v3845 = vsel %vm862, %v3465, 0.0
  %v3846 = vsel %vm863, %v3467, 0.0
  %v3848 = vsel %vm229, %v3841, 0
  %v3851 = vsel %vm229, %v3842, 0
  %3853 = vmatprep.subr.mxu0 %v3844
  %3854 = vmatpush1.msra.mxu0 %v3843
  %3855 = vmatprep.subr.mxu0 %v3846
  %3856 = vmatpush1.msra.mxu0 %v3845
  %3857 = vmatprep.subr.mxu0 0.0
  %3858 = vmatpush1.msra.mxu0 0.0
  %3859 = vmatprep.subr.mxu0 0.0
  %3860 = vmatpush1.msra.mxu0 0.0
  %3861 = vmatprep.subr.mxu0 0.0
  %3862 = vmatpush1.msra.mxu0 0.0
  %3863 = vmatprep.subr.mxu0 0.0
  %3864 = vmatpush1.msra.mxu0 0.0
  %3865 = vmatprep.subr.mxu0 0.0
  %3866 = vmatpush1.msra.mxu0 0.0
  %3867 = vmatprep.subr.mxu0 0.0
  %3868 = vmatpush1.msra.mxu0 0.0
  %3869 = vmatprep.subr.mxu0 0.0
  %3870 = vmatpush1.msra.mxu0 0.0
  %3871 = vmatprep.subr.mxu0 0.0
  %3872 = vmatpush1.msra.mxu0 0.0
  %3873 = vmatprep.subr.mxu0 0.0
  %3874 = vmatpush1.msra.mxu0 0.0
  %3875 = vmatprep.subr.mxu0 0.0
  %3876 = vmatpush1.msra.mxu0 0.0
  %3877 = vmatprep.subr.mxu0 0.0
  %3878 = vmatpush1.msra.mxu0 0.0
  %3879 = vmatprep.subr.mxu0 0.0
  %3880 = vmatpush1.msra.mxu0 0.0
  %3881 = vmatprep.subr.mxu0 0.0
  %3882 = vmatpush1.msra.mxu0 0.0
  %3883 = vmatprep.subr.mxu0 0.0
  %3884 = vmatpush1.msra.mxu0 0.0
  %3885 = vmatprep.subr.mxu0 0.0
  %3886 = vmatpush1.msra.mxu0 0.0
  %3887 = vmatprep.subr.mxu0 0.0
  %3888 = vmatpush1.msra.mxu0 0.0
  %3889 = vmatprep.subr.mxu0 0.0
  %3890 = vmatpush1.msra.mxu0 0.0
  %3891 = vmatprep.subr.mxu0 0.0
  %3892 = vmatpush1.msra.mxu0 0.0
  %3893 = vmatprep.subr.mxu0 0.0
  %3894 = vmatpush1.msra.mxu0 0.0
  %3895 = vmatprep.subr.mxu0 0.0
  %3896 = vmatpush1.msra.mxu0 0.0
  %3897 = vmatprep.subr.mxu0 0.0
  %3898 = vmatpush1.msra.mxu0 0.0
  %3899 = vmatprep.subr.mxu0 0.0
  %3900 = vmatpush1.msra.mxu0 0.0
  %3901 = vmatprep.subr.mxu0 0.0
  %3902 = vmatpush1.msra.mxu0 0.0
  %3903 = vmatprep.subr.mxu0 0.0
  %3904 = vmatpush1.msra.mxu0 0.0
  %3905 = vmatprep.subr.mxu0 0.0
  %3906 = vmatpush1.msra.mxu0 0.0
  %3907 = vmatprep.subr.mxu0 0.0
  %3908 = vmatpush1.msra.mxu0 0.0
  %3909 = vmatprep.subr.mxu0 0.0
  %3910 = vmatpush1.msra.mxu0 0.0
  %3911 = vmatprep.subr.mxu0 0.0
  %3912 = vmatpush1.msra.mxu0 0.0
  %3913 = vmatprep.subr.mxu0 0.0
  %3914 = vmatpush1.msra.mxu0 0.0
  %3915 = vmatprep.subr.mxu0 0.0
  %3916 = vmatpush1.msra.mxu0 0.0
  %3917 = vmatprep.mubr.f32.mxu0 0.0
  %3918 = vmatmul.mubr.f32.gmra.mrb[0].mxu0 %v3848
  %v3919 = vpop.f32.mrb[0].mxu0
  %v3920 = vadd.f32 0.0, %v3919
  %v3921 = vpop.f32.mrb[0].mxu0
  %v3922 = vadd.f32 0.0, %v3921
  %3923 = vmatprep.mubr.f32.mxu0 0.0
  %3924 = vmatmul.mubr.f32.gmra.mrb[0].mxu0 %v3851
  %v3925 = vpop.f32.mrb[0].mxu0
  %v3926 = vadd.f32 0.0, %v3925
  %v3927 = vpop.f32.mrb[0].mxu0
  %v3928 = vadd.f32 0.0, %v3927
  %3929 = vdwg.mxu0
  %v3930 = vadd.f32 %v3793, %v3920
  %v3931 = vadd.f32 %v3794, %v3922
  %v3932 = vadd.f32 %v3795, %v3926
  %v3933 = vadd.f32 %v3796, %v3928
  %3934 = vset.pattern.permute.xlu0 2
  %3935 = vperm.xlu0 %3934, %v3637
  %v3936 = vpop.permute.xlu0 %3935
  %3938 = vset.pattern.permute.xlu0 2
  %3939 = vperm.xlu0 %3938, %v3642
  %v3940 = vpop.permute.xlu0 %3939
  %v3942 = vlaneseq
  %v3943 = vshrl.u32 %v3942, 7
  %v3944 = vsub.s32 2, %v3943
  %v3945 = vrot.slane %v3548, %v3944
  %v3946 = vadd.f32 %v3936, %v3945
  %v3947 = vadd.f32 %v3940, %v3945
  %vm3948 = vcmp.ge.f32.partialorder %v3946, 0.0
  %vm3949 = vcmp.ge.f32.partialorder %v3947, 0.0
  %v3950 = vmul.f32 %v3946, 0.2
  %v3951 = vmul.f32 %v3947, 0.2
  %v3952 = vsel %vm3948, %v3946, %v3950
  %v3953 = vsel %vm3949, %v3947, %v3951
  %v3954 = vsel %vm1616, %v3952, -1e+30
  %v3955 = vsel %vm1617, %v3953, -1e+30
  %v3956 = vsel %vm229, %v3954, -inf
  %3957 = vmax.xlane.f32.xlu0 %v3956
  %v3958 = vpop.xlane.xlu0 %3957
  %v3959 = vsel %vm229, %v3955, -inf
  %3960 = vmax.xlane.f32.xlu0 %v3959
  %v3961 = vpop.xlane.xlu0 %3960
  %v3962 = vsub.f32 %v3954, %v3958
  %v3963 = vsub.f32 %v3955, %v3961
  %v3964 = vmul.f32 %v3962, 1.442695
  %v3965 = vpow.pop %v3964
  %v3966 = vmul.f32 %v3963, 1.442695
  %v3967 = vpow.pop %v3966
  %v3968 = vsel %vm1616, %v3965, 0.0
  %v3969 = vsel %vm1617, %v3967, 0.0
  %v3970 = vsel %vm229, %v3968, 0.0
  %3971 = vadd.xlane.f32.xlu0 %v3970
  %v3972 = vpop.xlane.xlu0 %3971
  %v3973 = vsel %vm229, %v3969, 0.0
  %3974 = vadd.xlane.f32.xlu0 %v3973
  %v3975 = vpop.xlane.xlu0 %3974
  %v3976 = vrcp.pop %v3972
  %v3977 = vrcp.pop %v3975
  %v3978 = vmul.f32 %v3968, %v3976
  %v3979 = vmul.f32 %v3969, %v3977
  %v3980 = vsel %vm1003, %v3459, 0.0
  %v3981 = vsel %vm1004, %v3461, 0.0
  %v3982 = vsel %vm1003, %v3465, 0.0
  %v3983 = vsel %vm1004, %v3467, 0.0
  %v3985 = vsel %vm229, %v3978, 0
  %v3988 = vsel %vm229, %v3979, 0
  %3990 = vmatprep.subr.mxu0 %v3981
  %3991 = vmatpush1.msra.mxu0 %v3980
  %3992 = vmatprep.subr.mxu0 %v3983
  %3993 = vmatpush1.msra.mxu0 %v3982
  %3994 = vmatprep.subr.mxu0 0.0
  %3995 = vmatpush1.msra.mxu0 0.0
  %3996 = vmatprep.subr.mxu0 0.0
  %3997 = vmatpush1.msra.mxu0 0.0
  %3998 = vmatprep.subr.mxu0 0.0
  %3999 = vmatpush1.msra.mxu0 0.0
  %4000 = vmatprep.subr.mxu0 0.0
  %4001 = vmatpush1.msra.mxu0 0.0
  %4002 = vmatprep.subr.mxu0 0.0
  %4003 = vmatpush1.msra.mxu0 0.0
  %4004 = vmatprep.subr.mxu0 0.0
  %4005 = vmatpush1.msra.mxu0 0.0
  %4006 = vmatprep.subr.mxu0 0.0
  %4007 = vmatpush1.msra.mxu0 0.0
  %4008 = vmatprep.subr.mxu0 0.0
  %4009 = vmatpush1.msra.mxu0 0.0
  %4010 = vmatprep.subr.mxu0 0.0
  %4011 = vmatpush1.msra.mxu0 0.0
  %4012 = vmatprep.subr.mxu0 0.0
  %4013 = vmatpush1.msra.mxu0 0.0
  %4014 = vmatprep.subr.mxu0 0.0
  %4015 = vmatpush1.msra.mxu0 0.0
  %4016 = vmatprep.subr.mxu0 0.0
  %4017 = vmatpush1.msra.mxu0 0.0
  %4018 = vmatprep.subr.mxu0 0.0
  %4019 = vmatpush1.msra.mxu0 0.0
  %4020 = vmatprep.subr.mxu0 0.0
  %4021 = vmatpush1.msra.mxu0 0.0
  %4022 = vmatprep.subr.mxu0 0.0
  %4023 = vmatpush1.msra.mxu0 0.0
  %4024 = vmatprep.subr.mxu0 0.0
  %4025 = vmatpush1.msra.mxu0 0.0
  %4026 = vmatprep.subr.mxu0 0.0
  %4027 = vmatpush1.msra.mxu0 0.0
  %4028 = vmatprep.subr.mxu0 0.0
  %4029 = vmatpush1.msra.mxu0 0.0
  %4030 = vmatprep.subr.mxu0 0.0
  %4031 = vmatpush1.msra.mxu0 0.0
  %4032 = vmatprep.subr.mxu0 0.0
  %4033 = vmatpush1.msra.mxu0 0.0
  %4034 = vmatprep.subr.mxu0 0.0
  %4035 = vmatpush1.msra.mxu0 0.0
  %4036 = vmatprep.subr.mxu0 0.0
  %4037 = vmatpush1.msra.mxu0 0.0
  %4038 = vmatprep.subr.mxu0 0.0
  %4039 = vmatpush1.msra.mxu0 0.0
  %4040 = vmatprep.subr.mxu0 0.0
  %4041 = vmatpush1.msra.mxu0 0.0
  %4042 = vmatprep.subr.mxu0 0.0
  %4043 = vmatpush1.msra.mxu0 0.0
  %4044 = vmatprep.subr.mxu0 0.0
  %4045 = vmatpush1.msra.mxu0 0.0
  %4046 = vmatprep.subr.mxu0 0.0
  %4047 = vmatpush1.msra.mxu0 0.0
  %4048 = vmatprep.subr.mxu0 0.0
  %4049 = vmatpush1.msra.mxu0 0.0
  %4050 = vmatprep.subr.mxu0 0.0
  %4051 = vmatpush1.msra.mxu0 0.0
  %4052 = vmatprep.subr.mxu0 0.0
  %4053 = vmatpush1.msra.mxu0 0.0
  %4054 = vmatprep.mubr.f32.mxu0 0.0
  %4055 = vmatmul.mubr.f32.gmra.mrb[0].mxu0 %v3985
  %v4056 = vpop.f32.mrb[0].mxu0
  %v4057 = vadd.f32 0.0, %v4056
  %v4058 = vpop.f32.mrb[0].mxu0
  %v4059 = vadd.f32 0.0, %v4058
  %4060 = vmatprep.mubr.f32.mxu0 0.0
  %4061 = vmatmul.mubr.f32.gmra.mrb[0].mxu0 %v3988
  %v4062 = vpop.f32.mrb[0].mxu0
  %v4063 = vadd.f32 0.0, %v4062
  %v4064 = vpop.f32.mrb[0].mxu0
  %v4065 = vadd.f32 0.0, %v4064
  %4066 = vdwg.mxu0
  %v4067 = vadd.f32 %v3930, %v4057
  %v4068 = vadd.f32 %v3931, %v4059
  %v4069 = vadd.f32 %v3932, %v4063
  %v4070 = vadd.f32 %v3933, %v4065
  %4071 = vset.pattern.permute.xlu0 3
  %4072 = vperm.xlu0 %4071, %v3637
  %v4073 = vpop.permute.xlu0 %4072
  %4075 = vset.pattern.permute.xlu0 3
  %4076 = vperm.xlu0 %4075, %v3642
  %v4077 = vpop.permute.xlu0 %4076
  %v4079 = vlaneseq
  %v4080 = vshrl.u32 %v4079, 7
  %v4081 = vsub.s32 3, %v4080
  %v4082 = vrot.slane %v3548, %v4081
  %v4083 = vadd.f32 %v4073, %v4082
  %v4084 = vadd.f32 %v4077, %v4082
  %vm4085 = vcmp.ge.f32.partialorder %v4083, 0.0
  %vm4086 = vcmp.ge.f32.partialorder %v4084, 0.0
  %v4087 = vmul.f32 %v4083, 0.2
  %v4088 = vmul.f32 %v4084, 0.2
  %v4089 = vsel %vm4085, %v4083, %v4087
  %v4090 = vsel %vm4086, %v4084, %v4088
  %v4091 = vsel %vm1616, %v4089, -1e+30
  %v4092 = vsel %vm1617, %v4090, -1e+30
  %v4093 = vsel %vm229, %v4091, -inf
  %4094 = vmax.xlane.f32.xlu0 %v4093
  %v4095 = vpop.xlane.xlu0 %4094
  %v4096 = vsel %vm229, %v4092, -inf
  %4097 = vmax.xlane.f32.xlu0 %v4096
  %v4098 = vpop.xlane.xlu0 %4097
  %v4099 = vsub.f32 %v4091, %v4095
  %v4100 = vsub.f32 %v4092, %v4098
  %v4101 = vmul.f32 %v4099, 1.442695
  %v4102 = vpow.pop %v4101
  %v4103 = vmul.f32 %v4100, 1.442695
  %v4104 = vpow.pop %v4103
  %v4105 = vsel %vm1616, %v4102, 0.0
  %v4106 = vsel %vm1617, %v4104, 0.0
  %v4107 = vsel %vm229, %v4105, 0.0
  %4108 = vadd.xlane.f32.xlu0 %v4107
  %v4109 = vpop.xlane.xlu0 %4108
  %v4110 = vsel %vm229, %v4106, 0.0
  %4111 = vadd.xlane.f32.xlu0 %v4110
  %v4112 = vpop.xlane.xlu0 %4111
  %v4113 = vrcp.pop %v4109
  %v4114 = vrcp.pop %v4112
  %v4115 = vmul.f32 %v4105, %v4113
  %v4116 = vmul.f32 %v4106, %v4114
  %v4117 = vsel %vm1144, %v3459, 0.0
  %v4118 = vsel %vm1145, %v3461, 0.0
  %v4119 = vsel %vm1144, %v3465, 0.0
  %v4120 = vsel %vm1145, %v3467, 0.0
  %v4122 = vsel %vm229, %v4115, 0
  %v4125 = vsel %vm229, %v4116, 0
  %4127 = vmatprep.subr.mxu0 %v4118
  %4128 = vmatpush1.msra.mxu0 %v4117
  %4129 = vmatprep.subr.mxu0 %v4120
  %4130 = vmatpush1.msra.mxu0 %v4119
  %4131 = vmatprep.subr.mxu0 0.0
  %4132 = vmatpush1.msra.mxu0 0.0
  %4133 = vmatprep.subr.mxu0 0.0
  %4134 = vmatpush1.msra.mxu0 0.0
  %4135 = vmatprep.subr.mxu0 0.0
  %4136 = vmatpush1.msra.mxu0 0.0
  %4137 = vmatprep.subr.mxu0 0.0
  %4138 = vmatpush1.msra.mxu0 0.0
  %4139 = vmatprep.subr.mxu0 0.0
  %4140 = vmatpush1.msra.mxu0 0.0
  %4141 = vmatprep.subr.mxu0 0.0
  %4142 = vmatpush1.msra.mxu0 0.0
  %4143 = vmatprep.subr.mxu0 0.0
  %4144 = vmatpush1.msra.mxu0 0.0
  %4145 = vmatprep.subr.mxu0 0.0
  %4146 = vmatpush1.msra.mxu0 0.0
  %4147 = vmatprep.subr.mxu0 0.0
  %4148 = vmatpush1.msra.mxu0 0.0
  %4149 = vmatprep.subr.mxu0 0.0
  %4150 = vmatpush1.msra.mxu0 0.0
  %4151 = vmatprep.subr.mxu0 0.0
  %4152 = vmatpush1.msra.mxu0 0.0
  %4153 = vmatprep.subr.mxu0 0.0
  %4154 = vmatpush1.msra.mxu0 0.0
  %4155 = vmatprep.subr.mxu0 0.0
  %4156 = vmatpush1.msra.mxu0 0.0
  %4157 = vmatprep.subr.mxu0 0.0
  %4158 = vmatpush1.msra.mxu0 0.0
  %4159 = vmatprep.subr.mxu0 0.0
  %4160 = vmatpush1.msra.mxu0 0.0
  %4161 = vmatprep.subr.mxu0 0.0
  %4162 = vmatpush1.msra.mxu0 0.0
  %4163 = vmatprep.subr.mxu0 0.0
  %4164 = vmatpush1.msra.mxu0 0.0
  %4165 = vmatprep.subr.mxu0 0.0
  %4166 = vmatpush1.msra.mxu0 0.0
  %4167 = vmatprep.subr.mxu0 0.0
  %4168 = vmatpush1.msra.mxu0 0.0
  %4169 = vmatprep.subr.mxu0 0.0
  %4170 = vmatpush1.msra.mxu0 0.0
  %4171 = vmatprep.subr.mxu0 0.0
  %4172 = vmatpush1.msra.mxu0 0.0
  %4173 = vmatprep.subr.mxu0 0.0
  %4174 = vmatpush1.msra.mxu0 0.0
  %4175 = vmatprep.subr.mxu0 0.0
  %4176 = vmatpush1.msra.mxu0 0.0
  %4177 = vmatprep.subr.mxu0 0.0
  %4178 = vmatpush1.msra.mxu0 0.0
  %4179 = vmatprep.subr.mxu0 0.0
  %4180 = vmatpush1.msra.mxu0 0.0
  %4181 = vmatprep.subr.mxu0 0.0
  %4182 = vmatpush1.msra.mxu0 0.0
  %4183 = vmatprep.subr.mxu0 0.0
  %4184 = vmatpush1.msra.mxu0 0.0
  %4185 = vmatprep.subr.mxu0 0.0
  %4186 = vmatpush1.msra.mxu0 0.0
  %4187 = vmatprep.subr.mxu0 0.0
  %4188 = vmatpush1.msra.mxu0 0.0
  %4189 = vmatprep.subr.mxu0 0.0
  %4190 = vmatpush1.msra.mxu0 0.0
  %4191 = vmatprep.mubr.f32.mxu0 0.0
  %4192 = vmatmul.mubr.f32.gmra.mrb[0].mxu0 %v4122
  %v4193 = vpop.f32.mrb[0].mxu0
  %v4194 = vadd.f32 0.0, %v4193
  %v4195 = vpop.f32.mrb[0].mxu0
  %v4196 = vadd.f32 0.0, %v4195
  %4197 = vmatprep.mubr.f32.mxu0 0.0
  %4198 = vmatmul.mubr.f32.gmra.mrb[0].mxu0 %v4125
  %v4199 = vpop.f32.mrb[0].mxu0
  %v4200 = vadd.f32 0.0, %v4199
  %v4201 = vpop.f32.mrb[0].mxu0
  %v4202 = vadd.f32 0.0, %v4201
  %4203 = vdwg.mxu0
  %v4204 = vadd.f32 %v4067, %v4194
  %v4205 = vadd.f32 %v4068, %v4196
  %v4206 = vadd.f32 %v4069, %v4200
  %v4207 = vadd.f32 %v4070, %v4202
  %vm4208 = vcmp.gt.f32.partialorder %v4204, 0.0
  %vm4209 = vcmp.gt.f32.partialorder %v4205, 0.0
  %vm4210 = vcmp.gt.f32.partialorder %v4206, 0.0
  %vm4211 = vcmp.gt.f32.partialorder %v4207, 0.0
  %v4212 = vmin.f32 %v4204, 0.0
  %v4213 = vmin.f32 %v4205, 0.0
  %v4214 = vmin.f32 %v4206, 0.0
  %v4215 = vmin.f32 %v4207, 0.0
  %v4216 = vmul.f32 %v4212, 1.442695
  %v4217 = vpow.pop %v4216
  %v4218 = vmul.f32 %v4213, 1.442695
  %v4219 = vpow.pop %v4218
  %v4220 = vmul.f32 %v4214, 1.442695
  %v4221 = vpow.pop %v4220
  %v4222 = vmul.f32 %v4215, 1.442695
  %v4223 = vpow.pop %v4222
  %v4224 = vsub.f32 %v4217, 1.0
  %v4225 = vsub.f32 %v4219, 1.0
  %v4226 = vsub.f32 %v4221, 1.0
  %v4227 = vsub.f32 %v4223, 1.0
  %v4228 = vsel %vm4208, %v4204, %v4224
  %v4229 = vsel %vm4209, %v4205, %v4225
  %v4230 = vsel %vm4210, %v4206, %v4226
  %v4231 = vsel %vm4211, %v4207, %v4227
  %s4232 = scalar_lea.vmem %s10, 144
  %v4233 = vld [vmem:[%s4232] sm:$0xff]
  %v4234 = vld [vmem:[%s4232 + $0x8] sm:$0xff]
  %v4235 = vld [vmem:[%s4232 + $0x10] sm:$0xff]
  %v4236 = vld [vmem:[%s4232 + $0x18] sm:$0xff]
  %v4237 = vld [vmem:[%s4232 + $0x20] sm:$0xff]
  %v4238 = vld [vmem:[%s4232 + $0x28] sm:$0xff]
  %v4239 = vld [vmem:[%s4232 + $0x30] sm:$0xff]
  %v4240 = vld [vmem:[%s4232 + $0x38] sm:$0xff]
  %v4241 = vld [vmem:[%s4232 + $0x40] sm:$0xff]
  %v4242 = vld [vmem:[%s4232 + $0x48] sm:$0xff]
  %v4243 = vld [vmem:[%s4232 + $0x50] sm:$0xff]
  %v4244 = vld [vmem:[%s4232 + $0x58] sm:$0xff]
  %v4245 = vld [vmem:[%s4232 + $0x60] sm:$0xff]
  %v4246 = vld [vmem:[%s4232 + $0x68] sm:$0xff]
  %v4247 = vld [vmem:[%s4232 + $0x70] sm:$0xff]
  %v4248 = vld [vmem:[%s4232 + $0x78] sm:$0xff]
  %v4249 = vld [vmem:[%s4232 + $0x80] sm:$0xff]
  %v4250 = vld [vmem:[%s4232 + $0x88] sm:$0xff]
  %v4251 = vld [vmem:[%s14 + $0x4] sm:$0x1]
  %v4252 = vld [vmem:[%s14 + $0x5] sm:$0x1]
  %v4253 = vlaneseq
  %v4254 = vshrl.u32 %v4253, 7
  %v4255 = vsub.s32 0, %v4254
  %v4256 = vrot.slane %v4251, %v4255
  %v4258 = vsel %vm229, %v3352, 0
  %v4261 = vsel %vm229, %v3354, 0
  %4263 = vmatprep.subr.mxu0 0.0
  %4264 = vmatpush1.msra.mxu0 %v4233
  %4265 = vmatprep.subr.mxu0 0.0
  %4266 = vmatpush1.msra.mxu0 %v4234
  %4267 = vmatprep.subr.mxu0 0.0
  %4268 = vmatpush1.msra.mxu0 %v4235
  %4269 = vmatprep.subr.mxu0 0.0
  %4270 = vmatpush1.msra.mxu0 %v4236
  %4271 = vmatprep.subr.mxu0 0.0
  %4272 = vmatpush1.msra.mxu0 %v4237
  %4273 = vmatprep.subr.mxu0 0.0
  %4274 = vmatpush1.msra.mxu0 %v4238
  %4275 = vmatprep.subr.mxu0 0.0
  %4276 = vmatpush1.msra.mxu0 %v4239
  %4277 = vmatprep.subr.mxu0 0.0
  %4278 = vmatpush1.msra.mxu0 %v4240
  %4279 = vmatprep.subr.mxu0 0.0
  %4280 = vmatpush1.msra.mxu0 %v4241
  %4281 = vmatprep.subr.mxu0 0.0
  %4282 = vmatpush1.msra.mxu0 %v4242
  %4283 = vmatprep.subr.mxu0 0.0
  %4284 = vmatpush1.msra.mxu0 %v4243
  %4285 = vmatprep.subr.mxu0 0.0
  %4286 = vmatpush1.msra.mxu0 %v4244
  %4287 = vmatprep.subr.mxu0 0.0
  %4288 = vmatpush1.msra.mxu0 %v4245
  %4289 = vmatprep.subr.mxu0 0.0
  %4290 = vmatpush1.msra.mxu0 %v4246
  %4291 = vmatprep.subr.mxu0 0.0
  %4292 = vmatpush1.msra.mxu0 %v4247
  %4293 = vmatprep.subr.mxu0 0.0
  %4294 = vmatpush1.msra.mxu0 %v4248
  %4295 = vmatprep.subr.mxu0 0.0
  %4296 = vmatpush1.msra.mxu0 %v4249
  %4297 = vmatprep.subr.mxu0 0.0
  %4298 = vmatpush1.msra.mxu0 %v4250
  %4299 = vmatprep.subr.mxu0 0.0
  %4300 = vmatpush1.msra.mxu0 0.0
  %4301 = vmatprep.subr.mxu0 0.0
  %4302 = vmatpush1.msra.mxu0 0.0
  %4303 = vmatprep.subr.mxu0 0.0
  %4304 = vmatpush1.msra.mxu0 0.0
  %4305 = vmatprep.subr.mxu0 0.0
  %4306 = vmatpush1.msra.mxu0 0.0
  %4307 = vmatprep.subr.mxu0 0.0
  %4308 = vmatpush1.msra.mxu0 0.0
  %4309 = vmatprep.subr.mxu0 0.0
  %4310 = vmatpush1.msra.mxu0 0.0
  %4311 = vmatprep.subr.mxu0 0.0
  %4312 = vmatpush1.msra.mxu0 0.0
  %4313 = vmatprep.subr.mxu0 0.0
  %4314 = vmatpush1.msra.mxu0 0.0
  %4315 = vmatprep.subr.mxu0 0.0
  %4316 = vmatpush1.msra.mxu0 0.0
  %4317 = vmatprep.subr.mxu0 0.0
  %4318 = vmatpush1.msra.mxu0 0.0
  %4319 = vmatprep.subr.mxu0 0.0
  %4320 = vmatpush1.msra.mxu0 0.0
  %4321 = vmatprep.subr.mxu0 0.0
  %4322 = vmatpush1.msra.mxu0 0.0
  %4323 = vmatprep.subr.mxu0 0.0
  %4324 = vmatpush1.msra.mxu0 0.0
  %4325 = vmatprep.subr.mxu0 0.0
  %4326 = vmatpush1.msra.mxu0 0.0
  %4327 = vmatprep.mubr.f32.mxu0 %v4258
  %4328 = vmatmul.mubr.f32.gmra.mrb[0].mxu0 %v3351
  %v4329 = vpop.f32.mrb[0].mxu0
  %v4330 = vadd.f32 %v4256, %v4329
  %v4331 = vpop.f32.mrb[0].mxu0
  %4332 = vmatprep.mubr.f32.mxu0 %v4261
  %4333 = vmatmul.mubr.f32.gmra.mrb[0].mxu0 %v3353
  %v4334 = vpop.f32.mrb[0].mxu0
  %v4335 = vadd.f32 %v4256, %v4334
  %v4336 = vpop.f32.mrb[0].mxu0
  %4337 = vdwg.mxu0
  %v4338 = vtanh.pop %v4330
  %v4339 = vtanh.pop %v4335
  %v4340 = vlaneseq
  %v4341 = vshrl.u32 %v4340, 7
  %v4342 = vsub.s32 0, %v4341
  %v4343 = vrot.slane %v4252, %v4342
  %v4344 = vmul.f32 %v4338, %v4343
  %v4345 = vmul.f32 %v4339, %v4343
  %4346 = vadd.xlane.f32.xlu0 %v4344
  %v4347 = vpop.xlane.xlu0 %4346
  %4348 = vadd.xlane.f32.xlu0 %v4345
  %v4349 = vpop.xlane.xlu0 %4348
  %v4350 = vsel %vm2322, %v4347, 0.0
  %v4351 = vsel %vm2322, %v4349, 0.0
  %v4352 = vadd.f32 %v4350, %v4351
  %4353 = vadd.xlane.f32.xlu0 %v4352
  %v4354 = vpop.xlane.xlu0 %4353
  %v4355 = vrot.slane %v4354, 4
  %v4356 = vadd.f32 %v4354, %v4355
  %v4357 = vrot.slane %v4356, 2
  %v4358 = vadd.f32 %v4356, %v4357
  %v4359 = vrot.slane %v4358, 1
  %v4360 = vadd.f32 %v4358, %v4359
  %s4361 = vtos %v4360
  %v4362 = vrcp.pop 16.0
  %s4363 = vtos %v4362
  %s4364 = smul.f32 %s4361, %s4363
  %v4366 = vsel %vm229, %v4229, 0
  %v4369 = vsel %vm229, %v4231, 0
  %4371 = vmatprep.subr.mxu0 0.0
  %4372 = vmatpush1.msra.mxu0 %v4233
  %4373 = vmatprep.subr.mxu0 0.0
  %4374 = vmatpush1.msra.mxu0 %v4234
  %4375 = vmatprep.subr.mxu0 0.0
  %4376 = vmatpush1.msra.mxu0 %v4235
  %4377 = vmatprep.subr.mxu0 0.0
  %4378 = vmatpush1.msra.mxu0 %v4236
  %4379 = vmatprep.subr.mxu0 0.0
  %4380 = vmatpush1.msra.mxu0 %v4237
  %4381 = vmatprep.subr.mxu0 0.0
  %4382 = vmatpush1.msra.mxu0 %v4238
  %4383 = vmatprep.subr.mxu0 0.0
  %4384 = vmatpush1.msra.mxu0 %v4239
  %4385 = vmatprep.subr.mxu0 0.0
  %4386 = vmatpush1.msra.mxu0 %v4240
  %4387 = vmatprep.subr.mxu0 0.0
  %4388 = vmatpush1.msra.mxu0 %v4241
  %4389 = vmatprep.subr.mxu0 0.0
  %4390 = vmatpush1.msra.mxu0 %v4242
  %4391 = vmatprep.subr.mxu0 0.0
  %4392 = vmatpush1.msra.mxu0 %v4243
  %4393 = vmatprep.subr.mxu0 0.0
  %4394 = vmatpush1.msra.mxu0 %v4244
  %4395 = vmatprep.subr.mxu0 0.0
  %4396 = vmatpush1.msra.mxu0 %v4245
  %4397 = vmatprep.subr.mxu0 0.0
  %4398 = vmatpush1.msra.mxu0 %v4246
  %4399 = vmatprep.subr.mxu0 0.0
  %4400 = vmatpush1.msra.mxu0 %v4247
  %4401 = vmatprep.subr.mxu0 0.0
  %4402 = vmatpush1.msra.mxu0 %v4248
  %4403 = vmatprep.subr.mxu0 0.0
  %4404 = vmatpush1.msra.mxu0 %v4249
  %4405 = vmatprep.subr.mxu0 0.0
  %4406 = vmatpush1.msra.mxu0 %v4250
  %4407 = vmatprep.subr.mxu0 0.0
  %4408 = vmatpush1.msra.mxu0 0.0
  %4409 = vmatprep.subr.mxu0 0.0
  %4410 = vmatpush1.msra.mxu0 0.0
  %4411 = vmatprep.subr.mxu0 0.0
  %4412 = vmatpush1.msra.mxu0 0.0
  %4413 = vmatprep.subr.mxu0 0.0
  %4414 = vmatpush1.msra.mxu0 0.0
  %4415 = vmatprep.subr.mxu0 0.0
  %4416 = vmatpush1.msra.mxu0 0.0
  %4417 = vmatprep.subr.mxu0 0.0
  %4418 = vmatpush1.msra.mxu0 0.0
  %4419 = vmatprep.subr.mxu0 0.0
  %4420 = vmatpush1.msra.mxu0 0.0
  %4421 = vmatprep.subr.mxu0 0.0
  %4422 = vmatpush1.msra.mxu0 0.0
  %4423 = vmatprep.subr.mxu0 0.0
  %4424 = vmatpush1.msra.mxu0 0.0
  %4425 = vmatprep.subr.mxu0 0.0
  %4426 = vmatpush1.msra.mxu0 0.0
  %4427 = vmatprep.subr.mxu0 0.0
  %4428 = vmatpush1.msra.mxu0 0.0
  %4429 = vmatprep.subr.mxu0 0.0
  %4430 = vmatpush1.msra.mxu0 0.0
  %4431 = vmatprep.subr.mxu0 0.0
  %4432 = vmatpush1.msra.mxu0 0.0
  %4433 = vmatprep.subr.mxu0 0.0
  %4434 = vmatpush1.msra.mxu0 0.0
  %4435 = vmatprep.mubr.f32.mxu0 %v4366
  %4436 = vmatmul.mubr.f32.gmra.mrb[0].mxu0 %v4228
  %v4437 = vpop.f32.mrb[0].mxu0
  %v4438 = vadd.f32 %v4256, %v4437
  %v4439 = vpop.f32.mrb[0].mxu0
  %4440 = vmatprep.mubr.f32.mxu0 %v4369
  %4441 = vmatmul.mubr.f32.gmra.mrb[0].mxu0 %v4230
  %v4442 = vpop.f32.mrb[0].mxu0
  %v4443 = vadd.f32 %v4256, %v4442
  %v4444 = vpop.f32.mrb[0].mxu0
  %4445 = vdwg.mxu0
  %v4446 = vtanh.pop %v4438
  %v4447 = vtanh.pop %v4443
  %v4448 = vmul.f32 %v4446, %v4343
  %v4449 = vmul.f32 %v4447, %v4343
  %4450 = vadd.xlane.f32.xlu0 %v4448
  %v4451 = vpop.xlane.xlu0 %4450
  %4452 = vadd.xlane.f32.xlu0 %v4449
  %v4453 = vpop.xlane.xlu0 %4452
  %v4454 = vsel %vm2322, %v4451, 0.0
  %v4455 = vsel %vm2322, %v4453, 0.0
  %v4456 = vadd.f32 %v4454, %v4455
  %4457 = vadd.xlane.f32.xlu0 %v4456
  %v4458 = vpop.xlane.xlu0 %4457
  %v4459 = vrot.slane %v4458, 4
  %v4460 = vadd.f32 %v4458, %v4459
  %v4461 = vrot.slane %v4460, 2
  %v4462 = vadd.f32 %v4460, %v4461
  %v4463 = vrot.slane %v4462, 1
  %v4464 = vadd.f32 %v4462, %v4463
  %s4465 = vtos %v4464
  %v4466 = vrcp.pop 16.0
  %s4467 = vtos %v4466
  %s4468 = smul.f32 %s4465, %s4467
  %s4469 = smax.f32 %s4364, %s4468
  %s4470 = ssub.f32 %s4364, %s4469
  %v4471 = vstv %s4470
  %v4472 = vmul.f32 %v4471, 1.442695
  %v4473 = vpow.pop %v4472
  %s4474 = vtos %v4473
  %s4475 = ssub.f32 %s4468, %s4469
  %v4476 = vstv %s4475
  %v4477 = vmul.f32 %v4476, 1.442695
  %v4478 = vpow.pop %v4477
  %s4479 = vtos %v4478
  %s4480 = sadd.f32 %s4474, %s4479
  %v4481 = vstv %s4480
  %v4482 = vrcp.pop %v4481
  %s4483 = vtos %v4482
  %s4484 = smul.f32 %s4474, %s4483
  %v4485 = vstv %s4484
  %v4486 = vmul.f32 %v4485, %v3351
  %v4487 = vmul.f32 %v4485, %v3352
  %v4488 = vmul.f32 %v4485, %v3353
  %v4489 = vmul.f32 %v4485, %v3354
  %s4490 = smul.f32 %s4479, %s4483
  %v4491 = vstv %s4490
  %v4492 = vmul.f32 %v4491, %v4228
  %v4493 = vmul.f32 %v4491, %v4229
  %v4494 = vmul.f32 %v4491, %v4230
  %v4495 = vmul.f32 %v4491, %v4231
  %v4496 = vadd.f32 %v4486, %v4492
  %v4497 = vadd.f32 %v4487, %v4493
  %v4498 = vadd.f32 %v4488, %v4494
  %v4499 = vadd.f32 %v4489, %v4495
  %v4500 = vld [vmem:[%s11] sm:$0xff]
  %v4501 = vld [vmem:[%s11 + $0x8] sm:$0xff]
  %v4502 = vld [vmem:[%s11 + $0x10] sm:$0xff]
  %v4503 = vld [vmem:[%s11 + $0x18] sm:$0xff]
  %v4504 = vld [vmem:[%s11 + $0x20] sm:$0xff]
  %v4505 = vld [vmem:[%s11 + $0x28] sm:$0xff]
  %v4506 = vld [vmem:[%s11 + $0x30] sm:$0xff]
  %v4507 = vld [vmem:[%s11 + $0x38] sm:$0xff]
  %v4508 = vld [vmem:[%s11 + $0x40] sm:$0xff]
  %v4509 = vld [vmem:[%s11 + $0x48] sm:$0xff]
  %v4510 = vld [vmem:[%s11 + $0x50] sm:$0xff]
  %v4511 = vld [vmem:[%s11 + $0x58] sm:$0xff]
  %v4512 = vld [vmem:[%s11 + $0x60] sm:$0xff]
  %v4513 = vld [vmem:[%s11 + $0x68] sm:$0xff]
  %v4514 = vld [vmem:[%s11 + $0x70] sm:$0xff]
  %v4515 = vld [vmem:[%s11 + $0x78] sm:$0xff]
  %v4516 = vld [vmem:[%s11 + $0x80] sm:$0xff]
  %v4517 = vld [vmem:[%s11 + $0x88] sm:$0xff]
  %v4518 = vld [vmem:[%s14 + $0x6] sm:$0x1]
  %v4519 = vlaneseq
  %v4520 = vshrl.u32 %v4519, 7
  %v4521 = vsub.s32 0, %v4520
  %v4522 = vrot.slane %v4518, %v4521
  %v4524 = vsel %vm229, %v4497, 0
  %v4527 = vsel %vm229, %v4499, 0
  %4529 = vmatprep.subr.mxu0 0.0
  %4530 = vmatpush1.msra.mxu0 %v4500
  %4531 = vmatprep.subr.mxu0 0.0
  %4532 = vmatpush1.msra.mxu0 %v4501
  %4533 = vmatprep.subr.mxu0 0.0
  %4534 = vmatpush1.msra.mxu0 %v4502
  %4535 = vmatprep.subr.mxu0 0.0
  %4536 = vmatpush1.msra.mxu0 %v4503
  %4537 = vmatprep.subr.mxu0 0.0
  %4538 = vmatpush1.msra.mxu0 %v4504
  %4539 = vmatprep.subr.mxu0 0.0
  %4540 = vmatpush1.msra.mxu0 %v4505
  %4541 = vmatprep.subr.mxu0 0.0
  %4542 = vmatpush1.msra.mxu0 %v4506
  %4543 = vmatprep.subr.mxu0 0.0
  %4544 = vmatpush1.msra.mxu0 %v4507
  %4545 = vmatprep.subr.mxu0 0.0
  %4546 = vmatpush1.msra.mxu0 %v4508
  %4547 = vmatprep.subr.mxu0 0.0
  %4548 = vmatpush1.msra.mxu0 %v4509
  %4549 = vmatprep.subr.mxu0 0.0
  %4550 = vmatpush1.msra.mxu0 %v4510
  %4551 = vmatprep.subr.mxu0 0.0
  %4552 = vmatpush1.msra.mxu0 %v4511
  %4553 = vmatprep.subr.mxu0 0.0
  %4554 = vmatpush1.msra.mxu0 %v4512
  %4555 = vmatprep.subr.mxu0 0.0
  %4556 = vmatpush1.msra.mxu0 %v4513
  %4557 = vmatprep.subr.mxu0 0.0
  %4558 = vmatpush1.msra.mxu0 %v4514
  %4559 = vmatprep.subr.mxu0 0.0
  %4560 = vmatpush1.msra.mxu0 %v4515
  %4561 = vmatprep.subr.mxu0 0.0
  %4562 = vmatpush1.msra.mxu0 %v4516
  %4563 = vmatprep.subr.mxu0 0.0
  %4564 = vmatpush1.msra.mxu0 %v4517
  %4565 = vmatprep.subr.mxu0 0.0
  %4566 = vmatpush1.msra.mxu0 0.0
  %4567 = vmatprep.subr.mxu0 0.0
  %4568 = vmatpush1.msra.mxu0 0.0
  %4569 = vmatprep.subr.mxu0 0.0
  %4570 = vmatpush1.msra.mxu0 0.0
  %4571 = vmatprep.subr.mxu0 0.0
  %4572 = vmatpush1.msra.mxu0 0.0
  %4573 = vmatprep.subr.mxu0 0.0
  %4574 = vmatpush1.msra.mxu0 0.0
  %4575 = vmatprep.subr.mxu0 0.0
  %4576 = vmatpush1.msra.mxu0 0.0
  %4577 = vmatprep.subr.mxu0 0.0
  %4578 = vmatpush1.msra.mxu0 0.0
  %4579 = vmatprep.subr.mxu0 0.0
  %4580 = vmatpush1.msra.mxu0 0.0
  %4581 = vmatprep.subr.mxu0 0.0
  %4582 = vmatpush1.msra.mxu0 0.0
  %4583 = vmatprep.subr.mxu0 0.0
  %4584 = vmatpush1.msra.mxu0 0.0
  %4585 = vmatprep.subr.mxu0 0.0
  %4586 = vmatpush1.msra.mxu0 0.0
  %4587 = vmatprep.subr.mxu0 0.0
  %4588 = vmatpush1.msra.mxu0 0.0
  %4589 = vmatprep.subr.mxu0 0.0
  %4590 = vmatpush1.msra.mxu0 0.0
  %4591 = vmatprep.subr.mxu0 0.0
  %4592 = vmatpush1.msra.mxu0 0.0
  %4593 = vmatprep.mubr.f32.mxu0 %v4524
  %4594 = vmatmul.mubr.f32.gmra.mrb[0].mxu0 %v4496
  %v4595 = vpop.f32.mrb[0].mxu0
  %v4596 = vadd.f32 %v4522, %v4595
  %v4597 = vpop.f32.mrb[0].mxu0
  %4598 = vmatprep.mubr.f32.mxu0 %v4527
  %4599 = vmatmul.mubr.f32.gmra.mrb[0].mxu0 %v4498
  %v4600 = vpop.f32.mrb[0].mxu0
  %v4601 = vadd.f32 %v4522, %v4600
  %v4602 = vpop.f32.mrb[0].mxu0
  %4603 = vdwg.mxu0
  %s4604 = scalar_lea.vmem %s0, 32
  %v4605 = vld [vmem:[%s4604] sm:$0xff]
  %v4606 = vld [vmem:[%s4604 + $0x8] sm:$0xff]
  %vm4607 = vcmp.gt.f32.partialorder %v4605, 0.5
  %vm4608 = vcmp.gt.f32.partialorder %v4606, 0.5
  %v4609 = vsel %vm4607, %v680, -1e+30
  %v4610 = vsel %vm4608, %v681, -1e+30
  %v4611 = vsel %vm229, %v4609, -inf
  %4612 = vmax.xlane.f32.xlu0 %v4611
  %v4613 = vpop.xlane.xlu0 %4612
  %v4614 = vsel %vm229, %v4610, -inf
  %4615 = vmax.xlane.f32.xlu0 %v4614
  %v4616 = vpop.xlane.xlu0 %4615
  %v4617 = vsub.f32 %v4609, %v4613
  %v4618 = vsub.f32 %v4610, %v4616
  %v4619 = vmul.f32 %v4617, 1.442695
  %v4620 = vpow.pop %v4619
  %v4621 = vmul.f32 %v4618, 1.442695
  %v4622 = vpow.pop %v4621
  %v4623 = vsel %vm4607, %v4620, 0.0
  %v4624 = vsel %vm4608, %v4622, 0.0
  %v4625 = vsel %vm229, %v4623, 0.0
  %4626 = vadd.xlane.f32.xlu0 %v4625
  %v4627 = vpop.xlane.xlu0 %4626
  %v4628 = vsel %vm229, %v4624, 0.0
  %4629 = vadd.xlane.f32.xlu0 %v4628
  %v4630 = vpop.xlane.xlu0 %4629
  %v4631 = vrcp.pop %v4627
  %v4632 = vrcp.pop %v4630
  %v4633 = vmul.f32 %v4623, %v4631
  %v4634 = vmul.f32 %v4624, %v4632
  %v4636 = vsel %vm229, %v4633, 0
  %v4639 = vsel %vm229, %v4634, 0
  %4641 = vmatprep.subr.mxu0 %v713
  %4642 = vmatpush1.msra.mxu0 %v712
  %4643 = vmatprep.subr.mxu0 %v715
  %4644 = vmatpush1.msra.mxu0 %v714
  %4645 = vmatprep.subr.mxu0 0.0
  %4646 = vmatpush1.msra.mxu0 0.0
  %4647 = vmatprep.subr.mxu0 0.0
  %4648 = vmatpush1.msra.mxu0 0.0
  %4649 = vmatprep.subr.mxu0 0.0
  %4650 = vmatpush1.msra.mxu0 0.0
  %4651 = vmatprep.subr.mxu0 0.0
  %4652 = vmatpush1.msra.mxu0 0.0
  %4653 = vmatprep.subr.mxu0 0.0
  %4654 = vmatpush1.msra.mxu0 0.0
  %4655 = vmatprep.subr.mxu0 0.0
  %4656 = vmatpush1.msra.mxu0 0.0
  %4657 = vmatprep.subr.mxu0 0.0
  %4658 = vmatpush1.msra.mxu0 0.0
  %4659 = vmatprep.subr.mxu0 0.0
  %4660 = vmatpush1.msra.mxu0 0.0
  %4661 = vmatprep.subr.mxu0 0.0
  %4662 = vmatpush1.msra.mxu0 0.0
  %4663 = vmatprep.subr.mxu0 0.0
  %4664 = vmatpush1.msra.mxu0 0.0
  %4665 = vmatprep.subr.mxu0 0.0
  %4666 = vmatpush1.msra.mxu0 0.0
  %4667 = vmatprep.subr.mxu0 0.0
  %4668 = vmatpush1.msra.mxu0 0.0
  %4669 = vmatprep.subr.mxu0 0.0
  %4670 = vmatpush1.msra.mxu0 0.0
  %4671 = vmatprep.subr.mxu0 0.0
  %4672 = vmatpush1.msra.mxu0 0.0
  %4673 = vmatprep.subr.mxu0 0.0
  %4674 = vmatpush1.msra.mxu0 0.0
  %4675 = vmatprep.subr.mxu0 0.0
  %4676 = vmatpush1.msra.mxu0 0.0
  %4677 = vmatprep.subr.mxu0 0.0
  %4678 = vmatpush1.msra.mxu0 0.0
  %4679 = vmatprep.subr.mxu0 0.0
  %4680 = vmatpush1.msra.mxu0 0.0
  %4681 = vmatprep.subr.mxu0 0.0
  %4682 = vmatpush1.msra.mxu0 0.0
  %4683 = vmatprep.subr.mxu0 0.0
  %4684 = vmatpush1.msra.mxu0 0.0
  %4685 = vmatprep.subr.mxu0 0.0
  %4686 = vmatpush1.msra.mxu0 0.0
  %4687 = vmatprep.subr.mxu0 0.0
  %4688 = vmatpush1.msra.mxu0 0.0
  %4689 = vmatprep.subr.mxu0 0.0
  %4690 = vmatpush1.msra.mxu0 0.0
  %4691 = vmatprep.subr.mxu0 0.0
  %4692 = vmatpush1.msra.mxu0 0.0
  %4693 = vmatprep.subr.mxu0 0.0
  %4694 = vmatpush1.msra.mxu0 0.0
  %4695 = vmatprep.subr.mxu0 0.0
  %4696 = vmatpush1.msra.mxu0 0.0
  %4697 = vmatprep.subr.mxu0 0.0
  %4698 = vmatpush1.msra.mxu0 0.0
  %4699 = vmatprep.subr.mxu0 0.0
  %4700 = vmatpush1.msra.mxu0 0.0
  %4701 = vmatprep.subr.mxu0 0.0
  %4702 = vmatpush1.msra.mxu0 0.0
  %4703 = vmatprep.subr.mxu0 0.0
  %4704 = vmatpush1.msra.mxu0 0.0
  %4705 = vmatprep.mubr.f32.mxu0 0.0
  %4706 = vmatmul.mubr.f32.gmra.mrb[0].mxu0 %v4636
  %v4707 = vpop.f32.mrb[0].mxu0
  %v4708 = vadd.f32 0.0, %v4707
  %v4709 = vpop.f32.mrb[0].mxu0
  %v4710 = vadd.f32 0.0, %v4709
  %4711 = vmatprep.mubr.f32.mxu0 0.0
  %4712 = vmatmul.mubr.f32.gmra.mrb[0].mxu0 %v4639
  %v4713 = vpop.f32.mrb[0].mxu0
  %v4714 = vadd.f32 0.0, %v4713
  %v4715 = vpop.f32.mrb[0].mxu0
  %v4716 = vadd.f32 0.0, %v4715
  %4717 = vdwg.mxu0
  %v4718 = vadd.f32 %v803, %v4708
  %v4719 = vadd.f32 %v807, %v4710
  %v4720 = vadd.f32 %v803, %v4714
  %v4721 = vadd.f32 %v807, %v4716
  %v4722 = vsel %vm4607, %v832, -1e+30
  %v4723 = vsel %vm4608, %v833, -1e+30
  %v4724 = vsel %vm229, %v4722, -inf
  %4725 = vmax.xlane.f32.xlu0 %v4724
  %v4726 = vpop.xlane.xlu0 %4725
  %v4727 = vsel %vm229, %v4723, -inf
  %4728 = vmax.xlane.f32.xlu0 %v4727
  %v4729 = vpop.xlane.xlu0 %4728
  %v4730 = vsub.f32 %v4722, %v4726
  %v4731 = vsub.f32 %v4723, %v4729
  %v4732 = vmul.f32 %v4730, 1.442695
  %v4733 = vpow.pop %v4732
  %v4734 = vmul.f32 %v4731, 1.442695
  %v4735 = vpow.pop %v4734
  %v4736 = vsel %vm4607, %v4733, 0.0
  %v4737 = vsel %vm4608, %v4735, 0.0
  %v4738 = vsel %vm229, %v4736, 0.0
  %4739 = vadd.xlane.f32.xlu0 %v4738
  %v4740 = vpop.xlane.xlu0 %4739
  %v4741 = vsel %vm229, %v4737, 0.0
  %4742 = vadd.xlane.f32.xlu0 %v4741
  %v4743 = vpop.xlane.xlu0 %4742
  %v4744 = vrcp.pop %v4740
  %v4745 = vrcp.pop %v4743
  %v4746 = vmul.f32 %v4736, %v4744
  %v4747 = vmul.f32 %v4737, %v4745
  %v4749 = vsel %vm229, %v4746, 0
  %v4752 = vsel %vm229, %v4747, 0
  %4754 = vmatprep.subr.mxu0 %v865
  %4755 = vmatpush1.msra.mxu0 %v864
  %4756 = vmatprep.subr.mxu0 %v867
  %4757 = vmatpush1.msra.mxu0 %v866
  %4758 = vmatprep.subr.mxu0 0.0
  %4759 = vmatpush1.msra.mxu0 0.0
  %4760 = vmatprep.subr.mxu0 0.0
  %4761 = vmatpush1.msra.mxu0 0.0
  %4762 = vmatprep.subr.mxu0 0.0
  %4763 = vmatpush1.msra.mxu0 0.0
  %4764 = vmatprep.subr.mxu0 0.0
  %4765 = vmatpush1.msra.mxu0 0.0
  %4766 = vmatprep.subr.mxu0 0.0
  %4767 = vmatpush1.msra.mxu0 0.0
  %4768 = vmatprep.subr.mxu0 0.0
  %4769 = vmatpush1.msra.mxu0 0.0
  %4770 = vmatprep.subr.mxu0 0.0
  %4771 = vmatpush1.msra.mxu0 0.0
  %4772 = vmatprep.subr.mxu0 0.0
  %4773 = vmatpush1.msra.mxu0 0.0
  %4774 = vmatprep.subr.mxu0 0.0
  %4775 = vmatpush1.msra.mxu0 0.0
  %4776 = vmatprep.subr.mxu0 0.0
  %4777 = vmatpush1.msra.mxu0 0.0
  %4778 = vmatprep.subr.mxu0 0.0
  %4779 = vmatpush1.msra.mxu0 0.0
  %4780 = vmatprep.subr.mxu0 0.0
  %4781 = vmatpush1.msra.mxu0 0.0
  %4782 = vmatprep.subr.mxu0 0.0
  %4783 = vmatpush1.msra.mxu0 0.0
  %4784 = vmatprep.subr.mxu0 0.0
  %4785 = vmatpush1.msra.mxu0 0.0
  %4786 = vmatprep.subr.mxu0 0.0
  %4787 = vmatpush1.msra.mxu0 0.0
  %4788 = vmatprep.subr.mxu0 0.0
  %4789 = vmatpush1.msra.mxu0 0.0
  %4790 = vmatprep.subr.mxu0 0.0
  %4791 = vmatpush1.msra.mxu0 0.0
  %4792 = vmatprep.subr.mxu0 0.0
  %4793 = vmatpush1.msra.mxu0 0.0
  %4794 = vmatprep.subr.mxu0 0.0
  %4795 = vmatpush1.msra.mxu0 0.0
  %4796 = vmatprep.subr.mxu0 0.0
  %4797 = vmatpush1.msra.mxu0 0.0
  %4798 = vmatprep.subr.mxu0 0.0
  %4799 = vmatpush1.msra.mxu0 0.0
  %4800 = vmatprep.subr.mxu0 0.0
  %4801 = vmatpush1.msra.mxu0 0.0
  %4802 = vmatprep.subr.mxu0 0.0
  %4803 = vmatpush1.msra.mxu0 0.0
  %4804 = vmatprep.subr.mxu0 0.0
  %4805 = vmatpush1.msra.mxu0 0.0
  %4806 = vmatprep.subr.mxu0 0.0
  %4807 = vmatpush1.msra.mxu0 0.0
  %4808 = vmatprep.subr.mxu0 0.0
  %4809 = vmatpush1.msra.mxu0 0.0
  %4810 = vmatprep.subr.mxu0 0.0
  %4811 = vmatpush1.msra.mxu0 0.0
  %4812 = vmatprep.subr.mxu0 0.0
  %4813 = vmatpush1.msra.mxu0 0.0
  %4814 = vmatprep.subr.mxu0 0.0
  %4815 = vmatpush1.msra.mxu0 0.0
  %4816 = vmatprep.subr.mxu0 0.0
  %4817 = vmatpush1.msra.mxu0 0.0
  %4818 = vmatprep.mubr.f32.mxu0 0.0
  %4819 = vmatmul.mubr.f32.gmra.mrb[0].mxu0 %v4749
  %v4820 = vpop.f32.mrb[0].mxu0
  %v4821 = vadd.f32 0.0, %v4820
  %v4822 = vpop.f32.mrb[0].mxu0
  %v4823 = vadd.f32 0.0, %v4822
  %4824 = vmatprep.mubr.f32.mxu0 0.0
  %4825 = vmatmul.mubr.f32.gmra.mrb[0].mxu0 %v4752
  %v4826 = vpop.f32.mrb[0].mxu0
  %v4827 = vadd.f32 0.0, %v4826
  %v4828 = vpop.f32.mrb[0].mxu0
  %v4829 = vadd.f32 0.0, %v4828
  %4830 = vdwg.mxu0
  %v4831 = vadd.f32 %v4718, %v4821
  %v4832 = vadd.f32 %v4719, %v4823
  %v4833 = vadd.f32 %v4720, %v4827
  %v4834 = vadd.f32 %v4721, %v4829
  %v4835 = vsel %vm4607, %v973, -1e+30
  %v4836 = vsel %vm4608, %v974, -1e+30
  %v4837 = vsel %vm229, %v4835, -inf
  %4838 = vmax.xlane.f32.xlu0 %v4837
  %v4839 = vpop.xlane.xlu0 %4838
  %v4840 = vsel %vm229, %v4836, -inf
  %4841 = vmax.xlane.f32.xlu0 %v4840
  %v4842 = vpop.xlane.xlu0 %4841
  %v4843 = vsub.f32 %v4835, %v4839
  %v4844 = vsub.f32 %v4836, %v4842
  %v4845 = vmul.f32 %v4843, 1.442695
  %v4846 = vpow.pop %v4845
  %v4847 = vmul.f32 %v4844, 1.442695
  %v4848 = vpow.pop %v4847
  %v4849 = vsel %vm4607, %v4846, 0.0
  %v4850 = vsel %vm4608, %v4848, 0.0
  %v4851 = vsel %vm229, %v4849, 0.0
  %4852 = vadd.xlane.f32.xlu0 %v4851
  %v4853 = vpop.xlane.xlu0 %4852
  %v4854 = vsel %vm229, %v4850, 0.0
  %4855 = vadd.xlane.f32.xlu0 %v4854
  %v4856 = vpop.xlane.xlu0 %4855
  %v4857 = vrcp.pop %v4853
  %v4858 = vrcp.pop %v4856
  %v4859 = vmul.f32 %v4849, %v4857
  %v4860 = vmul.f32 %v4850, %v4858
  %v4862 = vsel %vm229, %v4859, 0
  %v4865 = vsel %vm229, %v4860, 0
  %4867 = vmatprep.subr.mxu0 %v1006
  %4868 = vmatpush1.msra.mxu0 %v1005
  %4869 = vmatprep.subr.mxu0 %v1008
  %4870 = vmatpush1.msra.mxu0 %v1007
  %4871 = vmatprep.subr.mxu0 0.0
  %4872 = vmatpush1.msra.mxu0 0.0
  %4873 = vmatprep.subr.mxu0 0.0
  %4874 = vmatpush1.msra.mxu0 0.0
  %4875 = vmatprep.subr.mxu0 0.0
  %4876 = vmatpush1.msra.mxu0 0.0
  %4877 = vmatprep.subr.mxu0 0.0
  %4878 = vmatpush1.msra.mxu0 0.0
  %4879 = vmatprep.subr.mxu0 0.0
  %4880 = vmatpush1.msra.mxu0 0.0
  %4881 = vmatprep.subr.mxu0 0.0
  %4882 = vmatpush1.msra.mxu0 0.0
  %4883 = vmatprep.subr.mxu0 0.0
  %4884 = vmatpush1.msra.mxu0 0.0
  %4885 = vmatprep.subr.mxu0 0.0
  %4886 = vmatpush1.msra.mxu0 0.0
  %4887 = vmatprep.subr.mxu0 0.0
  %4888 = vmatpush1.msra.mxu0 0.0
  %4889 = vmatprep.subr.mxu0 0.0
  %4890 = vmatpush1.msra.mxu0 0.0
  %4891 = vmatprep.subr.mxu0 0.0
  %4892 = vmatpush1.msra.mxu0 0.0
  %4893 = vmatprep.subr.mxu0 0.0
  %4894 = vmatpush1.msra.mxu0 0.0
  %4895 = vmatprep.subr.mxu0 0.0
  %4896 = vmatpush1.msra.mxu0 0.0
  %4897 = vmatprep.subr.mxu0 0.0
  %4898 = vmatpush1.msra.mxu0 0.0
  %4899 = vmatprep.subr.mxu0 0.0
  %4900 = vmatpush1.msra.mxu0 0.0
  %4901 = vmatprep.subr.mxu0 0.0
  %4902 = vmatpush1.msra.mxu0 0.0
  %4903 = vmatprep.subr.mxu0 0.0
  %4904 = vmatpush1.msra.mxu0 0.0
  %4905 = vmatprep.subr.mxu0 0.0
  %4906 = vmatpush1.msra.mxu0 0.0
  %4907 = vmatprep.subr.mxu0 0.0
  %4908 = vmatpush1.msra.mxu0 0.0
  %4909 = vmatprep.subr.mxu0 0.0
  %4910 = vmatpush1.msra.mxu0 0.0
  %4911 = vmatprep.subr.mxu0 0.0
  %4912 = vmatpush1.msra.mxu0 0.0
  %4913 = vmatprep.subr.mxu0 0.0
  %4914 = vmatpush1.msra.mxu0 0.0
  %4915 = vmatprep.subr.mxu0 0.0
  %4916 = vmatpush1.msra.mxu0 0.0
  %4917 = vmatprep.subr.mxu0 0.0
  %4918 = vmatpush1.msra.mxu0 0.0
  %4919 = vmatprep.subr.mxu0 0.0
  %4920 = vmatpush1.msra.mxu0 0.0
  %4921 = vmatprep.subr.mxu0 0.0
  %4922 = vmatpush1.msra.mxu0 0.0
  %4923 = vmatprep.subr.mxu0 0.0
  %4924 = vmatpush1.msra.mxu0 0.0
  %4925 = vmatprep.subr.mxu0 0.0
  %4926 = vmatpush1.msra.mxu0 0.0
  %4927 = vmatprep.subr.mxu0 0.0
  %4928 = vmatpush1.msra.mxu0 0.0
  %4929 = vmatprep.subr.mxu0 0.0
  %4930 = vmatpush1.msra.mxu0 0.0
  %4931 = vmatprep.mubr.f32.mxu0 0.0
  %4932 = vmatmul.mubr.f32.gmra.mrb[0].mxu0 %v4862
  %v4933 = vpop.f32.mrb[0].mxu0
  %v4934 = vadd.f32 0.0, %v4933
  %v4935 = vpop.f32.mrb[0].mxu0
  %v4936 = vadd.f32 0.0, %v4935
  %4937 = vmatprep.mubr.f32.mxu0 0.0
  %4938 = vmatmul.mubr.f32.gmra.mrb[0].mxu0 %v4865
  %v4939 = vpop.f32.mrb[0].mxu0
  %v4940 = vadd.f32 0.0, %v4939
  %v4941 = vpop.f32.mrb[0].mxu0
  %v4942 = vadd.f32 0.0, %v4941
  %4943 = vdwg.mxu0
  %v4944 = vadd.f32 %v4831, %v4934
  %v4945 = vadd.f32 %v4832, %v4936
  %v4946 = vadd.f32 %v4833, %v4940
  %v4947 = vadd.f32 %v4834, %v4942
  %v4948 = vsel %vm4607, %v1114, -1e+30
  %v4949 = vsel %vm4608, %v1115, -1e+30
  %v4950 = vsel %vm229, %v4948, -inf
  %4951 = vmax.xlane.f32.xlu0 %v4950
  %v4952 = vpop.xlane.xlu0 %4951
  %v4953 = vsel %vm229, %v4949, -inf
  %4954 = vmax.xlane.f32.xlu0 %v4953
  %v4955 = vpop.xlane.xlu0 %4954
  %v4956 = vsub.f32 %v4948, %v4952
  %v4957 = vsub.f32 %v4949, %v4955
  %v4958 = vmul.f32 %v4956, 1.442695
  %v4959 = vpow.pop %v4958
  %v4960 = vmul.f32 %v4957, 1.442695
  %v4961 = vpow.pop %v4960
  %v4962 = vsel %vm4607, %v4959, 0.0
  %v4963 = vsel %vm4608, %v4961, 0.0
  %v4964 = vsel %vm229, %v4962, 0.0
  %4965 = vadd.xlane.f32.xlu0 %v4964
  %v4966 = vpop.xlane.xlu0 %4965
  %v4967 = vsel %vm229, %v4963, 0.0
  %4968 = vadd.xlane.f32.xlu0 %v4967
  %v4969 = vpop.xlane.xlu0 %4968
  %v4970 = vrcp.pop %v4966
  %v4971 = vrcp.pop %v4969
  %v4972 = vmul.f32 %v4962, %v4970
  %v4973 = vmul.f32 %v4963, %v4971
  %v4975 = vsel %vm229, %v4972, 0
  %v4978 = vsel %vm229, %v4973, 0
  %4980 = vmatprep.subr.mxu0 %v1147
  %4981 = vmatpush1.msra.mxu0 %v1146
  %4982 = vmatprep.subr.mxu0 %v1149
  %4983 = vmatpush1.msra.mxu0 %v1148
  %4984 = vmatprep.subr.mxu0 0.0
  %4985 = vmatpush1.msra.mxu0 0.0
  %4986 = vmatprep.subr.mxu0 0.0
  %4987 = vmatpush1.msra.mxu0 0.0
  %4988 = vmatprep.subr.mxu0 0.0
  %4989 = vmatpush1.msra.mxu0 0.0
  %4990 = vmatprep.subr.mxu0 0.0
  %4991 = vmatpush1.msra.mxu0 0.0
  %4992 = vmatprep.subr.mxu0 0.0
  %4993 = vmatpush1.msra.mxu0 0.0
  %4994 = vmatprep.subr.mxu0 0.0
  %4995 = vmatpush1.msra.mxu0 0.0
  %4996 = vmatprep.subr.mxu0 0.0
  %4997 = vmatpush1.msra.mxu0 0.0
  %4998 = vmatprep.subr.mxu0 0.0
  %4999 = vmatpush1.msra.mxu0 0.0
  %5000 = vmatprep.subr.mxu0 0.0
  %5001 = vmatpush1.msra.mxu0 0.0
  %5002 = vmatprep.subr.mxu0 0.0
  %5003 = vmatpush1.msra.mxu0 0.0
  %5004 = vmatprep.subr.mxu0 0.0
  %5005 = vmatpush1.msra.mxu0 0.0
  %5006 = vmatprep.subr.mxu0 0.0
  %5007 = vmatpush1.msra.mxu0 0.0
  %5008 = vmatprep.subr.mxu0 0.0
  %5009 = vmatpush1.msra.mxu0 0.0
  %5010 = vmatprep.subr.mxu0 0.0
  %5011 = vmatpush1.msra.mxu0 0.0
  %5012 = vmatprep.subr.mxu0 0.0
  %5013 = vmatpush1.msra.mxu0 0.0
  %5014 = vmatprep.subr.mxu0 0.0
  %5015 = vmatpush1.msra.mxu0 0.0
  %5016 = vmatprep.subr.mxu0 0.0
  %5017 = vmatpush1.msra.mxu0 0.0
  %5018 = vmatprep.subr.mxu0 0.0
  %5019 = vmatpush1.msra.mxu0 0.0
  %5020 = vmatprep.subr.mxu0 0.0
  %5021 = vmatpush1.msra.mxu0 0.0
  %5022 = vmatprep.subr.mxu0 0.0
  %5023 = vmatpush1.msra.mxu0 0.0
  %5024 = vmatprep.subr.mxu0 0.0
  %5025 = vmatpush1.msra.mxu0 0.0
  %5026 = vmatprep.subr.mxu0 0.0
  %5027 = vmatpush1.msra.mxu0 0.0
  %5028 = vmatprep.subr.mxu0 0.0
  %5029 = vmatpush1.msra.mxu0 0.0
  %5030 = vmatprep.subr.mxu0 0.0
  %5031 = vmatpush1.msra.mxu0 0.0
  %5032 = vmatprep.subr.mxu0 0.0
  %5033 = vmatpush1.msra.mxu0 0.0
  %5034 = vmatprep.subr.mxu0 0.0
  %5035 = vmatpush1.msra.mxu0 0.0
  %5036 = vmatprep.subr.mxu0 0.0
  %5037 = vmatpush1.msra.mxu0 0.0
  %5038 = vmatprep.subr.mxu0 0.0
  %5039 = vmatpush1.msra.mxu0 0.0
  %5040 = vmatprep.subr.mxu0 0.0
  %5041 = vmatpush1.msra.mxu0 0.0
  %5042 = vmatprep.subr.mxu0 0.0
  %5043 = vmatpush1.msra.mxu0 0.0
  %5044 = vmatprep.mubr.f32.mxu0 0.0
  %5045 = vmatmul.mubr.f32.gmra.mrb[0].mxu0 %v4975
  %v5046 = vpop.f32.mrb[0].mxu0
  %v5047 = vadd.f32 0.0, %v5046
  %v5048 = vpop.f32.mrb[0].mxu0
  %v5049 = vadd.f32 0.0, %v5048
  %5050 = vmatprep.mubr.f32.mxu0 0.0
  %5051 = vmatmul.mubr.f32.gmra.mrb[0].mxu0 %v4978
  %v5052 = vpop.f32.mrb[0].mxu0
  %v5053 = vadd.f32 0.0, %v5052
  %v5054 = vpop.f32.mrb[0].mxu0
  %v5055 = vadd.f32 0.0, %v5054
  %5056 = vdwg.mxu0
  %v5057 = vadd.f32 %v4944, %v5047
  %v5058 = vadd.f32 %v4945, %v5049
  %v5059 = vadd.f32 %v4946, %v5053
  %v5060 = vadd.f32 %v4947, %v5055
  %vm5061 = vcmp.gt.f32.partialorder %v5057, 0.0
  %vm5062 = vcmp.gt.f32.partialorder %v5058, 0.0
  %vm5063 = vcmp.gt.f32.partialorder %v5059, 0.0
  %vm5064 = vcmp.gt.f32.partialorder %v5060, 0.0
  %v5065 = vmin.f32 %v5057, 0.0
  %v5066 = vmin.f32 %v5058, 0.0
  %v5067 = vmin.f32 %v5059, 0.0
  %v5068 = vmin.f32 %v5060, 0.0
  %v5069 = vmul.f32 %v5065, 1.442695
  %v5070 = vpow.pop %v5069
  %v5071 = vmul.f32 %v5066, 1.442695
  %v5072 = vpow.pop %v5071
  %v5073 = vmul.f32 %v5067, 1.442695
  %v5074 = vpow.pop %v5073
  %v5075 = vmul.f32 %v5068, 1.442695
  %v5076 = vpow.pop %v5075
  %v5077 = vsub.f32 %v5070, 1.0
  %v5078 = vsub.f32 %v5072, 1.0
  %v5079 = vsub.f32 %v5074, 1.0
  %v5080 = vsub.f32 %v5076, 1.0
  %v5081 = vsel %vm5061, %v5057, %v5077
  %v5082 = vsel %vm5062, %v5058, %v5078
  %v5083 = vsel %vm5063, %v5059, %v5079
  %v5084 = vsel %vm5064, %v5060, %v5080
  %s5085 = scalar_lea.vmem %s0, 48
  %v5086 = vld [vmem:[%s5085] sm:$0xff]
  %v5087 = vld [vmem:[%s5085 + $0x8] sm:$0xff]
  %vm5088 = vcmp.gt.f32.partialorder %v5086, 0.5
  %vm5089 = vcmp.gt.f32.partialorder %v5087, 0.5
  %v5090 = vsel %vm5088, %v1640, -1e+30
  %v5091 = vsel %vm5089, %v1641, -1e+30
  %v5092 = vsel %vm229, %v5090, -inf
  %5093 = vmax.xlane.f32.xlu0 %v5092
  %v5094 = vpop.xlane.xlu0 %5093
  %v5095 = vsel %vm229, %v5091, -inf
  %5096 = vmax.xlane.f32.xlu0 %v5095
  %v5097 = vpop.xlane.xlu0 %5096
  %v5098 = vsub.f32 %v5090, %v5094
  %v5099 = vsub.f32 %v5091, %v5097
  %v5100 = vmul.f32 %v5098, 1.442695
  %v5101 = vpow.pop %v5100
  %v5102 = vmul.f32 %v5099, 1.442695
  %v5103 = vpow.pop %v5102
  %v5104 = vsel %vm5088, %v5101, 0.0
  %v5105 = vsel %vm5089, %v5103, 0.0
  %v5106 = vsel %vm229, %v5104, 0.0
  %5107 = vadd.xlane.f32.xlu0 %v5106
  %v5108 = vpop.xlane.xlu0 %5107
  %v5109 = vsel %vm229, %v5105, 0.0
  %5110 = vadd.xlane.f32.xlu0 %v5109
  %v5111 = vpop.xlane.xlu0 %5110
  %v5112 = vrcp.pop %v5108
  %v5113 = vrcp.pop %v5111
  %v5114 = vmul.f32 %v5104, %v5112
  %v5115 = vmul.f32 %v5105, %v5113
  %v5117 = vsel %vm229, %v5114, 0
  %v5120 = vsel %vm229, %v5115, 0
  %5122 = vmatprep.subr.mxu0 %v1669
  %5123 = vmatpush1.msra.mxu0 %v1668
  %5124 = vmatprep.subr.mxu0 %v1671
  %5125 = vmatpush1.msra.mxu0 %v1670
  %5126 = vmatprep.subr.mxu0 0.0
  %5127 = vmatpush1.msra.mxu0 0.0
  %5128 = vmatprep.subr.mxu0 0.0
  %5129 = vmatpush1.msra.mxu0 0.0
  %5130 = vmatprep.subr.mxu0 0.0
  %5131 = vmatpush1.msra.mxu0 0.0
  %5132 = vmatprep.subr.mxu0 0.0
  %5133 = vmatpush1.msra.mxu0 0.0
  %5134 = vmatprep.subr.mxu0 0.0
  %5135 = vmatpush1.msra.mxu0 0.0
  %5136 = vmatprep.subr.mxu0 0.0
  %5137 = vmatpush1.msra.mxu0 0.0
  %5138 = vmatprep.subr.mxu0 0.0
  %5139 = vmatpush1.msra.mxu0 0.0
  %5140 = vmatprep.subr.mxu0 0.0
  %5141 = vmatpush1.msra.mxu0 0.0
  %5142 = vmatprep.subr.mxu0 0.0
  %5143 = vmatpush1.msra.mxu0 0.0
  %5144 = vmatprep.subr.mxu0 0.0
  %5145 = vmatpush1.msra.mxu0 0.0
  %5146 = vmatprep.subr.mxu0 0.0
  %5147 = vmatpush1.msra.mxu0 0.0
  %5148 = vmatprep.subr.mxu0 0.0
  %5149 = vmatpush1.msra.mxu0 0.0
  %5150 = vmatprep.subr.mxu0 0.0
  %5151 = vmatpush1.msra.mxu0 0.0
  %5152 = vmatprep.subr.mxu0 0.0
  %5153 = vmatpush1.msra.mxu0 0.0
  %5154 = vmatprep.subr.mxu0 0.0
  %5155 = vmatpush1.msra.mxu0 0.0
  %5156 = vmatprep.subr.mxu0 0.0
  %5157 = vmatpush1.msra.mxu0 0.0
  %5158 = vmatprep.subr.mxu0 0.0
  %5159 = vmatpush1.msra.mxu0 0.0
  %5160 = vmatprep.subr.mxu0 0.0
  %5161 = vmatpush1.msra.mxu0 0.0
  %5162 = vmatprep.subr.mxu0 0.0
  %5163 = vmatpush1.msra.mxu0 0.0
  %5164 = vmatprep.subr.mxu0 0.0
  %5165 = vmatpush1.msra.mxu0 0.0
  %5166 = vmatprep.subr.mxu0 0.0
  %5167 = vmatpush1.msra.mxu0 0.0
  %5168 = vmatprep.subr.mxu0 0.0
  %5169 = vmatpush1.msra.mxu0 0.0
  %5170 = vmatprep.subr.mxu0 0.0
  %5171 = vmatpush1.msra.mxu0 0.0
  %5172 = vmatprep.subr.mxu0 0.0
  %5173 = vmatpush1.msra.mxu0 0.0
  %5174 = vmatprep.subr.mxu0 0.0
  %5175 = vmatpush1.msra.mxu0 0.0
  %5176 = vmatprep.subr.mxu0 0.0
  %5177 = vmatpush1.msra.mxu0 0.0
  %5178 = vmatprep.subr.mxu0 0.0
  %5179 = vmatpush1.msra.mxu0 0.0
  %5180 = vmatprep.subr.mxu0 0.0
  %5181 = vmatpush1.msra.mxu0 0.0
  %5182 = vmatprep.subr.mxu0 0.0
  %5183 = vmatpush1.msra.mxu0 0.0
  %5184 = vmatprep.subr.mxu0 0.0
  %5185 = vmatpush1.msra.mxu0 0.0
  %5186 = vmatprep.mubr.f32.mxu0 0.0
  %5187 = vmatmul.mubr.f32.gmra.mrb[0].mxu0 %v5117
  %v5188 = vpop.f32.mrb[0].mxu0
  %v5189 = vadd.f32 0.0, %v5188
  %v5190 = vpop.f32.mrb[0].mxu0
  %v5191 = vadd.f32 0.0, %v5190
  %5192 = vmatprep.mubr.f32.mxu0 0.0
  %5193 = vmatmul.mubr.f32.gmra.mrb[0].mxu0 %v5120
  %v5194 = vpop.f32.mrb[0].mxu0
  %v5195 = vadd.f32 0.0, %v5194
  %v5196 = vpop.f32.mrb[0].mxu0
  %v5197 = vadd.f32 0.0, %v5196
  %5198 = vdwg.mxu0
  %v5199 = vadd.f32 %v1759, %v5189
  %v5200 = vadd.f32 %v1763, %v5191
  %v5201 = vadd.f32 %v1759, %v5195
  %v5202 = vadd.f32 %v1763, %v5197
  %v5203 = vsel %vm5088, %v1788, -1e+30
  %v5204 = vsel %vm5089, %v1789, -1e+30
  %v5205 = vsel %vm229, %v5203, -inf
  %5206 = vmax.xlane.f32.xlu0 %v5205
  %v5207 = vpop.xlane.xlu0 %5206
  %v5208 = vsel %vm229, %v5204, -inf
  %5209 = vmax.xlane.f32.xlu0 %v5208
  %v5210 = vpop.xlane.xlu0 %5209
  %v5211 = vsub.f32 %v5203, %v5207
  %v5212 = vsub.f32 %v5204, %v5210
  %v5213 = vmul.f32 %v5211, 1.442695
  %v5214 = vpow.pop %v5213
  %v5215 = vmul.f32 %v5212, 1.442695
  %v5216 = vpow.pop %v5215
  %v5217 = vsel %vm5088, %v5214, 0.0
  %v5218 = vsel %vm5089, %v5216, 0.0
  %v5219 = vsel %vm229, %v5217, 0.0
  %5220 = vadd.xlane.f32.xlu0 %v5219
  %v5221 = vpop.xlane.xlu0 %5220
  %v5222 = vsel %vm229, %v5218, 0.0
  %5223 = vadd.xlane.f32.xlu0 %v5222
  %v5224 = vpop.xlane.xlu0 %5223
  %v5225 = vrcp.pop %v5221
  %v5226 = vrcp.pop %v5224
  %v5227 = vmul.f32 %v5217, %v5225
  %v5228 = vmul.f32 %v5218, %v5226
  %v5230 = vsel %vm229, %v5227, 0
  %v5233 = vsel %vm229, %v5228, 0
  %5235 = vmatprep.subr.mxu0 %v1817
  %5236 = vmatpush1.msra.mxu0 %v1816
  %5237 = vmatprep.subr.mxu0 %v1819
  %5238 = vmatpush1.msra.mxu0 %v1818
  %5239 = vmatprep.subr.mxu0 0.0
  %5240 = vmatpush1.msra.mxu0 0.0
  %5241 = vmatprep.subr.mxu0 0.0
  %5242 = vmatpush1.msra.mxu0 0.0
  %5243 = vmatprep.subr.mxu0 0.0
  %5244 = vmatpush1.msra.mxu0 0.0
  %5245 = vmatprep.subr.mxu0 0.0
  %5246 = vmatpush1.msra.mxu0 0.0
  %5247 = vmatprep.subr.mxu0 0.0
  %5248 = vmatpush1.msra.mxu0 0.0
  %5249 = vmatprep.subr.mxu0 0.0
  %5250 = vmatpush1.msra.mxu0 0.0
  %5251 = vmatprep.subr.mxu0 0.0
  %5252 = vmatpush1.msra.mxu0 0.0
  %5253 = vmatprep.subr.mxu0 0.0
  %5254 = vmatpush1.msra.mxu0 0.0
  %5255 = vmatprep.subr.mxu0 0.0
  %5256 = vmatpush1.msra.mxu0 0.0
  %5257 = vmatprep.subr.mxu0 0.0
  %5258 = vmatpush1.msra.mxu0 0.0
  %5259 = vmatprep.subr.mxu0 0.0
  %5260 = vmatpush1.msra.mxu0 0.0
  %5261 = vmatprep.subr.mxu0 0.0
  %5262 = vmatpush1.msra.mxu0 0.0
  %5263 = vmatprep.subr.mxu0 0.0
  %5264 = vmatpush1.msra.mxu0 0.0
  %5265 = vmatprep.subr.mxu0 0.0
  %5266 = vmatpush1.msra.mxu0 0.0
  %5267 = vmatprep.subr.mxu0 0.0
  %5268 = vmatpush1.msra.mxu0 0.0
  %5269 = vmatprep.subr.mxu0 0.0
  %5270 = vmatpush1.msra.mxu0 0.0
  %5271 = vmatprep.subr.mxu0 0.0
  %5272 = vmatpush1.msra.mxu0 0.0
  %5273 = vmatprep.subr.mxu0 0.0
  %5274 = vmatpush1.msra.mxu0 0.0
  %5275 = vmatprep.subr.mxu0 0.0
  %5276 = vmatpush1.msra.mxu0 0.0
  %5277 = vmatprep.subr.mxu0 0.0
  %5278 = vmatpush1.msra.mxu0 0.0
  %5279 = vmatprep.subr.mxu0 0.0
  %5280 = vmatpush1.msra.mxu0 0.0
  %5281 = vmatprep.subr.mxu0 0.0
  %5282 = vmatpush1.msra.mxu0 0.0
  %5283 = vmatprep.subr.mxu0 0.0
  %5284 = vmatpush1.msra.mxu0 0.0
  %5285 = vmatprep.subr.mxu0 0.0
  %5286 = vmatpush1.msra.mxu0 0.0
  %5287 = vmatprep.subr.mxu0 0.0
  %5288 = vmatpush1.msra.mxu0 0.0
  %5289 = vmatprep.subr.mxu0 0.0
  %5290 = vmatpush1.msra.mxu0 0.0
  %5291 = vmatprep.subr.mxu0 0.0
  %5292 = vmatpush1.msra.mxu0 0.0
  %5293 = vmatprep.subr.mxu0 0.0
  %5294 = vmatpush1.msra.mxu0 0.0
  %5295 = vmatprep.subr.mxu0 0.0
  %5296 = vmatpush1.msra.mxu0 0.0
  %5297 = vmatprep.subr.mxu0 0.0
  %5298 = vmatpush1.msra.mxu0 0.0
  %5299 = vmatprep.mubr.f32.mxu0 0.0
  %5300 = vmatmul.mubr.f32.gmra.mrb[0].mxu0 %v5230
  %v5301 = vpop.f32.mrb[0].mxu0
  %v5302 = vadd.f32 0.0, %v5301
  %v5303 = vpop.f32.mrb[0].mxu0
  %v5304 = vadd.f32 0.0, %v5303
  %5305 = vmatprep.mubr.f32.mxu0 0.0
  %5306 = vmatmul.mubr.f32.gmra.mrb[0].mxu0 %v5233
  %v5307 = vpop.f32.mrb[0].mxu0
  %v5308 = vadd.f32 0.0, %v5307
  %v5309 = vpop.f32.mrb[0].mxu0
  %v5310 = vadd.f32 0.0, %v5309
  %5311 = vdwg.mxu0
  %v5312 = vadd.f32 %v5199, %v5302
  %v5313 = vadd.f32 %v5200, %v5304
  %v5314 = vadd.f32 %v5201, %v5308
  %v5315 = vadd.f32 %v5202, %v5310
  %v5316 = vsel %vm5088, %v1925, -1e+30
  %v5317 = vsel %vm5089, %v1926, -1e+30
  %v5318 = vsel %vm229, %v5316, -inf
  %5319 = vmax.xlane.f32.xlu0 %v5318
  %v5320 = vpop.xlane.xlu0 %5319
  %v5321 = vsel %vm229, %v5317, -inf
  %5322 = vmax.xlane.f32.xlu0 %v5321
  %v5323 = vpop.xlane.xlu0 %5322
  %v5324 = vsub.f32 %v5316, %v5320
  %v5325 = vsub.f32 %v5317, %v5323
  %v5326 = vmul.f32 %v5324, 1.442695
  %v5327 = vpow.pop %v5326
  %v5328 = vmul.f32 %v5325, 1.442695
  %v5329 = vpow.pop %v5328
  %v5330 = vsel %vm5088, %v5327, 0.0
  %v5331 = vsel %vm5089, %v5329, 0.0
  %v5332 = vsel %vm229, %v5330, 0.0
  %5333 = vadd.xlane.f32.xlu0 %v5332
  %v5334 = vpop.xlane.xlu0 %5333
  %v5335 = vsel %vm229, %v5331, 0.0
  %5336 = vadd.xlane.f32.xlu0 %v5335
  %v5337 = vpop.xlane.xlu0 %5336
  %v5338 = vrcp.pop %v5334
  %v5339 = vrcp.pop %v5337
  %v5340 = vmul.f32 %v5330, %v5338
  %v5341 = vmul.f32 %v5331, %v5339
  %v5343 = vsel %vm229, %v5340, 0
  %v5346 = vsel %vm229, %v5341, 0
  %5348 = vmatprep.subr.mxu0 %v1954
  %5349 = vmatpush1.msra.mxu0 %v1953
  %5350 = vmatprep.subr.mxu0 %v1956
  %5351 = vmatpush1.msra.mxu0 %v1955
  %5352 = vmatprep.subr.mxu0 0.0
  %5353 = vmatpush1.msra.mxu0 0.0
  %5354 = vmatprep.subr.mxu0 0.0
  %5355 = vmatpush1.msra.mxu0 0.0
  %5356 = vmatprep.subr.mxu0 0.0
  %5357 = vmatpush1.msra.mxu0 0.0
  %5358 = vmatprep.subr.mxu0 0.0
  %5359 = vmatpush1.msra.mxu0 0.0
  %5360 = vmatprep.subr.mxu0 0.0
  %5361 = vmatpush1.msra.mxu0 0.0
  %5362 = vmatprep.subr.mxu0 0.0
  %5363 = vmatpush1.msra.mxu0 0.0
  %5364 = vmatprep.subr.mxu0 0.0
  %5365 = vmatpush1.msra.mxu0 0.0
  %5366 = vmatprep.subr.mxu0 0.0
  %5367 = vmatpush1.msra.mxu0 0.0
  %5368 = vmatprep.subr.mxu0 0.0
  %5369 = vmatpush1.msra.mxu0 0.0
  %5370 = vmatprep.subr.mxu0 0.0
  %5371 = vmatpush1.msra.mxu0 0.0
  %5372 = vmatprep.subr.mxu0 0.0
  %5373 = vmatpush1.msra.mxu0 0.0
  %5374 = vmatprep.subr.mxu0 0.0
  %5375 = vmatpush1.msra.mxu0 0.0
  %5376 = vmatprep.subr.mxu0 0.0
  %5377 = vmatpush1.msra.mxu0 0.0
  %5378 = vmatprep.subr.mxu0 0.0
  %5379 = vmatpush1.msra.mxu0 0.0
  %5380 = vmatprep.subr.mxu0 0.0
  %5381 = vmatpush1.msra.mxu0 0.0
  %5382 = vmatprep.subr.mxu0 0.0
  %5383 = vmatpush1.msra.mxu0 0.0
  %5384 = vmatprep.subr.mxu0 0.0
  %5385 = vmatpush1.msra.mxu0 0.0
  %5386 = vmatprep.subr.mxu0 0.0
  %5387 = vmatpush1.msra.mxu0 0.0
  %5388 = vmatprep.subr.mxu0 0.0
  %5389 = vmatpush1.msra.mxu0 0.0
  %5390 = vmatprep.subr.mxu0 0.0
  %5391 = vmatpush1.msra.mxu0 0.0
  %5392 = vmatprep.subr.mxu0 0.0
  %5393 = vmatpush1.msra.mxu0 0.0
  %5394 = vmatprep.subr.mxu0 0.0
  %5395 = vmatpush1.msra.mxu0 0.0
  %5396 = vmatprep.subr.mxu0 0.0
  %5397 = vmatpush1.msra.mxu0 0.0
  %5398 = vmatprep.subr.mxu0 0.0
  %5399 = vmatpush1.msra.mxu0 0.0
  %5400 = vmatprep.subr.mxu0 0.0
  %5401 = vmatpush1.msra.mxu0 0.0
  %5402 = vmatprep.subr.mxu0 0.0
  %5403 = vmatpush1.msra.mxu0 0.0
  %5404 = vmatprep.subr.mxu0 0.0
  %5405 = vmatpush1.msra.mxu0 0.0
  %5406 = vmatprep.subr.mxu0 0.0
  %5407 = vmatpush1.msra.mxu0 0.0
  %5408 = vmatprep.subr.mxu0 0.0
  %5409 = vmatpush1.msra.mxu0 0.0
  %5410 = vmatprep.subr.mxu0 0.0
  %5411 = vmatpush1.msra.mxu0 0.0
  %5412 = vmatprep.mubr.f32.mxu0 0.0
  %5413 = vmatmul.mubr.f32.gmra.mrb[0].mxu0 %v5343
  %v5414 = vpop.f32.mrb[0].mxu0
  %v5415 = vadd.f32 0.0, %v5414
  %v5416 = vpop.f32.mrb[0].mxu0
  %v5417 = vadd.f32 0.0, %v5416
  %5418 = vmatprep.mubr.f32.mxu0 0.0
  %5419 = vmatmul.mubr.f32.gmra.mrb[0].mxu0 %v5346
  %v5420 = vpop.f32.mrb[0].mxu0
  %v5421 = vadd.f32 0.0, %v5420
  %v5422 = vpop.f32.mrb[0].mxu0
  %v5423 = vadd.f32 0.0, %v5422
  %5424 = vdwg.mxu0
  %v5425 = vadd.f32 %v5312, %v5415
  %v5426 = vadd.f32 %v5313, %v5417
  %v5427 = vadd.f32 %v5314, %v5421
  %v5428 = vadd.f32 %v5315, %v5423
  %v5429 = vsel %vm5088, %v2062, -1e+30
  %v5430 = vsel %vm5089, %v2063, -1e+30
  %v5431 = vsel %vm229, %v5429, -inf
  %5432 = vmax.xlane.f32.xlu0 %v5431
  %v5433 = vpop.xlane.xlu0 %5432
  %v5434 = vsel %vm229, %v5430, -inf
  %5435 = vmax.xlane.f32.xlu0 %v5434
  %v5436 = vpop.xlane.xlu0 %5435
  %v5437 = vsub.f32 %v5429, %v5433
  %v5438 = vsub.f32 %v5430, %v5436
  %v5439 = vmul.f32 %v5437, 1.442695
  %v5440 = vpow.pop %v5439
  %v5441 = vmul.f32 %v5438, 1.442695
  %v5442 = vpow.pop %v5441
  %v5443 = vsel %vm5088, %v5440, 0.0
  %v5444 = vsel %vm5089, %v5442, 0.0
  %v5445 = vsel %vm229, %v5443, 0.0
  %5446 = vadd.xlane.f32.xlu0 %v5445
  %v5447 = vpop.xlane.xlu0 %5446
  %v5448 = vsel %vm229, %v5444, 0.0
  %5449 = vadd.xlane.f32.xlu0 %v5448
  %v5450 = vpop.xlane.xlu0 %5449
  %v5451 = vrcp.pop %v5447
  %v5452 = vrcp.pop %v5450
  %v5453 = vmul.f32 %v5443, %v5451
  %v5454 = vmul.f32 %v5444, %v5452
  %v5456 = vsel %vm229, %v5453, 0
  %v5459 = vsel %vm229, %v5454, 0
  %5461 = vmatprep.subr.mxu0 %v2091
  %5462 = vmatpush1.msra.mxu0 %v2090
  %5463 = vmatprep.subr.mxu0 %v2093
  %5464 = vmatpush1.msra.mxu0 %v2092
  %5465 = vmatprep.subr.mxu0 0.0
  %5466 = vmatpush1.msra.mxu0 0.0
  %5467 = vmatprep.subr.mxu0 0.0
  %5468 = vmatpush1.msra.mxu0 0.0
  %5469 = vmatprep.subr.mxu0 0.0
  %5470 = vmatpush1.msra.mxu0 0.0
  %5471 = vmatprep.subr.mxu0 0.0
  %5472 = vmatpush1.msra.mxu0 0.0
  %5473 = vmatprep.subr.mxu0 0.0
  %5474 = vmatpush1.msra.mxu0 0.0
  %5475 = vmatprep.subr.mxu0 0.0
  %5476 = vmatpush1.msra.mxu0 0.0
  %5477 = vmatprep.subr.mxu0 0.0
  %5478 = vmatpush1.msra.mxu0 0.0
  %5479 = vmatprep.subr.mxu0 0.0
  %5480 = vmatpush1.msra.mxu0 0.0
  %5481 = vmatprep.subr.mxu0 0.0
  %5482 = vmatpush1.msra.mxu0 0.0
  %5483 = vmatprep.subr.mxu0 0.0
  %5484 = vmatpush1.msra.mxu0 0.0
  %5485 = vmatprep.subr.mxu0 0.0
  %5486 = vmatpush1.msra.mxu0 0.0
  %5487 = vmatprep.subr.mxu0 0.0
  %5488 = vmatpush1.msra.mxu0 0.0
  %5489 = vmatprep.subr.mxu0 0.0
  %5490 = vmatpush1.msra.mxu0 0.0
  %5491 = vmatprep.subr.mxu0 0.0
  %5492 = vmatpush1.msra.mxu0 0.0
  %5493 = vmatprep.subr.mxu0 0.0
  %5494 = vmatpush1.msra.mxu0 0.0
  %5495 = vmatprep.subr.mxu0 0.0
  %5496 = vmatpush1.msra.mxu0 0.0
  %5497 = vmatprep.subr.mxu0 0.0
  %5498 = vmatpush1.msra.mxu0 0.0
  %5499 = vmatprep.subr.mxu0 0.0
  %5500 = vmatpush1.msra.mxu0 0.0
  %5501 = vmatprep.subr.mxu0 0.0
  %5502 = vmatpush1.msra.mxu0 0.0
  %5503 = vmatprep.subr.mxu0 0.0
  %5504 = vmatpush1.msra.mxu0 0.0
  %5505 = vmatprep.subr.mxu0 0.0
  %5506 = vmatpush1.msra.mxu0 0.0
  %5507 = vmatprep.subr.mxu0 0.0
  %5508 = vmatpush1.msra.mxu0 0.0
  %5509 = vmatprep.subr.mxu0 0.0
  %5510 = vmatpush1.msra.mxu0 0.0
  %5511 = vmatprep.subr.mxu0 0.0
  %5512 = vmatpush1.msra.mxu0 0.0
  %5513 = vmatprep.subr.mxu0 0.0
  %5514 = vmatpush1.msra.mxu0 0.0
  %5515 = vmatprep.subr.mxu0 0.0
  %5516 = vmatpush1.msra.mxu0 0.0
  %5517 = vmatprep.subr.mxu0 0.0
  %5518 = vmatpush1.msra.mxu0 0.0
  %5519 = vmatprep.subr.mxu0 0.0
  %5520 = vmatpush1.msra.mxu0 0.0
  %5521 = vmatprep.subr.mxu0 0.0
  %5522 = vmatpush1.msra.mxu0 0.0
  %5523 = vmatprep.subr.mxu0 0.0
  %5524 = vmatpush1.msra.mxu0 0.0
  %5525 = vmatprep.mubr.f32.mxu0 0.0
  %5526 = vmatmul.mubr.f32.gmra.mrb[0].mxu0 %v5456
  %v5527 = vpop.f32.mrb[0].mxu0
  %v5528 = vadd.f32 0.0, %v5527
  %v5529 = vpop.f32.mrb[0].mxu0
  %v5530 = vadd.f32 0.0, %v5529
  %5531 = vmatprep.mubr.f32.mxu0 0.0
  %5532 = vmatmul.mubr.f32.gmra.mrb[0].mxu0 %v5459
  %v5533 = vpop.f32.mrb[0].mxu0
  %v5534 = vadd.f32 0.0, %v5533
  %v5535 = vpop.f32.mrb[0].mxu0
  %v5536 = vadd.f32 0.0, %v5535
  %5537 = vdwg.mxu0
  %v5538 = vadd.f32 %v5425, %v5528
  %v5539 = vadd.f32 %v5426, %v5530
  %v5540 = vadd.f32 %v5427, %v5534
  %v5541 = vadd.f32 %v5428, %v5536
  %vm5542 = vcmp.gt.f32.partialorder %v5538, 0.0
  %vm5543 = vcmp.gt.f32.partialorder %v5539, 0.0
  %vm5544 = vcmp.gt.f32.partialorder %v5540, 0.0
  %vm5545 = vcmp.gt.f32.partialorder %v5541, 0.0
  %v5546 = vmin.f32 %v5538, 0.0
  %v5547 = vmin.f32 %v5539, 0.0
  %v5548 = vmin.f32 %v5540, 0.0
  %v5549 = vmin.f32 %v5541, 0.0
  %v5550 = vmul.f32 %v5546, 1.442695
  %v5551 = vpow.pop %v5550
  %v5552 = vmul.f32 %v5547, 1.442695
  %v5553 = vpow.pop %v5552
  %v5554 = vmul.f32 %v5548, 1.442695
  %v5555 = vpow.pop %v5554
  %v5556 = vmul.f32 %v5549, 1.442695
  %v5557 = vpow.pop %v5556
  %v5558 = vsub.f32 %v5551, 1.0
  %v5559 = vsub.f32 %v5553, 1.0
  %v5560 = vsub.f32 %v5555, 1.0
  %v5561 = vsub.f32 %v5557, 1.0
  %v5562 = vsel %vm5542, %v5538, %v5558
  %v5563 = vsel %vm5543, %v5539, %v5559
  %v5564 = vsel %vm5544, %v5540, %v5560
  %v5565 = vsel %vm5545, %v5541, %v5561
  %v5567 = vsel %vm229, %v5082, 0
  %v5570 = vsel %vm229, %v5084, 0
  %5572 = vmatprep.subr.mxu0 0.0
  %5573 = vmatpush1.msra.mxu0 %v2205
  %5574 = vmatprep.subr.mxu0 0.0
  %5575 = vmatpush1.msra.mxu0 %v2206
  %5576 = vmatprep.subr.mxu0 0.0
  %5577 = vmatpush1.msra.mxu0 %v2207
  %5578 = vmatprep.subr.mxu0 0.0
  %5579 = vmatpush1.msra.mxu0 %v2208
  %5580 = vmatprep.subr.mxu0 0.0
  %5581 = vmatpush1.msra.mxu0 %v2209
  %5582 = vmatprep.subr.mxu0 0.0
  %5583 = vmatpush1.msra.mxu0 %v2210
  %5584 = vmatprep.subr.mxu0 0.0
  %5585 = vmatpush1.msra.mxu0 %v2211
  %5586 = vmatprep.subr.mxu0 0.0
  %5587 = vmatpush1.msra.mxu0 %v2212
  %5588 = vmatprep.subr.mxu0 0.0
  %5589 = vmatpush1.msra.mxu0 %v2213
  %5590 = vmatprep.subr.mxu0 0.0
  %5591 = vmatpush1.msra.mxu0 %v2214
  %5592 = vmatprep.subr.mxu0 0.0
  %5593 = vmatpush1.msra.mxu0 %v2215
  %5594 = vmatprep.subr.mxu0 0.0
  %5595 = vmatpush1.msra.mxu0 %v2216
  %5596 = vmatprep.subr.mxu0 0.0
  %5597 = vmatpush1.msra.mxu0 %v2217
  %5598 = vmatprep.subr.mxu0 0.0
  %5599 = vmatpush1.msra.mxu0 %v2218
  %5600 = vmatprep.subr.mxu0 0.0
  %5601 = vmatpush1.msra.mxu0 %v2219
  %5602 = vmatprep.subr.mxu0 0.0
  %5603 = vmatpush1.msra.mxu0 %v2220
  %5604 = vmatprep.subr.mxu0 0.0
  %5605 = vmatpush1.msra.mxu0 %v2221
  %5606 = vmatprep.subr.mxu0 0.0
  %5607 = vmatpush1.msra.mxu0 %v2222
  %5608 = vmatprep.subr.mxu0 0.0
  %5609 = vmatpush1.msra.mxu0 0.0
  %5610 = vmatprep.subr.mxu0 0.0
  %5611 = vmatpush1.msra.mxu0 0.0
  %5612 = vmatprep.subr.mxu0 0.0
  %5613 = vmatpush1.msra.mxu0 0.0
  %5614 = vmatprep.subr.mxu0 0.0
  %5615 = vmatpush1.msra.mxu0 0.0
  %5616 = vmatprep.subr.mxu0 0.0
  %5617 = vmatpush1.msra.mxu0 0.0
  %5618 = vmatprep.subr.mxu0 0.0
  %5619 = vmatpush1.msra.mxu0 0.0
  %5620 = vmatprep.subr.mxu0 0.0
  %5621 = vmatpush1.msra.mxu0 0.0
  %5622 = vmatprep.subr.mxu0 0.0
  %5623 = vmatpush1.msra.mxu0 0.0
  %5624 = vmatprep.subr.mxu0 0.0
  %5625 = vmatpush1.msra.mxu0 0.0
  %5626 = vmatprep.subr.mxu0 0.0
  %5627 = vmatpush1.msra.mxu0 0.0
  %5628 = vmatprep.subr.mxu0 0.0
  %5629 = vmatpush1.msra.mxu0 0.0
  %5630 = vmatprep.subr.mxu0 0.0
  %5631 = vmatpush1.msra.mxu0 0.0
  %5632 = vmatprep.subr.mxu0 0.0
  %5633 = vmatpush1.msra.mxu0 0.0
  %5634 = vmatprep.subr.mxu0 0.0
  %5635 = vmatpush1.msra.mxu0 0.0
  %5636 = vmatprep.mubr.f32.mxu0 %v5567
  %5637 = vmatmul.mubr.f32.gmra.mrb[0].mxu0 %v5081
  %v5638 = vpop.f32.mrb[0].mxu0
  %v5639 = vadd.f32 %v2228, %v5638
  %v5640 = vpop.f32.mrb[0].mxu0
  %5641 = vmatprep.mubr.f32.mxu0 %v5570
  %5642 = vmatmul.mubr.f32.gmra.mrb[0].mxu0 %v5083
  %v5643 = vpop.f32.mrb[0].mxu0
  %v5644 = vadd.f32 %v2228, %v5643
  %v5645 = vpop.f32.mrb[0].mxu0
  %5646 = vdwg.mxu0
  %v5647 = vtanh.pop %v5639
  %v5648 = vtanh.pop %v5644
  %v5649 = vmul.f32 %v5647, %v2315
  %v5650 = vmul.f32 %v5648, %v2315
  %5651 = vadd.xlane.f32.xlu0 %v5649
  %v5652 = vpop.xlane.xlu0 %5651
  %5653 = vadd.xlane.f32.xlu0 %v5650
  %v5654 = vpop.xlane.xlu0 %5653
  %v5655 = vsel %vm2322, %v5652, 0.0
  %v5656 = vsel %vm2322, %v5654, 0.0
  %v5657 = vadd.f32 %v5655, %v5656
  %5658 = vadd.xlane.f32.xlu0 %v5657
  %v5659 = vpop.xlane.xlu0 %5658
  %v5660 = vrot.slane %v5659, 4
  %v5661 = vadd.f32 %v5659, %v5660
  %v5662 = vrot.slane %v5661, 2
  %v5663 = vadd.f32 %v5661, %v5662
  %v5664 = vrot.slane %v5663, 1
  %v5665 = vadd.f32 %v5663, %v5664
  %s5666 = vtos %v5665
  %v5667 = vrcp.pop 16.0
  %s5668 = vtos %v5667
  %s5669 = smul.f32 %s5666, %s5668
  %v5671 = vsel %vm229, %v5563, 0
  %v5674 = vsel %vm229, %v5565, 0
  %5676 = vmatprep.subr.mxu0 0.0
  %5677 = vmatpush1.msra.mxu0 %v2205
  %5678 = vmatprep.subr.mxu0 0.0
  %5679 = vmatpush1.msra.mxu0 %v2206
  %5680 = vmatprep.subr.mxu0 0.0
  %5681 = vmatpush1.msra.mxu0 %v2207
  %5682 = vmatprep.subr.mxu0 0.0
  %5683 = vmatpush1.msra.mxu0 %v2208
  %5684 = vmatprep.subr.mxu0 0.0
  %5685 = vmatpush1.msra.mxu0 %v2209
  %5686 = vmatprep.subr.mxu0 0.0
  %5687 = vmatpush1.msra.mxu0 %v2210
  %5688 = vmatprep.subr.mxu0 0.0
  %5689 = vmatpush1.msra.mxu0 %v2211
  %5690 = vmatprep.subr.mxu0 0.0
  %5691 = vmatpush1.msra.mxu0 %v2212
  %5692 = vmatprep.subr.mxu0 0.0
  %5693 = vmatpush1.msra.mxu0 %v2213
  %5694 = vmatprep.subr.mxu0 0.0
  %5695 = vmatpush1.msra.mxu0 %v2214
  %5696 = vmatprep.subr.mxu0 0.0
  %5697 = vmatpush1.msra.mxu0 %v2215
  %5698 = vmatprep.subr.mxu0 0.0
  %5699 = vmatpush1.msra.mxu0 %v2216
  %5700 = vmatprep.subr.mxu0 0.0
  %5701 = vmatpush1.msra.mxu0 %v2217
  %5702 = vmatprep.subr.mxu0 0.0
  %5703 = vmatpush1.msra.mxu0 %v2218
  %5704 = vmatprep.subr.mxu0 0.0
  %5705 = vmatpush1.msra.mxu0 %v2219
  %5706 = vmatprep.subr.mxu0 0.0
  %5707 = vmatpush1.msra.mxu0 %v2220
  %5708 = vmatprep.subr.mxu0 0.0
  %5709 = vmatpush1.msra.mxu0 %v2221
  %5710 = vmatprep.subr.mxu0 0.0
  %5711 = vmatpush1.msra.mxu0 %v2222
  %5712 = vmatprep.subr.mxu0 0.0
  %5713 = vmatpush1.msra.mxu0 0.0
  %5714 = vmatprep.subr.mxu0 0.0
  %5715 = vmatpush1.msra.mxu0 0.0
  %5716 = vmatprep.subr.mxu0 0.0
  %5717 = vmatpush1.msra.mxu0 0.0
  %5718 = vmatprep.subr.mxu0 0.0
  %5719 = vmatpush1.msra.mxu0 0.0
  %5720 = vmatprep.subr.mxu0 0.0
  %5721 = vmatpush1.msra.mxu0 0.0
  %5722 = vmatprep.subr.mxu0 0.0
  %5723 = vmatpush1.msra.mxu0 0.0
  %5724 = vmatprep.subr.mxu0 0.0
  %5725 = vmatpush1.msra.mxu0 0.0
  %5726 = vmatprep.subr.mxu0 0.0
  %5727 = vmatpush1.msra.mxu0 0.0
  %5728 = vmatprep.subr.mxu0 0.0
  %5729 = vmatpush1.msra.mxu0 0.0
  %5730 = vmatprep.subr.mxu0 0.0
  %5731 = vmatpush1.msra.mxu0 0.0
  %5732 = vmatprep.subr.mxu0 0.0
  %5733 = vmatpush1.msra.mxu0 0.0
  %5734 = vmatprep.subr.mxu0 0.0
  %5735 = vmatpush1.msra.mxu0 0.0
  %5736 = vmatprep.subr.mxu0 0.0
  %5737 = vmatpush1.msra.mxu0 0.0
  %5738 = vmatprep.subr.mxu0 0.0
  %5739 = vmatpush1.msra.mxu0 0.0
  %5740 = vmatprep.mubr.f32.mxu0 %v5671
  %5741 = vmatmul.mubr.f32.gmra.mrb[0].mxu0 %v5562
  %v5742 = vpop.f32.mrb[0].mxu0
  %v5743 = vadd.f32 %v2228, %v5742
  %v5744 = vpop.f32.mrb[0].mxu0
  %5745 = vmatprep.mubr.f32.mxu0 %v5674
  %5746 = vmatmul.mubr.f32.gmra.mrb[0].mxu0 %v5564
  %v5747 = vpop.f32.mrb[0].mxu0
  %v5748 = vadd.f32 %v2228, %v5747
  %v5749 = vpop.f32.mrb[0].mxu0
  %5750 = vdwg.mxu0
  %v5751 = vtanh.pop %v5743
  %v5752 = vtanh.pop %v5748
  %v5753 = vmul.f32 %v5751, %v2315
  %v5754 = vmul.f32 %v5752, %v2315
  %5755 = vadd.xlane.f32.xlu0 %v5753
  %v5756 = vpop.xlane.xlu0 %5755
  %5757 = vadd.xlane.f32.xlu0 %v5754
  %v5758 = vpop.xlane.xlu0 %5757
  %v5759 = vsel %vm2322, %v5756, 0.0
  %v5760 = vsel %vm2322, %v5758, 0.0
  %v5761 = vadd.f32 %v5759, %v5760
  %5762 = vadd.xlane.f32.xlu0 %v5761
  %v5763 = vpop.xlane.xlu0 %5762
  %v5764 = vrot.slane %v5763, 4
  %v5765 = vadd.f32 %v5763, %v5764
  %v5766 = vrot.slane %v5765, 2
  %v5767 = vadd.f32 %v5765, %v5766
  %v5768 = vrot.slane %v5767, 1
  %v5769 = vadd.f32 %v5767, %v5768
  %s5770 = vtos %v5769
  %v5771 = vrcp.pop 16.0
  %s5772 = vtos %v5771
  %s5773 = smul.f32 %s5770, %s5772
  %s5774 = smax.f32 %s5669, %s5773
  %s5775 = ssub.f32 %s5669, %s5774
  %v5776 = vstv %s5775
  %v5777 = vmul.f32 %v5776, 1.442695
  %v5778 = vpow.pop %v5777
  %s5779 = vtos %v5778
  %s5780 = ssub.f32 %s5773, %s5774
  %v5781 = vstv %s5780
  %v5782 = vmul.f32 %v5781, 1.442695
  %v5783 = vpow.pop %v5782
  %s5784 = vtos %v5783
  %s5785 = sadd.f32 %s5779, %s5784
  %v5786 = vstv %s5785
  %v5787 = vrcp.pop %v5786
  %s5788 = vtos %v5787
  %s5789 = smul.f32 %s5779, %s5788
  %v5790 = vstv %s5789
  %v5791 = vmul.f32 %v5790, %v5081
  %v5792 = vmul.f32 %v5790, %v5082
  %v5793 = vmul.f32 %v5790, %v5083
  %v5794 = vmul.f32 %v5790, %v5084
  %s5795 = smul.f32 %s5784, %s5788
  %v5796 = vstv %s5795
  %v5797 = vmul.f32 %v5796, %v5562
  %v5798 = vmul.f32 %v5796, %v5563
  %v5799 = vmul.f32 %v5796, %v5564
  %v5800 = vmul.f32 %v5796, %v5565
  %v5801 = vadd.f32 %v5791, %v5797
  %v5802 = vadd.f32 %v5792, %v5798
  %v5803 = vadd.f32 %v5793, %v5799
  %v5804 = vadd.f32 %v5794, %v5800
  %v5806 = vsel %vm229, %v5802, 0
  %v5809 = vsel %vm229, %v5804, 0
  %5811 = vmatprep.subr.mxu0 %v2474
  %5812 = vmatpush1.msra.mxu0 %v2473
  %5813 = vmatprep.subr.mxu0 %v2476
  %5814 = vmatpush1.msra.mxu0 %v2475
  %5815 = vmatprep.subr.mxu0 %v2478
  %5816 = vmatpush1.msra.mxu0 %v2477
  %5817 = vmatprep.subr.mxu0 %v2480
  %5818 = vmatpush1.msra.mxu0 %v2479
  %5819 = vmatprep.subr.mxu0 %v2482
  %5820 = vmatpush1.msra.mxu0 %v2481
  %5821 = vmatprep.subr.mxu0 %v2484
  %5822 = vmatpush1.msra.mxu0 %v2483
  %5823 = vmatprep.subr.mxu0 %v2486
  %5824 = vmatpush1.msra.mxu0 %v2485
  %5825 = vmatprep.subr.mxu0 %v2488
  %5826 = vmatpush1.msra.mxu0 %v2487
  %5827 = vmatprep.subr.mxu0 %v2490
  %5828 = vmatpush1.msra.mxu0 %v2489
  %5829 = vmatprep.subr.mxu0 %v2492
  %5830 = vmatpush1.msra.mxu0 %v2491
  %5831 = vmatprep.subr.mxu0 %v2494
  %5832 = vmatpush1.msra.mxu0 %v2493
  %5833 = vmatprep.subr.mxu0 %v2496
  %5834 = vmatpush1.msra.mxu0 %v2495
  %5835 = vmatprep.subr.mxu0 %v2498
  %5836 = vmatpush1.msra.mxu0 %v2497
  %5837 = vmatprep.subr.mxu0 %v2500
  %5838 = vmatpush1.msra.mxu0 %v2499
  %5839 = vmatprep.subr.mxu0 %v2502
  %5840 = vmatpush1.msra.mxu0 %v2501
  %5841 = vmatprep.subr.mxu0 %v2504
  %5842 = vmatpush1.msra.mxu0 %v2503
  %5843 = vmatprep.subr.mxu0 %v2506
  %5844 = vmatpush1.msra.mxu0 %v2505
  %5845 = vmatprep.subr.mxu0 %v2508
  %5846 = vmatpush1.msra.mxu0 %v2507
  %5847 = vmatprep.subr.mxu0 0.0
  %5848 = vmatpush1.msra.mxu0 0.0
  %5849 = vmatprep.subr.mxu0 0.0
  %5850 = vmatpush1.msra.mxu0 0.0
  %5851 = vmatprep.subr.mxu0 0.0
  %5852 = vmatpush1.msra.mxu0 0.0
  %5853 = vmatprep.subr.mxu0 0.0
  %5854 = vmatpush1.msra.mxu0 0.0
  %5855 = vmatprep.subr.mxu0 0.0
  %5856 = vmatpush1.msra.mxu0 0.0
  %5857 = vmatprep.subr.mxu0 0.0
  %5858 = vmatpush1.msra.mxu0 0.0
  %5859 = vmatprep.subr.mxu0 0.0
  %5860 = vmatpush1.msra.mxu0 0.0
  %5861 = vmatprep.subr.mxu0 0.0
  %5862 = vmatpush1.msra.mxu0 0.0
  %5863 = vmatprep.subr.mxu0 0.0
  %5864 = vmatpush1.msra.mxu0 0.0
  %5865 = vmatprep.subr.mxu0 0.0
  %5866 = vmatpush1.msra.mxu0 0.0
  %5867 = vmatprep.subr.mxu0 0.0
  %5868 = vmatpush1.msra.mxu0 0.0
  %5869 = vmatprep.subr.mxu0 0.0
  %5870 = vmatpush1.msra.mxu0 0.0
  %5871 = vmatprep.subr.mxu0 0.0
  %5872 = vmatpush1.msra.mxu0 0.0
  %5873 = vmatprep.subr.mxu0 0.0
  %5874 = vmatpush1.msra.mxu0 0.0
  %5875 = vmatprep.mubr.f32.mxu0 %v5806
  %5876 = vmatmul.mubr.f32.gmra.mrb[0].mxu0 %v5801
  %v5877 = vpop.f32.mrb[0].mxu0
  %v5878 = vadd.f32 0.0, %v5877
  %v5879 = vpop.f32.mrb[0].mxu0
  %v5880 = vadd.f32 0.0, %v5879
  %5881 = vmatprep.mubr.f32.mxu0 %v5809
  %5882 = vmatmul.mubr.f32.gmra.mrb[0].mxu0 %v5803
  %v5883 = vpop.f32.mrb[0].mxu0
  %v5884 = vadd.f32 0.0, %v5883
  %v5885 = vpop.f32.mrb[0].mxu0
  %v5886 = vadd.f32 0.0, %v5885
  %5887 = vdwg.mxu0
  %v5889 = vsel %vm229, %v5880, 0
  %v5892 = vsel %vm229, %v5886, 0
  %5894 = vmatprep.subr.mxu0 %v5889
  %5895 = vmatpush1.xpose.msra.mxu0 %v5878
  %5896 = vmatprep.subr.mxu0 %v5892
  %5897 = vmatpush1.xpose.msra.mxu0 %v5884
  %5898 = vmatprep.subr.mxu0 0.0
  %5899 = vmatpush1.xpose.msra.mxu0 0.0
  %5900 = vmatprep.subr.mxu0 0.0
  %5901 = vmatpush1.xpose.msra.mxu0 0.0
  %5902 = vmatprep.subr.mxu0 0.0
  %5903 = vmatpush1.xpose.msra.mxu0 0.0
  %5904 = vmatprep.subr.mxu0 0.0
  %5905 = vmatpush1.xpose.msra.mxu0 0.0
  %5906 = vmatprep.subr.mxu0 0.0
  %5907 = vmatpush1.xpose.msra.mxu0 0.0
  %5908 = vmatprep.subr.mxu0 0.0
  %5909 = vmatpush1.xpose.msra.mxu0 0.0
  %5910 = vmatprep.subr.mxu0 0.0
  %5911 = vmatpush1.xpose.msra.mxu0 0.0
  %5912 = vmatprep.subr.mxu0 0.0
  %5913 = vmatpush1.xpose.msra.mxu0 0.0
  %5914 = vmatprep.subr.mxu0 0.0
  %5915 = vmatpush1.xpose.msra.mxu0 0.0
  %5916 = vmatprep.subr.mxu0 0.0
  %5917 = vmatpush1.xpose.msra.mxu0 0.0
  %5918 = vmatprep.subr.mxu0 0.0
  %5919 = vmatpush1.xpose.msra.mxu0 0.0
  %5920 = vmatprep.subr.mxu0 0.0
  %5921 = vmatpush1.xpose.msra.mxu0 0.0
  %5922 = vmatprep.subr.mxu0 0.0
  %5923 = vmatpush1.xpose.msra.mxu0 0.0
  %5924 = vmatprep.subr.mxu0 0.0
  %5925 = vmatpush1.xpose.msra.mxu0 0.0
  %5926 = vmatprep.subr.mxu0 0.0
  %5927 = vmatpush1.xpose.msra.mxu0 0.0
  %5928 = vmatprep.subr.mxu0 0.0
  %5929 = vmatpush1.xpose.msra.mxu0 0.0
  %5930 = vmatprep.subr.mxu0 0.0
  %5931 = vmatpush1.xpose.msra.mxu0 0.0
  %5932 = vmatprep.subr.mxu0 0.0
  %5933 = vmatpush1.xpose.msra.mxu0 0.0
  %5934 = vmatprep.subr.mxu0 0.0
  %5935 = vmatpush1.xpose.msra.mxu0 0.0
  %5936 = vmatprep.subr.mxu0 0.0
  %5937 = vmatpush1.xpose.msra.mxu0 0.0
  %5938 = vmatprep.subr.mxu0 0.0
  %5939 = vmatpush1.xpose.msra.mxu0 0.0
  %5940 = vmatprep.subr.mxu0 0.0
  %5941 = vmatpush1.xpose.msra.mxu0 0.0
  %5942 = vmatprep.subr.mxu0 0.0
  %5943 = vmatpush1.xpose.msra.mxu0 0.0
  %5944 = vmatprep.subr.mxu0 0.0
  %5945 = vmatpush1.xpose.msra.mxu0 0.0
  %5946 = vmatprep.subr.mxu0 0.0
  %5947 = vmatpush1.xpose.msra.mxu0 0.0
  %5948 = vmatprep.subr.mxu0 0.0
  %5949 = vmatpush1.xpose.msra.mxu0 0.0
  %5950 = vmatprep.subr.mxu0 0.0
  %5951 = vmatpush1.xpose.msra.mxu0 0.0
  %5952 = vmatprep.subr.mxu0 0.0
  %5953 = vmatpush1.xpose.msra.mxu0 0.0
  %5954 = vmatprep.subr.mxu0 0.0
  %5955 = vmatpush1.xpose.msra.mxu0 0.0
  %5956 = vmatprep.subr.mxu0 0.0
  %5957 = vmatpush1.xpose.msra.mxu0 0.0
  %5958 = vmatprep.mubr.f32.mxu0 %v2596
  %5959 = vmatmul.mubr.f32.gmra.mrb[0].mxu0 %v2593
  %v5960 = vpop.f32.mrb[0].mxu0
  %v5961 = vadd.f32 0.0, %v5960
  %v5962 = vpop.f32.mrb[0].mxu0
  %5963 = vdwg.mxu0
  %5964 = vmatprep.subr.mxu0 0.0
  %5965 = vmatpush1.msra.mxu0 %v2675
  %5966 = vmatprep.subr.mxu0 0.0
  %5967 = vmatpush1.msra.mxu0 %v2676
  %5968 = vmatprep.subr.mxu0 0.0
  %5969 = vmatpush1.msra.mxu0 %v2677
  %5970 = vmatprep.subr.mxu0 0.0
  %5971 = vmatpush1.msra.mxu0 %v2678
  %5972 = vmatprep.subr.mxu0 0.0
  %5973 = vmatpush1.msra.mxu0 %v2679
  %5974 = vmatprep.subr.mxu0 0.0
  %5975 = vmatpush1.msra.mxu0 %v2680
  %5976 = vmatprep.subr.mxu0 0.0
  %5977 = vmatpush1.msra.mxu0 %v2681
  %5978 = vmatprep.subr.mxu0 0.0
  %5979 = vmatpush1.msra.mxu0 %v2682
  %5980 = vmatprep.subr.mxu0 0.0
  %5981 = vmatpush1.msra.mxu0 %v2683
  %5982 = vmatprep.subr.mxu0 0.0
  %5983 = vmatpush1.msra.mxu0 %v2684
  %5984 = vmatprep.subr.mxu0 0.0
  %5985 = vmatpush1.msra.mxu0 %v2685
  %5986 = vmatprep.subr.mxu0 0.0
  %5987 = vmatpush1.msra.mxu0 %v2686
  %5988 = vmatprep.subr.mxu0 0.0
  %5989 = vmatpush1.msra.mxu0 %v2687
  %5990 = vmatprep.subr.mxu0 0.0
  %5991 = vmatpush1.msra.mxu0 %v2688
  %5992 = vmatprep.subr.mxu0 0.0
  %5993 = vmatpush1.msra.mxu0 %v2689
  %5994 = vmatprep.subr.mxu0 0.0
  %5995 = vmatpush1.msra.mxu0 %v2690
  %5996 = vmatprep.subr.mxu0 0.0
  %5997 = vmatpush1.msra.mxu0 %v2691
  %5998 = vmatprep.subr.mxu0 0.0
  %5999 = vmatpush1.msra.mxu0 %v2692
  %6000 = vmatprep.subr.mxu0 0.0
  %6001 = vmatpush1.msra.mxu0 0.0
  %6002 = vmatprep.subr.mxu0 0.0
  %6003 = vmatpush1.msra.mxu0 0.0
  %6004 = vmatprep.subr.mxu0 0.0
  %6005 = vmatpush1.msra.mxu0 0.0
  %6006 = vmatprep.subr.mxu0 0.0
  %6007 = vmatpush1.msra.mxu0 0.0
  %6008 = vmatprep.subr.mxu0 0.0
  %6009 = vmatpush1.msra.mxu0 0.0
  %6010 = vmatprep.subr.mxu0 0.0
  %6011 = vmatpush1.msra.mxu0 0.0
  %6012 = vmatprep.subr.mxu0 0.0
  %6013 = vmatpush1.msra.mxu0 0.0
  %6014 = vmatprep.subr.mxu0 0.0
  %6015 = vmatpush1.msra.mxu0 0.0
  %6016 = vmatprep.subr.mxu0 0.0
  %6017 = vmatpush1.msra.mxu0 0.0
  %6018 = vmatprep.subr.mxu0 0.0
  %6019 = vmatpush1.msra.mxu0 0.0
  %6020 = vmatprep.subr.mxu0 0.0
  %6021 = vmatpush1.msra.mxu0 0.0
  %6022 = vmatprep.subr.mxu0 0.0
  %6023 = vmatpush1.msra.mxu0 0.0
  %6024 = vmatprep.subr.mxu0 0.0
  %6025 = vmatpush1.msra.mxu0 0.0
  %6026 = vmatprep.subr.mxu0 0.0
  %6027 = vmatpush1.msra.mxu0 0.0
  %6028 = vmatprep.mubr.f32.mxu0 %v5889
  %6029 = vmatmul.mubr.f32.gmra.mrb[0].mxu0 %v5878
  %v6030 = vpop.f32.mrb[0].mxu0
  %v6031 = vadd.f32 0.0, %v6030
  %v6032 = vpop.f32.mrb[0].mxu0
  %6033 = vmatprep.mubr.f32.mxu0 %v5892
  %6034 = vmatmul.mubr.f32.gmra.mrb[0].mxu0 %v5884
  %v6035 = vpop.f32.mrb[0].mxu0
  %v6036 = vadd.f32 0.0, %v6035
  %v6037 = vpop.f32.mrb[0].mxu0
  %6038 = vdwg.mxu0
  %6040 = vset.pattern.permute.xlu0 0
  %6041 = vperm.xlu0 %6040, %v6031
  %v6042 = vpop.permute.xlu0 %6041
  %6045 = vset.pattern.permute.xlu0 0
  %6046 = vperm.xlu0 %6045, %v6036
  %v6047 = vpop.permute.xlu0 %6046
  %v6049 = vlaneseq
  %v6050 = vshrl.u32 %v6049, 7
  %v6051 = vsub.s32 0, %v6050
  %v6052 = vrot.slane %v5961, %v6051
  %v6053 = vadd.f32 %v6042, %v6052
  %v6054 = vadd.f32 %v6047, %v6052
  %vm6055 = vcmp.ge.f32.partialorder %v6053, 0.0
  %vm6056 = vcmp.ge.f32.partialorder %v6054, 0.0
  %v6057 = vmul.f32 %v6053, 0.2
  %v6058 = vmul.f32 %v6054, 0.2
  %v6059 = vsel %vm6055, %v6053, %v6057
  %v6060 = vsel %vm6056, %v6054, %v6058
  %v6061 = vsel %vm4607, %v6059, -1e+30
  %v6062 = vsel %vm4608, %v6060, -1e+30
  %v6063 = vsel %vm229, %v6061, -inf
  %6064 = vmax.xlane.f32.xlu0 %v6063
  %v6065 = vpop.xlane.xlu0 %6064
  %v6066 = vsel %vm229, %v6062, -inf
  %6067 = vmax.xlane.f32.xlu0 %v6066
  %v6068 = vpop.xlane.xlu0 %6067
  %v6069 = vsub.f32 %v6061, %v6065
  %v6070 = vsub.f32 %v6062, %v6068
  %v6071 = vmul.f32 %v6069, 1.442695
  %v6072 = vpow.pop %v6071
  %v6073 = vmul.f32 %v6070, 1.442695
  %v6074 = vpow.pop %v6073
  %v6075 = vsel %vm4607, %v6072, 0.0
  %v6076 = vsel %vm4608, %v6074, 0.0
  %v6077 = vsel %vm229, %v6075, 0.0
  %6078 = vadd.xlane.f32.xlu0 %v6077
  %v6079 = vpop.xlane.xlu0 %6078
  %v6080 = vsel %vm229, %v6076, 0.0
  %6081 = vadd.xlane.f32.xlu0 %v6080
  %v6082 = vpop.xlane.xlu0 %6081
  %v6083 = vrcp.pop %v6079
  %v6084 = vrcp.pop %v6082
  %v6085 = vmul.f32 %v6075, %v6083
  %v6086 = vmul.f32 %v6076, %v6084
  %v6087 = vsel %vm710, %v5878, 0.0
  %v6088 = vsel %vm711, %v5880, 0.0
  %v6089 = vsel %vm710, %v5884, 0.0
  %v6090 = vsel %vm711, %v5886, 0.0
  %v6092 = vsel %vm229, %v6085, 0
  %v6095 = vsel %vm229, %v6086, 0
  %6097 = vmatprep.subr.mxu0 %v6088
  %6098 = vmatpush1.msra.mxu0 %v6087
  %6099 = vmatprep.subr.mxu0 %v6090
  %6100 = vmatpush1.msra.mxu0 %v6089
  %6101 = vmatprep.subr.mxu0 0.0
  %6102 = vmatpush1.msra.mxu0 0.0
  %6103 = vmatprep.subr.mxu0 0.0
  %6104 = vmatpush1.msra.mxu0 0.0
  %6105 = vmatprep.subr.mxu0 0.0
  %6106 = vmatpush1.msra.mxu0 0.0
  %6107 = vmatprep.subr.mxu0 0.0
  %6108 = vmatpush1.msra.mxu0 0.0
  %6109 = vmatprep.subr.mxu0 0.0
  %6110 = vmatpush1.msra.mxu0 0.0
  %6111 = vmatprep.subr.mxu0 0.0
  %6112 = vmatpush1.msra.mxu0 0.0
  %6113 = vmatprep.subr.mxu0 0.0
  %6114 = vmatpush1.msra.mxu0 0.0
  %6115 = vmatprep.subr.mxu0 0.0
  %6116 = vmatpush1.msra.mxu0 0.0
  %6117 = vmatprep.subr.mxu0 0.0
  %6118 = vmatpush1.msra.mxu0 0.0
  %6119 = vmatprep.subr.mxu0 0.0
  %6120 = vmatpush1.msra.mxu0 0.0
  %6121 = vmatprep.subr.mxu0 0.0
  %6122 = vmatpush1.msra.mxu0 0.0
  %6123 = vmatprep.subr.mxu0 0.0
  %6124 = vmatpush1.msra.mxu0 0.0
  %6125 = vmatprep.subr.mxu0 0.0
  %6126 = vmatpush1.msra.mxu0 0.0
  %6127 = vmatprep.subr.mxu0 0.0
  %6128 = vmatpush1.msra.mxu0 0.0
  %6129 = vmatprep.subr.mxu0 0.0
  %6130 = vmatpush1.msra.mxu0 0.0
  %6131 = vmatprep.subr.mxu0 0.0
  %6132 = vmatpush1.msra.mxu0 0.0
  %6133 = vmatprep.subr.mxu0 0.0
  %6134 = vmatpush1.msra.mxu0 0.0
  %6135 = vmatprep.subr.mxu0 0.0
  %6136 = vmatpush1.msra.mxu0 0.0
  %6137 = vmatprep.subr.mxu0 0.0
  %6138 = vmatpush1.msra.mxu0 0.0
  %6139 = vmatprep.subr.mxu0 0.0
  %6140 = vmatpush1.msra.mxu0 0.0
  %6141 = vmatprep.subr.mxu0 0.0
  %6142 = vmatpush1.msra.mxu0 0.0
  %6143 = vmatprep.subr.mxu0 0.0
  %6144 = vmatpush1.msra.mxu0 0.0
  %6145 = vmatprep.subr.mxu0 0.0
  %6146 = vmatpush1.msra.mxu0 0.0
  %6147 = vmatprep.subr.mxu0 0.0
  %6148 = vmatpush1.msra.mxu0 0.0
  %6149 = vmatprep.subr.mxu0 0.0
  %6150 = vmatpush1.msra.mxu0 0.0
  %6151 = vmatprep.subr.mxu0 0.0
  %6152 = vmatpush1.msra.mxu0 0.0
  %6153 = vmatprep.subr.mxu0 0.0
  %6154 = vmatpush1.msra.mxu0 0.0
  %6155 = vmatprep.subr.mxu0 0.0
  %6156 = vmatpush1.msra.mxu0 0.0
  %6157 = vmatprep.subr.mxu0 0.0
  %6158 = vmatpush1.msra.mxu0 0.0
  %6159 = vmatprep.subr.mxu0 0.0
  %6160 = vmatpush1.msra.mxu0 0.0
  %6161 = vmatprep.mubr.f32.mxu0 0.0
  %6162 = vmatmul.mubr.f32.gmra.mrb[0].mxu0 %v6092
  %v6163 = vpop.f32.mrb[0].mxu0
  %v6164 = vadd.f32 0.0, %v6163
  %v6165 = vpop.f32.mrb[0].mxu0
  %v6166 = vadd.f32 0.0, %v6165
  %6167 = vmatprep.mubr.f32.mxu0 0.0
  %6168 = vmatmul.mubr.f32.gmra.mrb[0].mxu0 %v6095
  %v6169 = vpop.f32.mrb[0].mxu0
  %v6170 = vadd.f32 0.0, %v6169
  %v6171 = vpop.f32.mrb[0].mxu0
  %v6172 = vadd.f32 0.0, %v6171
  %6173 = vdwg.mxu0
  %v6174 = vadd.f32 %v2909, %v6164
  %v6175 = vadd.f32 %v2913, %v6166
  %v6176 = vadd.f32 %v2909, %v6170
  %v6177 = vadd.f32 %v2913, %v6172
  %6178 = vset.pattern.permute.xlu0 1
  %6179 = vperm.xlu0 %6178, %v6031
  %v6180 = vpop.permute.xlu0 %6179
  %6182 = vset.pattern.permute.xlu0 1
  %6183 = vperm.xlu0 %6182, %v6036
  %v6184 = vpop.permute.xlu0 %6183
  %v6186 = vlaneseq
  %v6187 = vshrl.u32 %v6186, 7
  %v6188 = vsub.s32 1, %v6187
  %v6189 = vrot.slane %v5961, %v6188
  %v6190 = vadd.f32 %v6180, %v6189
  %v6191 = vadd.f32 %v6184, %v6189
  %vm6192 = vcmp.ge.f32.partialorder %v6190, 0.0
  %vm6193 = vcmp.ge.f32.partialorder %v6191, 0.0
  %v6194 = vmul.f32 %v6190, 0.2
  %v6195 = vmul.f32 %v6191, 0.2
  %v6196 = vsel %vm6192, %v6190, %v6194
  %v6197 = vsel %vm6193, %v6191, %v6195
  %v6198 = vsel %vm4607, %v6196, -1e+30
  %v6199 = vsel %vm4608, %v6197, -1e+30
  %v6200 = vsel %vm229, %v6198, -inf
  %6201 = vmax.xlane.f32.xlu0 %v6200
  %v6202 = vpop.xlane.xlu0 %6201
  %v6203 = vsel %vm229, %v6199, -inf
  %6204 = vmax.xlane.f32.xlu0 %v6203
  %v6205 = vpop.xlane.xlu0 %6204
  %v6206 = vsub.f32 %v6198, %v6202
  %v6207 = vsub.f32 %v6199, %v6205
  %v6208 = vmul.f32 %v6206, 1.442695
  %v6209 = vpow.pop %v6208
  %v6210 = vmul.f32 %v6207, 1.442695
  %v6211 = vpow.pop %v6210
  %v6212 = vsel %vm4607, %v6209, 0.0
  %v6213 = vsel %vm4608, %v6211, 0.0
  %v6214 = vsel %vm229, %v6212, 0.0
  %6215 = vadd.xlane.f32.xlu0 %v6214
  %v6216 = vpop.xlane.xlu0 %6215
  %v6217 = vsel %vm229, %v6213, 0.0
  %6218 = vadd.xlane.f32.xlu0 %v6217
  %v6219 = vpop.xlane.xlu0 %6218
  %v6220 = vrcp.pop %v6216
  %v6221 = vrcp.pop %v6219
  %v6222 = vmul.f32 %v6212, %v6220
  %v6223 = vmul.f32 %v6213, %v6221
  %v6224 = vsel %vm862, %v5878, 0.0
  %v6225 = vsel %vm863, %v5880, 0.0
  %v6226 = vsel %vm862, %v5884, 0.0
  %v6227 = vsel %vm863, %v5886, 0.0
  %v6229 = vsel %vm229, %v6222, 0
  %v6232 = vsel %vm229, %v6223, 0
  %6234 = vmatprep.subr.mxu0 %v6225
  %6235 = vmatpush1.msra.mxu0 %v6224
  %6236 = vmatprep.subr.mxu0 %v6227
  %6237 = vmatpush1.msra.mxu0 %v6226
  %6238 = vmatprep.subr.mxu0 0.0
  %6239 = vmatpush1.msra.mxu0 0.0
  %6240 = vmatprep.subr.mxu0 0.0
  %6241 = vmatpush1.msra.mxu0 0.0
  %6242 = vmatprep.subr.mxu0 0.0
  %6243 = vmatpush1.msra.mxu0 0.0
  %6244 = vmatprep.subr.mxu0 0.0
  %6245 = vmatpush1.msra.mxu0 0.0
  %6246 = vmatprep.subr.mxu0 0.0
  %6247 = vmatpush1.msra.mxu0 0.0
  %6248 = vmatprep.subr.mxu0 0.0
  %6249 = vmatpush1.msra.mxu0 0.0
  %6250 = vmatprep.subr.mxu0 0.0
  %6251 = vmatpush1.msra.mxu0 0.0
  %6252 = vmatprep.subr.mxu0 0.0
  %6253 = vmatpush1.msra.mxu0 0.0
  %6254 = vmatprep.subr.mxu0 0.0
  %6255 = vmatpush1.msra.mxu0 0.0
  %6256 = vmatprep.subr.mxu0 0.0
  %6257 = vmatpush1.msra.mxu0 0.0
  %6258 = vmatprep.subr.mxu0 0.0
  %6259 = vmatpush1.msra.mxu0 0.0
  %6260 = vmatprep.subr.mxu0 0.0
  %6261 = vmatpush1.msra.mxu0 0.0
  %6262 = vmatprep.subr.mxu0 0.0
  %6263 = vmatpush1.msra.mxu0 0.0
  %6264 = vmatprep.subr.mxu0 0.0
  %6265 = vmatpush1.msra.mxu0 0.0
  %6266 = vmatprep.subr.mxu0 0.0
  %6267 = vmatpush1.msra.mxu0 0.0
  %6268 = vmatprep.subr.mxu0 0.0
  %6269 = vmatpush1.msra.mxu0 0.0
  %6270 = vmatprep.subr.mxu0 0.0
  %6271 = vmatpush1.msra.mxu0 0.0
  %6272 = vmatprep.subr.mxu0 0.0
  %6273 = vmatpush1.msra.mxu0 0.0
  %6274 = vmatprep.subr.mxu0 0.0
  %6275 = vmatpush1.msra.mxu0 0.0
  %6276 = vmatprep.subr.mxu0 0.0
  %6277 = vmatpush1.msra.mxu0 0.0
  %6278 = vmatprep.subr.mxu0 0.0
  %6279 = vmatpush1.msra.mxu0 0.0
  %6280 = vmatprep.subr.mxu0 0.0
  %6281 = vmatpush1.msra.mxu0 0.0
  %6282 = vmatprep.subr.mxu0 0.0
  %6283 = vmatpush1.msra.mxu0 0.0
  %6284 = vmatprep.subr.mxu0 0.0
  %6285 = vmatpush1.msra.mxu0 0.0
  %6286 = vmatprep.subr.mxu0 0.0
  %6287 = vmatpush1.msra.mxu0 0.0
  %6288 = vmatprep.subr.mxu0 0.0
  %6289 = vmatpush1.msra.mxu0 0.0
  %6290 = vmatprep.subr.mxu0 0.0
  %6291 = vmatpush1.msra.mxu0 0.0
  %6292 = vmatprep.subr.mxu0 0.0
  %6293 = vmatpush1.msra.mxu0 0.0
  %6294 = vmatprep.subr.mxu0 0.0
  %6295 = vmatpush1.msra.mxu0 0.0
  %6296 = vmatprep.subr.mxu0 0.0
  %6297 = vmatpush1.msra.mxu0 0.0
  %6298 = vmatprep.mubr.f32.mxu0 0.0
  %6299 = vmatmul.mubr.f32.gmra.mrb[0].mxu0 %v6229
  %v6300 = vpop.f32.mrb[0].mxu0
  %v6301 = vadd.f32 0.0, %v6300
  %v6302 = vpop.f32.mrb[0].mxu0
  %v6303 = vadd.f32 0.0, %v6302
  %6304 = vmatprep.mubr.f32.mxu0 0.0
  %6305 = vmatmul.mubr.f32.gmra.mrb[0].mxu0 %v6232
  %v6306 = vpop.f32.mrb[0].mxu0
  %v6307 = vadd.f32 0.0, %v6306
  %v6308 = vpop.f32.mrb[0].mxu0
  %v6309 = vadd.f32 0.0, %v6308
  %6310 = vdwg.mxu0
  %v6311 = vadd.f32 %v6174, %v6301
  %v6312 = vadd.f32 %v6175, %v6303
  %v6313 = vadd.f32 %v6176, %v6307
  %v6314 = vadd.f32 %v6177, %v6309
  %6315 = vset.pattern.permute.xlu0 2
  %6316 = vperm.xlu0 %6315, %v6031
  %v6317 = vpop.permute.xlu0 %6316
  %6319 = vset.pattern.permute.xlu0 2
  %6320 = vperm.xlu0 %6319, %v6036
  %v6321 = vpop.permute.xlu0 %6320
  %v6323 = vlaneseq
  %v6324 = vshrl.u32 %v6323, 7
  %v6325 = vsub.s32 2, %v6324
  %v6326 = vrot.slane %v5961, %v6325
  %v6327 = vadd.f32 %v6317, %v6326
  %v6328 = vadd.f32 %v6321, %v6326
  %vm6329 = vcmp.ge.f32.partialorder %v6327, 0.0
  %vm6330 = vcmp.ge.f32.partialorder %v6328, 0.0
  %v6331 = vmul.f32 %v6327, 0.2
  %v6332 = vmul.f32 %v6328, 0.2
  %v6333 = vsel %vm6329, %v6327, %v6331
  %v6334 = vsel %vm6330, %v6328, %v6332
  %v6335 = vsel %vm4607, %v6333, -1e+30
  %v6336 = vsel %vm4608, %v6334, -1e+30
  %v6337 = vsel %vm229, %v6335, -inf
  %6338 = vmax.xlane.f32.xlu0 %v6337
  %v6339 = vpop.xlane.xlu0 %6338
  %v6340 = vsel %vm229, %v6336, -inf
  %6341 = vmax.xlane.f32.xlu0 %v6340
  %v6342 = vpop.xlane.xlu0 %6341
  %v6343 = vsub.f32 %v6335, %v6339
  %v6344 = vsub.f32 %v6336, %v6342
  %v6345 = vmul.f32 %v6343, 1.442695
  %v6346 = vpow.pop %v6345
  %v6347 = vmul.f32 %v6344, 1.442695
  %v6348 = vpow.pop %v6347
  %v6349 = vsel %vm4607, %v6346, 0.0
  %v6350 = vsel %vm4608, %v6348, 0.0
  %v6351 = vsel %vm229, %v6349, 0.0
  %6352 = vadd.xlane.f32.xlu0 %v6351
  %v6353 = vpop.xlane.xlu0 %6352
  %v6354 = vsel %vm229, %v6350, 0.0
  %6355 = vadd.xlane.f32.xlu0 %v6354
  %v6356 = vpop.xlane.xlu0 %6355
  %v6357 = vrcp.pop %v6353
  %v6358 = vrcp.pop %v6356
  %v6359 = vmul.f32 %v6349, %v6357
  %v6360 = vmul.f32 %v6350, %v6358
  %v6361 = vsel %vm1003, %v5878, 0.0
  %v6362 = vsel %vm1004, %v5880, 0.0
  %v6363 = vsel %vm1003, %v5884, 0.0
  %v6364 = vsel %vm1004, %v5886, 0.0
  %v6366 = vsel %vm229, %v6359, 0
  %v6369 = vsel %vm229, %v6360, 0
  %6371 = vmatprep.subr.mxu0 %v6362
  %6372 = vmatpush1.msra.mxu0 %v6361
  %6373 = vmatprep.subr.mxu0 %v6364
  %6374 = vmatpush1.msra.mxu0 %v6363
  %6375 = vmatprep.subr.mxu0 0.0
  %6376 = vmatpush1.msra.mxu0 0.0
  %6377 = vmatprep.subr.mxu0 0.0
  %6378 = vmatpush1.msra.mxu0 0.0
  %6379 = vmatprep.subr.mxu0 0.0
  %6380 = vmatpush1.msra.mxu0 0.0
  %6381 = vmatprep.subr.mxu0 0.0
  %6382 = vmatpush1.msra.mxu0 0.0
  %6383 = vmatprep.subr.mxu0 0.0
  %6384 = vmatpush1.msra.mxu0 0.0
  %6385 = vmatprep.subr.mxu0 0.0
  %6386 = vmatpush1.msra.mxu0 0.0
  %6387 = vmatprep.subr.mxu0 0.0
  %6388 = vmatpush1.msra.mxu0 0.0
  %6389 = vmatprep.subr.mxu0 0.0
  %6390 = vmatpush1.msra.mxu0 0.0
  %6391 = vmatprep.subr.mxu0 0.0
  %6392 = vmatpush1.msra.mxu0 0.0
  %6393 = vmatprep.subr.mxu0 0.0
  %6394 = vmatpush1.msra.mxu0 0.0
  %6395 = vmatprep.subr.mxu0 0.0
  %6396 = vmatpush1.msra.mxu0 0.0
  %6397 = vmatprep.subr.mxu0 0.0
  %6398 = vmatpush1.msra.mxu0 0.0
  %6399 = vmatprep.subr.mxu0 0.0
  %6400 = vmatpush1.msra.mxu0 0.0
  %6401 = vmatprep.subr.mxu0 0.0
  %6402 = vmatpush1.msra.mxu0 0.0
  %6403 = vmatprep.subr.mxu0 0.0
  %6404 = vmatpush1.msra.mxu0 0.0
  %6405 = vmatprep.subr.mxu0 0.0
  %6406 = vmatpush1.msra.mxu0 0.0
  %6407 = vmatprep.subr.mxu0 0.0
  %6408 = vmatpush1.msra.mxu0 0.0
  %6409 = vmatprep.subr.mxu0 0.0
  %6410 = vmatpush1.msra.mxu0 0.0
  %6411 = vmatprep.subr.mxu0 0.0
  %6412 = vmatpush1.msra.mxu0 0.0
  %6413 = vmatprep.subr.mxu0 0.0
  %6414 = vmatpush1.msra.mxu0 0.0
  %6415 = vmatprep.subr.mxu0 0.0
  %6416 = vmatpush1.msra.mxu0 0.0
  %6417 = vmatprep.subr.mxu0 0.0
  %6418 = vmatpush1.msra.mxu0 0.0
  %6419 = vmatprep.subr.mxu0 0.0
  %6420 = vmatpush1.msra.mxu0 0.0
  %6421 = vmatprep.subr.mxu0 0.0
  %6422 = vmatpush1.msra.mxu0 0.0
  %6423 = vmatprep.subr.mxu0 0.0
  %6424 = vmatpush1.msra.mxu0 0.0
  %6425 = vmatprep.subr.mxu0 0.0
  %6426 = vmatpush1.msra.mxu0 0.0
  %6427 = vmatprep.subr.mxu0 0.0
  %6428 = vmatpush1.msra.mxu0 0.0
  %6429 = vmatprep.subr.mxu0 0.0
  %6430 = vmatpush1.msra.mxu0 0.0
  %6431 = vmatprep.subr.mxu0 0.0
  %6432 = vmatpush1.msra.mxu0 0.0
  %6433 = vmatprep.subr.mxu0 0.0
  %6434 = vmatpush1.msra.mxu0 0.0
  %6435 = vmatprep.mubr.f32.mxu0 0.0
  %6436 = vmatmul.mubr.f32.gmra.mrb[0].mxu0 %v6366
  %v6437 = vpop.f32.mrb[0].mxu0
  %v6438 = vadd.f32 0.0, %v6437
  %v6439 = vpop.f32.mrb[0].mxu0
  %v6440 = vadd.f32 0.0, %v6439
  %6441 = vmatprep.mubr.f32.mxu0 0.0
  %6442 = vmatmul.mubr.f32.gmra.mrb[0].mxu0 %v6369
  %v6443 = vpop.f32.mrb[0].mxu0
  %v6444 = vadd.f32 0.0, %v6443
  %v6445 = vpop.f32.mrb[0].mxu0
  %v6446 = vadd.f32 0.0, %v6445
  %6447 = vdwg.mxu0
  %v6448 = vadd.f32 %v6311, %v6438
  %v6449 = vadd.f32 %v6312, %v6440
  %v6450 = vadd.f32 %v6313, %v6444
  %v6451 = vadd.f32 %v6314, %v6446
  %6452 = vset.pattern.permute.xlu0 3
  %6453 = vperm.xlu0 %6452, %v6031
  %v6454 = vpop.permute.xlu0 %6453
  %6456 = vset.pattern.permute.xlu0 3
  %6457 = vperm.xlu0 %6456, %v6036
  %v6458 = vpop.permute.xlu0 %6457
  %v6460 = vlaneseq
  %v6461 = vshrl.u32 %v6460, 7
  %v6462 = vsub.s32 3, %v6461
  %v6463 = vrot.slane %v5961, %v6462
  %v6464 = vadd.f32 %v6454, %v6463
  %v6465 = vadd.f32 %v6458, %v6463
  %vm6466 = vcmp.ge.f32.partialorder %v6464, 0.0
  %vm6467 = vcmp.ge.f32.partialorder %v6465, 0.0
  %v6468 = vmul.f32 %v6464, 0.2
  %v6469 = vmul.f32 %v6465, 0.2
  %v6470 = vsel %vm6466, %v6464, %v6468
  %v6471 = vsel %vm6467, %v6465, %v6469
  %v6472 = vsel %vm4607, %v6470, -1e+30
  %v6473 = vsel %vm4608, %v6471, -1e+30
  %v6474 = vsel %vm229, %v6472, -inf
  %6475 = vmax.xlane.f32.xlu0 %v6474
  %v6476 = vpop.xlane.xlu0 %6475
  %v6477 = vsel %vm229, %v6473, -inf
  %6478 = vmax.xlane.f32.xlu0 %v6477
  %v6479 = vpop.xlane.xlu0 %6478
  %v6480 = vsub.f32 %v6472, %v6476
  %v6481 = vsub.f32 %v6473, %v6479
  %v6482 = vmul.f32 %v6480, 1.442695
  %v6483 = vpow.pop %v6482
  %v6484 = vmul.f32 %v6481, 1.442695
  %v6485 = vpow.pop %v6484
  %v6486 = vsel %vm4607, %v6483, 0.0
  %v6487 = vsel %vm4608, %v6485, 0.0
  %v6488 = vsel %vm229, %v6486, 0.0
  %6489 = vadd.xlane.f32.xlu0 %v6488
  %v6490 = vpop.xlane.xlu0 %6489
  %v6491 = vsel %vm229, %v6487, 0.0
  %6492 = vadd.xlane.f32.xlu0 %v6491
  %v6493 = vpop.xlane.xlu0 %6492
  %v6494 = vrcp.pop %v6490
  %v6495 = vrcp.pop %v6493
  %v6496 = vmul.f32 %v6486, %v6494
  %v6497 = vmul.f32 %v6487, %v6495
  %v6498 = vsel %vm1144, %v5878, 0.0
  %v6499 = vsel %vm1145, %v5880, 0.0
  %v6500 = vsel %vm1144, %v5884, 0.0
  %v6501 = vsel %vm1145, %v5886, 0.0
  %v6503 = vsel %vm229, %v6496, 0
  %v6506 = vsel %vm229, %v6497, 0
  %6508 = vmatprep.subr.mxu0 %v6499
  %6509 = vmatpush1.msra.mxu0 %v6498
  %6510 = vmatprep.subr.mxu0 %v6501
  %6511 = vmatpush1.msra.mxu0 %v6500
  %6512 = vmatprep.subr.mxu0 0.0
  %6513 = vmatpush1.msra.mxu0 0.0
  %6514 = vmatprep.subr.mxu0 0.0
  %6515 = vmatpush1.msra.mxu0 0.0
  %6516 = vmatprep.subr.mxu0 0.0
  %6517 = vmatpush1.msra.mxu0 0.0
  %6518 = vmatprep.subr.mxu0 0.0
  %6519 = vmatpush1.msra.mxu0 0.0
  %6520 = vmatprep.subr.mxu0 0.0
  %6521 = vmatpush1.msra.mxu0 0.0
  %6522 = vmatprep.subr.mxu0 0.0
  %6523 = vmatpush1.msra.mxu0 0.0
  %6524 = vmatprep.subr.mxu0 0.0
  %6525 = vmatpush1.msra.mxu0 0.0
  %6526 = vmatprep.subr.mxu0 0.0
  %6527 = vmatpush1.msra.mxu0 0.0
  %6528 = vmatprep.subr.mxu0 0.0
  %6529 = vmatpush1.msra.mxu0 0.0
  %6530 = vmatprep.subr.mxu0 0.0
  %6531 = vmatpush1.msra.mxu0 0.0
  %6532 = vmatprep.subr.mxu0 0.0
  %6533 = vmatpush1.msra.mxu0 0.0
  %6534 = vmatprep.subr.mxu0 0.0
  %6535 = vmatpush1.msra.mxu0 0.0
  %6536 = vmatprep.subr.mxu0 0.0
  %6537 = vmatpush1.msra.mxu0 0.0
  %6538 = vmatprep.subr.mxu0 0.0
  %6539 = vmatpush1.msra.mxu0 0.0
  %6540 = vmatprep.subr.mxu0 0.0
  %6541 = vmatpush1.msra.mxu0 0.0
  %6542 = vmatprep.subr.mxu0 0.0
  %6543 = vmatpush1.msra.mxu0 0.0
  %6544 = vmatprep.subr.mxu0 0.0
  %6545 = vmatpush1.msra.mxu0 0.0
  %6546 = vmatprep.subr.mxu0 0.0
  %6547 = vmatpush1.msra.mxu0 0.0
  %6548 = vmatprep.subr.mxu0 0.0
  %6549 = vmatpush1.msra.mxu0 0.0
  %6550 = vmatprep.subr.mxu0 0.0
  %6551 = vmatpush1.msra.mxu0 0.0
  %6552 = vmatprep.subr.mxu0 0.0
  %6553 = vmatpush1.msra.mxu0 0.0
  %6554 = vmatprep.subr.mxu0 0.0
  %6555 = vmatpush1.msra.mxu0 0.0
  %6556 = vmatprep.subr.mxu0 0.0
  %6557 = vmatpush1.msra.mxu0 0.0
  %6558 = vmatprep.subr.mxu0 0.0
  %6559 = vmatpush1.msra.mxu0 0.0
  %6560 = vmatprep.subr.mxu0 0.0
  %6561 = vmatpush1.msra.mxu0 0.0
  %6562 = vmatprep.subr.mxu0 0.0
  %6563 = vmatpush1.msra.mxu0 0.0
  %6564 = vmatprep.subr.mxu0 0.0
  %6565 = vmatpush1.msra.mxu0 0.0
  %6566 = vmatprep.subr.mxu0 0.0
  %6567 = vmatpush1.msra.mxu0 0.0
  %6568 = vmatprep.subr.mxu0 0.0
  %6569 = vmatpush1.msra.mxu0 0.0
  %6570 = vmatprep.subr.mxu0 0.0
  %6571 = vmatpush1.msra.mxu0 0.0
  %6572 = vmatprep.mubr.f32.mxu0 0.0
  %6573 = vmatmul.mubr.f32.gmra.mrb[0].mxu0 %v6503
  %v6574 = vpop.f32.mrb[0].mxu0
  %v6575 = vadd.f32 0.0, %v6574
  %v6576 = vpop.f32.mrb[0].mxu0
  %v6577 = vadd.f32 0.0, %v6576
  %6578 = vmatprep.mubr.f32.mxu0 0.0
  %6579 = vmatmul.mubr.f32.gmra.mrb[0].mxu0 %v6506
  %v6580 = vpop.f32.mrb[0].mxu0
  %v6581 = vadd.f32 0.0, %v6580
  %v6582 = vpop.f32.mrb[0].mxu0
  %v6583 = vadd.f32 0.0, %v6582
  %6584 = vdwg.mxu0
  %v6585 = vadd.f32 %v6448, %v6575
  %v6586 = vadd.f32 %v6449, %v6577
  %v6587 = vadd.f32 %v6450, %v6581
  %v6588 = vadd.f32 %v6451, %v6583
  %vm6589 = vcmp.gt.f32.partialorder %v6585, 0.0
  %vm6590 = vcmp.gt.f32.partialorder %v6586, 0.0
  %vm6591 = vcmp.gt.f32.partialorder %v6587, 0.0
  %vm6592 = vcmp.gt.f32.partialorder %v6588, 0.0
  %v6593 = vmin.f32 %v6585, 0.0
  %v6594 = vmin.f32 %v6586, 0.0
  %v6595 = vmin.f32 %v6587, 0.0
  %v6596 = vmin.f32 %v6588, 0.0
  %v6597 = vmul.f32 %v6593, 1.442695
  %v6598 = vpow.pop %v6597
  %v6599 = vmul.f32 %v6594, 1.442695
  %v6600 = vpow.pop %v6599
  %v6601 = vmul.f32 %v6595, 1.442695
  %v6602 = vpow.pop %v6601
  %v6603 = vmul.f32 %v6596, 1.442695
  %v6604 = vpow.pop %v6603
  %v6605 = vsub.f32 %v6598, 1.0
  %v6606 = vsub.f32 %v6600, 1.0
  %v6607 = vsub.f32 %v6602, 1.0
  %v6608 = vsub.f32 %v6604, 1.0
  %v6609 = vsel %vm6589, %v6585, %v6605
  %v6610 = vsel %vm6590, %v6586, %v6606
  %v6611 = vsel %vm6591, %v6587, %v6607
  %v6612 = vsel %vm6592, %v6588, %v6608
  %6613 = vmatprep.subr.mxu0 %v3357
  %6614 = vmatpush1.msra.mxu0 %v3356
  %6615 = vmatprep.subr.mxu0 %v3359
  %6616 = vmatpush1.msra.mxu0 %v3358
  %6617 = vmatprep.subr.mxu0 %v3361
  %6618 = vmatpush1.msra.mxu0 %v3360
  %6619 = vmatprep.subr.mxu0 %v3363
  %6620 = vmatpush1.msra.mxu0 %v3362
  %6621 = vmatprep.subr.mxu0 %v3365
  %6622 = vmatpush1.msra.mxu0 %v3364
  %6623 = vmatprep.subr.mxu0 %v3367
  %6624 = vmatpush1.msra.mxu0 %v3366
  %6625 = vmatprep.subr.mxu0 %v3369
  %6626 = vmatpush1.msra.mxu0 %v3368
  %6627 = vmatprep.subr.mxu0 %v3371
  %6628 = vmatpush1.msra.mxu0 %v3370
  %6629 = vmatprep.subr.mxu0 %v3373
  %6630 = vmatpush1.msra.mxu0 %v3372
  %6631 = vmatprep.subr.mxu0 %v3375
  %6632 = vmatpush1.msra.mxu0 %v3374
  %6633 = vmatprep.subr.mxu0 %v3377
  %6634 = vmatpush1.msra.mxu0 %v3376
  %6635 = vmatprep.subr.mxu0 %v3379
  %6636 = vmatpush1.msra.mxu0 %v3378
  %6637 = vmatprep.subr.mxu0 %v3381
  %6638 = vmatpush1.msra.mxu0 %v3380
  %6639 = vmatprep.subr.mxu0 %v3383
  %6640 = vmatpush1.msra.mxu0 %v3382
  %6641 = vmatprep.subr.mxu0 %v3385
  %6642 = vmatpush1.msra.mxu0 %v3384
  %6643 = vmatprep.subr.mxu0 %v3387
  %6644 = vmatpush1.msra.mxu0 %v3386
  %6645 = vmatprep.subr.mxu0 %v3389
  %6646 = vmatpush1.msra.mxu0 %v3388
  %6647 = vmatprep.subr.mxu0 %v3391
  %6648 = vmatpush1.msra.mxu0 %v3390
  %6649 = vmatprep.subr.mxu0 0.0
  %6650 = vmatpush1.msra.mxu0 0.0
  %6651 = vmatprep.subr.mxu0 0.0
  %6652 = vmatpush1.msra.mxu0 0.0
  %6653 = vmatprep.subr.mxu0 0.0
  %6654 = vmatpush1.msra.mxu0 0.0
  %6655 = vmatprep.subr.mxu0 0.0
  %6656 = vmatpush1.msra.mxu0 0.0
  %6657 = vmatprep.subr.mxu0 0.0
  %6658 = vmatpush1.msra.mxu0 0.0
  %6659 = vmatprep.subr.mxu0 0.0
  %6660 = vmatpush1.msra.mxu0 0.0
  %6661 = vmatprep.subr.mxu0 0.0
  %6662 = vmatpush1.msra.mxu0 0.0
  %6663 = vmatprep.subr.mxu0 0.0
  %6664 = vmatpush1.msra.mxu0 0.0
  %6665 = vmatprep.subr.mxu0 0.0
  %6666 = vmatpush1.msra.mxu0 0.0
  %6667 = vmatprep.subr.mxu0 0.0
  %6668 = vmatpush1.msra.mxu0 0.0
  %6669 = vmatprep.subr.mxu0 0.0
  %6670 = vmatpush1.msra.mxu0 0.0
  %6671 = vmatprep.subr.mxu0 0.0
  %6672 = vmatpush1.msra.mxu0 0.0
  %6673 = vmatprep.subr.mxu0 0.0
  %6674 = vmatpush1.msra.mxu0 0.0
  %6675 = vmatprep.subr.mxu0 0.0
  %6676 = vmatpush1.msra.mxu0 0.0
  %6677 = vmatprep.mubr.f32.mxu0 %v5806
  %6678 = vmatmul.mubr.f32.gmra.mrb[0].mxu0 %v5801
  %v6679 = vpop.f32.mrb[0].mxu0
  %v6680 = vadd.f32 0.0, %v6679
  %v6681 = vpop.f32.mrb[0].mxu0
  %v6682 = vadd.f32 0.0, %v6681
  %6683 = vmatprep.mubr.f32.mxu0 %v5809
  %6684 = vmatmul.mubr.f32.gmra.mrb[0].mxu0 %v5803
  %v6685 = vpop.f32.mrb[0].mxu0
  %v6686 = vadd.f32 0.0, %v6685
  %v6687 = vpop.f32.mrb[0].mxu0
  %v6688 = vadd.f32 0.0, %v6687
  %6689 = vdwg.mxu0
  %v6691 = vsel %vm229, %v6682, 0
  %v6694 = vsel %vm229, %v6688, 0
  %6696 = vmatprep.subr.mxu0 %v6691
  %6697 = vmatpush1.xpose.msra.mxu0 %v6680
  %6698 = vmatprep.subr.mxu0 %v6694
  %6699 = vmatpush1.xpose.msra.mxu0 %v6686
  %6700 = vmatprep.subr.mxu0 0.0
  %6701 = vmatpush1.xpose.msra.mxu0 0.0
  %6702 = vmatprep.subr.mxu0 0.0
  %6703 = vmatpush1.xpose.msra.mxu0 0.0
  %6704 = vmatprep.subr.mxu0 0.0
  %6705 = vmatpush1.xpose.msra.mxu0 0.0
  %6706 = vmatprep.subr.mxu0 0.0
  %6707 = vmatpush1.xpose.msra.mxu0 0.0
  %6708 = vmatprep.subr.mxu0 0.0
  %6709 = vmatpush1.xpose.msra.mxu0 0.0
  %6710 = vmatprep.subr.mxu0 0.0
  %6711 = vmatpush1.xpose.msra.mxu0 0.0
  %6712 = vmatprep.subr.mxu0 0.0
  %6713 = vmatpush1.xpose.msra.mxu0 0.0
  %6714 = vmatprep.subr.mxu0 0.0
  %6715 = vmatpush1.xpose.msra.mxu0 0.0
  %6716 = vmatprep.subr.mxu0 0.0
  %6717 = vmatpush1.xpose.msra.mxu0 0.0
  %6718 = vmatprep.subr.mxu0 0.0
  %6719 = vmatpush1.xpose.msra.mxu0 0.0
  %6720 = vmatprep.subr.mxu0 0.0
  %6721 = vmatpush1.xpose.msra.mxu0 0.0
  %6722 = vmatprep.subr.mxu0 0.0
  %6723 = vmatpush1.xpose.msra.mxu0 0.0
  %6724 = vmatprep.subr.mxu0 0.0
  %6725 = vmatpush1.xpose.msra.mxu0 0.0
  %6726 = vmatprep.subr.mxu0 0.0
  %6727 = vmatpush1.xpose.msra.mxu0 0.0
  %6728 = vmatprep.subr.mxu0 0.0
  %6729 = vmatpush1.xpose.msra.mxu0 0.0
  %6730 = vmatprep.subr.mxu0 0.0
  %6731 = vmatpush1.xpose.msra.mxu0 0.0
  %6732 = vmatprep.subr.mxu0 0.0
  %6733 = vmatpush1.xpose.msra.mxu0 0.0
  %6734 = vmatprep.subr.mxu0 0.0
  %6735 = vmatpush1.xpose.msra.mxu0 0.0
  %6736 = vmatprep.subr.mxu0 0.0
  %6737 = vmatpush1.xpose.msra.mxu0 0.0
  %6738 = vmatprep.subr.mxu0 0.0
  %6739 = vmatpush1.xpose.msra.mxu0 0.0
  %6740 = vmatprep.subr.mxu0 0.0
  %6741 = vmatpush1.xpose.msra.mxu0 0.0
  %6742 = vmatprep.subr.mxu0 0.0
  %6743 = vmatpush1.xpose.msra.mxu0 0.0
  %6744 = vmatprep.subr.mxu0 0.0
  %6745 = vmatpush1.xpose.msra.mxu0 0.0
  %6746 = vmatprep.subr.mxu0 0.0
  %6747 = vmatpush1.xpose.msra.mxu0 0.0
  %6748 = vmatprep.subr.mxu0 0.0
  %6749 = vmatpush1.xpose.msra.mxu0 0.0
  %6750 = vmatprep.subr.mxu0 0.0
  %6751 = vmatpush1.xpose.msra.mxu0 0.0
  %6752 = vmatprep.subr.mxu0 0.0
  %6753 = vmatpush1.xpose.msra.mxu0 0.0
  %6754 = vmatprep.subr.mxu0 0.0
  %6755 = vmatpush1.xpose.msra.mxu0 0.0
  %6756 = vmatprep.subr.mxu0 0.0
  %6757 = vmatpush1.xpose.msra.mxu0 0.0
  %6758 = vmatprep.subr.mxu0 0.0
  %6759 = vmatpush1.xpose.msra.mxu0 0.0
  %6760 = vmatprep.mubr.f32.mxu0 %v3473
  %6761 = vmatmul.mubr.f32.gmra.mrb[0].mxu0 %v3470
  %v6762 = vpop.f32.mrb[0].mxu0
  %v6763 = vadd.f32 0.0, %v6762
  %v6764 = vpop.f32.mrb[0].mxu0
  %6765 = vdwg.mxu0
  %6766 = vmatprep.subr.mxu0 0.0
  %6767 = vmatpush1.msra.mxu0 %v3552
  %6768 = vmatprep.subr.mxu0 0.0
  %6769 = vmatpush1.msra.mxu0 %v3553
  %6770 = vmatprep.subr.mxu0 0.0
  %6771 = vmatpush1.msra.mxu0 %v3554
  %6772 = vmatprep.subr.mxu0 0.0
  %6773 = vmatpush1.msra.mxu0 %v3555
  %6774 = vmatprep.subr.mxu0 0.0
  %6775 = vmatpush1.msra.mxu0 %v3556
  %6776 = vmatprep.subr.mxu0 0.0
  %6777 = vmatpush1.msra.mxu0 %v3557
  %6778 = vmatprep.subr.mxu0 0.0
  %6779 = vmatpush1.msra.mxu0 %v3558
  %6780 = vmatprep.subr.mxu0 0.0
  %6781 = vmatpush1.msra.mxu0 %v3559
  %6782 = vmatprep.subr.mxu0 0.0
  %6783 = vmatpush1.msra.mxu0 %v3560
  %6784 = vmatprep.subr.mxu0 0.0
  %6785 = vmatpush1.msra.mxu0 %v3561
  %6786 = vmatprep.subr.mxu0 0.0
  %6787 = vmatpush1.msra.mxu0 %v3562
  %6788 = vmatprep.subr.mxu0 0.0
  %6789 = vmatpush1.msra.mxu0 %v3563
  %6790 = vmatprep.subr.mxu0 0.0
  %6791 = vmatpush1.msra.mxu0 %v3564
  %6792 = vmatprep.subr.mxu0 0.0
  %6793 = vmatpush1.msra.mxu0 %v3565
  %6794 = vmatprep.subr.mxu0 0.0
  %6795 = vmatpush1.msra.mxu0 %v3566
  %6796 = vmatprep.subr.mxu0 0.0
  %6797 = vmatpush1.msra.mxu0 %v3567
  %6798 = vmatprep.subr.mxu0 0.0
  %6799 = vmatpush1.msra.mxu0 %v3568
  %6800 = vmatprep.subr.mxu0 0.0
  %6801 = vmatpush1.msra.mxu0 %v3569
  %6802 = vmatprep.subr.mxu0 0.0
  %6803 = vmatpush1.msra.mxu0 0.0
  %6804 = vmatprep.subr.mxu0 0.0
  %6805 = vmatpush1.msra.mxu0 0.0
  %6806 = vmatprep.subr.mxu0 0.0
  %6807 = vmatpush1.msra.mxu0 0.0
  %6808 = vmatprep.subr.mxu0 0.0
  %6809 = vmatpush1.msra.mxu0 0.0
  %6810 = vmatprep.subr.mxu0 0.0
  %6811 = vmatpush1.msra.mxu0 0.0
  %6812 = vmatprep.subr.mxu0 0.0
  %6813 = vmatpush1.msra.mxu0 0.0
  %6814 = vmatprep.subr.mxu0 0.0
  %6815 = vmatpush1.msra.mxu0 0.0
  %6816 = vmatprep.subr.mxu0 0.0
  %6817 = vmatpush1.msra.mxu0 0.0
  %6818 = vmatprep.subr.mxu0 0.0
  %6819 = vmatpush1.msra.mxu0 0.0
  %6820 = vmatprep.subr.mxu0 0.0
  %6821 = vmatpush1.msra.mxu0 0.0
  %6822 = vmatprep.subr.mxu0 0.0
  %6823 = vmatpush1.msra.mxu0 0.0
  %6824 = vmatprep.subr.mxu0 0.0
  %6825 = vmatpush1.msra.mxu0 0.0
  %6826 = vmatprep.subr.mxu0 0.0
  %6827 = vmatpush1.msra.mxu0 0.0
  %6828 = vmatprep.subr.mxu0 0.0
  %6829 = vmatpush1.msra.mxu0 0.0
  %6830 = vmatprep.mubr.f32.mxu0 %v6691
  %6831 = vmatmul.mubr.f32.gmra.mrb[0].mxu0 %v6680
  %v6832 = vpop.f32.mrb[0].mxu0
  %v6833 = vadd.f32 0.0, %v6832
  %v6834 = vpop.f32.mrb[0].mxu0
  %6835 = vmatprep.mubr.f32.mxu0 %v6694
  %6836 = vmatmul.mubr.f32.gmra.mrb[0].mxu0 %v6686
  %v6837 = vpop.f32.mrb[0].mxu0
  %v6838 = vadd.f32 0.0, %v6837
  %v6839 = vpop.f32.mrb[0].mxu0
  %6840 = vdwg.mxu0
  %6842 = vset.pattern.permute.xlu0 0
  %6843 = vperm.xlu0 %6842, %v6833
  %v6844 = vpop.permute.xlu0 %6843
  %6847 = vset.pattern.permute.xlu0 0
  %6848 = vperm.xlu0 %6847, %v6838
  %v6849 = vpop.permute.xlu0 %6848
  %v6851 = vlaneseq
  %v6852 = vshrl.u32 %v6851, 7
  %v6853 = vsub.s32 0, %v6852
  %v6854 = vrot.slane %v6763, %v6853
  %v6855 = vadd.f32 %v6844, %v6854
  %v6856 = vadd.f32 %v6849, %v6854
  %vm6857 = vcmp.ge.f32.partialorder %v6855, 0.0
  %vm6858 = vcmp.ge.f32.partialorder %v6856, 0.0
  %v6859 = vmul.f32 %v6855, 0.2
  %v6860 = vmul.f32 %v6856, 0.2
  %v6861 = vsel %vm6857, %v6855, %v6859
  %v6862 = vsel %vm6858, %v6856, %v6860
  %v6863 = vsel %vm5088, %v6861, -1e+30
  %v6864 = vsel %vm5089, %v6862, -1e+30
  %v6865 = vsel %vm229, %v6863, -inf
  %6866 = vmax.xlane.f32.xlu0 %v6865
  %v6867 = vpop.xlane.xlu0 %6866
  %v6868 = vsel %vm229, %v6864, -inf
  %6869 = vmax.xlane.f32.xlu0 %v6868
  %v6870 = vpop.xlane.xlu0 %6869
  %v6871 = vsub.f32 %v6863, %v6867
  %v6872 = vsub.f32 %v6864, %v6870
  %v6873 = vmul.f32 %v6871, 1.442695
  %v6874 = vpow.pop %v6873
  %v6875 = vmul.f32 %v6872, 1.442695
  %v6876 = vpow.pop %v6875
  %v6877 = vsel %vm5088, %v6874, 0.0
  %v6878 = vsel %vm5089, %v6876, 0.0
  %v6879 = vsel %vm229, %v6877, 0.0
  %6880 = vadd.xlane.f32.xlu0 %v6879
  %v6881 = vpop.xlane.xlu0 %6880
  %v6882 = vsel %vm229, %v6878, 0.0
  %6883 = vadd.xlane.f32.xlu0 %v6882
  %v6884 = vpop.xlane.xlu0 %6883
  %v6885 = vrcp.pop %v6881
  %v6886 = vrcp.pop %v6884
  %v6887 = vmul.f32 %v6877, %v6885
  %v6888 = vmul.f32 %v6878, %v6886
  %v6889 = vsel %vm710, %v6680, 0.0
  %v6890 = vsel %vm711, %v6682, 0.0
  %v6891 = vsel %vm710, %v6686, 0.0
  %v6892 = vsel %vm711, %v6688, 0.0
  %v6894 = vsel %vm229, %v6887, 0
  %v6897 = vsel %vm229, %v6888, 0
  %6899 = vmatprep.subr.mxu0 %v6890
  %6900 = vmatpush1.msra.mxu0 %v6889
  %6901 = vmatprep.subr.mxu0 %v6892
  %6902 = vmatpush1.msra.mxu0 %v6891
  %6903 = vmatprep.subr.mxu0 0.0
  %6904 = vmatpush1.msra.mxu0 0.0
  %6905 = vmatprep.subr.mxu0 0.0
  %6906 = vmatpush1.msra.mxu0 0.0
  %6907 = vmatprep.subr.mxu0 0.0
  %6908 = vmatpush1.msra.mxu0 0.0
  %6909 = vmatprep.subr.mxu0 0.0
  %6910 = vmatpush1.msra.mxu0 0.0
  %6911 = vmatprep.subr.mxu0 0.0
  %6912 = vmatpush1.msra.mxu0 0.0
  %6913 = vmatprep.subr.mxu0 0.0
  %6914 = vmatpush1.msra.mxu0 0.0
  %6915 = vmatprep.subr.mxu0 0.0
  %6916 = vmatpush1.msra.mxu0 0.0
  %6917 = vmatprep.subr.mxu0 0.0
  %6918 = vmatpush1.msra.mxu0 0.0
  %6919 = vmatprep.subr.mxu0 0.0
  %6920 = vmatpush1.msra.mxu0 0.0
  %6921 = vmatprep.subr.mxu0 0.0
  %6922 = vmatpush1.msra.mxu0 0.0
  %6923 = vmatprep.subr.mxu0 0.0
  %6924 = vmatpush1.msra.mxu0 0.0
  %6925 = vmatprep.subr.mxu0 0.0
  %6926 = vmatpush1.msra.mxu0 0.0
  %6927 = vmatprep.subr.mxu0 0.0
  %6928 = vmatpush1.msra.mxu0 0.0
  %6929 = vmatprep.subr.mxu0 0.0
  %6930 = vmatpush1.msra.mxu0 0.0
  %6931 = vmatprep.subr.mxu0 0.0
  %6932 = vmatpush1.msra.mxu0 0.0
  %6933 = vmatprep.subr.mxu0 0.0
  %6934 = vmatpush1.msra.mxu0 0.0
  %6935 = vmatprep.subr.mxu0 0.0
  %6936 = vmatpush1.msra.mxu0 0.0
  %6937 = vmatprep.subr.mxu0 0.0
  %6938 = vmatpush1.msra.mxu0 0.0
  %6939 = vmatprep.subr.mxu0 0.0
  %6940 = vmatpush1.msra.mxu0 0.0
  %6941 = vmatprep.subr.mxu0 0.0
  %6942 = vmatpush1.msra.mxu0 0.0
  %6943 = vmatprep.subr.mxu0 0.0
  %6944 = vmatpush1.msra.mxu0 0.0
  %6945 = vmatprep.subr.mxu0 0.0
  %6946 = vmatpush1.msra.mxu0 0.0
  %6947 = vmatprep.subr.mxu0 0.0
  %6948 = vmatpush1.msra.mxu0 0.0
  %6949 = vmatprep.subr.mxu0 0.0
  %6950 = vmatpush1.msra.mxu0 0.0
  %6951 = vmatprep.subr.mxu0 0.0
  %6952 = vmatpush1.msra.mxu0 0.0
  %6953 = vmatprep.subr.mxu0 0.0
  %6954 = vmatpush1.msra.mxu0 0.0
  %6955 = vmatprep.subr.mxu0 0.0
  %6956 = vmatpush1.msra.mxu0 0.0
  %6957 = vmatprep.subr.mxu0 0.0
  %6958 = vmatpush1.msra.mxu0 0.0
  %6959 = vmatprep.subr.mxu0 0.0
  %6960 = vmatpush1.msra.mxu0 0.0
  %6961 = vmatprep.subr.mxu0 0.0
  %6962 = vmatpush1.msra.mxu0 0.0
  %6963 = vmatprep.mubr.f32.mxu0 0.0
  %6964 = vmatmul.mubr.f32.gmra.mrb[0].mxu0 %v6894
  %v6965 = vpop.f32.mrb[0].mxu0
  %v6966 = vadd.f32 0.0, %v6965
  %v6967 = vpop.f32.mrb[0].mxu0
  %v6968 = vadd.f32 0.0, %v6967
  %6969 = vmatprep.mubr.f32.mxu0 0.0
  %6970 = vmatmul.mubr.f32.gmra.mrb[0].mxu0 %v6897
  %v6971 = vpop.f32.mrb[0].mxu0
  %v6972 = vadd.f32 0.0, %v6971
  %v6973 = vpop.f32.mrb[0].mxu0
  %v6974 = vadd.f32 0.0, %v6973
  %6975 = vdwg.mxu0
  %v6976 = vadd.f32 %v3786, %v6966
  %v6977 = vadd.f32 %v3790, %v6968
  %v6978 = vadd.f32 %v3786, %v6972
  %v6979 = vadd.f32 %v3790, %v6974
  %6980 = vset.pattern.permute.xlu0 1
  %6981 = vperm.xlu0 %6980, %v6833
  %v6982 = vpop.permute.xlu0 %6981
  %6984 = vset.pattern.permute.xlu0 1
  %6985 = vperm.xlu0 %6984, %v6838
  %v6986 = vpop.permute.xlu0 %6985
  %v6988 = vlaneseq
  %v6989 = vshrl.u32 %v6988, 7
  %v6990 = vsub.s32 1, %v6989
  %v6991 = vrot.slane %v6763, %v6990
  %v6992 = vadd.f32 %v6982, %v6991
  %v6993 = vadd.f32 %v6986, %v6991
  %vm6994 = vcmp.ge.f32.partialorder %v6992, 0.0
  %vm6995 = vcmp.ge.f32.partialorder %v6993, 0.0
  %v6996 = vmul.f32 %v6992, 0.2
  %v6997 = vmul.f32 %v6993, 0.2
  %v6998 = vsel %vm6994, %v6992, %v6996
  %v6999 = vsel %vm6995, %v6993, %v6997
  %v7000 = vsel %vm5088, %v6998, -1e+30
  %v7001 = vsel %vm5089, %v6999, -1e+30
  %v7002 = vsel %vm229, %v7000, -inf
  %7003 = vmax.xlane.f32.xlu0 %v7002
  %v7004 = vpop.xlane.xlu0 %7003
  %v7005 = vsel %vm229, %v7001, -inf
  %7006 = vmax.xlane.f32.xlu0 %v7005
  %v7007 = vpop.xlane.xlu0 %7006
  %v7008 = vsub.f32 %v7000, %v7004
  %v7009 = vsub.f32 %v7001, %v7007
  %v7010 = vmul.f32 %v7008, 1.442695
  %v7011 = vpow.pop %v7010
  %v7012 = vmul.f32 %v7009, 1.442695
  %v7013 = vpow.pop %v7012
  %v7014 = vsel %vm5088, %v7011, 0.0
  %v7015 = vsel %vm5089, %v7013, 0.0
  %v7016 = vsel %vm229, %v7014, 0.0
  %7017 = vadd.xlane.f32.xlu0 %v7016
  %v7018 = vpop.xlane.xlu0 %7017
  %v7019 = vsel %vm229, %v7015, 0.0
  %7020 = vadd.xlane.f32.xlu0 %v7019
  %v7021 = vpop.xlane.xlu0 %7020
  %v7022 = vrcp.pop %v7018
  %v7023 = vrcp.pop %v7021
  %v7024 = vmul.f32 %v7014, %v7022
  %v7025 = vmul.f32 %v7015, %v7023
  %v7026 = vsel %vm862, %v6680, 0.0
  %v7027 = vsel %vm863, %v6682, 0.0
  %v7028 = vsel %vm862, %v6686, 0.0
  %v7029 = vsel %vm863, %v6688, 0.0
  %v7031 = vsel %vm229, %v7024, 0
  %v7034 = vsel %vm229, %v7025, 0
  %7036 = vmatprep.subr.mxu0 %v7027
  %7037 = vmatpush1.msra.mxu0 %v7026
  %7038 = vmatprep.subr.mxu0 %v7029
  %7039 = vmatpush1.msra.mxu0 %v7028
  %7040 = vmatprep.subr.mxu0 0.0
  %7041 = vmatpush1.msra.mxu0 0.0
  %7042 = vmatprep.subr.mxu0 0.0
  %7043 = vmatpush1.msra.mxu0 0.0
  %7044 = vmatprep.subr.mxu0 0.0
  %7045 = vmatpush1.msra.mxu0 0.0
  %7046 = vmatprep.subr.mxu0 0.0
  %7047 = vmatpush1.msra.mxu0 0.0
  %7048 = vmatprep.subr.mxu0 0.0
  %7049 = vmatpush1.msra.mxu0 0.0
  %7050 = vmatprep.subr.mxu0 0.0
  %7051 = vmatpush1.msra.mxu0 0.0
  %7052 = vmatprep.subr.mxu0 0.0
  %7053 = vmatpush1.msra.mxu0 0.0
  %7054 = vmatprep.subr.mxu0 0.0
  %7055 = vmatpush1.msra.mxu0 0.0
  %7056 = vmatprep.subr.mxu0 0.0
  %7057 = vmatpush1.msra.mxu0 0.0
  %7058 = vmatprep.subr.mxu0 0.0
  %7059 = vmatpush1.msra.mxu0 0.0
  %7060 = vmatprep.subr.mxu0 0.0
  %7061 = vmatpush1.msra.mxu0 0.0
  %7062 = vmatprep.subr.mxu0 0.0
  %7063 = vmatpush1.msra.mxu0 0.0
  %7064 = vmatprep.subr.mxu0 0.0
  %7065 = vmatpush1.msra.mxu0 0.0
  %7066 = vmatprep.subr.mxu0 0.0
  %7067 = vmatpush1.msra.mxu0 0.0
  %7068 = vmatprep.subr.mxu0 0.0
  %7069 = vmatpush1.msra.mxu0 0.0
  %7070 = vmatprep.subr.mxu0 0.0
  %7071 = vmatpush1.msra.mxu0 0.0
  %7072 = vmatprep.subr.mxu0 0.0
  %7073 = vmatpush1.msra.mxu0 0.0
  %7074 = vmatprep.subr.mxu0 0.0
  %7075 = vmatpush1.msra.mxu0 0.0
  %7076 = vmatprep.subr.mxu0 0.0
  %7077 = vmatpush1.msra.mxu0 0.0
  %7078 = vmatprep.subr.mxu0 0.0
  %7079 = vmatpush1.msra.mxu0 0.0
  %7080 = vmatprep.subr.mxu0 0.0
  %7081 = vmatpush1.msra.mxu0 0.0
  %7082 = vmatprep.subr.mxu0 0.0
  %7083 = vmatpush1.msra.mxu0 0.0
  %7084 = vmatprep.subr.mxu0 0.0
  %7085 = vmatpush1.msra.mxu0 0.0
  %7086 = vmatprep.subr.mxu0 0.0
  %7087 = vmatpush1.msra.mxu0 0.0
  %7088 = vmatprep.subr.mxu0 0.0
  %7089 = vmatpush1.msra.mxu0 0.0
  %7090 = vmatprep.subr.mxu0 0.0
  %7091 = vmatpush1.msra.mxu0 0.0
  %7092 = vmatprep.subr.mxu0 0.0
  %7093 = vmatpush1.msra.mxu0 0.0
  %7094 = vmatprep.subr.mxu0 0.0
  %7095 = vmatpush1.msra.mxu0 0.0
  %7096 = vmatprep.subr.mxu0 0.0
  %7097 = vmatpush1.msra.mxu0 0.0
  %7098 = vmatprep.subr.mxu0 0.0
  %7099 = vmatpush1.msra.mxu0 0.0
  %7100 = vmatprep.mubr.f32.mxu0 0.0
  %7101 = vmatmul.mubr.f32.gmra.mrb[0].mxu0 %v7031
  %v7102 = vpop.f32.mrb[0].mxu0
  %v7103 = vadd.f32 0.0, %v7102
  %v7104 = vpop.f32.mrb[0].mxu0
  %v7105 = vadd.f32 0.0, %v7104
  %7106 = vmatprep.mubr.f32.mxu0 0.0
  %7107 = vmatmul.mubr.f32.gmra.mrb[0].mxu0 %v7034
  %v7108 = vpop.f32.mrb[0].mxu0
  %v7109 = vadd.f32 0.0, %v7108
  %v7110 = vpop.f32.mrb[0].mxu0
  %v7111 = vadd.f32 0.0, %v7110
  %7112 = vdwg.mxu0
  %v7113 = vadd.f32 %v6976, %v7103
  %v7114 = vadd.f32 %v6977, %v7105
  %v7115 = vadd.f32 %v6978, %v7109
  %v7116 = vadd.f32 %v6979, %v7111
  %7117 = vset.pattern.permute.xlu0 2
  %7118 = vperm.xlu0 %7117, %v6833
  %v7119 = vpop.permute.xlu0 %7118
  %7121 = vset.pattern.permute.xlu0 2
  %7122 = vperm.xlu0 %7121, %v6838
  %v7123 = vpop.permute.xlu0 %7122
  %v7125 = vlaneseq
  %v7126 = vshrl.u32 %v7125, 7
  %v7127 = vsub.s32 2, %v7126
  %v7128 = vrot.slane %v6763, %v7127
  %v7129 = vadd.f32 %v7119, %v7128
  %v7130 = vadd.f32 %v7123, %v7128
  %vm7131 = vcmp.ge.f32.partialorder %v7129, 0.0
  %vm7132 = vcmp.ge.f32.partialorder %v7130, 0.0
  %v7133 = vmul.f32 %v7129, 0.2
  %v7134 = vmul.f32 %v7130, 0.2
  %v7135 = vsel %vm7131, %v7129, %v7133
  %v7136 = vsel %vm7132, %v7130, %v7134
  %v7137 = vsel %vm5088, %v7135, -1e+30
  %v7138 = vsel %vm5089, %v7136, -1e+30
  %v7139 = vsel %vm229, %v7137, -inf
  %7140 = vmax.xlane.f32.xlu0 %v7139
  %v7141 = vpop.xlane.xlu0 %7140
  %v7142 = vsel %vm229, %v7138, -inf
  %7143 = vmax.xlane.f32.xlu0 %v7142
  %v7144 = vpop.xlane.xlu0 %7143
  %v7145 = vsub.f32 %v7137, %v7141
  %v7146 = vsub.f32 %v7138, %v7144
  %v7147 = vmul.f32 %v7145, 1.442695
  %v7148 = vpow.pop %v7147
  %v7149 = vmul.f32 %v7146, 1.442695
  %v7150 = vpow.pop %v7149
  %v7151 = vsel %vm5088, %v7148, 0.0
  %v7152 = vsel %vm5089, %v7150, 0.0
  %v7153 = vsel %vm229, %v7151, 0.0
  %7154 = vadd.xlane.f32.xlu0 %v7153
  %v7155 = vpop.xlane.xlu0 %7154
  %v7156 = vsel %vm229, %v7152, 0.0
  %7157 = vadd.xlane.f32.xlu0 %v7156
  %v7158 = vpop.xlane.xlu0 %7157
  %v7159 = vrcp.pop %v7155
  %v7160 = vrcp.pop %v7158
  %v7161 = vmul.f32 %v7151, %v7159
  %v7162 = vmul.f32 %v7152, %v7160
  %v7163 = vsel %vm1003, %v6680, 0.0
  %v7164 = vsel %vm1004, %v6682, 0.0
  %v7165 = vsel %vm1003, %v6686, 0.0
  %v7166 = vsel %vm1004, %v6688, 0.0
  %v7168 = vsel %vm229, %v7161, 0
  %v7171 = vsel %vm229, %v7162, 0
  %7173 = vmatprep.subr.mxu0 %v7164
  %7174 = vmatpush1.msra.mxu0 %v7163
  %7175 = vmatprep.subr.mxu0 %v7166
  %7176 = vmatpush1.msra.mxu0 %v7165
  %7177 = vmatprep.subr.mxu0 0.0
  %7178 = vmatpush1.msra.mxu0 0.0
  %7179 = vmatprep.subr.mxu0 0.0
  %7180 = vmatpush1.msra.mxu0 0.0
  %7181 = vmatprep.subr.mxu0 0.0
  %7182 = vmatpush1.msra.mxu0 0.0
  %7183 = vmatprep.subr.mxu0 0.0
  %7184 = vmatpush1.msra.mxu0 0.0
  %7185 = vmatprep.subr.mxu0 0.0
  %7186 = vmatpush1.msra.mxu0 0.0
  %7187 = vmatprep.subr.mxu0 0.0
  %7188 = vmatpush1.msra.mxu0 0.0
  %7189 = vmatprep.subr.mxu0 0.0
  %7190 = vmatpush1.msra.mxu0 0.0
  %7191 = vmatprep.subr.mxu0 0.0
  %7192 = vmatpush1.msra.mxu0 0.0
  %7193 = vmatprep.subr.mxu0 0.0
  %7194 = vmatpush1.msra.mxu0 0.0
  %7195 = vmatprep.subr.mxu0 0.0
  %7196 = vmatpush1.msra.mxu0 0.0
  %7197 = vmatprep.subr.mxu0 0.0
  %7198 = vmatpush1.msra.mxu0 0.0
  %7199 = vmatprep.subr.mxu0 0.0
  %7200 = vmatpush1.msra.mxu0 0.0
  %7201 = vmatprep.subr.mxu0 0.0
  %7202 = vmatpush1.msra.mxu0 0.0
  %7203 = vmatprep.subr.mxu0 0.0
  %7204 = vmatpush1.msra.mxu0 0.0
  %7205 = vmatprep.subr.mxu0 0.0
  %7206 = vmatpush1.msra.mxu0 0.0
  %7207 = vmatprep.subr.mxu0 0.0
  %7208 = vmatpush1.msra.mxu0 0.0
  %7209 = vmatprep.subr.mxu0 0.0
  %7210 = vmatpush1.msra.mxu0 0.0
  %7211 = vmatprep.subr.mxu0 0.0
  %7212 = vmatpush1.msra.mxu0 0.0
  %7213 = vmatprep.subr.mxu0 0.0
  %7214 = vmatpush1.msra.mxu0 0.0
  %7215 = vmatprep.subr.mxu0 0.0
  %7216 = vmatpush1.msra.mxu0 0.0
  %7217 = vmatprep.subr.mxu0 0.0
  %7218 = vmatpush1.msra.mxu0 0.0
  %7219 = vmatprep.subr.mxu0 0.0
  %7220 = vmatpush1.msra.mxu0 0.0
  %7221 = vmatprep.subr.mxu0 0.0
  %7222 = vmatpush1.msra.mxu0 0.0
  %7223 = vmatprep.subr.mxu0 0.0
  %7224 = vmatpush1.msra.mxu0 0.0
  %7225 = vmatprep.subr.mxu0 0.0
  %7226 = vmatpush1.msra.mxu0 0.0
  %7227 = vmatprep.subr.mxu0 0.0
  %7228 = vmatpush1.msra.mxu0 0.0
  %7229 = vmatprep.subr.mxu0 0.0
  %7230 = vmatpush1.msra.mxu0 0.0
  %7231 = vmatprep.subr.mxu0 0.0
  %7232 = vmatpush1.msra.mxu0 0.0
  %7233 = vmatprep.subr.mxu0 0.0
  %7234 = vmatpush1.msra.mxu0 0.0
  %7235 = vmatprep.subr.mxu0 0.0
  %7236 = vmatpush1.msra.mxu0 0.0
  %7237 = vmatprep.mubr.f32.mxu0 0.0
  %7238 = vmatmul.mubr.f32.gmra.mrb[0].mxu0 %v7168
  %v7239 = vpop.f32.mrb[0].mxu0
  %v7240 = vadd.f32 0.0, %v7239
  %v7241 = vpop.f32.mrb[0].mxu0
  %v7242 = vadd.f32 0.0, %v7241
  %7243 = vmatprep.mubr.f32.mxu0 0.0
  %7244 = vmatmul.mubr.f32.gmra.mrb[0].mxu0 %v7171
  %v7245 = vpop.f32.mrb[0].mxu0
  %v7246 = vadd.f32 0.0, %v7245
  %v7247 = vpop.f32.mrb[0].mxu0
  %v7248 = vadd.f32 0.0, %v7247
  %7249 = vdwg.mxu0
  %v7250 = vadd.f32 %v7113, %v7240
  %v7251 = vadd.f32 %v7114, %v7242
  %v7252 = vadd.f32 %v7115, %v7246
  %v7253 = vadd.f32 %v7116, %v7248
  %7254 = vset.pattern.permute.xlu0 3
  %7255 = vperm.xlu0 %7254, %v6833
  %v7256 = vpop.permute.xlu0 %7255
  %7258 = vset.pattern.permute.xlu0 3
  %7259 = vperm.xlu0 %7258, %v6838
  %v7260 = vpop.permute.xlu0 %7259
  %v7262 = vlaneseq
  %v7263 = vshrl.u32 %v7262, 7
  %v7264 = vsub.s32 3, %v7263
  %v7265 = vrot.slane %v6763, %v7264
  %v7266 = vadd.f32 %v7256, %v7265
  %v7267 = vadd.f32 %v7260, %v7265
  %vm7268 = vcmp.ge.f32.partialorder %v7266, 0.0
  %vm7269 = vcmp.ge.f32.partialorder %v7267, 0.0
  %v7270 = vmul.f32 %v7266, 0.2
  %v7271 = vmul.f32 %v7267, 0.2
  %v7272 = vsel %vm7268, %v7266, %v7270
  %v7273 = vsel %vm7269, %v7267, %v7271
  %v7274 = vsel %vm5088, %v7272, -1e+30
  %v7275 = vsel %vm5089, %v7273, -1e+30
  %v7276 = vsel %vm229, %v7274, -inf
  %7277 = vmax.xlane.f32.xlu0 %v7276
  %v7278 = vpop.xlane.xlu0 %7277
  %v7279 = vsel %vm229, %v7275, -inf
  %7280 = vmax.xlane.f32.xlu0 %v7279
  %v7281 = vpop.xlane.xlu0 %7280
  %v7282 = vsub.f32 %v7274, %v7278
  %v7283 = vsub.f32 %v7275, %v7281
  %v7284 = vmul.f32 %v7282, 1.442695
  %v7285 = vpow.pop %v7284
  %v7286 = vmul.f32 %v7283, 1.442695
  %v7287 = vpow.pop %v7286
  %v7288 = vsel %vm5088, %v7285, 0.0
  %v7289 = vsel %vm5089, %v7287, 0.0
  %v7290 = vsel %vm229, %v7288, 0.0
  %7291 = vadd.xlane.f32.xlu0 %v7290
  %v7292 = vpop.xlane.xlu0 %7291
  %v7293 = vsel %vm229, %v7289, 0.0
  %7294 = vadd.xlane.f32.xlu0 %v7293
  %v7295 = vpop.xlane.xlu0 %7294
  %v7296 = vrcp.pop %v7292
  %v7297 = vrcp.pop %v7295
  %v7298 = vmul.f32 %v7288, %v7296
  %v7299 = vmul.f32 %v7289, %v7297
  %v7300 = vsel %vm1144, %v6680, 0.0
  %v7301 = vsel %vm1145, %v6682, 0.0
  %v7302 = vsel %vm1144, %v6686, 0.0
  %v7303 = vsel %vm1145, %v6688, 0.0
  %v7305 = vsel %vm229, %v7298, 0
  %v7308 = vsel %vm229, %v7299, 0
  %7310 = vmatprep.subr.mxu0 %v7301
  %7311 = vmatpush1.msra.mxu0 %v7300
  %7312 = vmatprep.subr.mxu0 %v7303
  %7313 = vmatpush1.msra.mxu0 %v7302
  %7314 = vmatprep.subr.mxu0 0.0
  %7315 = vmatpush1.msra.mxu0 0.0
  %7316 = vmatprep.subr.mxu0 0.0
  %7317 = vmatpush1.msra.mxu0 0.0
  %7318 = vmatprep.subr.mxu0 0.0
  %7319 = vmatpush1.msra.mxu0 0.0
  %7320 = vmatprep.subr.mxu0 0.0
  %7321 = vmatpush1.msra.mxu0 0.0
  %7322 = vmatprep.subr.mxu0 0.0
  %7323 = vmatpush1.msra.mxu0 0.0
  %7324 = vmatprep.subr.mxu0 0.0
  %7325 = vmatpush1.msra.mxu0 0.0
  %7326 = vmatprep.subr.mxu0 0.0
  %7327 = vmatpush1.msra.mxu0 0.0
  %7328 = vmatprep.subr.mxu0 0.0
  %7329 = vmatpush1.msra.mxu0 0.0
  %7330 = vmatprep.subr.mxu0 0.0
  %7331 = vmatpush1.msra.mxu0 0.0
  %7332 = vmatprep.subr.mxu0 0.0
  %7333 = vmatpush1.msra.mxu0 0.0
  %7334 = vmatprep.subr.mxu0 0.0
  %7335 = vmatpush1.msra.mxu0 0.0
  %7336 = vmatprep.subr.mxu0 0.0
  %7337 = vmatpush1.msra.mxu0 0.0
  %7338 = vmatprep.subr.mxu0 0.0
  %7339 = vmatpush1.msra.mxu0 0.0
  %7340 = vmatprep.subr.mxu0 0.0
  %7341 = vmatpush1.msra.mxu0 0.0
  %7342 = vmatprep.subr.mxu0 0.0
  %7343 = vmatpush1.msra.mxu0 0.0
  %7344 = vmatprep.subr.mxu0 0.0
  %7345 = vmatpush1.msra.mxu0 0.0
  %7346 = vmatprep.subr.mxu0 0.0
  %7347 = vmatpush1.msra.mxu0 0.0
  %7348 = vmatprep.subr.mxu0 0.0
  %7349 = vmatpush1.msra.mxu0 0.0
  %7350 = vmatprep.subr.mxu0 0.0
  %7351 = vmatpush1.msra.mxu0 0.0
  %7352 = vmatprep.subr.mxu0 0.0
  %7353 = vmatpush1.msra.mxu0 0.0
  %7354 = vmatprep.subr.mxu0 0.0
  %7355 = vmatpush1.msra.mxu0 0.0
  %7356 = vmatprep.subr.mxu0 0.0
  %7357 = vmatpush1.msra.mxu0 0.0
  %7358 = vmatprep.subr.mxu0 0.0
  %7359 = vmatpush1.msra.mxu0 0.0
  %7360 = vmatprep.subr.mxu0 0.0
  %7361 = vmatpush1.msra.mxu0 0.0
  %7362 = vmatprep.subr.mxu0 0.0
  %7363 = vmatpush1.msra.mxu0 0.0
  %7364 = vmatprep.subr.mxu0 0.0
  %7365 = vmatpush1.msra.mxu0 0.0
  %7366 = vmatprep.subr.mxu0 0.0
  %7367 = vmatpush1.msra.mxu0 0.0
  %7368 = vmatprep.subr.mxu0 0.0
  %7369 = vmatpush1.msra.mxu0 0.0
  %7370 = vmatprep.subr.mxu0 0.0
  %7371 = vmatpush1.msra.mxu0 0.0
  %7372 = vmatprep.subr.mxu0 0.0
  %7373 = vmatpush1.msra.mxu0 0.0
  %7374 = vmatprep.mubr.f32.mxu0 0.0
  %7375 = vmatmul.mubr.f32.gmra.mrb[0].mxu0 %v7305
  %v7376 = vpop.f32.mrb[0].mxu0
  %v7377 = vadd.f32 0.0, %v7376
  %v7378 = vpop.f32.mrb[0].mxu0
  %v7379 = vadd.f32 0.0, %v7378
  %7380 = vmatprep.mubr.f32.mxu0 0.0
  %7381 = vmatmul.mubr.f32.gmra.mrb[0].mxu0 %v7308
  %v7382 = vpop.f32.mrb[0].mxu0
  %v7383 = vadd.f32 0.0, %v7382
  %v7384 = vpop.f32.mrb[0].mxu0
  %v7385 = vadd.f32 0.0, %v7384
  %7386 = vdwg.mxu0
  %v7387 = vadd.f32 %v7250, %v7377
  %v7388 = vadd.f32 %v7251, %v7379
  %v7389 = vadd.f32 %v7252, %v7383
  %v7390 = vadd.f32 %v7253, %v7385
  %vm7391 = vcmp.gt.f32.partialorder %v7387, 0.0
  %vm7392 = vcmp.gt.f32.partialorder %v7388, 0.0
  %vm7393 = vcmp.gt.f32.partialorder %v7389, 0.0
  %vm7394 = vcmp.gt.f32.partialorder %v7390, 0.0
  %v7395 = vmin.f32 %v7387, 0.0
  %v7396 = vmin.f32 %v7388, 0.0
  %v7397 = vmin.f32 %v7389, 0.0
  %v7398 = vmin.f32 %v7390, 0.0
  %v7399 = vmul.f32 %v7395, 1.442695
  %v7400 = vpow.pop %v7399
  %v7401 = vmul.f32 %v7396, 1.442695
  %v7402 = vpow.pop %v7401
  %v7403 = vmul.f32 %v7397, 1.442695
  %v7404 = vpow.pop %v7403
  %v7405 = vmul.f32 %v7398, 1.442695
  %v7406 = vpow.pop %v7405
  %v7407 = vsub.f32 %v7400, 1.0
  %v7408 = vsub.f32 %v7402, 1.0
  %v7409 = vsub.f32 %v7404, 1.0
  %v7410 = vsub.f32 %v7406, 1.0
  %v7411 = vsel %vm7391, %v7387, %v7407
  %v7412 = vsel %vm7392, %v7388, %v7408
  %v7413 = vsel %vm7393, %v7389, %v7409
  %v7414 = vsel %vm7394, %v7390, %v7410
  %v7416 = vsel %vm229, %v6610, 0
  %v7419 = vsel %vm229, %v6612, 0
  %7421 = vmatprep.subr.mxu0 0.0
  %7422 = vmatpush1.msra.mxu0 %v4233
  %7423 = vmatprep.subr.mxu0 0.0
  %7424 = vmatpush1.msra.mxu0 %v4234
  %7425 = vmatprep.subr.mxu0 0.0
  %7426 = vmatpush1.msra.mxu0 %v4235
  %7427 = vmatprep.subr.mxu0 0.0
  %7428 = vmatpush1.msra.mxu0 %v4236
  %7429 = vmatprep.subr.mxu0 0.0
  %7430 = vmatpush1.msra.mxu0 %v4237
  %7431 = vmatprep.subr.mxu0 0.0
  %7432 = vmatpush1.msra.mxu0 %v4238
  %7433 = vmatprep.subr.mxu0 0.0
  %7434 = vmatpush1.msra.mxu0 %v4239
  %7435 = vmatprep.subr.mxu0 0.0
  %7436 = vmatpush1.msra.mxu0 %v4240
  %7437 = vmatprep.subr.mxu0 0.0
  %7438 = vmatpush1.msra.mxu0 %v4241
  %7439 = vmatprep.subr.mxu0 0.0
  %7440 = vmatpush1.msra.mxu0 %v4242
  %7441 = vmatprep.subr.mxu0 0.0
  %7442 = vmatpush1.msra.mxu0 %v4243
  %7443 = vmatprep.subr.mxu0 0.0
  %7444 = vmatpush1.msra.mxu0 %v4244
  %7445 = vmatprep.subr.mxu0 0.0
  %7446 = vmatpush1.msra.mxu0 %v4245
  %7447 = vmatprep.subr.mxu0 0.0
  %7448 = vmatpush1.msra.mxu0 %v4246
  %7449 = vmatprep.subr.mxu0 0.0
  %7450 = vmatpush1.msra.mxu0 %v4247
  %7451 = vmatprep.subr.mxu0 0.0
  %7452 = vmatpush1.msra.mxu0 %v4248
  %7453 = vmatprep.subr.mxu0 0.0
  %7454 = vmatpush1.msra.mxu0 %v4249
  %7455 = vmatprep.subr.mxu0 0.0
  %7456 = vmatpush1.msra.mxu0 %v4250
  %7457 = vmatprep.subr.mxu0 0.0
  %7458 = vmatpush1.msra.mxu0 0.0
  %7459 = vmatprep.subr.mxu0 0.0
  %7460 = vmatpush1.msra.mxu0 0.0
  %7461 = vmatprep.subr.mxu0 0.0
  %7462 = vmatpush1.msra.mxu0 0.0
  %7463 = vmatprep.subr.mxu0 0.0
  %7464 = vmatpush1.msra.mxu0 0.0
  %7465 = vmatprep.subr.mxu0 0.0
  %7466 = vmatpush1.msra.mxu0 0.0
  %7467 = vmatprep.subr.mxu0 0.0
  %7468 = vmatpush1.msra.mxu0 0.0
  %7469 = vmatprep.subr.mxu0 0.0
  %7470 = vmatpush1.msra.mxu0 0.0
  %7471 = vmatprep.subr.mxu0 0.0
  %7472 = vmatpush1.msra.mxu0 0.0
  %7473 = vmatprep.subr.mxu0 0.0
  %7474 = vmatpush1.msra.mxu0 0.0
  %7475 = vmatprep.subr.mxu0 0.0
  %7476 = vmatpush1.msra.mxu0 0.0
  %7477 = vmatprep.subr.mxu0 0.0
  %7478 = vmatpush1.msra.mxu0 0.0
  %7479 = vmatprep.subr.mxu0 0.0
  %7480 = vmatpush1.msra.mxu0 0.0
  %7481 = vmatprep.subr.mxu0 0.0
  %7482 = vmatpush1.msra.mxu0 0.0
  %7483 = vmatprep.subr.mxu0 0.0
  %7484 = vmatpush1.msra.mxu0 0.0
  %7485 = vmatprep.mubr.f32.mxu0 %v7416
  %7486 = vmatmul.mubr.f32.gmra.mrb[0].mxu0 %v6609
  %v7487 = vpop.f32.mrb[0].mxu0
  %v7488 = vadd.f32 %v4256, %v7487
  %v7489 = vpop.f32.mrb[0].mxu0
  %7490 = vmatprep.mubr.f32.mxu0 %v7419
  %7491 = vmatmul.mubr.f32.gmra.mrb[0].mxu0 %v6611
  %v7492 = vpop.f32.mrb[0].mxu0
  %v7493 = vadd.f32 %v4256, %v7492
  %v7494 = vpop.f32.mrb[0].mxu0
  %7495 = vdwg.mxu0
  %v7496 = vtanh.pop %v7488
  %v7497 = vtanh.pop %v7493
  %v7498 = vmul.f32 %v7496, %v4343
  %v7499 = vmul.f32 %v7497, %v4343
  %7500 = vadd.xlane.f32.xlu0 %v7498
  %v7501 = vpop.xlane.xlu0 %7500
  %7502 = vadd.xlane.f32.xlu0 %v7499
  %v7503 = vpop.xlane.xlu0 %7502
  %v7504 = vsel %vm2322, %v7501, 0.0
  %v7505 = vsel %vm2322, %v7503, 0.0
  %v7506 = vadd.f32 %v7504, %v7505
  %7507 = vadd.xlane.f32.xlu0 %v7506
  %v7508 = vpop.xlane.xlu0 %7507
  %v7509 = vrot.slane %v7508, 4
  %v7510 = vadd.f32 %v7508, %v7509
  %v7511 = vrot.slane %v7510, 2
  %v7512 = vadd.f32 %v7510, %v7511
  %v7513 = vrot.slane %v7512, 1
  %v7514 = vadd.f32 %v7512, %v7513
  %s7515 = vtos %v7514
  %v7516 = vrcp.pop 16.0
  %s7517 = vtos %v7516
  %s7518 = smul.f32 %s7515, %s7517
  %v7520 = vsel %vm229, %v7412, 0
  %v7523 = vsel %vm229, %v7414, 0
  %7525 = vmatprep.subr.mxu0 0.0
  %7526 = vmatpush1.msra.mxu0 %v4233
  %7527 = vmatprep.subr.mxu0 0.0
  %7528 = vmatpush1.msra.mxu0 %v4234
  %7529 = vmatprep.subr.mxu0 0.0
  %7530 = vmatpush1.msra.mxu0 %v4235
  %7531 = vmatprep.subr.mxu0 0.0
  %7532 = vmatpush1.msra.mxu0 %v4236
  %7533 = vmatprep.subr.mxu0 0.0
  %7534 = vmatpush1.msra.mxu0 %v4237
  %7535 = vmatprep.subr.mxu0 0.0
  %7536 = vmatpush1.msra.mxu0 %v4238
  %7537 = vmatprep.subr.mxu0 0.0
  %7538 = vmatpush1.msra.mxu0 %v4239
  %7539 = vmatprep.subr.mxu0 0.0
  %7540 = vmatpush1.msra.mxu0 %v4240
  %7541 = vmatprep.subr.mxu0 0.0
  %7542 = vmatpush1.msra.mxu0 %v4241
  %7543 = vmatprep.subr.mxu0 0.0
  %7544 = vmatpush1.msra.mxu0 %v4242
  %7545 = vmatprep.subr.mxu0 0.0
  %7546 = vmatpush1.msra.mxu0 %v4243
  %7547 = vmatprep.subr.mxu0 0.0
  %7548 = vmatpush1.msra.mxu0 %v4244
  %7549 = vmatprep.subr.mxu0 0.0
  %7550 = vmatpush1.msra.mxu0 %v4245
  %7551 = vmatprep.subr.mxu0 0.0
  %7552 = vmatpush1.msra.mxu0 %v4246
  %7553 = vmatprep.subr.mxu0 0.0
  %7554 = vmatpush1.msra.mxu0 %v4247
  %7555 = vmatprep.subr.mxu0 0.0
  %7556 = vmatpush1.msra.mxu0 %v4248
  %7557 = vmatprep.subr.mxu0 0.0
  %7558 = vmatpush1.msra.mxu0 %v4249
  %7559 = vmatprep.subr.mxu0 0.0
  %7560 = vmatpush1.msra.mxu0 %v4250
  %7561 = vmatprep.subr.mxu0 0.0
  %7562 = vmatpush1.msra.mxu0 0.0
  %7563 = vmatprep.subr.mxu0 0.0
  %7564 = vmatpush1.msra.mxu0 0.0
  %7565 = vmatprep.subr.mxu0 0.0
  %7566 = vmatpush1.msra.mxu0 0.0
  %7567 = vmatprep.subr.mxu0 0.0
  %7568 = vmatpush1.msra.mxu0 0.0
  %7569 = vmatprep.subr.mxu0 0.0
  %7570 = vmatpush1.msra.mxu0 0.0
  %7571 = vmatprep.subr.mxu0 0.0
  %7572 = vmatpush1.msra.mxu0 0.0
  %7573 = vmatprep.subr.mxu0 0.0
  %7574 = vmatpush1.msra.mxu0 0.0
  %7575 = vmatprep.subr.mxu0 0.0
  %7576 = vmatpush1.msra.mxu0 0.0
  %7577 = vmatprep.subr.mxu0 0.0
  %7578 = vmatpush1.msra.mxu0 0.0
  %7579 = vmatprep.subr.mxu0 0.0
  %7580 = vmatpush1.msra.mxu0 0.0
  %7581 = vmatprep.subr.mxu0 0.0
  %7582 = vmatpush1.msra.mxu0 0.0
  %7583 = vmatprep.subr.mxu0 0.0
  %7584 = vmatpush1.msra.mxu0 0.0
  %7585 = vmatprep.subr.mxu0 0.0
  %7586 = vmatpush1.msra.mxu0 0.0
  %7587 = vmatprep.subr.mxu0 0.0
  %7588 = vmatpush1.msra.mxu0 0.0
  %7589 = vmatprep.mubr.f32.mxu0 %v7520
  %7590 = vmatmul.mubr.f32.gmra.mrb[0].mxu0 %v7411
  %v7591 = vpop.f32.mrb[0].mxu0
  %v7592 = vadd.f32 %v4256, %v7591
  %v7593 = vpop.f32.mrb[0].mxu0
  %7594 = vmatprep.mubr.f32.mxu0 %v7523
  %7595 = vmatmul.mubr.f32.gmra.mrb[0].mxu0 %v7413
  %v7596 = vpop.f32.mrb[0].mxu0
  %v7597 = vadd.f32 %v4256, %v7596
  %v7598 = vpop.f32.mrb[0].mxu0
  %7599 = vdwg.mxu0
  %v7600 = vtanh.pop %v7592
  %v7601 = vtanh.pop %v7597
  %v7602 = vmul.f32 %v7600, %v4343
  %v7603 = vmul.f32 %v7601, %v4343
  %7604 = vadd.xlane.f32.xlu0 %v7602
  %v7605 = vpop.xlane.xlu0 %7604
  %7606 = vadd.xlane.f32.xlu0 %v7603
  %v7607 = vpop.xlane.xlu0 %7606
  %v7608 = vsel %vm2322, %v7605, 0.0
  %v7609 = vsel %vm2322, %v7607, 0.0
  %v7610 = vadd.f32 %v7608, %v7609
  %7611 = vadd.xlane.f32.xlu0 %v7610
  %v7612 = vpop.xlane.xlu0 %7611
  %v7613 = vrot.slane %v7612, 4
  %v7614 = vadd.f32 %v7612, %v7613
  %v7615 = vrot.slane %v7614, 2
  %v7616 = vadd.f32 %v7614, %v7615
  %v7617 = vrot.slane %v7616, 1
  %v7618 = vadd.f32 %v7616, %v7617
  %s7619 = vtos %v7618
  %v7620 = vrcp.pop 16.0
  %s7621 = vtos %v7620
  %s7622 = smul.f32 %s7619, %s7621
  %s7623 = smax.f32 %s7518, %s7622
  %s7624 = ssub.f32 %s7518, %s7623
  %v7625 = vstv %s7624
  %v7626 = vmul.f32 %v7625, 1.442695
  %v7627 = vpow.pop %v7626
  %s7628 = vtos %v7627
  %s7629 = ssub.f32 %s7622, %s7623
  %v7630 = vstv %s7629
  %v7631 = vmul.f32 %v7630, 1.442695
  %v7632 = vpow.pop %v7631
  %s7633 = vtos %v7632
  %s7634 = sadd.f32 %s7628, %s7633
  %v7635 = vstv %s7634
  %v7636 = vrcp.pop %v7635
  %s7637 = vtos %v7636
  %s7638 = smul.f32 %s7628, %s7637
  %v7639 = vstv %s7638
  %v7640 = vmul.f32 %v7639, %v6609
  %v7641 = vmul.f32 %v7639, %v6610
  %v7642 = vmul.f32 %v7639, %v6611
  %v7643 = vmul.f32 %v7639, %v6612
  %s7644 = smul.f32 %s7633, %s7637
  %v7645 = vstv %s7644
  %v7646 = vmul.f32 %v7645, %v7411
  %v7647 = vmul.f32 %v7645, %v7412
  %v7648 = vmul.f32 %v7645, %v7413
  %v7649 = vmul.f32 %v7645, %v7414
  %v7650 = vadd.f32 %v7640, %v7646
  %v7651 = vadd.f32 %v7641, %v7647
  %v7652 = vadd.f32 %v7642, %v7648
  %v7653 = vadd.f32 %v7643, %v7649
  %v7655 = vsel %vm229, %v7651, 0
  %v7658 = vsel %vm229, %v7653, 0
  %7660 = vmatprep.subr.mxu0 0.0
  %7661 = vmatpush1.msra.mxu0 %v4500
  %7662 = vmatprep.subr.mxu0 0.0
  %7663 = vmatpush1.msra.mxu0 %v4501
  %7664 = vmatprep.subr.mxu0 0.0
  %7665 = vmatpush1.msra.mxu0 %v4502
  %7666 = vmatprep.subr.mxu0 0.0
  %7667 = vmatpush1.msra.mxu0 %v4503
  %7668 = vmatprep.subr.mxu0 0.0
  %7669 = vmatpush1.msra.mxu0 %v4504
  %7670 = vmatprep.subr.mxu0 0.0
  %7671 = vmatpush1.msra.mxu0 %v4505
  %7672 = vmatprep.subr.mxu0 0.0
  %7673 = vmatpush1.msra.mxu0 %v4506
  %7674 = vmatprep.subr.mxu0 0.0
  %7675 = vmatpush1.msra.mxu0 %v4507
  %7676 = vmatprep.subr.mxu0 0.0
  %7677 = vmatpush1.msra.mxu0 %v4508
  %7678 = vmatprep.subr.mxu0 0.0
  %7679 = vmatpush1.msra.mxu0 %v4509
  %7680 = vmatprep.subr.mxu0 0.0
  %7681 = vmatpush1.msra.mxu0 %v4510
  %7682 = vmatprep.subr.mxu0 0.0
  %7683 = vmatpush1.msra.mxu0 %v4511
  %7684 = vmatprep.subr.mxu0 0.0
  %7685 = vmatpush1.msra.mxu0 %v4512
  %7686 = vmatprep.subr.mxu0 0.0
  %7687 = vmatpush1.msra.mxu0 %v4513
  %7688 = vmatprep.subr.mxu0 0.0
  %7689 = vmatpush1.msra.mxu0 %v4514
  %7690 = vmatprep.subr.mxu0 0.0
  %7691 = vmatpush1.msra.mxu0 %v4515
  %7692 = vmatprep.subr.mxu0 0.0
  %7693 = vmatpush1.msra.mxu0 %v4516
  %7694 = vmatprep.subr.mxu0 0.0
  %7695 = vmatpush1.msra.mxu0 %v4517
  %7696 = vmatprep.subr.mxu0 0.0
  %7697 = vmatpush1.msra.mxu0 0.0
  %7698 = vmatprep.subr.mxu0 0.0
  %7699 = vmatpush1.msra.mxu0 0.0
  %7700 = vmatprep.subr.mxu0 0.0
  %7701 = vmatpush1.msra.mxu0 0.0
  %7702 = vmatprep.subr.mxu0 0.0
  %7703 = vmatpush1.msra.mxu0 0.0
  %7704 = vmatprep.subr.mxu0 0.0
  %7705 = vmatpush1.msra.mxu0 0.0
  %7706 = vmatprep.subr.mxu0 0.0
  %7707 = vmatpush1.msra.mxu0 0.0
  %7708 = vmatprep.subr.mxu0 0.0
  %7709 = vmatpush1.msra.mxu0 0.0
  %7710 = vmatprep.subr.mxu0 0.0
  %7711 = vmatpush1.msra.mxu0 0.0
  %7712 = vmatprep.subr.mxu0 0.0
  %7713 = vmatpush1.msra.mxu0 0.0
  %7714 = vmatprep.subr.mxu0 0.0
  %7715 = vmatpush1.msra.mxu0 0.0
  %7716 = vmatprep.subr.mxu0 0.0
  %7717 = vmatpush1.msra.mxu0 0.0
  %7718 = vmatprep.subr.mxu0 0.0
  %7719 = vmatpush1.msra.mxu0 0.0
  %7720 = vmatprep.subr.mxu0 0.0
  %7721 = vmatpush1.msra.mxu0 0.0
  %7722 = vmatprep.subr.mxu0 0.0
  %7723 = vmatpush1.msra.mxu0 0.0
  %7724 = vmatprep.mubr.f32.mxu0 %v7655
  %7725 = vmatmul.mubr.f32.gmra.mrb[0].mxu0 %v7650
  %v7726 = vpop.f32.mrb[0].mxu0
  %v7727 = vadd.f32 %v4522, %v7726
  %v7728 = vpop.f32.mrb[0].mxu0
  %7729 = vmatprep.mubr.f32.mxu0 %v7658
  %7730 = vmatmul.mubr.f32.gmra.mrb[0].mxu0 %v7652
  %v7731 = vpop.f32.mrb[0].mxu0
  %v7732 = vadd.f32 %v4522, %v7731
  %v7733 = vpop.f32.mrb[0].mxu0
  %7734 = vdwg.mxu0
  %v7735 = vld [vmem:[%s12] sm:$0xff]
  %v7736 = vld [vmem:[%s12 + $0x8] sm:$0xff]
  %v7737 = vld [vmem:[%s12 + $0x10] sm:$0xff]
  %v7738 = vld [vmem:[%s12 + $0x18] sm:$0xff]
  %v7739 = vld [vmem:[%s12 + $0x20] sm:$0xff]
  %v7740 = vld [vmem:[%s12 + $0x28] sm:$0xff]
  %v7741 = vld [vmem:[%s12 + $0x30] sm:$0xff]
  %v7742 = vld [vmem:[%s12 + $0x38] sm:$0xff]
  %v7743 = vld [vmem:[%s14 + $0x7] sm:$0x1]
  %v7744 = vld [vmem:[%s14 + $0x8] sm:$0x1]
  %v7745 = vlaneseq
  %v7746 = vshrl.u32 %v7745, 7
  %v7747 = vsub.s32 0, %v7746
  %v7748 = vrot.slane %v7743, %v7747
  %vm7749 = vcmask 523264
  %v7751 = vsel %vm7749, %v4596, 0
  %v7754 = vsel %vm7749, %v4601, 0
  %7756 = vmatprep.subr.mxu0 0.0
  %7757 = vmatpush1.msra.mxu0 %v7735
  %7758 = vmatprep.subr.mxu0 0.0
  %7759 = vmatpush1.msra.mxu0 %v7736
  %7760 = vmatprep.subr.mxu0 0.0
  %7761 = vmatpush1.msra.mxu0 %v7737
  %7762 = vmatprep.subr.mxu0 0.0
  %7763 = vmatpush1.msra.mxu0 %v7738
  %7764 = vmatprep.subr.mxu0 0.0
  %7765 = vmatpush1.msra.mxu0 %v7739
  %7766 = vmatprep.subr.mxu0 0.0
  %7767 = vmatpush1.msra.mxu0 %v7740
  %7768 = vmatprep.subr.mxu0 0.0
  %7769 = vmatpush1.msra.mxu0 %v7741
  %7770 = vmatprep.subr.mxu0 0.0
  %7771 = vmatpush1.msra.mxu0 %v7742
  %7772 = vmatprep.subr.mxu0 0.0
  %7773 = vmatpush1.msra.mxu0 0.0
  %7774 = vmatprep.subr.mxu0 0.0
  %7775 = vmatpush1.msra.mxu0 0.0
  %7776 = vmatprep.subr.mxu0 0.0
  %7777 = vmatpush1.msra.mxu0 0.0
  %7778 = vmatprep.subr.mxu0 0.0
  %7779 = vmatpush1.msra.mxu0 0.0
  %7780 = vmatprep.subr.mxu0 0.0
  %7781 = vmatpush1.msra.mxu0 0.0
  %7782 = vmatprep.subr.mxu0 0.0
  %7783 = vmatpush1.msra.mxu0 0.0
  %7784 = vmatprep.subr.mxu0 0.0
  %7785 = vmatpush1.msra.mxu0 0.0
  %7786 = vmatprep.subr.mxu0 0.0
  %7787 = vmatpush1.msra.mxu0 0.0
  %7788 = vmatprep.subr.mxu0 0.0
  %7789 = vmatpush1.msra.mxu0 0.0
  %7790 = vmatprep.subr.mxu0 0.0
  %7791 = vmatpush1.msra.mxu0 0.0
  %7792 = vmatprep.subr.mxu0 0.0
  %7793 = vmatpush1.msra.mxu0 0.0
  %7794 = vmatprep.subr.mxu0 0.0
  %7795 = vmatpush1.msra.mxu0 0.0
  %7796 = vmatprep.subr.mxu0 0.0
  %7797 = vmatpush1.msra.mxu0 0.0
  %7798 = vmatprep.subr.mxu0 0.0
  %7799 = vmatpush1.msra.mxu0 0.0
  %7800 = vmatprep.subr.mxu0 0.0
  %7801 = vmatpush1.msra.mxu0 0.0
  %7802 = vmatprep.subr.mxu0 0.0
  %7803 = vmatpush1.msra.mxu0 0.0
  %7804 = vmatprep.subr.mxu0 0.0
  %7805 = vmatpush1.msra.mxu0 0.0
  %7806 = vmatprep.subr.mxu0 0.0
  %7807 = vmatpush1.msra.mxu0 0.0
  %7808 = vmatprep.subr.mxu0 0.0
  %7809 = vmatpush1.msra.mxu0 0.0
  %7810 = vmatprep.subr.mxu0 0.0
  %7811 = vmatpush1.msra.mxu0 0.0
  %7812 = vmatprep.subr.mxu0 0.0
  %7813 = vmatpush1.msra.mxu0 0.0
  %7814 = vmatprep.subr.mxu0 0.0
  %7815 = vmatpush1.msra.mxu0 0.0
  %7816 = vmatprep.subr.mxu0 0.0
  %7817 = vmatpush1.msra.mxu0 0.0
  %7818 = vmatprep.subr.mxu0 0.0
  %7819 = vmatpush1.msra.mxu0 0.0
  %7820 = vmatprep.mubr.f32.mxu0 0.0
  %7821 = vmatmul.mubr.f32.gmra.mrb[0].mxu0 %v7751
  %v7822 = vpop.f32.mrb[0].mxu0
  %v7823 = vadd.f32 %v7748, %v7822
  %v7824 = vpop.f32.mrb[0].mxu0
  %7825 = vmatprep.mubr.f32.mxu0 0.0
  %7826 = vmatmul.mubr.f32.gmra.mrb[0].mxu0 %v7754
  %v7827 = vpop.f32.mrb[0].mxu0
  %v7828 = vadd.f32 %v7748, %v7827
  %v7829 = vpop.f32.mrb[0].mxu0
  %7830 = vdwg.mxu0
  %v7831 = vtanh.pop %v7823
  %v7832 = vtanh.pop %v7828
  %v7833 = vlaneseq
  %v7834 = vshrl.u32 %v7833, 7
  %v7835 = vsub.s32 0, %v7834
  %v7836 = vrot.slane %v7744, %v7835
  %v7837 = vmul.f32 %v7831, %v7836
  %v7838 = vmul.f32 %v7832, %v7836
  %7839 = vadd.xlane.f32.xlu0 %v7837
  %v7840 = vpop.xlane.xlu0 %7839
  %7841 = vadd.xlane.f32.xlu0 %v7838
  %v7842 = vpop.xlane.xlu0 %7841
  %v7843 = vsel %vm2322, %v7840, 0.0
  %v7844 = vsel %vm2322, %v7842, 0.0
  %v7845 = vadd.f32 %v7843, %v7844
  %7846 = vadd.xlane.f32.xlu0 %v7845
  %v7847 = vpop.xlane.xlu0 %7846
  %v7848 = vrot.slane %v7847, 4
  %v7849 = vadd.f32 %v7847, %v7848
  %v7850 = vrot.slane %v7849, 2
  %v7851 = vadd.f32 %v7849, %v7850
  %v7852 = vrot.slane %v7851, 1
  %v7853 = vadd.f32 %v7851, %v7852
  %s7854 = vtos %v7853
  %v7855 = vrcp.pop 16.0
  %s7856 = vtos %v7855
  %s7857 = smul.f32 %s7854, %s7856
  %v7859 = vsel %vm7749, %v7727, 0
  %v7862 = vsel %vm7749, %v7732, 0
  %7864 = vmatprep.subr.mxu0 0.0
  %7865 = vmatpush1.msra.mxu0 %v7735
  %7866 = vmatprep.subr.mxu0 0.0
  %7867 = vmatpush1.msra.mxu0 %v7736
  %7868 = vmatprep.subr.mxu0 0.0
  %7869 = vmatpush1.msra.mxu0 %v7737
  %7870 = vmatprep.subr.mxu0 0.0
  %7871 = vmatpush1.msra.mxu0 %v7738
  %7872 = vmatprep.subr.mxu0 0.0
  %7873 = vmatpush1.msra.mxu0 %v7739
  %7874 = vmatprep.subr.mxu0 0.0
  %7875 = vmatpush1.msra.mxu0 %v7740
  %7876 = vmatprep.subr.mxu0 0.0
  %7877 = vmatpush1.msra.mxu0 %v7741
  %7878 = vmatprep.subr.mxu0 0.0
  %7879 = vmatpush1.msra.mxu0 %v7742
  %7880 = vmatprep.subr.mxu0 0.0
  %7881 = vmatpush1.msra.mxu0 0.0
  %7882 = vmatprep.subr.mxu0 0.0
  %7883 = vmatpush1.msra.mxu0 0.0
  %7884 = vmatprep.subr.mxu0 0.0
  %7885 = vmatpush1.msra.mxu0 0.0
  %7886 = vmatprep.subr.mxu0 0.0
  %7887 = vmatpush1.msra.mxu0 0.0
  %7888 = vmatprep.subr.mxu0 0.0
  %7889 = vmatpush1.msra.mxu0 0.0
  %7890 = vmatprep.subr.mxu0 0.0
  %7891 = vmatpush1.msra.mxu0 0.0
  %7892 = vmatprep.subr.mxu0 0.0
  %7893 = vmatpush1.msra.mxu0 0.0
  %7894 = vmatprep.subr.mxu0 0.0
  %7895 = vmatpush1.msra.mxu0 0.0
  %7896 = vmatprep.subr.mxu0 0.0
  %7897 = vmatpush1.msra.mxu0 0.0
  %7898 = vmatprep.subr.mxu0 0.0
  %7899 = vmatpush1.msra.mxu0 0.0
  %7900 = vmatprep.subr.mxu0 0.0
  %7901 = vmatpush1.msra.mxu0 0.0
  %7902 = vmatprep.subr.mxu0 0.0
  %7903 = vmatpush1.msra.mxu0 0.0
  %7904 = vmatprep.subr.mxu0 0.0
  %7905 = vmatpush1.msra.mxu0 0.0
  %7906 = vmatprep.subr.mxu0 0.0
  %7907 = vmatpush1.msra.mxu0 0.0
  %7908 = vmatprep.subr.mxu0 0.0
  %7909 = vmatpush1.msra.mxu0 0.0
  %7910 = vmatprep.subr.mxu0 0.0
  %7911 = vmatpush1.msra.mxu0 0.0
  %7912 = vmatprep.subr.mxu0 0.0
  %7913 = vmatpush1.msra.mxu0 0.0
  %7914 = vmatprep.subr.mxu0 0.0
  %7915 = vmatpush1.msra.mxu0 0.0
  %7916 = vmatprep.subr.mxu0 0.0
  %7917 = vmatpush1.msra.mxu0 0.0
  %7918 = vmatprep.subr.mxu0 0.0
  %7919 = vmatpush1.msra.mxu0 0.0
  %7920 = vmatprep.subr.mxu0 0.0
  %7921 = vmatpush1.msra.mxu0 0.0
  %7922 = vmatprep.subr.mxu0 0.0
  %7923 = vmatpush1.msra.mxu0 0.0
  %7924 = vmatprep.subr.mxu0 0.0
  %7925 = vmatpush1.msra.mxu0 0.0
  %7926 = vmatprep.subr.mxu0 0.0
  %7927 = vmatpush1.msra.mxu0 0.0
  %7928 = vmatprep.mubr.f32.mxu0 0.0
  %7929 = vmatmul.mubr.f32.gmra.mrb[0].mxu0 %v7859
  %v7930 = vpop.f32.mrb[0].mxu0
  %v7931 = vadd.f32 %v7748, %v7930
  %v7932 = vpop.f32.mrb[0].mxu0
  %7933 = vmatprep.mubr.f32.mxu0 0.0
  %7934 = vmatmul.mubr.f32.gmra.mrb[0].mxu0 %v7862
  %v7935 = vpop.f32.mrb[0].mxu0
  %v7936 = vadd.f32 %v7748, %v7935
  %v7937 = vpop.f32.mrb[0].mxu0
  %7938 = vdwg.mxu0
  %v7939 = vtanh.pop %v7931
  %v7940 = vtanh.pop %v7936
  %v7941 = vmul.f32 %v7939, %v7836
  %v7942 = vmul.f32 %v7940, %v7836
  %7943 = vadd.xlane.f32.xlu0 %v7941
  %v7944 = vpop.xlane.xlu0 %7943
  %7945 = vadd.xlane.f32.xlu0 %v7942
  %v7946 = vpop.xlane.xlu0 %7945
  %v7947 = vsel %vm2322, %v7944, 0.0
  %v7948 = vsel %vm2322, %v7946, 0.0
  %v7949 = vadd.f32 %v7947, %v7948
  %7950 = vadd.xlane.f32.xlu0 %v7949
  %v7951 = vpop.xlane.xlu0 %7950
  %v7952 = vrot.slane %v7951, 4
  %v7953 = vadd.f32 %v7951, %v7952
  %v7954 = vrot.slane %v7953, 2
  %v7955 = vadd.f32 %v7953, %v7954
  %v7956 = vrot.slane %v7955, 1
  %v7957 = vadd.f32 %v7955, %v7956
  %s7958 = vtos %v7957
  %v7959 = vrcp.pop 16.0
  %s7960 = vtos %v7959
  %s7961 = smul.f32 %s7958, %s7960
  %s7962 = smax.f32 %s7857, %s7961
  %s7963 = ssub.f32 %s7857, %s7962
  %v7964 = vstv %s7963
  %v7965 = vmul.f32 %v7964, 1.442695
  %v7966 = vpow.pop %v7965
  %s7967 = vtos %v7966
  %s7968 = ssub.f32 %s7961, %s7962
  %v7969 = vstv %s7968
  %v7970 = vmul.f32 %v7969, 1.442695
  %v7971 = vpow.pop %v7970
  %s7972 = vtos %v7971
  %s7973 = sadd.f32 %s7967, %s7972
  %v7974 = vstv %s7973
  %v7975 = vrcp.pop %v7974
  %s7976 = vtos %v7975
  %s7977 = smul.f32 %s7967, %s7976
  %v7978 = vstv %s7977
  %v7979 = vmul.f32 %v7978, %v4596
  %v7980 = vmul.f32 %v7978, %v4601
  %s7981 = smul.f32 %s7972, %s7976
  %v7982 = vstv %s7981
  %v7983 = vmul.f32 %v7982, %v7727
  %v7984 = vmul.f32 %v7982, %v7732
  %v7985 = vadd.f32 %v7979, %v7983
  %v7986 = vadd.f32 %v7980, %v7984
  %v7987 = vld [vmem:[%s13] sm:$0xff]
  %v7988 = vld [vmem:[%s13 + $0x8] sm:$0xff]
  %v7989 = vld [vmem:[%s13 + $0x10] sm:$0xff]
  %v7990 = vld [vmem:[%s13 + $0x18] sm:$0xff]
  %v7991 = vld [vmem:[%s13 + $0x20] sm:$0xff]
  %v7992 = vld [vmem:[%s13 + $0x28] sm:$0xff]
  %v7993 = vld [vmem:[%s13 + $0x30] sm:$0xff]
  %v7994 = vld [vmem:[%s13 + $0x38] sm:$0xff]
  %v7995 = vld [vmem:[%s14 + $0x9] sm:$0x1]
  %v7996 = vlaneseq
  %v7997 = vshrl.u32 %v7996, 7
  %v7998 = vsub.s32 0, %v7997
  %v7999 = vrot.slane %v7995, %v7998
  %v8001 = vsel %vm7749, %v7985, 0
  %v8004 = vsel %vm7749, %v7986, 0
  %8006 = vmatprep.subr.mxu0 0.0
  %8007 = vmatpush1.msra.mxu0 %v7987
  %8008 = vmatprep.subr.mxu0 0.0
  %8009 = vmatpush1.msra.mxu0 %v7988
  %8010 = vmatprep.subr.mxu0 0.0
  %8011 = vmatpush1.msra.mxu0 %v7989
  %8012 = vmatprep.subr.mxu0 0.0
  %8013 = vmatpush1.msra.mxu0 %v7990
  %8014 = vmatprep.subr.mxu0 0.0
  %8015 = vmatpush1.msra.mxu0 %v7991
  %8016 = vmatprep.subr.mxu0 0.0
  %8017 = vmatpush1.msra.mxu0 %v7992
  %8018 = vmatprep.subr.mxu0 0.0
  %8019 = vmatpush1.msra.mxu0 %v7993
  %8020 = vmatprep.subr.mxu0 0.0
  %8021 = vmatpush1.msra.mxu0 %v7994
  %8022 = vmatprep.subr.mxu0 0.0
  %8023 = vmatpush1.msra.mxu0 0.0
  %8024 = vmatprep.subr.mxu0 0.0
  %8025 = vmatpush1.msra.mxu0 0.0
  %8026 = vmatprep.subr.mxu0 0.0
  %8027 = vmatpush1.msra.mxu0 0.0
  %8028 = vmatprep.subr.mxu0 0.0
  %8029 = vmatpush1.msra.mxu0 0.0
  %8030 = vmatprep.subr.mxu0 0.0
  %8031 = vmatpush1.msra.mxu0 0.0
  %8032 = vmatprep.subr.mxu0 0.0
  %8033 = vmatpush1.msra.mxu0 0.0
  %8034 = vmatprep.subr.mxu0 0.0
  %8035 = vmatpush1.msra.mxu0 0.0
  %8036 = vmatprep.subr.mxu0 0.0
  %8037 = vmatpush1.msra.mxu0 0.0
  %8038 = vmatprep.subr.mxu0 0.0
  %8039 = vmatpush1.msra.mxu0 0.0
  %8040 = vmatprep.subr.mxu0 0.0
  %8041 = vmatpush1.msra.mxu0 0.0
  %8042 = vmatprep.subr.mxu0 0.0
  %8043 = vmatpush1.msra.mxu0 0.0
  %8044 = vmatprep.subr.mxu0 0.0
  %8045 = vmatpush1.msra.mxu0 0.0
  %8046 = vmatprep.subr.mxu0 0.0
  %8047 = vmatpush1.msra.mxu0 0.0
  %8048 = vmatprep.subr.mxu0 0.0
  %8049 = vmatpush1.msra.mxu0 0.0
  %8050 = vmatprep.subr.mxu0 0.0
  %8051 = vmatpush1.msra.mxu0 0.0
  %8052 = vmatprep.subr.mxu0 0.0
  %8053 = vmatpush1.msra.mxu0 0.0
  %8054 = vmatprep.subr.mxu0 0.0
  %8055 = vmatpush1.msra.mxu0 0.0
  %8056 = vmatprep.subr.mxu0 0.0
  %8057 = vmatpush1.msra.mxu0 0.0
  %8058 = vmatprep.subr.mxu0 0.0
  %8059 = vmatpush1.msra.mxu0 0.0
  %8060 = vmatprep.subr.mxu0 0.0
  %8061 = vmatpush1.msra.mxu0 0.0
  %8062 = vmatprep.subr.mxu0 0.0
  %8063 = vmatpush1.msra.mxu0 0.0
  %8064 = vmatprep.subr.mxu0 0.0
  %8065 = vmatpush1.msra.mxu0 0.0
  %8066 = vmatprep.subr.mxu0 0.0
  %8067 = vmatpush1.msra.mxu0 0.0
  %8068 = vmatprep.subr.mxu0 0.0
  %8069 = vmatpush1.msra.mxu0 0.0
  %8070 = vmatprep.mubr.f32.mxu0 0.0
  %8071 = vmatmul.mubr.f32.gmra.mrb[0].mxu0 %v8001
  %v8072 = vpop.f32.mrb[0].mxu0
  %v8073 = vadd.f32 %v7999, %v8072
  %v8074 = vpop.f32.mrb[0].mxu0
  %8075 = vmatprep.mubr.f32.mxu0 0.0
  %8076 = vmatmul.mubr.f32.gmra.mrb[0].mxu0 %v8004
  %v8077 = vpop.f32.mrb[0].mxu0
  %v8078 = vadd.f32 %v7999, %v8077
  %v8079 = vpop.f32.mrb[0].mxu0
  %8080 = vdwg.mxu0
  %vm8081 = vcmask 31744
  %8082 = vst.msk [vmem:[%s15] sm:$0xff] %vm8081, %v8073
  %8083 = vst.msk [vmem:[%s15 + $0x8] sm:$0xff] %vm8081, %v8078
  // Predicated region
  $region62: #{hat_forward.1} parent=0 // pred_check
    _
  $region63: #{hat_forward.1} parent=0 // pred_check_branch
    %8085 = sbr.rel (0) target = $region65
  $region64: #{hat_forward.1} parent=0 // pred_region
    _
  $region65: #{hat_forward.1} parent=0 // pred_fallthru
    _
  // Predicated region
  $region66: #{hat_forward.1} parent=0 // pred_check
    _
  $region67: #{hat_forward.1} parent=0 // pred_check_branch
    %8087 = sbr.rel (0) target = $region69
  $region68: #{hat_forward.1} parent=0 // pred_region
    _
  $region69: #{hat_forward.1} parent=0 // pred_fallthru
    _

</llo_original>
